<compile_context>
chip_gen: v6e
topology: v6e:2x2x1
jax: 0.10.0
libtpu: 0.0.40
codegen_flags: <defaults>
</compile_context>

<pallas_src>
import math
from functools import partial
from typing import NamedTuple

import numpy as np
import jax
import jax.numpy as jnp
from jax.experimental import pallas as pl
from jax.experimental.pallas import tpu as pltpu

# ----------------------- configuration (mirrors MipNerf args) -----------------------
NUM_LEVELS = 2
NUM_SAMPLES = 8
MIN_DEG_POINT = 0
MAX_DEG_POINT = 4
DEG_VIEW = 2
APPEND_IDENTITY = True
USE_VIEWDIRS = True
DISPARITY = False
RAY_SHAPE = "cone"
DISABLE_INTEGRATION = False
DENSITY_NOISE = 0.0          # randomized=False path -> never applied
DENSITY_BIAS = -1.0
RGB_PADDING = 0.001
RESAMPLE_PADDING = 0.01
STOP_RESAMPLE_GRAD = True

NET_DEPTH = 6
NET_WIDTH = 32
NET_DEPTH_COND = 1
NET_WIDTH_COND = 32
SKIP_INDEX = 4
NUM_RGB_CHANNELS = 3
NUM_DENSITY_CHANNELS = 1

XYZ_DIM = (MAX_DEG_POINT - MIN_DEG_POINT) * 3 * 2                      # 24
VIEW_DIM = DEG_VIEW * 3 * 2 + (3 if APPEND_IDENTITY else 0)            # 15
VIEW_PAD = 16                                                          # 15 padded to 16 sublanes
F_SIN = 3 * (MAX_DEG_POINT - MIN_DEG_POINT)                            # 12 sin (and 12 cos) feats
N_HEAD = NUM_RGB_CHANNELS + NUM_DENSITY_CHANNELS                       # 4 merged output rows
SKIP_LAYERS = tuple(i for i in range(NET_DEPTH) if i > 1 and (i - 1) % SKIP_INDEX == 0)  # (5,)


class Rays(NamedTuple):
    origins: jnp.ndarray     # [B, 3]
    directions: jnp.ndarray  # [B, 3]
    viewdirs: jnp.ndarray    # [B, 3]
    radii: jnp.ndarray       # [B, 1]
    near: jnp.ndarray        # [B, 1]
    far: jnp.ndarray         # [B, 1]


# ----------------------------- parameter initialization -----------------------------
def _xavier_uniform(key, fan_in, fan_out):
    bound = math.sqrt(6.0 / (fan_in + fan_out))
    return jax.random.uniform(key, (fan_in, fan_out), jnp.float32, -bound, bound)


def _mlp_layer_dims():
    dims = []
    for i in range(NET_DEPTH):
        if i == 0:
            d_in = XYZ_DIM
        elif (i - 1) % SKIP_INDEX == 0 and i > 1:
            d_in = NET_WIDTH + XYZ_DIM
        else:
            d_in = NET_WIDTH
        dims.append((d_in, NET_WIDTH))
    dims.append((NET_WIDTH, NUM_DENSITY_CHANNELS))   # density layer
    dims.append((NET_WIDTH, NET_WIDTH))              # extra (bottleneck) layer
    for i in range(NET_DEPTH_COND):
        d_in = NET_WIDTH + VIEW_DIM if i == 0 else NET_WIDTH_COND
        dims.append((d_in, NET_WIDTH_COND))
    dims.append((NET_WIDTH_COND, NUM_RGB_CHANNELS))  # color layer
    return dims


def init_mlp_params(key):
    """Weights stored as (in, out) (transposed vs torch.nn.Linear); biases (1, out)."""
    dims = _mlp_layer_dims()
    keys = jax.random.split(key, 2 * len(dims))
    params = []
    for j, (d_in, d_out) in enumerate(dims):
        w = _xavier_uniform(keys[2 * j], d_in, d_out)
        bb = 1.0 / math.sqrt(d_in)
        b = jax.random.uniform(keys[2 * j + 1], (1, d_out), jnp.float32, -bb, bb)
        params += [w, b]
    return params


# ------------------------------ kernel parameter packing ------------------------------
def pack_params_for_kernel(params):
    """Pack the ~25 weight/bias tensors into a few resident slabs for the Pallas kernel.

    Slabs (transposed [out, in] weights, stacked on a leading axis):
      w_narrow [2+2*n_skip, 32, 12] bf16 : layer-0 sin/cos halves + per-skip-layer sin/cos halves
      w_sq     [NET_DEPTH+1, 32, 32] bf16: trunk layers 1..D-1 (h part), extra layer, view layer
                                           (bottleneck half)
      w_view   [32, 16] bf16             : view layer, view-encoding half (15 cols padded to 16)
      w_head   [2, 4, 32] bf16           : merged rgb/density head (rows 0..2 color<-hv, row 3 dens<-h)
      b_slab   [NET_DEPTH+2, 32, 1] f32  : trunk biases + extra-layer bias + view-layer bias
      b_head   [4, 1] f32                : color bias rows 0..2, density bias + DENSITY_BIAS row 3
      scl      [2, 12, 6] f32            : IPE scale-expansion matrices (y = Sy@[m;c], y_var = Sv@[m;c])
    """
    assert NET_WIDTH == NET_WIDTH_COND, "packing assumes equal trunk / view widths"
    idx = 0
    trunk_w, trunk_b = [], []
    for _ in range(NET_DEPTH):
        trunk_w.append(params[idx]); trunk_b.append(params[idx + 1]); idx += 2
    wd, bd = params[idx], params[idx + 1]; idx += 2
    we, be = params[idx], params[idx + 1]; idx += 2
    view_w, view_b = [], []
    for _ in range(NET_DEPTH_COND):
        view_w.append(params[idx]); view_b.append(params[idx + 1]); idx += 2
    wc, bc = params[idx], params[idx + 1]

    bf16 = jnp.bfloat16
    narrow = [trunk_w[0][:F_SIN].T, trunk_w[0][F_SIN:].T]          # layer 0 sin / cos halves
    square = []
    for i in range(1, NET_DEPTH):
        w = trunk_w[i]
        if i in SKIP_LAYERS:                                       # consumes cat([h, x_enc])
            square.append(w[:NET_WIDTH].T)
            wx = w[NET_WIDTH:]
            narrow += [wx[:F_SIN].T, wx[F_SIN:].T]
        else:
            square.append(w.T)
    square.append(we.T)                                            # extra (bottleneck) layer
    square.append(view_w[0][:NET_WIDTH].T)                         # view layer, bottleneck half
    # TODO(synk): NET_DEPTH_COND > 1 (extra view layers) not packed; config uses 1.

    w_narrow = jnp.stack(narrow).astype(bf16)
    w_sq = jnp.stack(square).astype(bf16)

    w_view = view_w[0][NET_WIDTH:].T                               # [32, VIEW_DIM]
    w_view = jnp.pad(w_view, ((0, 0), (0, VIEW_PAD - VIEW_DIM))).astype(bf16)   # [32, 16]

    wc4 = jnp.zeros((N_HEAD, NET_WIDTH_COND), jnp.float32).at[:NUM_RGB_CHANNELS].set(wc.T)
    wd4 = jnp.zeros((N_HEAD, NET_WIDTH), jnp.float32).at[NUM_RGB_CHANNELS:].set(wd.T)
    w_head = jnp.stack([wc4, wd4]).astype(bf16)
    b_head = jnp.concatenate([bc.T, bd.T + DENSITY_BIAS], axis=0)  # [4, 1] f32

    b_slab = jnp.stack([b.T for b in trunk_b] + [be.T, view_b[0].T])  # [NET_DEPTH+2, 32, 1] f32

    sy_m = np.zeros((F_SIN, 6), np.float32)
    sv_m = np.zeros((F_SIN, 6), np.float32)
    for d in range(MAX_DEG_POINT - MIN_DEG_POINT):
        s = 2.0 ** (MIN_DEG_POINT + d)
        for c in range(3):
            sy_m[3 * d + c, c] = s
            sv_m[3 * d + c, 3 + c] = s * s
    scl = jnp.asarray(np.stack([sy_m, sv_m]))                      # [2, 12, 6] f32

    return dict(w_narrow=w_narrow, w_sq=w_sq, w_view=w_view, w_head=w_head,
                b_slab=b_slab, b_head=b_head, scl=scl)


# --------------------------------- Pallas MLP kernel ---------------------------------
def _softplus_k(x):
    # numerically-safe softplus using only exp/log/abs/max (Mosaic-friendly, EUP ops)
    return jnp.maximum(x, 0.0) + jnp.log(1.0 + jnp.exp(-jnp.abs(x)))


def mipnerf_mlp_kernel(mc_ref, ve_ref, scl_ref, wn_ref, wsq_ref, wv_ref, wh_ref,
                       b_ref, bh_ref, out_ref):
    """Fused mip-NeRF sample pipeline on a [*, tm] transposed tile:
    IPE (sin/cos/exp) -> trunk MLP with skip -> density head -> bottleneck -> view-conditioned
    color head -> rgb/density activations, written as one lane-dense [4, tm] slab."""
    f32, bf16 = jnp.float32, jnp.bfloat16

    def mm(w, h):
        return jnp.dot(w, h, preferred_element_type=f32)

    # ----- integrated positional encoding (scale expansion via tiny matmuls, no concat) -----
    mc = mc_ref[...]                                   # [6, tm] f32 (means rows 0..2, covs 3..5)
    y = mm(scl_ref[0], mc)                             # [12, tm]
    yv = mm(scl_ref[1], mc)                            # [12, tm]
    es = jnp.exp(-0.5 * yv)
    sy = (es * jnp.sin(y)).astype(bf16)                # sin half of the 24-dim encoding
    cy = (es * jnp.cos(y)).astype(bf16)                # cos half (sin(y + pi/2))

    # ----- trunk MLP (split matmuls realize the torch-side concats, no lane/sublane concat) -----
    h = jnp.maximum(mm(wn_ref[0], sy) + mm(wn_ref[1], cy) + b_ref[0], 0.0)
    n_skip = 0
    for i in range(1, NET_DEPTH):
        z = mm(wsq_ref[i - 1], h.astype(bf16)) + b_ref[i]
        if i in SKIP_LAYERS:
            z = z + mm(wn_ref[2 + 2 * n_skip], sy) + mm(wn_ref[3 + 2 * n_skip], cy)
            n_skip += 1
        h = jnp.maximum(z, 0.0)
    hb = h.astype(bf16)

    # ----- bottleneck + view-conditioned layer (view encoding streamed, projected in-kernel) -----
    bott = mm(wsq_ref[NET_DEPTH - 1], hb) + b_ref[NET_DEPTH]
    hv = jnp.maximum(mm(wsq_ref[NET_DEPTH], bott.astype(bf16))
                     + mm(wv_ref[...], ve_ref[...])
                     + b_ref[NET_DEPTH + 1], 0.0)
    # TODO(synk): NET_DEPTH_COND > 1 would need additional view layers here (config uses 1).

    # ----- merged head: rows 0..2 raw_rgb (from hv), row 3 raw_density (from trunk h) -----
    raw = mm(wh_ref[0], hv.astype(bf16)) + mm(wh_ref[1], hb) + bh_ref[...]
    sp = _softplus_k(raw)                              # density bias already folded into bh row 3
    row = jax.lax.broadcasted_iota(jnp.int32, sp.shape, 0)
    out = jnp.where(row < NUM_RGB_CHANNELS,
                    sp * (1.0 + 2.0 * RGB_PADDING) - RGB_PADDING,   # rgb activation + padding
                    sp)                                             # density activation
    out_ref[...] = out.astype(out_ref.dtype)


def mlp_pallas(kp, means, covs, viewdirs_enc, *, tile_m=1024):
    """means/covs: [B, S, 3] f32, viewdirs_enc: [B, VIEW_DIM] f32 -> (rgb [B,S,3], density [B,S,1]).

    Wrapper does layout plumbing only: broadcast of the per-ray view encoding, transpose to the
    feature-on-sublane layout, lane padding to a multiple of the tile, and the inverse on output.
    """
    B, S, _ = means.shape
    N = B * S
    n_min = ((N + 127) // 128) * 128
    if n_min <= tile_m:                      # single tile, no over-padding for small batches
        tm, n_tiles = n_min, 1
    else:
        tm = tile_m
        n_tiles = pl.cdiv(N, tm)
    assert tm % 128 == 0
    n_pad = n_tiles * tm

    mc = jnp.concatenate([means.reshape(N, 3), covs.reshape(N, 3)], axis=-1)   # [N, 6]
    mc_t = jnp.pad(mc.T, ((0, 0), (0, n_pad - N)))                             # [6, Npad] f32

    ve = jnp.broadcast_to(viewdirs_enc[:, None, :], (B, S, VIEW_DIM)).reshape(N, VIEW_DIM)
    ve_t = jnp.pad(ve.T.astype(jnp.bfloat16),
                   ((0, VIEW_PAD - VIEW_DIM), (0, n_pad - N)))                 # [16, Npad] bf16

    # advisory cost estimate for the XLA scheduler
    mm_flops = (2 * (2 * F_SIN * 6)                          # IPE scale expansion
                + 2 * (2 * NET_WIDTH * F_SIN)                # trunk layer 0 (sin + cos halves)
                + (NET_DEPTH - 1) * 2 * NET_WIDTH * NET_WIDTH
                + len(SKIP_LAYERS) * 2 * (2 * NET_WIDTH * F_SIN)
                + 2 * NET_WIDTH * NET_WIDTH                  # extra (bottleneck) layer
                + 2 * NET_WIDTH_COND * NET_WIDTH             # view layer, bottleneck half
                + 2 * NET_WIDTH_COND * VIEW_PAD              # view layer, encoding half
                + 2 * (2 * N_HEAD * NET_WIDTH))              # merged head
    param_bytes = sum(int(np.prod(kp[k].shape)) * kp[k].dtype.itemsize
                      for k in ("w_narrow", "w_sq", "w_view", "w_head", "b_slab", "b_head", "scl"))
    cost = pl.CostEstimate(
        flops=mm_flops * n_pad,
        transcendentals=(3 * F_SIN + 2 * N_HEAD) * n_pad,
        bytes_accessed=n_pad * (6 * 4 + VIEW_PAD * 2 + N_HEAD * 4) + param_bytes,
    )

    in_specs = [
        pl.BlockSpec((6, tm), lambda i: (0, i)),                       # streamed means/covs
        pl.BlockSpec((VIEW_PAD, tm), lambda i: (0, i)),                # streamed view encoding
        pl.BlockSpec(kp["scl"].shape, lambda i: (0, 0, 0)),            # resident slabs below
        pl.BlockSpec(kp["w_narrow"].shape, lambda i: (0, 0, 0)),
        pl.BlockSpec(kp["w_sq"].shape, lambda i: (0, 0, 0)),
        pl.BlockSpec(kp["w_view"].shape, lambda i: (0, 0)),
        pl.BlockSpec(kp["w_head"].shape, lambda i: (0, 0, 0)),
        pl.BlockSpec(kp["b_slab"].shape, lambda i: (0, 0, 0)),
        pl.BlockSpec(kp["b_head"].shape, lambda i: (0, 0)),
    ]
    out_spec = pl.BlockSpec((N_HEAD, tm), lambda i: (0, i))

    out = pl.pallas_call(
        mipnerf_mlp_kernel,
        out_shape=jax.ShapeDtypeStruct((N_HEAD, n_pad), jnp.float32),
        grid_spec=pltpu.PrefetchScalarGridSpec(
            num_scalar_prefetch=0,
            grid=(n_tiles,),
            in_specs=in_specs,
            out_specs=out_spec,
        ),
        compiler_params=pltpu.CompilerParams(dimension_semantics=("parallel",)),
        cost_estimate=cost,
    )(mc_t, ve_t, kp["scl"], kp["w_narrow"], kp["w_sq"], kp["w_view"], kp["w_head"],
      kp["b_slab"], kp["b_head"])

    out = out[:, :N].T                                                     # [N, 4]
    rgb = out[:, :NUM_RGB_CHANNELS].reshape(B, S, NUM_RGB_CHANNELS)
    density = out[:, NUM_RGB_CHANNELS:].reshape(B, S, NUM_DENSITY_CHANNELS)
    return rgb, density


# ------------------------------ plain-JAX reference MLP ------------------------------
def mlp_reference(params, samples_enc, viewdirs_enc):
    B, S, _ = samples_enc.shape
    x = samples_enc
    inputs = x
    idx = 0
    for i in range(NET_DEPTH):
        w, b = params[idx], params[idx + 1]
        idx += 2
        x = jnp.maximum(jnp.einsum("bsf,fo->bso", x, w) + b, 0.0)
        if i % SKIP_INDEX == 0 and i > 0:
            x = jnp.concatenate([x, inputs], axis=-1)
    wd, bd, we, be = params[idx:idx + 4]
    idx += 4
    raw_density = jnp.einsum("bsf,fo->bso", x, wd) + bd
    bottleneck = jnp.einsum("bsf,fo->bso", x, we) + be
    v = jnp.broadcast_to(viewdirs_enc[:, None, :], (B, S, viewdirs_enc.shape[-1]))
    x = jnp.concatenate([bottleneck, v], axis=-1)
    for j in range(NET_DEPTH_COND):
        w, b = params[idx], params[idx + 1]
        idx += 2
        x = jnp.maximum(jnp.einsum("bsf,fo->bso", x, w) + b, 0.0)
    wc, bc = params[idx:idx + 2]
    raw_rgb = jnp.einsum("bsf,fo->bso", x, wc) + bc
    return raw_rgb, raw_density


def apply_heads_reference(raw_rgb, raw_density):
    rgb = jax.nn.softplus(raw_rgb)
    rgb = rgb * (1.0 + 2.0 * RGB_PADDING) - RGB_PADDING
    density = jax.nn.softplus(raw_density + DENSITY_BIAS)
    return rgb, density


# ------------------------------- mip-NeRF glue (JAX) --------------------------------
def lift_gaussian(directions, t_mean, t_var, r_var):
    mean = directions[..., None, :] * t_mean[..., None]
    d_norm_den = jnp.sum(directions ** 2, axis=-1, keepdims=True) + 1e-10
    d_outer_diag = directions ** 2
    null_outer_diag = 1.0 - d_outer_diag / d_norm_den
    t_cov_diag = t_var[..., None] * d_outer_diag[..., None, :]
    xy_cov_diag = r_var[..., None] * null_outer_diag[..., None, :]
    return mean, t_cov_diag + xy_cov_diag


def conical_frustum_to_gaussian(directions, t0, t1, base_radius):
    mu = (t0 + t1) / 2.0
    hw = (t1 - t0) / 2.0
    denom = 3.0 * mu ** 2 + hw ** 2
    t_mean = mu + (2.0 * mu * hw ** 2) / denom
    t_var = (hw ** 2) / 3.0 - (4.0 / 15.0) * ((hw ** 4 * (12.0 * mu ** 2 - hw ** 2)) / denom ** 2)
    r_var = base_radius ** 2 * ((mu ** 2) / 4.0 + (5.0 / 12.0) * hw ** 2
                                - (4.0 / 15.0) * (hw ** 4) / denom)
    return lift_gaussian(directions, t_mean, t_var, r_var)


def cast_rays(t_samples, origins, directions, radii, ray_shape):
    assert ray_shape == "cone"
    t0, t1 = t_samples[..., :-1], t_samples[..., 1:]
    means, covs = conical_frustum_to_gaussian(directions, t0, t1, radii)
    means = means + origins[..., None, :]
    return means, covs


def sample_along_rays(origins, directions, radii, num_samples, near, far,
                      randomized, disparity, ray_shape):
    # TODO(synk): randomized stratified sampling (torch.rand path) not implemented; deterministic only.
    B = origins.shape[0]
    t = jnp.linspace(0.0, 1.0, num_samples + 1)
    if disparity:
        t_samples = 1.0 / (1.0 / near * (1.0 - t) + 1.0 / far * t)
    else:
        t_samples = near * (1.0 - t) + far * t
    t_samples = jnp.broadcast_to(t_samples, (B, num_samples + 1))
    means, covs = cast_rays(t_samples, origins, directions, radii, ray_shape)
    return t_samples, (means, covs)


def expected_sin(x, x_var):
    y = jnp.exp(-0.5 * x_var) * jnp.sin(x)
    y_var = jnp.maximum(0.0, 0.5 * (1.0 - jnp.exp(-2.0 * x_var) * jnp.cos(2.0 * x)) - y ** 2)
    return y, y_var


def integrated_pos_enc(means_covs, min_deg, max_deg):
    means, covs_diag = means_covs
    scales = 2.0 ** jnp.arange(min_deg, max_deg, dtype=jnp.float32)
    y = (means[..., None, :] * scales[:, None]).reshape(*means.shape[:-1], -1)
    y_var = (covs_diag[..., None, :] * (scales[:, None] ** 2)).reshape(*covs_diag.shape[:-1], -1)
    return expected_sin(jnp.concatenate([y, y + 0.5 * jnp.pi], axis=-1),
                        jnp.concatenate([y_var, y_var], axis=-1))[0]


def pos_enc(x, min_deg, max_deg, append_identity=True):
    scales = 2.0 ** jnp.arange(min_deg, max_deg, dtype=jnp.float32)
    xb = (x[..., None, :] * scales[:, None]).reshape(*x.shape[:-1], -1)
    four_feat = jnp.sin(jnp.concatenate([xb, xb + 0.5 * jnp.pi], axis=-1))
    if append_identity:
        return jnp.concatenate([x, four_feat], axis=-1)
    return four_feat


def sorted_piecewise_constant_pdf(bins, weights, num_samples, randomized):
    eps = 1e-5
    weight_sum = jnp.sum(weights, axis=-1, keepdims=True)
    padding = jnp.maximum(0.0, eps - weight_sum)
    weights = weights + padding / weights.shape[-1]
    weight_sum = weight_sum + padding

    pdf = weights / weight_sum
    cdf = jnp.minimum(1.0, jnp.cumsum(pdf[..., :-1], axis=-1))
    cdf = jnp.concatenate([jnp.zeros_like(cdf[..., :1]), cdf, jnp.ones_like(cdf[..., :1])], axis=-1)

    u = jnp.linspace(0.0, 1.0 - eps, num_samples)
    u = jnp.broadcast_to(u, bins.shape[:-1] + (num_samples,))

    mask = u[..., None, :] >= cdf[..., :, None]

    def find_interval(x):
        x0 = jnp.max(jnp.where(mask, x[..., None], x[..., :1, None]), axis=-2)
        x1 = jnp.min(jnp.where(~mask, x[..., None], x[..., -1:, None]), axis=-2)
        return x0, x1

    bins_g0, bins_g1 = find_interval(bins)
    cdf_g0, cdf_g1 = find_interval(cdf)

    t = jnp.clip(jnp.nan_to_num((u - cdf_g0) / (cdf_g1 - cdf_g0), nan=0.0), 0.0, 1.0)
    return bins_g0 + t * (bins_g1 - bins_g0)


def resample_along_rays(origins, directions, radii, t_samples, weights, randomized,
                        ray_shape, stop_grad, resample_padding):
    if stop_grad:
        t_samples = jax.lax.stop_gradient(t_samples)
        weights = jax.lax.stop_gradient(weights)
    weights_pad = jnp.concatenate([weights[..., :1], weights, weights[..., -1:]], axis=-1)
    weights_max = jnp.maximum(weights_pad[..., :-1], weights_pad[..., 1:])
    weights_blur = 0.5 * (weights_max[..., :-1] + weights_max[..., 1:])
    weights = weights_blur + resample_padding
    new_t = sorted_piecewise_constant_pdf(t_samples, weights, t_samples.shape[-1], randomized)
    if stop_grad:
        new_t = jax.lax.stop_gradient(new_t)
    means, covs = cast_rays(new_t, origins, directions, radii, ray_shape)
    return new_t, (means, covs)


def volumetric_rendering(rgb, density, t_samples, dirs, white_bkgd):
    t_mids = 0.5 * (t_samples[..., :-1] + t_samples[..., 1:])
    t_interval = t_samples[..., 1:] - t_samples[..., :-1]
    delta = t_interval * jnp.linalg.norm(dirs[..., None, :], axis=-1)
    density_delta = density[..., 0] * delta
    alpha = 1.0 - jnp.exp(-density_delta)
    trans = jnp.exp(-jnp.concatenate(
        [jnp.zeros_like(density_delta[..., :1]),
         jnp.cumsum(density_delta[..., :-1], axis=-1)], axis=-1))
    weights = alpha * trans
    comp_rgb = (weights[..., None] * rgb).sum(axis=-2)
    acc = weights.sum(axis=-1)
    distance = (weights * t_mids).sum(axis=-1) / acc
    distance = jnp.clip(jnp.nan_to_num(distance, nan=jnp.inf), t_samples[:, 0], t_samples[:, -1])
    if white_bkgd:
        comp_rgb = comp_rgb + (1.0 - acc[..., None])
    return comp_rgb, distance, acc, weights


# --------------------------------- full forward pass ---------------------------------
@partial(jax.jit, static_argnames=("randomized", "white_bkgd", "use_pallas"))
def mipnerf_forward(params, kp, rays, randomized=False, white_bkgd=True, use_pallas=True):
    ret = []
    t_samples, weights = None, None
    viewdirs_enc = pos_enc(rays.viewdirs, 0, DEG_VIEW, append_identity=True)
    for i_level in range(NUM_LEVELS):
        if i_level == 0:
            t_samples, means_covs = sample_along_rays(
                rays.origins, rays.directions, rays.radii, NUM_SAMPLES,
                rays.near, rays.far, randomized, DISPARITY, RAY_SHAPE)
        else:
            t_samples, means_covs = resample_along_rays(
                rays.origins, rays.directions, rays.radii, t_samples, weights,
                randomized, RAY_SHAPE, STOP_RESAMPLE_GRAD, RESAMPLE_PADDING)
        means, covs = means_covs
        if DISABLE_INTEGRATION:
            covs = jnp.zeros_like(covs)
        if use_pallas:
            rgb, density = mlp_pallas(kp, means, covs, viewdirs_enc)
        else:
            samples_enc = integrated_pos_enc((means, covs), MIN_DEG_POINT, MAX_DEG_POINT)
            raw_rgb, raw_density = mlp_reference(params, samples_enc, viewdirs_enc)
            rgb, density = apply_heads_reference(raw_rgb, raw_density)
        comp_rgb, distance, acc, weights = volumetric_rendering(
            rgb, density, t_samples, rays.directions, white_bkgd=white_bkgd)
        ret.append((comp_rgb, distance, acc, weights, t_samples))
    return ret


# --------------------------------------- main ---------------------------------------
if __name__ == "__main__":
    key = jax.random.PRNGKey(0)
    k_param, k_o, k_d = jax.random.split(key, 3)

    B = 96  # rays; N = B * NUM_SAMPLES = 768 samples -> single 768-lane tile per level
    params = init_mlp_params(k_param)
    # round the weights (even indices) to bf16-representable values so the bf16 kernel and the
    # f32 reference share identical parameters; biases stay f32.
    params = [p.astype(jnp.bfloat16).astype(jnp.float32) if i % 2 == 0 else p
              for i, p in enumerate(params)]
    kp = pack_params_for_kernel(params)

    origins = 0.1 * jax.random.normal(k_o, (B, 3), jnp.float32)
    directions = jax.random.normal(k_d, (B, 3), jnp.float32)
    viewdirs = directions / jnp.linalg.norm(directions, axis=-1, keepdims=True)
    radii = jnp.full((B, 1), 0.05, jnp.float32)
    near = jnp.full((B, 1), 2.0, jnp.float32)
    far = jnp.full((B, 1), 6.0, jnp.float32)
    rays = Rays(origins, directions, viewdirs, radii, near, far)

    # 1) kernel correctness check against the plain-JAX MLP (coarse-level inputs)
    t_samples, (means, covs) = sample_along_rays(
        rays.origins, rays.directions, rays.radii, NUM_SAMPLES,
        rays.near, rays.far, False, DISPARITY, RAY_SHAPE)
    viewdirs_enc = pos_enc(rays.viewdirs, 0, DEG_VIEW, append_identity=True)

    rgb_k, den_k = mlp_pallas(kp, means, covs, viewdirs_enc)
    jax.block_until_ready((rgb_k, den_k))

    samples_enc = integrated_pos_enc((means, covs), MIN_DEG_POINT, MAX_DEG_POINT)
    rgb_r, den_r = apply_heads_reference(*mlp_reference(params, samples_enc, viewdirs_enc))
    assert bool(jnp.allclose(rgb_k, rgb_r, atol=2e-2, rtol=2e-2)), "rgb mismatch"
    assert bool(jnp.allclose(den_k, den_r, atol=2e-2, rtol=2e-2)), "density mismatch"

    # 2) full MipNerf forward (coarse + fine), jit-compiled, using the fused Pallas kernel
    ret = mipnerf_forward(params, kp, rays, randomized=False, white_bkgd=True, use_pallas=True)
    ret = jax.block_until_ready(ret)
    for leaf in jax.tree_util.tree_leaves(ret):
        assert bool(jnp.all(jnp.isfinite(leaf))), "non-finite output"

    print("KERNEL_OK")
</pallas_src>

<mosaic_0001>
module attributes {stable_mosaic.version = 11 : i64} {
  func.func @mipnerf_mlp_kernel(%arg0: i32, %arg1: memref<6x768xf32, #tpu.memory_space<vmem>>, %arg2: memref<16x768xbf16, #tpu.memory_space<vmem>>, %arg3: memref<2x12x6xf32, #tpu.memory_space<vmem>>, %arg4: memref<4x32x12xbf16, #tpu.memory_space<vmem>>, %arg5: memref<7x32x32xbf16, #tpu.memory_space<vmem>>, %arg6: memref<32x16xbf16, #tpu.memory_space<vmem>>, %arg7: memref<2x4x32xbf16, #tpu.memory_space<vmem>>, %arg8: memref<8x32x1xf32, #tpu.memory_space<vmem>>, %arg9: memref<4x1xf32, #tpu.memory_space<vmem>>, %arg10: memref<4x768xf32, #tpu.memory_space<vmem>>) attributes {dimension_semantics = [#tpu.dimension_semantics<parallel>], iteration_bounds = array<i64: 1>, scalar_prefetch = 0 : i64, scratch_operands = 0 : i64, tpu.core_type = #tpu.core_type<tc>, window_params = [{transform_indices = @transform_0, window_bounds = array<i64: 6, 768>}, {transform_indices = @transform_1, window_bounds = array<i64: 16, 768>}, {pipeline_mode = #tpu.pipeline_mode<synchronous>, transform_indices = @transform_2, window_bounds = array<i64: 2, 12, 6>}, {pipeline_mode = #tpu.pipeline_mode<synchronous>, transform_indices = @transform_3, window_bounds = array<i64: 4, 32, 12>}, {pipeline_mode = #tpu.pipeline_mode<synchronous>, transform_indices = @transform_4, window_bounds = array<i64: 7, 32, 32>}, {pipeline_mode = #tpu.pipeline_mode<synchronous>, transform_indices = @transform_5, window_bounds = array<i64: 32, 16>}, {pipeline_mode = #tpu.pipeline_mode<synchronous>, transform_indices = @transform_6, window_bounds = array<i64: 2, 4, 32>}, {pipeline_mode = #tpu.pipeline_mode<synchronous>, transform_indices = @transform_7, window_bounds = array<i64: 8, 32, 1>}, {pipeline_mode = #tpu.pipeline_mode<synchronous>, transform_indices = @transform_8, window_bounds = array<i64: 4, 1>}, {transform_indices = @transform_9, window_bounds = array<i64: 4, 768>}]} {
    %c0 = arith.constant 0 : index
    %c0_0 = arith.constant 0 : index
    %0 = vector.load %arg1[%c0, %c0_0] : memref<6x768xf32, #tpu.memory_space<vmem>>, vector<6x768xf32>
    %c0_1 = arith.constant 0 : index
    %c0_2 = arith.constant 0 : index
    %c0_3 = arith.constant 0 : index
    %1 = vector.load %arg3[%c0_1, %c0_2, %c0_3] : memref<2x12x6xf32, #tpu.memory_space<vmem>>, vector<1x12x6xf32>
    %2 = vector.shape_cast %1 : vector<1x12x6xf32> to vector<12x6xf32>
    %cst = arith.constant dense<0.000000e+00> : vector<12x768xf32>
    %3 = tpu.matmul %2, %0, %cst {dimension_numbers = #tpu.dot_dimension_numbers<[1], [0], [0], [1], [0, 0, 1, 1], [], []>} : vector<12x6xf32>, vector<6x768xf32>, vector<12x768xf32> -> vector<12x768xf32>
    %c1 = arith.constant 1 : index
    %c0_4 = arith.constant 0 : index
    %c0_5 = arith.constant 0 : index
    %4 = vector.load %arg3[%c1, %c0_4, %c0_5] : memref<2x12x6xf32, #tpu.memory_space<vmem>>, vector<1x12x6xf32>
    %5 = vector.shape_cast %4 : vector<1x12x6xf32> to vector<12x6xf32>
    %cst_6 = arith.constant dense<0.000000e+00> : vector<12x768xf32>
    %6 = tpu.matmul %5, %0, %cst_6 {dimension_numbers = #tpu.dot_dimension_numbers<[1], [0], [0], [1], [0, 0, 1, 1], [], []>} : vector<12x6xf32>, vector<6x768xf32>, vector<12x768xf32> -> vector<12x768xf32>
    %cst_7 = arith.constant -5.000000e-01 : f32
    %7 = vector.broadcast %cst_7 : f32 to vector<12x768xf32>
    %8 = arith.mulf %7, %6 : vector<12x768xf32>
    %9 = math.exp %8 : vector<12x768xf32>
    %10 = math.sin %3 : vector<12x768xf32>
    %11 = arith.mulf %9, %10 : vector<12x768xf32>
    %12 = arith.truncf %11 : vector<12x768xf32> to vector<12x768xbf16>
    %13 = math.cos %3 : vector<12x768xf32>
    %14 = arith.mulf %9, %13 : vector<12x768xf32>
    %15 = arith.truncf %14 : vector<12x768xf32> to vector<12x768xbf16>
    %c0_8 = arith.constant 0 : index
    %c0_9 = arith.constant 0 : index
    %c0_10 = arith.constant 0 : index
    %16 = vector.load %arg4[%c0_8, %c0_9, %c0_10] : memref<4x32x12xbf16, #tpu.memory_space<vmem>>, vector<1x32x12xbf16>
    %17 = vector.shape_cast %16 : vector<1x32x12xbf16> to vector<32x12xbf16>
    %cst_11 = arith.constant dense<0.000000e+00> : vector<32x768xf32>
    %18 = tpu.matmul %17, %12, %cst_11 {dimension_numbers = #tpu.dot_dimension_numbers<[1], [0], [0], [1], [0, 0, 1, 1], [], []>} : vector<32x12xbf16>, vector<12x768xbf16>, vector<32x768xf32> -> vector<32x768xf32>
    %c1_12 = arith.constant 1 : index
    %c0_13 = arith.constant 0 : index
    %c0_14 = arith.constant 0 : index
    %19 = vector.load %arg4[%c1_12, %c0_13, %c0_14] : memref<4x32x12xbf16, #tpu.memory_space<vmem>>, vector<1x32x12xbf16>
    %20 = vector.shape_cast %19 : vector<1x32x12xbf16> to vector<32x12xbf16>
    %cst_15 = arith.constant dense<0.000000e+00> : vector<32x768xf32>
    %21 = tpu.matmul %20, %15, %cst_15 {dimension_numbers = #tpu.dot_dimension_numbers<[1], [0], [0], [1], [0, 0, 1, 1], [], []>} : vector<32x12xbf16>, vector<12x768xbf16>, vector<32x768xf32> -> vector<32x768xf32>
    %22 = arith.addf %18, %21 : vector<32x768xf32>
    %c0_16 = arith.constant 0 : index
    %c0_17 = arith.constant 0 : index
    %c0_18 = arith.constant 0 : index
    %23 = vector.load %arg8[%c0_16, %c0_17, %c0_18] : memref<8x32x1xf32, #tpu.memory_space<vmem>>, vector<1x32x1xf32>
    %24 = vector.shape_cast %23 : vector<1x32x1xf32> to vector<32x1xf32>
    %25 = vector.broadcast %24 : vector<32x1xf32> to vector<32x768xf32>
    %26 = arith.addf %22, %25 : vector<32x768xf32>
    %cst_19 = arith.constant 0.000000e+00 : f32
    %27 = vector.broadcast %cst_19 : f32 to vector<32x768xf32>
    %28 = arith.maximumf %26, %27 : vector<32x768xf32>
    %c0_20 = arith.constant 0 : index
    %c0_21 = arith.constant 0 : index
    %c0_22 = arith.constant 0 : index
    %29 = vector.load %arg5[%c0_20, %c0_21, %c0_22] : memref<7x32x32xbf16, #tpu.memory_space<vmem>>, vector<1x32x32xbf16>
    %30 = vector.shape_cast %29 : vector<1x32x32xbf16> to vector<32x32xbf16>
    %31 = arith.truncf %28 : vector<32x768xf32> to vector<32x768xbf16>
    %cst_23 = arith.constant dense<0.000000e+00> : vector<32x768xf32>
    %32 = tpu.matmul %30, %31, %cst_23 {dimension_numbers = #tpu.dot_dimension_numbers<[1], [0], [0], [1], [0, 0, 1, 1], [], []>} : vector<32x32xbf16>, vector<32x768xbf16>, vector<32x768xf32> -> vector<32x768xf32>
    %c1_24 = arith.constant 1 : index
    %c0_25 = arith.constant 0 : index
    %c0_26 = arith.constant 0 : index
    %33 = vector.load %arg8[%c1_24, %c0_25, %c0_26] : memref<8x32x1xf32, #tpu.memory_space<vmem>>, vector<1x32x1xf32>
    %34 = vector.shape_cast %33 : vector<1x32x1xf32> to vector<32x1xf32>
    %35 = vector.broadcast %34 : vector<32x1xf32> to vector<32x768xf32>
    %36 = arith.addf %32, %35 : vector<32x768xf32>
    %cst_27 = arith.constant 0.000000e+00 : f32
    %37 = vector.broadcast %cst_27 : f32 to vector<32x768xf32>
    %38 = arith.maximumf %36, %37 : vector<32x768xf32>
    %c1_28 = arith.constant 1 : index
    %c0_29 = arith.constant 0 : index
    %c0_30 = arith.constant 0 : index
    %39 = vector.load %arg5[%c1_28, %c0_29, %c0_30] : memref<7x32x32xbf16, #tpu.memory_space<vmem>>, vector<1x32x32xbf16>
    %40 = vector.shape_cast %39 : vector<1x32x32xbf16> to vector<32x32xbf16>
    %41 = arith.truncf %38 : vector<32x768xf32> to vector<32x768xbf16>
    %cst_31 = arith.constant dense<0.000000e+00> : vector<32x768xf32>
    %42 = tpu.matmul %40, %41, %cst_31 {dimension_numbers = #tpu.dot_dimension_numbers<[1], [0], [0], [1], [0, 0, 1, 1], [], []>} : vector<32x32xbf16>, vector<32x768xbf16>, vector<32x768xf32> -> vector<32x768xf32>
    %c2 = arith.constant 2 : index
    %c0_32 = arith.constant 0 : index
    %c0_33 = arith.constant 0 : index
    %43 = vector.load %arg8[%c2, %c0_32, %c0_33] : memref<8x32x1xf32, #tpu.memory_space<vmem>>, vector<1x32x1xf32>
    %44 = vector.shape_cast %43 : vector<1x32x1xf32> to vector<32x1xf32>
    %45 = vector.broadcast %44 : vector<32x1xf32> to vector<32x768xf32>
    %46 = arith.addf %42, %45 : vector<32x768xf32>
    %cst_34 = arith.constant 0.000000e+00 : f32
    %47 = vector.broadcast %cst_34 : f32 to vector<32x768xf32>
    %48 = arith.maximumf %46, %47 : vector<32x768xf32>
    %c2_35 = arith.constant 2 : index
    %c0_36 = arith.constant 0 : index
    %c0_37 = arith.constant 0 : index
    %49 = vector.load %arg5[%c2_35, %c0_36, %c0_37] : memref<7x32x32xbf16, #tpu.memory_space<vmem>>, vector<1x32x32xbf16>
    %50 = vector.shape_cast %49 : vector<1x32x32xbf16> to vector<32x32xbf16>
    %51 = arith.truncf %48 : vector<32x768xf32> to vector<32x768xbf16>
    %cst_38 = arith.constant dense<0.000000e+00> : vector<32x768xf32>
    %52 = tpu.matmul %50, %51, %cst_38 {dimension_numbers = #tpu.dot_dimension_numbers<[1], [0], [0], [1], [0, 0, 1, 1], [], []>} : vector<32x32xbf16>, vector<32x768xbf16>, vector<32x768xf32> -> vector<32x768xf32>
    %c3 = arith.constant 3 : index
    %c0_39 = arith.constant 0 : index
    %c0_40 = arith.constant 0 : index
    %53 = vector.load %arg8[%c3, %c0_39, %c0_40] : memref<8x32x1xf32, #tpu.memory_space<vmem>>, vector<1x32x1xf32>
    %54 = vector.shape_cast %53 : vector<1x32x1xf32> to vector<32x1xf32>
    %55 = vector.broadcast %54 : vector<32x1xf32> to vector<32x768xf32>
    %56 = arith.addf %52, %55 : vector<32x768xf32>
    %cst_41 = arith.constant 0.000000e+00 : f32
    %57 = vector.broadcast %cst_41 : f32 to vector<32x768xf32>
    %58 = arith.maximumf %56, %57 : vector<32x768xf32>
    %c3_42 = arith.constant 3 : index
    %c0_43 = arith.constant 0 : index
    %c0_44 = arith.constant 0 : index
    %59 = vector.load %arg5[%c3_42, %c0_43, %c0_44] : memref<7x32x32xbf16, #tpu.memory_space<vmem>>, vector<1x32x32xbf16>
    %60 = vector.shape_cast %59 : vector<1x32x32xbf16> to vector<32x32xbf16>
    %61 = arith.truncf %58 : vector<32x768xf32> to vector<32x768xbf16>
    %cst_45 = arith.constant dense<0.000000e+00> : vector<32x768xf32>
    %62 = tpu.matmul %60, %61, %cst_45 {dimension_numbers = #tpu.dot_dimension_numbers<[1], [0], [0], [1], [0, 0, 1, 1], [], []>} : vector<32x32xbf16>, vector<32x768xbf16>, vector<32x768xf32> -> vector<32x768xf32>
    %c4 = arith.constant 4 : index
    %c0_46 = arith.constant 0 : index
    %c0_47 = arith.constant 0 : index
    %63 = vector.load %arg8[%c4, %c0_46, %c0_47] : memref<8x32x1xf32, #tpu.memory_space<vmem>>, vector<1x32x1xf32>
    %64 = vector.shape_cast %63 : vector<1x32x1xf32> to vector<32x1xf32>
    %65 = vector.broadcast %64 : vector<32x1xf32> to vector<32x768xf32>
    %66 = arith.addf %62, %65 : vector<32x768xf32>
    %cst_48 = arith.constant 0.000000e+00 : f32
    %67 = vector.broadcast %cst_48 : f32 to vector<32x768xf32>
    %68 = arith.maximumf %66, %67 : vector<32x768xf32>
    %c4_49 = arith.constant 4 : index
    %c0_50 = arith.constant 0 : index
    %c0_51 = arith.constant 0 : index
    %69 = vector.load %arg5[%c4_49, %c0_50, %c0_51] : memref<7x32x32xbf16, #tpu.memory_space<vmem>>, vector<1x32x32xbf16>
    %70 = vector.shape_cast %69 : vector<1x32x32xbf16> to vector<32x32xbf16>
    %71 = arith.truncf %68 : vector<32x768xf32> to vector<32x768xbf16>
    %cst_52 = arith.constant dense<0.000000e+00> : vector<32x768xf32>
    %72 = tpu.matmul %70, %71, %cst_52 {dimension_numbers = #tpu.dot_dimension_numbers<[1], [0], [0], [1], [0, 0, 1, 1], [], []>} : vector<32x32xbf16>, vector<32x768xbf16>, vector<32x768xf32> -> vector<32x768xf32>
    %c5 = arith.constant 5 : index
    %c0_53 = arith.constant 0 : index
    %c0_54 = arith.constant 0 : index
    %73 = vector.load %arg8[%c5, %c0_53, %c0_54] : memref<8x32x1xf32, #tpu.memory_space<vmem>>, vector<1x32x1xf32>
    %74 = vector.shape_cast %73 : vector<1x32x1xf32> to vector<32x1xf32>
    %75 = vector.broadcast %74 : vector<32x1xf32> to vector<32x768xf32>
    %76 = arith.addf %72, %75 : vector<32x768xf32>
    %c2_55 = arith.constant 2 : index
    %c0_56 = arith.constant 0 : index
    %c0_57 = arith.constant 0 : index
    %77 = vector.load %arg4[%c2_55, %c0_56, %c0_57] : memref<4x32x12xbf16, #tpu.memory_space<vmem>>, vector<1x32x12xbf16>
    %78 = vector.shape_cast %77 : vector<1x32x12xbf16> to vector<32x12xbf16>
    %cst_58 = arith.constant dense<0.000000e+00> : vector<32x768xf32>
    %79 = tpu.matmul %78, %12, %cst_58 {dimension_numbers = #tpu.dot_dimension_numbers<[1], [0], [0], [1], [0, 0, 1, 1], [], []>} : vector<32x12xbf16>, vector<12x768xbf16>, vector<32x768xf32> -> vector<32x768xf32>
    %80 = arith.addf %76, %79 : vector<32x768xf32>
    %c3_59 = arith.constant 3 : index
    %c0_60 = arith.constant 0 : index
    %c0_61 = arith.constant 0 : index
    %81 = vector.load %arg4[%c3_59, %c0_60, %c0_61] : memref<4x32x12xbf16, #tpu.memory_space<vmem>>, vector<1x32x12xbf16>
    %82 = vector.shape_cast %81 : vector<1x32x12xbf16> to vector<32x12xbf16>
    %cst_62 = arith.constant dense<0.000000e+00> : vector<32x768xf32>
    %83 = tpu.matmul %82, %15, %cst_62 {dimension_numbers = #tpu.dot_dimension_numbers<[1], [0], [0], [1], [0, 0, 1, 1], [], []>} : vector<32x12xbf16>, vector<12x768xbf16>, vector<32x768xf32> -> vector<32x768xf32>
    %84 = arith.addf %80, %83 : vector<32x768xf32>
    %cst_63 = arith.constant 0.000000e+00 : f32
    %85 = vector.broadcast %cst_63 : f32 to vector<32x768xf32>
    %86 = arith.maximumf %84, %85 : vector<32x768xf32>
    %87 = arith.truncf %86 : vector<32x768xf32> to vector<32x768xbf16>
    %c5_64 = arith.constant 5 : index
    %c0_65 = arith.constant 0 : index
    %c0_66 = arith.constant 0 : index
    %88 = vector.load %arg5[%c5_64, %c0_65, %c0_66] : memref<7x32x32xbf16, #tpu.memory_space<vmem>>, vector<1x32x32xbf16>
    %89 = vector.shape_cast %88 : vector<1x32x32xbf16> to vector<32x32xbf16>
    %cst_67 = arith.constant dense<0.000000e+00> : vector<32x768xf32>
    %90 = tpu.matmul %89, %87, %cst_67 {dimension_numbers = #tpu.dot_dimension_numbers<[1], [0], [0], [1], [0, 0, 1, 1], [], []>} : vector<32x32xbf16>, vector<32x768xbf16>, vector<32x768xf32> -> vector<32x768xf32>
    %c6 = arith.constant 6 : index
    %c0_68 = arith.constant 0 : index
    %c0_69 = arith.constant 0 : index
    %91 = vector.load %arg8[%c6, %c0_68, %c0_69] : memref<8x32x1xf32, #tpu.memory_space<vmem>>, vector<1x32x1xf32>
    %92 = vector.shape_cast %91 : vector<1x32x1xf32> to vector<32x1xf32>
    %93 = vector.broadcast %92 : vector<32x1xf32> to vector<32x768xf32>
    %94 = arith.addf %90, %93 : vector<32x768xf32>
    %c6_70 = arith.constant 6 : index
    %c0_71 = arith.constant 0 : index
    %c0_72 = arith.constant 0 : index
    %95 = vector.load %arg5[%c6_70, %c0_71, %c0_72] : memref<7x32x32xbf16, #tpu.memory_space<vmem>>, vector<1x32x32xbf16>
    %96 = vector.shape_cast %95 : vector<1x32x32xbf16> to vector<32x32xbf16>
    %97 = arith.truncf %94 : vector<32x768xf32> to vector<32x768xbf16>
    %cst_73 = arith.constant dense<0.000000e+00> : vector<32x768xf32>
    %98 = tpu.matmul %96, %97, %cst_73 {dimension_numbers = #tpu.dot_dimension_numbers<[1], [0], [0], [1], [0, 0, 1, 1], [], []>} : vector<32x32xbf16>, vector<32x768xbf16>, vector<32x768xf32> -> vector<32x768xf32>
    %c0_74 = arith.constant 0 : index
    %c0_75 = arith.constant 0 : index
    %99 = vector.load %arg6[%c0_74, %c0_75] : memref<32x16xbf16, #tpu.memory_space<vmem>>, vector<32x16xbf16>
    %c0_76 = arith.constant 0 : index
    %c0_77 = arith.constant 0 : index
    %100 = vector.load %arg2[%c0_76, %c0_77] : memref<16x768xbf16, #tpu.memory_space<vmem>>, vector<16x768xbf16>
    %cst_78 = arith.constant dense<0.000000e+00> : vector<32x768xf32>
    %101 = tpu.matmul %99, %100, %cst_78 {dimension_numbers = #tpu.dot_dimension_numbers<[1], [0], [0], [1], [0, 0, 1, 1], [], []>} : vector<32x16xbf16>, vector<16x768xbf16>, vector<32x768xf32> -> vector<32x768xf32>
    %102 = arith.addf %98, %101 : vector<32x768xf32>
    %c7 = arith.constant 7 : index
    %c0_79 = arith.constant 0 : index
    %c0_80 = arith.constant 0 : index
    %103 = vector.load %arg8[%c7, %c0_79, %c0_80] : memref<8x32x1xf32, #tpu.memory_space<vmem>>, vector<1x32x1xf32>
    %104 = vector.shape_cast %103 : vector<1x32x1xf32> to vector<32x1xf32>
    %105 = vector.broadcast %104 : vector<32x1xf32> to vector<32x768xf32>
    %106 = arith.addf %102, %105 : vector<32x768xf32>
    %cst_81 = arith.constant 0.000000e+00 : f32
    %107 = vector.broadcast %cst_81 : f32 to vector<32x768xf32>
    %108 = arith.maximumf %106, %107 : vector<32x768xf32>
    %c0_82 = arith.constant 0 : index
    %c0_83 = arith.constant 0 : index
    %c0_84 = arith.constant 0 : index
    %109 = vector.load %arg7[%c0_82, %c0_83, %c0_84] : memref<2x4x32xbf16, #tpu.memory_space<vmem>>, vector<1x4x32xbf16>
    %110 = vector.shape_cast %109 : vector<1x4x32xbf16> to vector<4x32xbf16>
    %111 = arith.truncf %108 : vector<32x768xf32> to vector<32x768xbf16>
    %cst_85 = arith.constant dense<0.000000e+00> : vector<4x768xf32>
    %112 = tpu.matmul %110, %111, %cst_85 {dimension_numbers = #tpu.dot_dimension_numbers<[1], [0], [0], [1], [0, 0, 1, 1], [], []>} : vector<4x32xbf16>, vector<32x768xbf16>, vector<4x768xf32> -> vector<4x768xf32>
    %c1_86 = arith.constant 1 : index
    %c0_87 = arith.constant 0 : index
    %c0_88 = arith.constant 0 : index
    %113 = vector.load %arg7[%c1_86, %c0_87, %c0_88] : memref<2x4x32xbf16, #tpu.memory_space<vmem>>, vector<1x4x32xbf16>
    %114 = vector.shape_cast %113 : vector<1x4x32xbf16> to vector<4x32xbf16>
    %cst_89 = arith.constant dense<0.000000e+00> : vector<4x768xf32>
    %115 = tpu.matmul %114, %87, %cst_89 {dimension_numbers = #tpu.dot_dimension_numbers<[1], [0], [0], [1], [0, 0, 1, 1], [], []>} : vector<4x32xbf16>, vector<32x768xbf16>, vector<4x768xf32> -> vector<4x768xf32>
    %116 = arith.addf %112, %115 : vector<4x768xf32>
    %c0_90 = arith.constant 0 : index
    %c0_91 = arith.constant 0 : index
    %117 = vector.load %arg9[%c0_90, %c0_91] : memref<4x1xf32, #tpu.memory_space<vmem>>, vector<4x1xf32>
    %118 = vector.broadcast %117 : vector<4x1xf32> to vector<4x768xf32>
    %119 = arith.addf %116, %118 : vector<4x768xf32>
    %cst_92 = arith.constant 0.000000e+00 : f32
    %120 = vector.broadcast %cst_92 : f32 to vector<4x768xf32>
    %121 = arith.maximumf %119, %120 : vector<4x768xf32>
    %122 = math.absf %119 : vector<4x768xf32>
    %cst_93 = arith.constant 0.000000e+00 : f32
    %123 = vector.broadcast %cst_93 : f32 to vector<4x768xf32>
    %124 = arith.subf %123, %122 : vector<4x768xf32>
    %125 = math.exp %124 : vector<4x768xf32>
    %cst_94 = arith.constant 1.000000e+00 : f32
    %126 = vector.broadcast %cst_94 : f32 to vector<4x768xf32>
    %127 = arith.addf %126, %125 : vector<4x768xf32>
    %128 = math.log %127 : vector<4x768xf32>
    %129 = arith.addf %121, %128 : vector<4x768xf32>
    %130 = tpu.iota {dimensions = array<i32: 0>} : vector<4x768xi32>
    %c3_i32 = arith.constant 3 : i32
    %131 = vector.broadcast %c3_i32 : i32 to vector<4x768xi32>
    %132 = arith.cmpi slt, %130, %131 : vector<4x768xi32>
    %cst_95 = arith.constant 1.002000e+00 : f32
    %133 = vector.broadcast %cst_95 : f32 to vector<4x768xf32>
    %134 = arith.mulf %129, %133 : vector<4x768xf32>
    %cst_96 = arith.constant 1.000000e-03 : f32
    %135 = vector.broadcast %cst_96 : f32 to vector<4x768xf32>
    %136 = arith.subf %134, %135 : vector<4x768xf32>
    %137 = arith.select %132, %136, %129 : vector<4x768xi1>, vector<4x768xf32>
    %c0_97 = arith.constant 0 : index
    %c0_98 = arith.constant 0 : index
    %138 = vector.load %arg10[%c0_97, %c0_98] : memref<4x768xf32, #tpu.memory_space<vmem>>, vector<4x768xf32>
    tpu.vector_store %arg10[%c0_97, %c0_98], %137 {strides = array<i32>} : memref<4x768xf32, #tpu.memory_space<vmem>>, vector<4x768xf32>,
    return
  }
  func.func @transform_0(%arg0: i32) -> (i32, i32) {
    %c0_i32 = arith.constant 0 : i32
    %c0_i32_0 = arith.constant 0 : i32
    return %c0_i32, %arg0 : i32, i32
  }
  func.func @transform_1(%arg0: i32) -> (i32, i32) {
    %c0_i32 = arith.constant 0 : i32
    %c0_i32_0 = arith.constant 0 : i32
    return %c0_i32, %arg0 : i32, i32
  }
  func.func @transform_2(%arg0: i32) -> (i32, i32, i32) {
    %c0_i32 = arith.constant 0 : i32
    %c0_i32_0 = arith.constant 0 : i32
    %c0_i32_1 = arith.constant 0 : i32
    %c0_i32_2 = arith.constant 0 : i32
    return %c0_i32, %c0_i32_0, %c0_i32_1 : i32, i32, i32
  }
  func.func @transform_3(%arg0: i32) -> (i32, i32, i32) {
    %c0_i32 = arith.constant 0 : i32
    %c0_i32_0 = arith.constant 0 : i32
    %c0_i32_1 = arith.constant 0 : i32
    %c0_i32_2 = arith.constant 0 : i32
    return %c0_i32, %c0_i32_0, %c0_i32_1 : i32, i32, i32
  }
  func.func @transform_4(%arg0: i32) -> (i32, i32, i32) {
    %c0_i32 = arith.constant 0 : i32
    %c0_i32_0 = arith.constant 0 : i32
    %c0_i32_1 = arith.constant 0 : i32
    %c0_i32_2 = arith.constant 0 : i32
    return %c0_i32, %c0_i32_0, %c0_i32_1 : i32, i32, i32
  }
  func.func @transform_5(%arg0: i32) -> (i32, i32) {
    %c0_i32 = arith.constant 0 : i32
    %c0_i32_0 = arith.constant 0 : i32
    %c0_i32_1 = arith.constant 0 : i32
    return %c0_i32, %c0_i32_0 : i32, i32
  }
  func.func @transform_6(%arg0: i32) -> (i32, i32, i32) {
    %c0_i32 = arith.constant 0 : i32
    %c0_i32_0 = arith.constant 0 : i32
    %c0_i32_1 = arith.constant 0 : i32
    %c0_i32_2 = arith.constant 0 : i32
    return %c0_i32, %c0_i32_0, %c0_i32_1 : i32, i32, i32
  }
  func.func @transform_7(%arg0: i32) -> (i32, i32, i32) {
    %c0_i32 = arith.constant 0 : i32
    %c0_i32_0 = arith.constant 0 : i32
    %c0_i32_1 = arith.constant 0 : i32
    %c0_i32_2 = arith.constant 0 : i32
    return %c0_i32, %c0_i32_0, %c0_i32_1 : i32, i32, i32
  }
  func.func @transform_8(%arg0: i32) -> (i32, i32) {
    %c0_i32 = arith.constant 0 : i32
    %c0_i32_0 = arith.constant 0 : i32
    %c0_i32_1 = arith.constant 0 : i32
    return %c0_i32, %c0_i32_0 : i32, i32
  }
  func.func @transform_9(%arg0: i32) -> (i32, i32) {
    %c0_i32 = arith.constant 0 : i32
    %c0_i32_0 = arith.constant 0 : i32
    return %c0_i32, %arg0 : i32, i32
  }
}

</mosaic_0001>

<llo_original>
// kernel: tpu_custom_call.1
$region0: #{tpu_custom_call.1}
  #allocation0 [shape = 'u32[]', space=smem, size = 0x4, offset = 0x4, fixed_abs, tag = 'smem constant byte address 0x4 - core index']
  #allocation1 [shape = 'u32[144,128]{1,0:T(1,128)}', space=vmem, size = 0x12000, scoped, tag = 'internal scratch']
  %s0 = inlined_call_operand.vmem [shape: f32[6,768], index: 0, kind: input, shape index: {}]
  %s1 = inlined_call_operand.vmem [shape: bf16[16,768], index: 1, kind: input, shape index: {}]
  %s2 = inlined_call_operand.vmem [shape: f32[2,12,6], index: 2, kind: input, shape index: {}]
  %s3 = inlined_call_operand.vmem [shape: bf16[4,32,12], index: 3, kind: input, shape index: {}]
  %s4 = inlined_call_operand.vmem [shape: bf16[7,32,32], index: 4, kind: input, shape index: {}]
  %s5 = inlined_call_operand.vmem [shape: bf16[32,16], index: 5, kind: input, shape index: {}]
  %s6 = inlined_call_operand.vmem [shape: bf16[2,4,32], index: 6, kind: input, shape index: {}]
  %s7 = inlined_call_operand.vmem [shape: f32[8,32,1], index: 7, kind: input, shape index: {}]
  %s8 = inlined_call_operand.vmem [shape: f32[4,1], index: 8, kind: input, shape index: {}]
  %s9 = inlined_call_operand.hbm [shape: f32[4,768], index: 9, kind: output, shape index: {}]
  %s10 = sld [smem:[#allocation0]]
  $region46: #{tpu_custom_call.1} parent=0
    _
  %s12 = ssub.s32 1, %s10
  %s13 = scalar_select 0, %s12, %s10
  $region1: #{tpu_custom_call.1} parent=0
    #allocation2 [shape = 'u8[12288]{0}', space=vmem, size = 0x3000, scoped, tag = 'output window, operand 0, single buffered']
    #allocation3 [shape = 's32[1]{0}', space=sflag, size = 0x4, scoped, tag = 'scoped memory for tpu_custom_call.1']
    %14 = vsyncpa [#allocation3], 0
    // Predicated region
    $region2: #{tpu_custom_call.1} parent=1 // pred_check
      _
    $region3: #{tpu_custom_call.1} parent=1 // pred_check_branch
      %16 = sbr.rel (0) target = $region5
    $region4: #{tpu_custom_call.1} parent=1 // pred_region
      _
    $region5: #{tpu_custom_call.1} parent=1 // pred_fallthru
      _
    // Predicated region
    $region6: #{tpu_custom_call.1} parent=1 // pred_check
      _
    $region7: #{tpu_custom_call.1} parent=1 // pred_check_branch
      %18 = sbr.rel (0) target = $region9
    $region8: #{tpu_custom_call.1} parent=1 // pred_region
      _
    $region9: #{tpu_custom_call.1} parent=1 // pred_fallthru
      _
    // Predicated region
    $region10: #{tpu_custom_call.1} parent=1 // pred_check
      _
    $region11: #{tpu_custom_call.1} parent=1 // pred_check_branch
      %20 = sbr.rel (0) target = $region13
    $region12: #{tpu_custom_call.1} parent=1 // pred_region
      _
    $region13: #{tpu_custom_call.1} parent=1 // pred_fallthru
      _
    // Predicated region
    $region14: #{tpu_custom_call.1} parent=1 // pred_check
      _
    $region15: #{tpu_custom_call.1} parent=1 // pred_check_branch
      %22 = sbr.rel (0) target = $region17
    $region16: #{tpu_custom_call.1} parent=1 // pred_region
      _
    $region17: #{tpu_custom_call.1} parent=1 // pred_fallthru
      _
    // Predicated region
    $region18: #{tpu_custom_call.1} parent=1 // pred_check
      _
    $region19: #{tpu_custom_call.1} parent=1 // pred_check_branch
      %24 = sbr.rel (0) target = $region21
    $region20: #{tpu_custom_call.1} parent=1 // pred_region
      _
    $region21: #{tpu_custom_call.1} parent=1 // pred_fallthru
      _
    // Predicated region
    $region22: #{tpu_custom_call.1} parent=1 // pred_check
      _
    $region23: #{tpu_custom_call.1} parent=1 // pred_check_branch
      %26 = sbr.rel (0) target = $region25
    $region24: #{tpu_custom_call.1} parent=1 // pred_region
      _
    $region25: #{tpu_custom_call.1} parent=1 // pred_fallthru
      _
    // Predicated region
    $region26: #{tpu_custom_call.1} parent=1 // pred_check
      _
    $region27: #{tpu_custom_call.1} parent=1 // pred_check_branch
      %28 = sbr.rel (0) target = $region29
    $region28: #{tpu_custom_call.1} parent=1 // pred_region
      _
    $region29: #{tpu_custom_call.1} parent=1 // pred_fallthru
      _
    // Predicated region
    $region30: #{tpu_custom_call.1} parent=1 // pred_check
      _
    $region31: #{tpu_custom_call.1} parent=1 // pred_check_branch
      %30 = sbr.rel (0) target = $region33
    $region32: #{tpu_custom_call.1} parent=1 // pred_region
      _
    $region33: #{tpu_custom_call.1} parent=1 // pred_fallthru
      _
    // Predicated region
    $region34: #{tpu_custom_call.1} parent=1 // pred_check
      _
    $region35: #{tpu_custom_call.1} parent=1 // pred_check_branch
      %32 = sbr.rel (0) target = $region37
    $region36: #{tpu_custom_call.1} parent=1 // pred_region
      _
    $region37: #{tpu_custom_call.1} parent=1 // pred_fallthru
      _
    %v34 = vld [vmem:[%s0] sm:$0x3f]
    %v35 = vld [vmem:[%s0 + $0x8] sm:$0x3f]
    %v36 = vld [vmem:[%s0 + $0x10] sm:$0x3f]
    %v37 = vld [vmem:[%s0 + $0x18] sm:$0x3f]
    %v38 = vld [vmem:[%s0 + $0x20] sm:$0x3f]
    %v39 = vld [vmem:[%s0 + $0x28] sm:$0x3f]
    %v40 = vld [vmem:[%s2] sm:$0xff]
    %v41 = vld [vmem:[%s2 + $0x8] sm:$0xf]
    %vm42 = vcmask 48128
    %v44 = vsel %vm42, %v40, 0
    %v47 = vsel %vm42, %v41, 0
    %vm49 = vcmask 1045504
    %v51 = vsel %vm49, %v34, 0
    %v54 = vsel %vm49, %v35, 0
    %v57 = vsel %vm49, %v36, 0
    %v60 = vsel %vm49, %v37, 0
    %v63 = vsel %vm49, %v38, 0
    %v66 = vsel %vm49, %v39, 0
    %68 = vmatprep.subr.mxu0 0.0
    %69 = vmatpush1.msra.mxu0 0.0
    %70 = vmatprep.subr.mxu0 0.0
    %71 = vmatpush1.msra.mxu0 0.0
    %72 = vmatprep.subr.mxu0 0.0
    %73 = vmatpush1.msra.mxu0 0.0
    %74 = vmatprep.subr.mxu0 0.0
    %75 = vmatpush1.msra.mxu0 0.0
    %76 = vmatprep.subr.mxu0 0.0
    %77 = vmatpush1.msra.mxu0 0.0
    %78 = vmatprep.subr.mxu0 0.0
    %79 = vmatpush1.msra.mxu0 0.0
    %80 = vmatprep.subr.mxu0 0.0
    %81 = vmatpush1.msra.mxu0 0.0
    %82 = vmatprep.subr.mxu0 0.0
    %83 = vmatpush1.msra.mxu0 0.0
    %84 = vmatprep.subr.mxu0 0.0
    %85 = vmatpush1.msra.mxu0 0.0
    %86 = vmatprep.subr.mxu0 0.0
    %87 = vmatpush1.msra.mxu0 0.0
    %88 = vmatprep.subr.mxu0 0.0
    %89 = vmatpush1.msra.mxu0 0.0
    %90 = vmatprep.subr.mxu0 0.0
    %91 = vmatpush1.msra.mxu0 0.0
    %92 = vmatprep.subr.mxu0 0.0
    %93 = vmatpush1.msra.mxu0 0.0
    %94 = vmatprep.subr.mxu0 0.0
    %95 = vmatpush1.msra.mxu0 0.0
    %96 = vmatprep.subr.mxu0 0.0
    %97 = vmatpush1.msra.mxu0 0.0
    %98 = vmatprep.subr.mxu0 %v54
    %99 = vmatpush1.msra.mxu0 %v51
    %100 = vmatprep.subr.mxu0 0.0
    %101 = vmatpush2.msra.mxu0 0.0
    %102 = vmatprep.subr.mxu0 0.0
    %103 = vmatpush2.msra.mxu0 0.0
    %104 = vmatprep.subr.mxu0 0.0
    %105 = vmatpush2.msra.mxu0 0.0
    %106 = vmatprep.subr.mxu0 0.0
    %107 = vmatpush2.msra.mxu0 0.0
    %108 = vmatprep.subr.mxu0 0.0
    %109 = vmatpush2.msra.mxu0 0.0
    %110 = vmatprep.subr.mxu0 0.0
    %111 = vmatpush2.msra.mxu0 0.0
    %112 = vmatprep.subr.mxu0 0.0
    %113 = vmatpush2.msra.mxu0 0.0
    %114 = vmatprep.subr.mxu0 0.0
    %115 = vmatpush2.msra.mxu0 0.0
    %116 = vmatprep.subr.mxu0 0.0
    %117 = vmatpush2.msra.mxu0 0.0
    %118 = vmatprep.subr.mxu0 0.0
    %119 = vmatpush2.msra.mxu0 0.0
    %120 = vmatprep.subr.mxu0 0.0
    %121 = vmatpush2.msra.mxu0 0.0
    %122 = vmatprep.subr.mxu0 0.0
    %123 = vmatpush2.msra.mxu0 0.0
    %124 = vmatprep.subr.mxu0 0.0
    %125 = vmatpush2.msra.mxu0 0.0
    %126 = vmatprep.subr.mxu0 0.0
    %127 = vmatpush2.msra.mxu0 0.0
    %128 = vmatprep.subr.mxu0 0.0
    %129 = vmatpush2.msra.mxu0 0.0
    %130 = vmatprep.subr.mxu0 0.0
    %131 = vmatpush2.msra.mxu0 0.0
    %132 = vmatprep.mubr.f32.mxu0 0.0
    %133 = vmatmul.mubr.f32.gmra.mxu0 %v44
    %v134 = vpop.f32.mrf.mxu0
    %v135 = vadd.f32 0.0, %v134
    %v136 = vpop.f32.mrf.mxu0
    %v137 = vadd.f32 0.0, %v136
    %138 = vmatprep.mubr.f32.mxu0 0.0
    %139 = vmatmul.mubr.f32.gmra.mxu0 %v47
    %v140 = vpop.f32.mrf.mxu0
    %v141 = vadd.f32 0.0, %v140
    %v142 = vpop.f32.mrf.mxu0
    %v143 = vadd.f32 0.0, %v142
    %144 = vdwg.mxu0
    %145 = vmatprep.subr.mxu0 0.0
    %146 = vmatpush1.msra.mxu0 0.0
    %147 = vmatprep.subr.mxu0 0.0
    %148 = vmatpush1.msra.mxu0 0.0
    %149 = vmatprep.subr.mxu0 0.0
    %150 = vmatpush1.msra.mxu0 0.0
    %151 = vmatprep.subr.mxu0 0.0
    %152 = vmatpush1.msra.mxu0 0.0
    %153 = vmatprep.subr.mxu0 0.0
    %154 = vmatpush1.msra.mxu0 0.0
    %155 = vmatprep.subr.mxu0 0.0
    %156 = vmatpush1.msra.mxu0 0.0
    %157 = vmatprep.subr.mxu0 0.0
    %158 = vmatpush1.msra.mxu0 0.0
    %159 = vmatprep.subr.mxu0 0.0
    %160 = vmatpush1.msra.mxu0 0.0
    %161 = vmatprep.subr.mxu0 0.0
    %162 = vmatpush1.msra.mxu0 0.0
    %163 = vmatprep.subr.mxu0 0.0
    %164 = vmatpush1.msra.mxu0 0.0
    %165 = vmatprep.subr.mxu0 0.0
    %166 = vmatpush1.msra.mxu0 0.0
    %167 = vmatprep.subr.mxu0 0.0
    %168 = vmatpush1.msra.mxu0 0.0
    %169 = vmatprep.subr.mxu0 0.0
    %170 = vmatpush1.msra.mxu0 0.0
    %171 = vmatprep.subr.mxu0 0.0
    %172 = vmatpush1.msra.mxu0 0.0
    %173 = vmatprep.subr.mxu0 0.0
    %174 = vmatpush1.msra.mxu0 0.0
    %175 = vmatprep.subr.mxu0 %v60
    %176 = vmatpush1.msra.mxu0 %v57
    %177 = vmatprep.subr.mxu0 0.0
    %178 = vmatpush2.msra.mxu0 0.0
    %179 = vmatprep.subr.mxu0 0.0
    %180 = vmatpush2.msra.mxu0 0.0
    %181 = vmatprep.subr.mxu0 0.0
    %182 = vmatpush2.msra.mxu0 0.0
    %183 = vmatprep.subr.mxu0 0.0
    %184 = vmatpush2.msra.mxu0 0.0
    %185 = vmatprep.subr.mxu0 0.0
    %186 = vmatpush2.msra.mxu0 0.0
    %187 = vmatprep.subr.mxu0 0.0
    %188 = vmatpush2.msra.mxu0 0.0
    %189 = vmatprep.subr.mxu0 0.0
    %190 = vmatpush2.msra.mxu0 0.0
    %191 = vmatprep.subr.mxu0 0.0
    %192 = vmatpush2.msra.mxu0 0.0
    %193 = vmatprep.subr.mxu0 0.0
    %194 = vmatpush2.msra.mxu0 0.0
    %195 = vmatprep.subr.mxu0 0.0
    %196 = vmatpush2.msra.mxu0 0.0
    %197 = vmatprep.subr.mxu0 0.0
    %198 = vmatpush2.msra.mxu0 0.0
    %199 = vmatprep.subr.mxu0 0.0
    %200 = vmatpush2.msra.mxu0 0.0
    %201 = vmatprep.subr.mxu0 0.0
    %202 = vmatpush2.msra.mxu0 0.0
    %203 = vmatprep.subr.mxu0 0.0
    %204 = vmatpush2.msra.mxu0 0.0
    %205 = vmatprep.subr.mxu0 0.0
    %206 = vmatpush2.msra.mxu0 0.0
    %207 = vmatprep.subr.mxu0 0.0
    %208 = vmatpush2.msra.mxu0 0.0
    %209 = vmatprep.mubr.f32.mxu0 0.0
    %210 = vmatmul.mubr.f32.gmra.mxu0 %v44
    %v211 = vpop.f32.mrf.mxu0
    %v212 = vadd.f32 0.0, %v211
    %v213 = vpop.f32.mrf.mxu0
    %v214 = vadd.f32 0.0, %v213
    %215 = vmatprep.mubr.f32.mxu0 0.0
    %216 = vmatmul.mubr.f32.gmra.mxu0 %v47
    %v217 = vpop.f32.mrf.mxu0
    %v218 = vadd.f32 0.0, %v217
    %v219 = vpop.f32.mrf.mxu0
    %v220 = vadd.f32 0.0, %v219
    %221 = vdwg.mxu0
    %222 = vmatprep.subr.mxu0 0.0
    %223 = vmatpush1.msra.mxu0 0.0
    %224 = vmatprep.subr.mxu0 0.0
    %225 = vmatpush1.msra.mxu0 0.0
    %226 = vmatprep.subr.mxu0 0.0
    %227 = vmatpush1.msra.mxu0 0.0
    %228 = vmatprep.subr.mxu0 0.0
    %229 = vmatpush1.msra.mxu0 0.0
    %230 = vmatprep.subr.mxu0 0.0
    %231 = vmatpush1.msra.mxu0 0.0
    %232 = vmatprep.subr.mxu0 0.0
    %233 = vmatpush1.msra.mxu0 0.0
    %234 = vmatprep.subr.mxu0 0.0
    %235 = vmatpush1.msra.mxu0 0.0
    %236 = vmatprep.subr.mxu0 0.0
    %237 = vmatpush1.msra.mxu0 0.0
    %238 = vmatprep.subr.mxu0 0.0
    %239 = vmatpush1.msra.mxu0 0.0
    %240 = vmatprep.subr.mxu0 0.0
    %241 = vmatpush1.msra.mxu0 0.0
    %242 = vmatprep.subr.mxu0 0.0
    %243 = vmatpush1.msra.mxu0 0.0
    %244 = vmatprep.subr.mxu0 0.0
    %245 = vmatpush1.msra.mxu0 0.0
    %246 = vmatprep.subr.mxu0 0.0
    %247 = vmatpush1.msra.mxu0 0.0
    %248 = vmatprep.subr.mxu0 0.0
    %249 = vmatpush1.msra.mxu0 0.0
    %250 = vmatprep.subr.mxu0 0.0
    %251 = vmatpush1.msra.mxu0 0.0
    %252 = vmatprep.subr.mxu0 %v66
    %253 = vmatpush1.msra.mxu0 %v63
    %254 = vmatprep.subr.mxu0 0.0
    %255 = vmatpush2.msra.mxu0 0.0
    %256 = vmatprep.subr.mxu0 0.0
    %257 = vmatpush2.msra.mxu0 0.0
    %258 = vmatprep.subr.mxu0 0.0
    %259 = vmatpush2.msra.mxu0 0.0
    %260 = vmatprep.subr.mxu0 0.0
    %261 = vmatpush2.msra.mxu0 0.0
    %262 = vmatprep.subr.mxu0 0.0
    %263 = vmatpush2.msra.mxu0 0.0
    %264 = vmatprep.subr.mxu0 0.0
    %265 = vmatpush2.msra.mxu0 0.0
    %266 = vmatprep.subr.mxu0 0.0
    %267 = vmatpush2.msra.mxu0 0.0
    %268 = vmatprep.subr.mxu0 0.0
    %269 = vmatpush2.msra.mxu0 0.0
    %270 = vmatprep.subr.mxu0 0.0
    %271 = vmatpush2.msra.mxu0 0.0
    %272 = vmatprep.subr.mxu0 0.0
    %273 = vmatpush2.msra.mxu0 0.0
    %274 = vmatprep.subr.mxu0 0.0
    %275 = vmatpush2.msra.mxu0 0.0
    %276 = vmatprep.subr.mxu0 0.0
    %277 = vmatpush2.msra.mxu0 0.0
    %278 = vmatprep.subr.mxu0 0.0
    %279 = vmatpush2.msra.mxu0 0.0
    %280 = vmatprep.subr.mxu0 0.0
    %281 = vmatpush2.msra.mxu0 0.0
    %282 = vmatprep.subr.mxu0 0.0
    %283 = vmatpush2.msra.mxu0 0.0
    %284 = vmatprep.subr.mxu0 0.0
    %285 = vmatpush2.msra.mxu0 0.0
    %286 = vmatprep.mubr.f32.mxu0 0.0
    %287 = vmatmul.mubr.f32.gmra.mxu0 %v44
    %v288 = vpop.f32.mrf.mxu0
    %v289 = vadd.f32 0.0, %v288
    %v290 = vpop.f32.mrf.mxu0
    %v291 = vadd.f32 0.0, %v290
    %292 = vmatprep.mubr.f32.mxu0 0.0
    %293 = vmatmul.mubr.f32.gmra.mxu0 %v47
    %v294 = vpop.f32.mrf.mxu0
    %v295 = vadd.f32 0.0, %v294
    %v296 = vpop.f32.mrf.mxu0
    %v297 = vadd.f32 0.0, %v296
    %298 = vdwg.mxu0
    %s299 = scalar_lea.vmem %s2, 16
    %v300 = vld [vmem:[%s299] sm:$0xff]
    %v301 = vld [vmem:[%s299 + $0x8] sm:$0xf]
    %v303 = vsel %vm42, %v300, 0
    %v306 = vsel %vm42, %v301, 0
    %308 = vmatprep.subr.mxu0 0.0
    %309 = vmatpush1.msra.mxu0 0.0
    %310 = vmatprep.subr.mxu0 0.0
    %311 = vmatpush1.msra.mxu0 0.0
    %312 = vmatprep.subr.mxu0 0.0
    %313 = vmatpush1.msra.mxu0 0.0
    %314 = vmatprep.subr.mxu0 0.0
    %315 = vmatpush1.msra.mxu0 0.0
    %316 = vmatprep.subr.mxu0 0.0
    %317 = vmatpush1.msra.mxu0 0.0
    %318 = vmatprep.subr.mxu0 0.0
    %319 = vmatpush1.msra.mxu0 0.0
    %320 = vmatprep.subr.mxu0 0.0
    %321 = vmatpush1.msra.mxu0 0.0
    %322 = vmatprep.subr.mxu0 0.0
    %323 = vmatpush1.msra.mxu0 0.0
    %324 = vmatprep.subr.mxu0 0.0
    %325 = vmatpush1.msra.mxu0 0.0
    %326 = vmatprep.subr.mxu0 0.0
    %327 = vmatpush1.msra.mxu0 0.0
    %328 = vmatprep.subr.mxu0 0.0
    %329 = vmatpush1.msra.mxu0 0.0
    %330 = vmatprep.subr.mxu0 0.0
    %331 = vmatpush1.msra.mxu0 0.0
    %332 = vmatprep.subr.mxu0 0.0
    %333 = vmatpush1.msra.mxu0 0.0
    %334 = vmatprep.subr.mxu0 0.0
    %335 = vmatpush1.msra.mxu0 0.0
    %336 = vmatprep.subr.mxu0 0.0
    %337 = vmatpush1.msra.mxu0 0.0
    %338 = vmatprep.subr.mxu0 %v54
    %339 = vmatpush1.msra.mxu0 %v51
    %340 = vmatprep.subr.mxu0 0.0
    %341 = vmatpush2.msra.mxu0 0.0
    %342 = vmatprep.subr.mxu0 0.0
    %343 = vmatpush2.msra.mxu0 0.0
    %344 = vmatprep.subr.mxu0 0.0
    %345 = vmatpush2.msra.mxu0 0.0
    %346 = vmatprep.subr.mxu0 0.0
    %347 = vmatpush2.msra.mxu0 0.0
    %348 = vmatprep.subr.mxu0 0.0
    %349 = vmatpush2.msra.mxu0 0.0
    %350 = vmatprep.subr.mxu0 0.0
    %351 = vmatpush2.msra.mxu0 0.0
    %352 = vmatprep.subr.mxu0 0.0
    %353 = vmatpush2.msra.mxu0 0.0
    %354 = vmatprep.subr.mxu0 0.0
    %355 = vmatpush2.msra.mxu0 0.0
    %356 = vmatprep.subr.mxu0 0.0
    %357 = vmatpush2.msra.mxu0 0.0
    %358 = vmatprep.subr.mxu0 0.0
    %359 = vmatpush2.msra.mxu0 0.0
    %360 = vmatprep.subr.mxu0 0.0
    %361 = vmatpush2.msra.mxu0 0.0
    %362 = vmatprep.subr.mxu0 0.0
    %363 = vmatpush2.msra.mxu0 0.0
    %364 = vmatprep.subr.mxu0 0.0
    %365 = vmatpush2.msra.mxu0 0.0
    %366 = vmatprep.subr.mxu0 0.0
    %367 = vmatpush2.msra.mxu0 0.0
    %368 = vmatprep.subr.mxu0 0.0
    %369 = vmatpush2.msra.mxu0 0.0
    %370 = vmatprep.subr.mxu0 0.0
    %371 = vmatpush2.msra.mxu0 0.0
    %372 = vmatprep.mubr.f32.mxu0 0.0
    %373 = vmatmul.mubr.f32.gmra.mxu0 %v303
    %v374 = vpop.f32.mrf.mxu0
    %v375 = vadd.f32 0.0, %v374
    %v376 = vpop.f32.mrf.mxu0
    %v377 = vadd.f32 0.0, %v376
    %378 = vmatprep.mubr.f32.mxu0 0.0
    %379 = vmatmul.mubr.f32.gmra.mxu0 %v306
    %v380 = vpop.f32.mrf.mxu0
    %v381 = vadd.f32 0.0, %v380
    %v382 = vpop.f32.mrf.mxu0
    %v383 = vadd.f32 0.0, %v382
    %384 = vdwg.mxu0
    %385 = vmatprep.subr.mxu0 0.0
    %386 = vmatpush1.msra.mxu0 0.0
    %387 = vmatprep.subr.mxu0 0.0
    %388 = vmatpush1.msra.mxu0 0.0
    %389 = vmatprep.subr.mxu0 0.0
    %390 = vmatpush1.msra.mxu0 0.0
    %391 = vmatprep.subr.mxu0 0.0
    %392 = vmatpush1.msra.mxu0 0.0
    %393 = vmatprep.subr.mxu0 0.0
    %394 = vmatpush1.msra.mxu0 0.0
    %395 = vmatprep.subr.mxu0 0.0
    %396 = vmatpush1.msra.mxu0 0.0
    %397 = vmatprep.subr.mxu0 0.0
    %398 = vmatpush1.msra.mxu0 0.0
    %399 = vmatprep.subr.mxu0 0.0
    %400 = vmatpush1.msra.mxu0 0.0
    %401 = vmatprep.subr.mxu0 0.0
    %402 = vmatpush1.msra.mxu0 0.0
    %403 = vmatprep.subr.mxu0 0.0
    %404 = vmatpush1.msra.mxu0 0.0
    %405 = vmatprep.subr.mxu0 0.0
    %406 = vmatpush1.msra.mxu0 0.0
    %407 = vmatprep.subr.mxu0 0.0
    %408 = vmatpush1.msra.mxu0 0.0
    %409 = vmatprep.subr.mxu0 0.0
    %410 = vmatpush1.msra.mxu0 0.0
    %411 = vmatprep.subr.mxu0 0.0
    %412 = vmatpush1.msra.mxu0 0.0
    %413 = vmatprep.subr.mxu0 0.0
    %414 = vmatpush1.msra.mxu0 0.0
    %415 = vmatprep.subr.mxu0 %v60
    %416 = vmatpush1.msra.mxu0 %v57
    %417 = vmatprep.subr.mxu0 0.0
    %418 = vmatpush2.msra.mxu0 0.0
    %419 = vmatprep.subr.mxu0 0.0
    %420 = vmatpush2.msra.mxu0 0.0
    %421 = vmatprep.subr.mxu0 0.0
    %422 = vmatpush2.msra.mxu0 0.0
    %423 = vmatprep.subr.mxu0 0.0
    %424 = vmatpush2.msra.mxu0 0.0
    %425 = vmatprep.subr.mxu0 0.0
    %426 = vmatpush2.msra.mxu0 0.0
    %427 = vmatprep.subr.mxu0 0.0
    %428 = vmatpush2.msra.mxu0 0.0
    %429 = vmatprep.subr.mxu0 0.0
    %430 = vmatpush2.msra.mxu0 0.0
    %431 = vmatprep.subr.mxu0 0.0
    %432 = vmatpush2.msra.mxu0 0.0
    %433 = vmatprep.subr.mxu0 0.0
    %434 = vmatpush2.msra.mxu0 0.0
    %435 = vmatprep.subr.mxu0 0.0
    %436 = vmatpush2.msra.mxu0 0.0
    %437 = vmatprep.subr.mxu0 0.0
    %438 = vmatpush2.msra.mxu0 0.0
    %439 = vmatprep.subr.mxu0 0.0
    %440 = vmatpush2.msra.mxu0 0.0
    %441 = vmatprep.subr.mxu0 0.0
    %442 = vmatpush2.msra.mxu0 0.0
    %443 = vmatprep.subr.mxu0 0.0
    %444 = vmatpush2.msra.mxu0 0.0
    %445 = vmatprep.subr.mxu0 0.0
    %446 = vmatpush2.msra.mxu0 0.0
    %447 = vmatprep.subr.mxu0 0.0
    %448 = vmatpush2.msra.mxu0 0.0
    %449 = vmatprep.mubr.f32.mxu0 0.0
    %450 = vmatmul.mubr.f32.gmra.mxu0 %v303
    %v451 = vpop.f32.mrf.mxu0
    %v452 = vadd.f32 0.0, %v451
    %v453 = vpop.f32.mrf.mxu0
    %v454 = vadd.f32 0.0, %v453
    %455 = vmatprep.mubr.f32.mxu0 0.0
    %456 = vmatmul.mubr.f32.gmra.mxu0 %v306
    %v457 = vpop.f32.mrf.mxu0
    %v458 = vadd.f32 0.0, %v457
    %v459 = vpop.f32.mrf.mxu0
    %v460 = vadd.f32 0.0, %v459
    %461 = vdwg.mxu0
    %462 = vmatprep.subr.mxu0 0.0
    %463 = vmatpush1.msra.mxu0 0.0
    %464 = vmatprep.subr.mxu0 0.0
    %465 = vmatpush1.msra.mxu0 0.0
    %466 = vmatprep.subr.mxu0 0.0
    %467 = vmatpush1.msra.mxu0 0.0
    %468 = vmatprep.subr.mxu0 0.0
    %469 = vmatpush1.msra.mxu0 0.0
    %470 = vmatprep.subr.mxu0 0.0
    %471 = vmatpush1.msra.mxu0 0.0
    %472 = vmatprep.subr.mxu0 0.0
    %473 = vmatpush1.msra.mxu0 0.0
    %474 = vmatprep.subr.mxu0 0.0
    %475 = vmatpush1.msra.mxu0 0.0
    %476 = vmatprep.subr.mxu0 0.0
    %477 = vmatpush1.msra.mxu0 0.0
    %478 = vmatprep.subr.mxu0 0.0
    %479 = vmatpush1.msra.mxu0 0.0
    %480 = vmatprep.subr.mxu0 0.0
    %481 = vmatpush1.msra.mxu0 0.0
    %482 = vmatprep.subr.mxu0 0.0
    %483 = vmatpush1.msra.mxu0 0.0
    %484 = vmatprep.subr.mxu0 0.0
    %485 = vmatpush1.msra.mxu0 0.0
    %486 = vmatprep.subr.mxu0 0.0
    %487 = vmatpush1.msra.mxu0 0.0
    %488 = vmatprep.subr.mxu0 0.0
    %489 = vmatpush1.msra.mxu0 0.0
    %490 = vmatprep.subr.mxu0 0.0
    %491 = vmatpush1.msra.mxu0 0.0
    %492 = vmatprep.subr.mxu0 %v66
    %493 = vmatpush1.msra.mxu0 %v63
    %494 = vmatprep.subr.mxu0 0.0
    %495 = vmatpush2.msra.mxu0 0.0
    %496 = vmatprep.subr.mxu0 0.0
    %497 = vmatpush2.msra.mxu0 0.0
    %498 = vmatprep.subr.mxu0 0.0
    %499 = vmatpush2.msra.mxu0 0.0
    %500 = vmatprep.subr.mxu0 0.0
    %501 = vmatpush2.msra.mxu0 0.0
    %502 = vmatprep.subr.mxu0 0.0
    %503 = vmatpush2.msra.mxu0 0.0
    %504 = vmatprep.subr.mxu0 0.0
    %505 = vmatpush2.msra.mxu0 0.0
    %506 = vmatprep.subr.mxu0 0.0
    %507 = vmatpush2.msra.mxu0 0.0
    %508 = vmatprep.subr.mxu0 0.0
    %509 = vmatpush2.msra.mxu0 0.0
    %510 = vmatprep.subr.mxu0 0.0
    %511 = vmatpush2.msra.mxu0 0.0
    %512 = vmatprep.subr.mxu0 0.0
    %513 = vmatpush2.msra.mxu0 0.0
    %514 = vmatprep.subr.mxu0 0.0
    %515 = vmatpush2.msra.mxu0 0.0
    %516 = vmatprep.subr.mxu0 0.0
    %517 = vmatpush2.msra.mxu0 0.0
    %518 = vmatprep.subr.mxu0 0.0
    %519 = vmatpush2.msra.mxu0 0.0
    %520 = vmatprep.subr.mxu0 0.0
    %521 = vmatpush2.msra.mxu0 0.0
    %522 = vmatprep.subr.mxu0 0.0
    %523 = vmatpush2.msra.mxu0 0.0
    %524 = vmatprep.subr.mxu0 0.0
    %525 = vmatpush2.msra.mxu0 0.0
    %526 = vmatprep.mubr.f32.mxu0 0.0
    %527 = vmatmul.mubr.f32.gmra.mxu0 %v303
    %v528 = vpop.f32.mrf.mxu0
    %v529 = vadd.f32 0.0, %v528
    %v530 = vpop.f32.mrf.mxu0
    %v531 = vadd.f32 0.0, %v530
    %532 = vmatprep.mubr.f32.mxu0 0.0
    %533 = vmatmul.mubr.f32.gmra.mxu0 %v306
    %v534 = vpop.f32.mrf.mxu0
    %v535 = vadd.f32 0.0, %v534
    %v536 = vpop.f32.mrf.mxu0
    %v537 = vadd.f32 0.0, %v536
    %538 = vdwg.mxu0
    %v539 = vmul.f32 %v375, -0.5
    %v540 = vmul.f32 %v377, -0.5
    %v541 = vmul.f32 %v452, -0.5
    %v542 = vmul.f32 %v454, -0.5
    %v543 = vmul.f32 %v529, -0.5
    %v544 = vmul.f32 %v531, -0.5
    %v545 = vmul.f32 %v381, -0.5
    %v546 = vmul.f32 %v383, -0.5
    %v547 = vmul.f32 %v458, -0.5
    %v548 = vmul.f32 %v460, -0.5
    %v549 = vmul.f32 %v535, -0.5
    %v550 = vmul.f32 %v537, -0.5
    %v551 = vmul.f32 %v539, 1.442695
    %v552 = vpow.pop %v551
    %v553 = vmul.f32 %v540, 1.442695
    %v554 = vpow.pop %v553
    %v555 = vmul.f32 %v541, 1.442695
    %v556 = vpow.pop %v555
    %v557 = vmul.f32 %v542, 1.442695
    %v558 = vpow.pop %v557
    %v559 = vmul.f32 %v543, 1.442695
    %v560 = vpow.pop %v559
    %v561 = vmul.f32 %v544, 1.442695
    %v562 = vpow.pop %v561
    %v563 = vmul.f32 %v545, 1.442695
    %v564 = vpow.pop %v563
    %v565 = vmul.f32 %v546, 1.442695
    %v566 = vpow.pop %v565
    %v567 = vmul.f32 %v547, 1.442695
    %v568 = vpow.pop %v567
    %v569 = vmul.f32 %v548, 1.442695
    %v570 = vpow.pop %v569
    %v571 = vmul.f32 %v549, 1.442695
    %v572 = vpow.pop %v571
    %v573 = vmul.f32 %v550, 1.442695
    %v574 = vpow.pop %v573
    %v575 = vand.u32 2147483647, %v135
    %vm576 = vcmp.le.f32.partialorder %v575, 0.7853982
    %vm577 = vcmp.lt.s32.totalorder %v135, 0
    %v578 = vand.u32 %v135, 2139095040
    %v579 = vshrl.u32 %v578, 23
    %v580 = vsub.s32 %v579, 127
    %v581 = vand.u32 2147483647, %v135
    %v582 = vand.u32 %v581, 8388607
    %v583 = vor.u32 %v582, 8388608
    %v584 = vsub.s32 0, %v583
    %v585 = vadd.s32 %v580, 1
    %vm586 = vcmp.gt.s32.totalorder %v585, 0
    %v587 = vsel %vm586, %v585, 0
    %v588 = vshrl.u32 %v587, 5
    %v589 = vand.u32 %v587, 31
    %v590 = vsub.s32 32, %v589
    %v591 = vshrl.u32 683565275, %v590
    %v592 = vshll.u32 683565275, %v589
    %v593 = vshrl.u32 2475754826, %v590
    %v594 = vor.u32 %v592, %v593
    %v595 = vshll.u32 2475754826, %v589
    %v596 = vshrl.u32 2131351028, %v590
    %v597 = vor.u32 %v595, %v596
    %v598 = vshll.u32 2131351028, %v589
    %v599 = vshrl.u32 2102212464, %v590
    %v600 = vor.u32 %v598, %v599
    %v601 = vshll.u32 2102212464, %v589
    %v602 = vshrl.u32 920167782, %v590
    %v603 = vor.u32 %v601, %v602
    %v604 = vshll.u32 920167782, %v589
    %v605 = vshrl.u32 1326507024, %v590
    %v606 = vor.u32 %v604, %v605
    %vm607 = vcmp.lt.s32.totalorder %v588, 1
    %vm608 = vcmp.lt.s32.totalorder %v588, 2
    %vm609 = vcmp.lt.s32.totalorder %v588, 3
    %vm610 = vcmp.lt.s32.totalorder %v588, 4
    %v611 = vsel %vm607, %v591, %v594
    %v612 = vsel %vm610, %v600, 2102212464
    %v613 = vsel %vm609, %v597, %v612
    %v614 = vsel %vm608, %v611, %v613
    %v615 = vsel %vm607, %v594, %v597
    %v616 = vsel %vm610, %v603, 920167782
    %v617 = vsel %vm609, %v600, %v616
    %v618 = vsel %vm608, %v615, %v617
    %v619 = vsel %vm607, %v597, %v600
    %v620 = vsel %vm610, %v606, 1326507024
    %v621 = vsel %vm609, %v603, %v620
    %v622 = vsel %vm608, %v619, %v621
    %v623 = vshll.u32 %v583, 8
    %v624 = vmul.u32.u64.compose %v623, %v622
    %v625 = vextract.low.u32 %v624
    %v626 = vextract.high.u32 %v624
    %v627 = vmul.u32.u64.compose %v623, %v618
    %v628 = vextract.low.u32 %v627
    %v629 = vextract.high.u32 %v627
    %v630 = vmul.u32 %v623, %v614
    %v631 = vadd.s32 %v626, %v628
    %vm632 = vc.u32 %v626, %v628
    %v633 = vadd.s32 %v629, 1
    %v634 = vsel %vm632, %v633, %v629
    %v635 = vadd.s32 %v630, %v634
    %v636 = vadd.s32 %v635, 536870912
    %v637 = vshrl.u32 %v636, 30
    %v638 = vshll.u32 %v637, 30
    %v639 = vsub.s32 %v635, %v638
    %vm640 = vcmp.lt.s32.totalorder %v639, 0
    %v641 = vsub.s32 0, %v639
    %v642 = vsel %vm640, %v641, %v639
    %v643 = vclz %v642
    %v644 = vsub.s32 %v643, 2
    %vm645 = vcmp.gt.s32.totalorder 0, %v644
    %v646 = vsel %vm645, 0, %v644
    %v647 = vsub.s32 32, %v646
    %v648 = vshll.u32 %v639, %v646
    %v649 = vshrl.u32 %v631, %v647
    %v650 = vor.u32 %v648, %v649
    %v651 = vsub.s32 4294967266, %v646
    %v652 = vadd.s32 %v651, 127
    %v653 = vshll.u32 %v652, 23
    %v654 = vor.u32 4788187, %v653
    %v655 = vand.u32 2147483647, %v654
    %v657 = vcvt.s32.f32 %v650
    %v658 = vmul.f32 %v657, %v655
    %v659 = vxor.u32 %v658, 2147483648
    %v660 = vsel %vm577, %v659, %v658
    %v661 = vsub.s32 4, %v637
    %v662 = vsel %vm577, %v661, %v637
    %v663 = vsel %vm576, %v135, %v660
    %v664 = vsel %vm576, 0, %v662
    %v665 = vcosq.f32.pop %v663
    %v666 = vsinq.f32.pop %v663
    %vm667 = vweird.f32 %v135
    %v668 = vadd.s32 %v664, 3
    %v669 = vand.u32 %v668, 3
    %vm670 = vcmp.lt.s32.totalorder %v669, 2
    %vm671 = vcmp.eq.s32.totalorder %v669, 0
    %v672 = vxor.u32 %v666, 2147483648
    %v673 = vsel %vm671, %v665, %v672
    %vm674 = vcmp.eq.s32.totalorder %v669, 2
    %v675 = vxor.u32 %v665, 2147483648
    %v676 = vsel %vm674, %v675, %v666
    %v677 = vsel %vm670, %v673, %v676
    %v678 = vsel %vm667, nan, %v677
    %v679 = vand.u32 2147483647, %v137
    %vm680 = vcmp.le.f32.partialorder %v679, 0.7853982
    %vm681 = vcmp.lt.s32.totalorder %v137, 0
    %v682 = vand.u32 %v137, 2139095040
    %v683 = vshrl.u32 %v682, 23
    %v684 = vsub.s32 %v683, 127
    %v685 = vand.u32 2147483647, %v137
    %v686 = vand.u32 %v685, 8388607
    %v687 = vor.u32 %v686, 8388608
    %v688 = vsub.s32 0, %v687
    %v689 = vadd.s32 %v684, 1
    %vm690 = vcmp.gt.s32.totalorder %v689, 0
    %v691 = vsel %vm690, %v689, 0
    %v692 = vshrl.u32 %v691, 5
    %v693 = vand.u32 %v691, 31
    %v694 = vsub.s32 32, %v693
    %v695 = vshrl.u32 683565275, %v694
    %v696 = vshll.u32 683565275, %v693
    %v697 = vshrl.u32 2475754826, %v694
    %v698 = vor.u32 %v696, %v697
    %v699 = vshll.u32 2475754826, %v693
    %v700 = vshrl.u32 2131351028, %v694
    %v701 = vor.u32 %v699, %v700
    %v702 = vshll.u32 2131351028, %v693
    %v703 = vshrl.u32 2102212464, %v694
    %v704 = vor.u32 %v702, %v703
    %v705 = vshll.u32 2102212464, %v693
    %v706 = vshrl.u32 920167782, %v694
    %v707 = vor.u32 %v705, %v706
    %v708 = vshll.u32 920167782, %v693
    %v709 = vshrl.u32 1326507024, %v694
    %v710 = vor.u32 %v708, %v709
    %vm711 = vcmp.lt.s32.totalorder %v692, 1
    %vm712 = vcmp.lt.s32.totalorder %v692, 2
    %vm713 = vcmp.lt.s32.totalorder %v692, 3
    %vm714 = vcmp.lt.s32.totalorder %v692, 4
    %v715 = vsel %vm711, %v695, %v698
    %v716 = vsel %vm714, %v704, 2102212464
    %v717 = vsel %vm713, %v701, %v716
    %v718 = vsel %vm712, %v715, %v717
    %v719 = vsel %vm711, %v698, %v701
    %v720 = vsel %vm714, %v707, 920167782
    %v721 = vsel %vm713, %v704, %v720
    %v722 = vsel %vm712, %v719, %v721
    %v723 = vsel %vm711, %v701, %v704
    %v724 = vsel %vm714, %v710, 1326507024
    %v725 = vsel %vm713, %v707, %v724
    %v726 = vsel %vm712, %v723, %v725
    %v727 = vshll.u32 %v687, 8
    %v728 = vmul.u32.u64.compose %v727, %v726
    %v729 = vextract.low.u32 %v728
    %v730 = vextract.high.u32 %v728
    %v731 = vmul.u32.u64.compose %v727, %v722
    %v732 = vextract.low.u32 %v731
    %v733 = vextract.high.u32 %v731
    %v734 = vmul.u32 %v727, %v718
    %v735 = vadd.s32 %v730, %v732
    %vm736 = vc.u32 %v730, %v732
    %v737 = vadd.s32 %v733, 1
    %v738 = vsel %vm736, %v737, %v733
    %v739 = vadd.s32 %v734, %v738
    %v740 = vadd.s32 %v739, 536870912
    %v741 = vshrl.u32 %v740, 30
    %v742 = vshll.u32 %v741, 30
    %v743 = vsub.s32 %v739, %v742
    %vm744 = vcmp.lt.s32.totalorder %v743, 0
    %v745 = vsub.s32 0, %v743
    %v746 = vsel %vm744, %v745, %v743
    %v747 = vclz %v746
    %v748 = vsub.s32 %v747, 2
    %vm749 = vcmp.gt.s32.totalorder 0, %v748
    %v750 = vsel %vm749, 0, %v748
    %v751 = vsub.s32 32, %v750
    %v752 = vshll.u32 %v743, %v750
    %v753 = vshrl.u32 %v735, %v751
    %v754 = vor.u32 %v752, %v753
    %v755 = vsub.s32 4294967266, %v750
    %v756 = vadd.s32 %v755, 127
    %v757 = vshll.u32 %v756, 23
    %v758 = vor.u32 4788187, %v757
    %v759 = vand.u32 2147483647, %v758
    %v761 = vcvt.s32.f32 %v754
    %v762 = vmul.f32 %v761, %v759
    %v763 = vxor.u32 %v762, 2147483648
    %v764 = vsel %vm681, %v763, %v762
    %v765 = vsub.s32 4, %v741
    %v766 = vsel %vm681, %v765, %v741
    %v767 = vsel %vm680, %v137, %v764
    %v768 = vsel %vm680, 0, %v766
    %v769 = vcosq.f32.pop %v767
    %v770 = vsinq.f32.pop %v767
    %vm771 = vweird.f32 %v137
    %v772 = vadd.s32 %v768, 3
    %v773 = vand.u32 %v772, 3
    %vm774 = vcmp.lt.s32.totalorder %v773, 2
    %vm775 = vcmp.eq.s32.totalorder %v773, 0
    %v776 = vxor.u32 %v770, 2147483648
    %v777 = vsel %vm775, %v769, %v776
    %vm778 = vcmp.eq.s32.totalorder %v773, 2
    %v779 = vxor.u32 %v769, 2147483648
    %v780 = vsel %vm778, %v779, %v770
    %v781 = vsel %vm774, %v777, %v780
    %v782 = vsel %vm771, nan, %v781
    %v783 = vand.u32 2147483647, %v212
    %vm784 = vcmp.le.f32.partialorder %v783, 0.7853982
    %vm785 = vcmp.lt.s32.totalorder %v212, 0
    %v786 = vand.u32 %v212, 2139095040
    %v787 = vshrl.u32 %v786, 23
    %v788 = vsub.s32 %v787, 127
    %v789 = vand.u32 2147483647, %v212
    %v790 = vand.u32 %v789, 8388607
    %v791 = vor.u32 %v790, 8388608
    %v792 = vsub.s32 0, %v791
    %v793 = vadd.s32 %v788, 1
    %vm794 = vcmp.gt.s32.totalorder %v793, 0
    %v795 = vsel %vm794, %v793, 0
    %v796 = vshrl.u32 %v795, 5
    %v797 = vand.u32 %v795, 31
    %v798 = vsub.s32 32, %v797
    %v799 = vshrl.u32 683565275, %v798
    %v800 = vshll.u32 683565275, %v797
    %v801 = vshrl.u32 2475754826, %v798
    %v802 = vor.u32 %v800, %v801
    %v803 = vshll.u32 2475754826, %v797
    %v804 = vshrl.u32 2131351028, %v798
    %v805 = vor.u32 %v803, %v804
    %v806 = vshll.u32 2131351028, %v797
    %v807 = vshrl.u32 2102212464, %v798
    %v808 = vor.u32 %v806, %v807
    %v809 = vshll.u32 2102212464, %v797
    %v810 = vshrl.u32 920167782, %v798
    %v811 = vor.u32 %v809, %v810
    %v812 = vshll.u32 920167782, %v797
    %v813 = vshrl.u32 1326507024, %v798
    %v814 = vor.u32 %v812, %v813
    %vm815 = vcmp.lt.s32.totalorder %v796, 1
    %vm816 = vcmp.lt.s32.totalorder %v796, 2
    %vm817 = vcmp.lt.s32.totalorder %v796, 3
    %vm818 = vcmp.lt.s32.totalorder %v796, 4
    %v819 = vsel %vm815, %v799, %v802
    %v820 = vsel %vm818, %v808, 2102212464
    %v821 = vsel %vm817, %v805, %v820
    %v822 = vsel %vm816, %v819, %v821
    %v823 = vsel %vm815, %v802, %v805
    %v824 = vsel %vm818, %v811, 920167782
    %v825 = vsel %vm817, %v808, %v824
    %v826 = vsel %vm816, %v823, %v825
    %v827 = vsel %vm815, %v805, %v808
    %v828 = vsel %vm818, %v814, 1326507024
    %v829 = vsel %vm817, %v811, %v828
    %v830 = vsel %vm816, %v827, %v829
    %v831 = vshll.u32 %v791, 8
    %v832 = vmul.u32.u64.compose %v831, %v830
    %v833 = vextract.low.u32 %v832
    %v834 = vextract.high.u32 %v832
    %v835 = vmul.u32.u64.compose %v831, %v826
    %v836 = vextract.low.u32 %v835
    %v837 = vextract.high.u32 %v835
    %v838 = vmul.u32 %v831, %v822
    %v839 = vadd.s32 %v834, %v836
    %vm840 = vc.u32 %v834, %v836
    %v841 = vadd.s32 %v837, 1
    %v842 = vsel %vm840, %v841, %v837
    %v843 = vadd.s32 %v838, %v842
    %v844 = vadd.s32 %v843, 536870912
    %v845 = vshrl.u32 %v844, 30
    %v846 = vshll.u32 %v845, 30
    %v847 = vsub.s32 %v843, %v846
    %vm848 = vcmp.lt.s32.totalorder %v847, 0
    %v849 = vsub.s32 0, %v847
    %v850 = vsel %vm848, %v849, %v847
    %v851 = vclz %v850
    %v852 = vsub.s32 %v851, 2
    %vm853 = vcmp.gt.s32.totalorder 0, %v852
    %v854 = vsel %vm853, 0, %v852
    %v855 = vsub.s32 32, %v854
    %v856 = vshll.u32 %v847, %v854
    %v857 = vshrl.u32 %v839, %v855
    %v858 = vor.u32 %v856, %v857
    %v859 = vsub.s32 4294967266, %v854
    %v860 = vadd.s32 %v859, 127
    %v861 = vshll.u32 %v860, 23
    %v862 = vor.u32 4788187, %v861
    %v863 = vand.u32 2147483647, %v862
    %v865 = vcvt.s32.f32 %v858
    %v866 = vmul.f32 %v865, %v863
    %v867 = vxor.u32 %v866, 2147483648
    %v868 = vsel %vm785, %v867, %v866
    %v869 = vsub.s32 4, %v845
    %v870 = vsel %vm785, %v869, %v845
    %v871 = vsel %vm784, %v212, %v868
    %v872 = vsel %vm784, 0, %v870
    %v873 = vcosq.f32.pop %v871
    %v874 = vsinq.f32.pop %v871
    %vm875 = vweird.f32 %v212
    %v876 = vadd.s32 %v872, 3
    %v877 = vand.u32 %v876, 3
    %vm878 = vcmp.lt.s32.totalorder %v877, 2
    %vm879 = vcmp.eq.s32.totalorder %v877, 0
    %v880 = vxor.u32 %v874, 2147483648
    %v881 = vsel %vm879, %v873, %v880
    %vm882 = vcmp.eq.s32.totalorder %v877, 2
    %v883 = vxor.u32 %v873, 2147483648
    %v884 = vsel %vm882, %v883, %v874
    %v885 = vsel %vm878, %v881, %v884
    %v886 = vsel %vm875, nan, %v885
    %v887 = vand.u32 2147483647, %v214
    %vm888 = vcmp.le.f32.partialorder %v887, 0.7853982
    %vm889 = vcmp.lt.s32.totalorder %v214, 0
    %v890 = vand.u32 %v214, 2139095040
    %v891 = vshrl.u32 %v890, 23
    %v892 = vsub.s32 %v891, 127
    %v893 = vand.u32 2147483647, %v214
    %v894 = vand.u32 %v893, 8388607
    %v895 = vor.u32 %v894, 8388608
    %v896 = vsub.s32 0, %v895
    %v897 = vadd.s32 %v892, 1
    %vm898 = vcmp.gt.s32.totalorder %v897, 0
    %v899 = vsel %vm898, %v897, 0
    %v900 = vshrl.u32 %v899, 5
    %v901 = vand.u32 %v899, 31
    %v902 = vsub.s32 32, %v901
    %v903 = vshrl.u32 683565275, %v902
    %v904 = vshll.u32 683565275, %v901
    %v905 = vshrl.u32 2475754826, %v902
    %v906 = vor.u32 %v904, %v905
    %v907 = vshll.u32 2475754826, %v901
    %v908 = vshrl.u32 2131351028, %v902
    %v909 = vor.u32 %v907, %v908
    %v910 = vshll.u32 2131351028, %v901
    %v911 = vshrl.u32 2102212464, %v902
    %v912 = vor.u32 %v910, %v911
    %v913 = vshll.u32 2102212464, %v901
    %v914 = vshrl.u32 920167782, %v902
    %v915 = vor.u32 %v913, %v914
    %v916 = vshll.u32 920167782, %v901
    %v917 = vshrl.u32 1326507024, %v902
    %v918 = vor.u32 %v916, %v917
    %vm919 = vcmp.lt.s32.totalorder %v900, 1
    %vm920 = vcmp.lt.s32.totalorder %v900, 2
    %vm921 = vcmp.lt.s32.totalorder %v900, 3
    %vm922 = vcmp.lt.s32.totalorder %v900, 4
    %v923 = vsel %vm919, %v903, %v906
    %v924 = vsel %vm922, %v912, 2102212464
    %v925 = vsel %vm921, %v909, %v924
    %v926 = vsel %vm920, %v923, %v925
    %v927 = vsel %vm919, %v906, %v909
    %v928 = vsel %vm922, %v915, 920167782
    %v929 = vsel %vm921, %v912, %v928
    %v930 = vsel %vm920, %v927, %v929
    %v931 = vsel %vm919, %v909, %v912
    %v932 = vsel %vm922, %v918, 1326507024
    %v933 = vsel %vm921, %v915, %v932
    %v934 = vsel %vm920, %v931, %v933
    %v935 = vshll.u32 %v895, 8
    %v936 = vmul.u32.u64.compose %v935, %v934
    %v937 = vextract.low.u32 %v936
    %v938 = vextract.high.u32 %v936
    %v939 = vmul.u32.u64.compose %v935, %v930
    %v940 = vextract.low.u32 %v939
    %v941 = vextract.high.u32 %v939
    %v942 = vmul.u32 %v935, %v926
    %v943 = vadd.s32 %v938, %v940
    %vm944 = vc.u32 %v938, %v940
    %v945 = vadd.s32 %v941, 1
    %v946 = vsel %vm944, %v945, %v941
    %v947 = vadd.s32 %v942, %v946
    %v948 = vadd.s32 %v947, 536870912
    %v949 = vshrl.u32 %v948, 30
    %v950 = vshll.u32 %v949, 30
    %v951 = vsub.s32 %v947, %v950
    %vm952 = vcmp.lt.s32.totalorder %v951, 0
    %v953 = vsub.s32 0, %v951
    %v954 = vsel %vm952, %v953, %v951
    %v955 = vclz %v954
    %v956 = vsub.s32 %v955, 2
    %vm957 = vcmp.gt.s32.totalorder 0, %v956
    %v958 = vsel %vm957, 0, %v956
    %v959 = vsub.s32 32, %v958
    %v960 = vshll.u32 %v951, %v958
    %v961 = vshrl.u32 %v943, %v959
    %v962 = vor.u32 %v960, %v961
    %v963 = vsub.s32 4294967266, %v958
    %v964 = vadd.s32 %v963, 127
    %v965 = vshll.u32 %v964, 23
    %v966 = vor.u32 4788187, %v965
    %v967 = vand.u32 2147483647, %v966
    %v969 = vcvt.s32.f32 %v962
    %v970 = vmul.f32 %v969, %v967
    %v971 = vxor.u32 %v970, 2147483648
    %v972 = vsel %vm889, %v971, %v970
    %v973 = vsub.s32 4, %v949
    %v974 = vsel %vm889, %v973, %v949
    %v975 = vsel %vm888, %v214, %v972
    %v976 = vsel %vm888, 0, %v974
    %v977 = vcosq.f32.pop %v975
    %v978 = vsinq.f32.pop %v975
    %vm979 = vweird.f32 %v214
    %v980 = vadd.s32 %v976, 3
    %v981 = vand.u32 %v980, 3
    %vm982 = vcmp.lt.s32.totalorder %v981, 2
    %vm983 = vcmp.eq.s32.totalorder %v981, 0
    %v984 = vxor.u32 %v978, 2147483648
    %v985 = vsel %vm983, %v977, %v984
    %vm986 = vcmp.eq.s32.totalorder %v981, 2
    %v987 = vxor.u32 %v977, 2147483648
    %v988 = vsel %vm986, %v987, %v978
    %v989 = vsel %vm982, %v985, %v988
    %v990 = vsel %vm979, nan, %v989
    %v991 = vand.u32 2147483647, %v289
    %vm992 = vcmp.le.f32.partialorder %v991, 0.7853982
    %vm993 = vcmp.lt.s32.totalorder %v289, 0
    %v994 = vand.u32 %v289, 2139095040
    %v995 = vshrl.u32 %v994, 23
    %v996 = vsub.s32 %v995, 127
    %v997 = vand.u32 2147483647, %v289
    %v998 = vand.u32 %v997, 8388607
    %v999 = vor.u32 %v998, 8388608
    %v1000 = vsub.s32 0, %v999
    %v1001 = vadd.s32 %v996, 1
    %vm1002 = vcmp.gt.s32.totalorder %v1001, 0
    %v1003 = vsel %vm1002, %v1001, 0
    %v1004 = vshrl.u32 %v1003, 5
    %v1005 = vand.u32 %v1003, 31
    %v1006 = vsub.s32 32, %v1005
    %v1007 = vshrl.u32 683565275, %v1006
    %v1008 = vshll.u32 683565275, %v1005
    %v1009 = vshrl.u32 2475754826, %v1006
    %v1010 = vor.u32 %v1008, %v1009
    %v1011 = vshll.u32 2475754826, %v1005
    %v1012 = vshrl.u32 2131351028, %v1006
    %v1013 = vor.u32 %v1011, %v1012
    %v1014 = vshll.u32 2131351028, %v1005
    %v1015 = vshrl.u32 2102212464, %v1006
    %v1016 = vor.u32 %v1014, %v1015
    %v1017 = vshll.u32 2102212464, %v1005
    %v1018 = vshrl.u32 920167782, %v1006
    %v1019 = vor.u32 %v1017, %v1018
    %v1020 = vshll.u32 920167782, %v1005
    %v1021 = vshrl.u32 1326507024, %v1006
    %v1022 = vor.u32 %v1020, %v1021
    %vm1023 = vcmp.lt.s32.totalorder %v1004, 1
    %vm1024 = vcmp.lt.s32.totalorder %v1004, 2
    %vm1025 = vcmp.lt.s32.totalorder %v1004, 3
    %vm1026 = vcmp.lt.s32.totalorder %v1004, 4
    %v1027 = vsel %vm1023, %v1007, %v1010
    %v1028 = vsel %vm1026, %v1016, 2102212464
    %v1029 = vsel %vm1025, %v1013, %v1028
    %v1030 = vsel %vm1024, %v1027, %v1029
    %v1031 = vsel %vm1023, %v1010, %v1013
    %v1032 = vsel %vm1026, %v1019, 920167782
    %v1033 = vsel %vm1025, %v1016, %v1032
    %v1034 = vsel %vm1024, %v1031, %v1033
    %v1035 = vsel %vm1023, %v1013, %v1016
    %v1036 = vsel %vm1026, %v1022, 1326507024
    %v1037 = vsel %vm1025, %v1019, %v1036
    %v1038 = vsel %vm1024, %v1035, %v1037
    %v1039 = vshll.u32 %v999, 8
    %v1040 = vmul.u32.u64.compose %v1039, %v1038
    %v1041 = vextract.low.u32 %v1040
    %v1042 = vextract.high.u32 %v1040
    %v1043 = vmul.u32.u64.compose %v1039, %v1034
    %v1044 = vextract.low.u32 %v1043
    %v1045 = vextract.high.u32 %v1043
    %v1046 = vmul.u32 %v1039, %v1030
    %v1047 = vadd.s32 %v1042, %v1044
    %vm1048 = vc.u32 %v1042, %v1044
    %v1049 = vadd.s32 %v1045, 1
    %v1050 = vsel %vm1048, %v1049, %v1045
    %v1051 = vadd.s32 %v1046, %v1050
    %v1052 = vadd.s32 %v1051, 536870912
    %v1053 = vshrl.u32 %v1052, 30
    %v1054 = vshll.u32 %v1053, 30
    %v1055 = vsub.s32 %v1051, %v1054
    %vm1056 = vcmp.lt.s32.totalorder %v1055, 0
    %v1057 = vsub.s32 0, %v1055
    %v1058 = vsel %vm1056, %v1057, %v1055
    %v1059 = vclz %v1058
    %v1060 = vsub.s32 %v1059, 2
    %vm1061 = vcmp.gt.s32.totalorder 0, %v1060
    %v1062 = vsel %vm1061, 0, %v1060
    %v1063 = vsub.s32 32, %v1062
    %v1064 = vshll.u32 %v1055, %v1062
    %v1065 = vshrl.u32 %v1047, %v1063
    %v1066 = vor.u32 %v1064, %v1065
    %v1067 = vsub.s32 4294967266, %v1062
    %v1068 = vadd.s32 %v1067, 127
    %v1069 = vshll.u32 %v1068, 23
    %v1070 = vor.u32 4788187, %v1069
    %v1071 = vand.u32 2147483647, %v1070
    %v1073 = vcvt.s32.f32 %v1066
    %v1074 = vmul.f32 %v1073, %v1071
    %v1075 = vxor.u32 %v1074, 2147483648
    %v1076 = vsel %vm993, %v1075, %v1074
    %v1077 = vsub.s32 4, %v1053
    %v1078 = vsel %vm993, %v1077, %v1053
    %v1079 = vsel %vm992, %v289, %v1076
    %v1080 = vsel %vm992, 0, %v1078
    %v1081 = vcosq.f32.pop %v1079
    %v1082 = vsinq.f32.pop %v1079
    %vm1083 = vweird.f32 %v289
    %v1084 = vadd.s32 %v1080, 3
    %v1085 = vand.u32 %v1084, 3
    %vm1086 = vcmp.lt.s32.totalorder %v1085, 2
    %vm1087 = vcmp.eq.s32.totalorder %v1085, 0
    %v1088 = vxor.u32 %v1082, 2147483648
    %v1089 = vsel %vm1087, %v1081, %v1088
    %vm1090 = vcmp.eq.s32.totalorder %v1085, 2
    %v1091 = vxor.u32 %v1081, 2147483648
    %v1092 = vsel %vm1090, %v1091, %v1082
    %v1093 = vsel %vm1086, %v1089, %v1092
    %v1094 = vsel %vm1083, nan, %v1093
    %v1095 = vand.u32 2147483647, %v291
    %vm1096 = vcmp.le.f32.partialorder %v1095, 0.7853982
    %vm1097 = vcmp.lt.s32.totalorder %v291, 0
    %v1098 = vand.u32 %v291, 2139095040
    %v1099 = vshrl.u32 %v1098, 23
    %v1100 = vsub.s32 %v1099, 127
    %v1101 = vand.u32 2147483647, %v291
    %v1102 = vand.u32 %v1101, 8388607
    %v1103 = vor.u32 %v1102, 8388608
    %v1104 = vsub.s32 0, %v1103
    %v1105 = vadd.s32 %v1100, 1
    %vm1106 = vcmp.gt.s32.totalorder %v1105, 0
    %v1107 = vsel %vm1106, %v1105, 0
    %v1108 = vshrl.u32 %v1107, 5
    %v1109 = vand.u32 %v1107, 31
    %v1110 = vsub.s32 32, %v1109
    %v1111 = vshrl.u32 683565275, %v1110
    %v1112 = vshll.u32 683565275, %v1109
    %v1113 = vshrl.u32 2475754826, %v1110
    %v1114 = vor.u32 %v1112, %v1113
    %v1115 = vshll.u32 2475754826, %v1109
    %v1116 = vshrl.u32 2131351028, %v1110
    %v1117 = vor.u32 %v1115, %v1116
    %v1118 = vshll.u32 2131351028, %v1109
    %v1119 = vshrl.u32 2102212464, %v1110
    %v1120 = vor.u32 %v1118, %v1119
    %v1121 = vshll.u32 2102212464, %v1109
    %v1122 = vshrl.u32 920167782, %v1110
    %v1123 = vor.u32 %v1121, %v1122
    %v1124 = vshll.u32 920167782, %v1109
    %v1125 = vshrl.u32 1326507024, %v1110
    %v1126 = vor.u32 %v1124, %v1125
    %vm1127 = vcmp.lt.s32.totalorder %v1108, 1
    %vm1128 = vcmp.lt.s32.totalorder %v1108, 2
    %vm1129 = vcmp.lt.s32.totalorder %v1108, 3
    %vm1130 = vcmp.lt.s32.totalorder %v1108, 4
    %v1131 = vsel %vm1127, %v1111, %v1114
    %v1132 = vsel %vm1130, %v1120, 2102212464
    %v1133 = vsel %vm1129, %v1117, %v1132
    %v1134 = vsel %vm1128, %v1131, %v1133
    %v1135 = vsel %vm1127, %v1114, %v1117
    %v1136 = vsel %vm1130, %v1123, 920167782
    %v1137 = vsel %vm1129, %v1120, %v1136
    %v1138 = vsel %vm1128, %v1135, %v1137
    %v1139 = vsel %vm1127, %v1117, %v1120
    %v1140 = vsel %vm1130, %v1126, 1326507024
    %v1141 = vsel %vm1129, %v1123, %v1140
    %v1142 = vsel %vm1128, %v1139, %v1141
    %v1143 = vshll.u32 %v1103, 8
    %v1144 = vmul.u32.u64.compose %v1143, %v1142
    %v1145 = vextract.low.u32 %v1144
    %v1146 = vextract.high.u32 %v1144
    %v1147 = vmul.u32.u64.compose %v1143, %v1138
    %v1148 = vextract.low.u32 %v1147
    %v1149 = vextract.high.u32 %v1147
    %v1150 = vmul.u32 %v1143, %v1134
    %v1151 = vadd.s32 %v1146, %v1148
    %vm1152 = vc.u32 %v1146, %v1148
    %v1153 = vadd.s32 %v1149, 1
    %v1154 = vsel %vm1152, %v1153, %v1149
    %v1155 = vadd.s32 %v1150, %v1154
    %v1156 = vadd.s32 %v1155, 536870912
    %v1157 = vshrl.u32 %v1156, 30
    %v1158 = vshll.u32 %v1157, 30
    %v1159 = vsub.s32 %v1155, %v1158
    %vm1160 = vcmp.lt.s32.totalorder %v1159, 0
    %v1161 = vsub.s32 0, %v1159
    %v1162 = vsel %vm1160, %v1161, %v1159
    %v1163 = vclz %v1162
    %v1164 = vsub.s32 %v1163, 2
    %vm1165 = vcmp.gt.s32.totalorder 0, %v1164
    %v1166 = vsel %vm1165, 0, %v1164
    %v1167 = vsub.s32 32, %v1166
    %v1168 = vshll.u32 %v1159, %v1166
    %v1169 = vshrl.u32 %v1151, %v1167
    %v1170 = vor.u32 %v1168, %v1169
    %v1171 = vsub.s32 4294967266, %v1166
    %v1172 = vadd.s32 %v1171, 127
    %v1173 = vshll.u32 %v1172, 23
    %v1174 = vor.u32 4788187, %v1173
    %v1175 = vand.u32 2147483647, %v1174
    %v1177 = vcvt.s32.f32 %v1170
    %v1178 = vmul.f32 %v1177, %v1175
    %v1179 = vxor.u32 %v1178, 2147483648
    %v1180 = vsel %vm1097, %v1179, %v1178
    %v1181 = vsub.s32 4, %v1157
    %v1182 = vsel %vm1097, %v1181, %v1157
    %v1183 = vsel %vm1096, %v291, %v1180
    %v1184 = vsel %vm1096, 0, %v1182
    %v1185 = vcosq.f32.pop %v1183
    %v1186 = vsinq.f32.pop %v1183
    %vm1187 = vweird.f32 %v291
    %v1188 = vadd.s32 %v1184, 3
    %v1189 = vand.u32 %v1188, 3
    %vm1190 = vcmp.lt.s32.totalorder %v1189, 2
    %vm1191 = vcmp.eq.s32.totalorder %v1189, 0
    %v1192 = vxor.u32 %v1186, 2147483648
    %v1193 = vsel %vm1191, %v1185, %v1192
    %vm1194 = vcmp.eq.s32.totalorder %v1189, 2
    %v1195 = vxor.u32 %v1185, 2147483648
    %v1196 = vsel %vm1194, %v1195, %v1186
    %v1197 = vsel %vm1190, %v1193, %v1196
    %v1198 = vsel %vm1187, nan, %v1197
    %v1199 = vand.u32 2147483647, %v141
    %vm1200 = vcmp.le.f32.partialorder %v1199, 0.7853982
    %vm1201 = vcmp.lt.s32.totalorder %v141, 0
    %v1202 = vand.u32 %v141, 2139095040
    %v1203 = vshrl.u32 %v1202, 23
    %v1204 = vsub.s32 %v1203, 127
    %v1205 = vand.u32 2147483647, %v141
    %v1206 = vand.u32 %v1205, 8388607
    %v1207 = vor.u32 %v1206, 8388608
    %v1208 = vsub.s32 0, %v1207
    %v1209 = vadd.s32 %v1204, 1
    %vm1210 = vcmp.gt.s32.totalorder %v1209, 0
    %v1211 = vsel %vm1210, %v1209, 0
    %v1212 = vshrl.u32 %v1211, 5
    %v1213 = vand.u32 %v1211, 31
    %v1214 = vsub.s32 32, %v1213
    %v1215 = vshrl.u32 683565275, %v1214
    %v1216 = vshll.u32 683565275, %v1213
    %v1217 = vshrl.u32 2475754826, %v1214
    %v1218 = vor.u32 %v1216, %v1217
    %v1219 = vshll.u32 2475754826, %v1213
    %v1220 = vshrl.u32 2131351028, %v1214
    %v1221 = vor.u32 %v1219, %v1220
    %v1222 = vshll.u32 2131351028, %v1213
    %v1223 = vshrl.u32 2102212464, %v1214
    %v1224 = vor.u32 %v1222, %v1223
    %v1225 = vshll.u32 2102212464, %v1213
    %v1226 = vshrl.u32 920167782, %v1214
    %v1227 = vor.u32 %v1225, %v1226
    %v1228 = vshll.u32 920167782, %v1213
    %v1229 = vshrl.u32 1326507024, %v1214
    %v1230 = vor.u32 %v1228, %v1229
    %vm1231 = vcmp.lt.s32.totalorder %v1212, 1
    %vm1232 = vcmp.lt.s32.totalorder %v1212, 2
    %vm1233 = vcmp.lt.s32.totalorder %v1212, 3
    %vm1234 = vcmp.lt.s32.totalorder %v1212, 4
    %v1235 = vsel %vm1231, %v1215, %v1218
    %v1236 = vsel %vm1234, %v1224, 2102212464
    %v1237 = vsel %vm1233, %v1221, %v1236
    %v1238 = vsel %vm1232, %v1235, %v1237
    %v1239 = vsel %vm1231, %v1218, %v1221
    %v1240 = vsel %vm1234, %v1227, 920167782
    %v1241 = vsel %vm1233, %v1224, %v1240
    %v1242 = vsel %vm1232, %v1239, %v1241
    %v1243 = vsel %vm1231, %v1221, %v1224
    %v1244 = vsel %vm1234, %v1230, 1326507024
    %v1245 = vsel %vm1233, %v1227, %v1244
    %v1246 = vsel %vm1232, %v1243, %v1245
    %v1247 = vshll.u32 %v1207, 8
    %v1248 = vmul.u32.u64.compose %v1247, %v1246
    %v1249 = vextract.low.u32 %v1248
    %v1250 = vextract.high.u32 %v1248
    %v1251 = vmul.u32.u64.compose %v1247, %v1242
    %v1252 = vextract.low.u32 %v1251
    %v1253 = vextract.high.u32 %v1251
    %v1254 = vmul.u32 %v1247, %v1238
    %v1255 = vadd.s32 %v1250, %v1252
    %vm1256 = vc.u32 %v1250, %v1252
    %v1257 = vadd.s32 %v1253, 1
    %v1258 = vsel %vm1256, %v1257, %v1253
    %v1259 = vadd.s32 %v1254, %v1258
    %v1260 = vadd.s32 %v1259, 536870912
    %v1261 = vshrl.u32 %v1260, 30
    %v1262 = vshll.u32 %v1261, 30
    %v1263 = vsub.s32 %v1259, %v1262
    %vm1264 = vcmp.lt.s32.totalorder %v1263, 0
    %v1265 = vsub.s32 0, %v1263
    %v1266 = vsel %vm1264, %v1265, %v1263
    %v1267 = vclz %v1266
    %v1268 = vsub.s32 %v1267, 2
    %vm1269 = vcmp.gt.s32.totalorder 0, %v1268
    %v1270 = vsel %vm1269, 0, %v1268
    %v1271 = vsub.s32 32, %v1270
    %v1272 = vshll.u32 %v1263, %v1270
    %v1273 = vshrl.u32 %v1255, %v1271
    %v1274 = vor.u32 %v1272, %v1273
    %v1275 = vsub.s32 4294967266, %v1270
    %v1276 = vadd.s32 %v1275, 127
    %v1277 = vshll.u32 %v1276, 23
    %v1278 = vor.u32 4788187, %v1277
    %v1279 = vand.u32 2147483647, %v1278
    %v1281 = vcvt.s32.f32 %v1274
    %v1282 = vmul.f32 %v1281, %v1279
    %v1283 = vxor.u32 %v1282, 2147483648
    %v1284 = vsel %vm1201, %v1283, %v1282
    %v1285 = vsub.s32 4, %v1261
    %v1286 = vsel %vm1201, %v1285, %v1261
    %v1287 = vsel %vm1200, %v141, %v1284
    %v1288 = vsel %vm1200, 0, %v1286
    %v1289 = vcosq.f32.pop %v1287
    %v1290 = vsinq.f32.pop %v1287
    %vm1291 = vweird.f32 %v141
    %v1292 = vadd.s32 %v1288, 3
    %v1293 = vand.u32 %v1292, 3
    %vm1294 = vcmp.lt.s32.totalorder %v1293, 2
    %vm1295 = vcmp.eq.s32.totalorder %v1293, 0
    %v1296 = vxor.u32 %v1290, 2147483648
    %v1297 = vsel %vm1295, %v1289, %v1296
    %vm1298 = vcmp.eq.s32.totalorder %v1293, 2
    %v1299 = vxor.u32 %v1289, 2147483648
    %v1300 = vsel %vm1298, %v1299, %v1290
    %v1301 = vsel %vm1294, %v1297, %v1300
    %v1302 = vsel %vm1291, nan, %v1301
    %v1303 = vand.u32 2147483647, %v143
    %vm1304 = vcmp.le.f32.partialorder %v1303, 0.7853982
    %vm1305 = vcmp.lt.s32.totalorder %v143, 0
    %v1306 = vand.u32 %v143, 2139095040
    %v1307 = vshrl.u32 %v1306, 23
    %v1308 = vsub.s32 %v1307, 127
    %v1309 = vand.u32 2147483647, %v143
    %v1310 = vand.u32 %v1309, 8388607
    %v1311 = vor.u32 %v1310, 8388608
    %v1312 = vsub.s32 0, %v1311
    %v1313 = vadd.s32 %v1308, 1
    %vm1314 = vcmp.gt.s32.totalorder %v1313, 0
    %v1315 = vsel %vm1314, %v1313, 0
    %v1316 = vshrl.u32 %v1315, 5
    %v1317 = vand.u32 %v1315, 31
    %v1318 = vsub.s32 32, %v1317
    %v1319 = vshrl.u32 683565275, %v1318
    %v1320 = vshll.u32 683565275, %v1317
    %v1321 = vshrl.u32 2475754826, %v1318
    %v1322 = vor.u32 %v1320, %v1321
    %v1323 = vshll.u32 2475754826, %v1317
    %v1324 = vshrl.u32 2131351028, %v1318
    %v1325 = vor.u32 %v1323, %v1324
    %v1326 = vshll.u32 2131351028, %v1317
    %v1327 = vshrl.u32 2102212464, %v1318
    %v1328 = vor.u32 %v1326, %v1327
    %v1329 = vshll.u32 2102212464, %v1317
    %v1330 = vshrl.u32 920167782, %v1318
    %v1331 = vor.u32 %v1329, %v1330
    %v1332 = vshll.u32 920167782, %v1317
    %v1333 = vshrl.u32 1326507024, %v1318
    %v1334 = vor.u32 %v1332, %v1333
    %vm1335 = vcmp.lt.s32.totalorder %v1316, 1
    %vm1336 = vcmp.lt.s32.totalorder %v1316, 2
    %vm1337 = vcmp.lt.s32.totalorder %v1316, 3
    %vm1338 = vcmp.lt.s32.totalorder %v1316, 4
    %v1339 = vsel %vm1335, %v1319, %v1322
    %v1340 = vsel %vm1338, %v1328, 2102212464
    %v1341 = vsel %vm1337, %v1325, %v1340
    %v1342 = vsel %vm1336, %v1339, %v1341
    %v1343 = vsel %vm1335, %v1322, %v1325
    %v1344 = vsel %vm1338, %v1331, 920167782
    %v1345 = vsel %vm1337, %v1328, %v1344
    %v1346 = vsel %vm1336, %v1343, %v1345
    %v1347 = vsel %vm1335, %v1325, %v1328
    %v1348 = vsel %vm1338, %v1334, 1326507024
    %v1349 = vsel %vm1337, %v1331, %v1348
    %v1350 = vsel %vm1336, %v1347, %v1349
    %v1351 = vshll.u32 %v1311, 8
    %v1352 = vmul.u32.u64.compose %v1351, %v1350
    %v1353 = vextract.low.u32 %v1352
    %v1354 = vextract.high.u32 %v1352
    %v1355 = vmul.u32.u64.compose %v1351, %v1346
    %v1356 = vextract.low.u32 %v1355
    %v1357 = vextract.high.u32 %v1355
    %v1358 = vmul.u32 %v1351, %v1342
    %v1359 = vadd.s32 %v1354, %v1356
    %vm1360 = vc.u32 %v1354, %v1356
    %v1361 = vadd.s32 %v1357, 1
    %v1362 = vsel %vm1360, %v1361, %v1357
    %v1363 = vadd.s32 %v1358, %v1362
    %v1364 = vadd.s32 %v1363, 536870912
    %v1365 = vshrl.u32 %v1364, 30
    %v1366 = vshll.u32 %v1365, 30
    %v1367 = vsub.s32 %v1363, %v1366
    %vm1368 = vcmp.lt.s32.totalorder %v1367, 0
    %v1369 = vsub.s32 0, %v1367
    %v1370 = vsel %vm1368, %v1369, %v1367
    %v1371 = vclz %v1370
    %v1372 = vsub.s32 %v1371, 2
    %vm1373 = vcmp.gt.s32.totalorder 0, %v1372
    %v1374 = vsel %vm1373, 0, %v1372
    %v1375 = vsub.s32 32, %v1374
    %v1376 = vshll.u32 %v1367, %v1374
    %v1377 = vshrl.u32 %v1359, %v1375
    %v1378 = vor.u32 %v1376, %v1377
    %v1379 = vsub.s32 4294967266, %v1374
    %v1380 = vadd.s32 %v1379, 127
    %v1381 = vshll.u32 %v1380, 23
    %v1382 = vor.u32 4788187, %v1381
    %v1383 = vand.u32 2147483647, %v1382
    %v1385 = vcvt.s32.f32 %v1378
    %v1386 = vmul.f32 %v1385, %v1383
    %v1387 = vxor.u32 %v1386, 2147483648
    %v1388 = vsel %vm1305, %v1387, %v1386
    %v1389 = vsub.s32 4, %v1365
    %v1390 = vsel %vm1305, %v1389, %v1365
    %v1391 = vsel %vm1304, %v143, %v1388
    %v1392 = vsel %vm1304, 0, %v1390
    %v1393 = vcosq.f32.pop %v1391
    %v1394 = vsinq.f32.pop %v1391
    %vm1395 = vweird.f32 %v143
    %v1396 = vadd.s32 %v1392, 3
    %v1397 = vand.u32 %v1396, 3
    %vm1398 = vcmp.lt.s32.totalorder %v1397, 2
    %vm1399 = vcmp.eq.s32.totalorder %v1397, 0
    %v1400 = vxor.u32 %v1394, 2147483648
    %v1401 = vsel %vm1399, %v1393, %v1400
    %vm1402 = vcmp.eq.s32.totalorder %v1397, 2
    %v1403 = vxor.u32 %v1393, 2147483648
    %v1404 = vsel %vm1402, %v1403, %v1394
    %v1405 = vsel %vm1398, %v1401, %v1404
    %v1406 = vsel %vm1395, nan, %v1405
    %v1407 = vand.u32 2147483647, %v218
    %vm1408 = vcmp.le.f32.partialorder %v1407, 0.7853982
    %vm1409 = vcmp.lt.s32.totalorder %v218, 0
    %v1410 = vand.u32 %v218, 2139095040
    %v1411 = vshrl.u32 %v1410, 23
    %v1412 = vsub.s32 %v1411, 127
    %v1413 = vand.u32 2147483647, %v218
    %v1414 = vand.u32 %v1413, 8388607
    %v1415 = vor.u32 %v1414, 8388608
    %v1416 = vsub.s32 0, %v1415
    %v1417 = vadd.s32 %v1412, 1
    %vm1418 = vcmp.gt.s32.totalorder %v1417, 0
    %v1419 = vsel %vm1418, %v1417, 0
    %v1420 = vshrl.u32 %v1419, 5
    %v1421 = vand.u32 %v1419, 31
    %v1422 = vsub.s32 32, %v1421
    %v1423 = vshrl.u32 683565275, %v1422
    %v1424 = vshll.u32 683565275, %v1421
    %v1425 = vshrl.u32 2475754826, %v1422
    %v1426 = vor.u32 %v1424, %v1425
    %v1427 = vshll.u32 2475754826, %v1421
    %v1428 = vshrl.u32 2131351028, %v1422
    %v1429 = vor.u32 %v1427, %v1428
    %v1430 = vshll.u32 2131351028, %v1421
    %v1431 = vshrl.u32 2102212464, %v1422
    %v1432 = vor.u32 %v1430, %v1431
    %v1433 = vshll.u32 2102212464, %v1421
    %v1434 = vshrl.u32 920167782, %v1422
    %v1435 = vor.u32 %v1433, %v1434
    %v1436 = vshll.u32 920167782, %v1421
    %v1437 = vshrl.u32 1326507024, %v1422
    %v1438 = vor.u32 %v1436, %v1437
    %vm1439 = vcmp.lt.s32.totalorder %v1420, 1
    %vm1440 = vcmp.lt.s32.totalorder %v1420, 2
    %vm1441 = vcmp.lt.s32.totalorder %v1420, 3
    %vm1442 = vcmp.lt.s32.totalorder %v1420, 4
    %v1443 = vsel %vm1439, %v1423, %v1426
    %v1444 = vsel %vm1442, %v1432, 2102212464
    %v1445 = vsel %vm1441, %v1429, %v1444
    %v1446 = vsel %vm1440, %v1443, %v1445
    %v1447 = vsel %vm1439, %v1426, %v1429
    %v1448 = vsel %vm1442, %v1435, 920167782
    %v1449 = vsel %vm1441, %v1432, %v1448
    %v1450 = vsel %vm1440, %v1447, %v1449
    %v1451 = vsel %vm1439, %v1429, %v1432
    %v1452 = vsel %vm1442, %v1438, 1326507024
    %v1453 = vsel %vm1441, %v1435, %v1452
    %v1454 = vsel %vm1440, %v1451, %v1453
    %v1455 = vshll.u32 %v1415, 8
    %v1456 = vmul.u32.u64.compose %v1455, %v1454
    %v1457 = vextract.low.u32 %v1456
    %v1458 = vextract.high.u32 %v1456
    %v1459 = vmul.u32.u64.compose %v1455, %v1450
    %v1460 = vextract.low.u32 %v1459
    %v1461 = vextract.high.u32 %v1459
    %v1462 = vmul.u32 %v1455, %v1446
    %v1463 = vadd.s32 %v1458, %v1460
    %vm1464 = vc.u32 %v1458, %v1460
    %v1465 = vadd.s32 %v1461, 1
    %v1466 = vsel %vm1464, %v1465, %v1461
    %v1467 = vadd.s32 %v1462, %v1466
    %v1468 = vadd.s32 %v1467, 536870912
    %v1469 = vshrl.u32 %v1468, 30
    %v1470 = vshll.u32 %v1469, 30
    %v1471 = vsub.s32 %v1467, %v1470
    %vm1472 = vcmp.lt.s32.totalorder %v1471, 0
    %v1473 = vsub.s32 0, %v1471
    %v1474 = vsel %vm1472, %v1473, %v1471
    %v1475 = vclz %v1474
    %v1476 = vsub.s32 %v1475, 2
    %vm1477 = vcmp.gt.s32.totalorder 0, %v1476
    %v1478 = vsel %vm1477, 0, %v1476
    %v1479 = vsub.s32 32, %v1478
    %v1480 = vshll.u32 %v1471, %v1478
    %v1481 = vshrl.u32 %v1463, %v1479
    %v1482 = vor.u32 %v1480, %v1481
    %v1483 = vsub.s32 4294967266, %v1478
    %v1484 = vadd.s32 %v1483, 127
    %v1485 = vshll.u32 %v1484, 23
    %v1486 = vor.u32 4788187, %v1485
    %v1487 = vand.u32 2147483647, %v1486
    %v1489 = vcvt.s32.f32 %v1482
    %v1490 = vmul.f32 %v1489, %v1487
    %v1491 = vxor.u32 %v1490, 2147483648
    %v1492 = vsel %vm1409, %v1491, %v1490
    %v1493 = vsub.s32 4, %v1469
    %v1494 = vsel %vm1409, %v1493, %v1469
    %v1495 = vsel %vm1408, %v218, %v1492
    %v1496 = vsel %vm1408, 0, %v1494
    %v1497 = vcosq.f32.pop %v1495
    %v1498 = vsinq.f32.pop %v1495
    %vm1499 = vweird.f32 %v218
    %v1500 = vadd.s32 %v1496, 3
    %v1501 = vand.u32 %v1500, 3
    %vm1502 = vcmp.lt.s32.totalorder %v1501, 2
    %vm1503 = vcmp.eq.s32.totalorder %v1501, 0
    %v1504 = vxor.u32 %v1498, 2147483648
    %v1505 = vsel %vm1503, %v1497, %v1504
    %vm1506 = vcmp.eq.s32.totalorder %v1501, 2
    %v1507 = vxor.u32 %v1497, 2147483648
    %v1508 = vsel %vm1506, %v1507, %v1498
    %v1509 = vsel %vm1502, %v1505, %v1508
    %v1510 = vsel %vm1499, nan, %v1509
    %v1511 = vand.u32 2147483647, %v220
    %vm1512 = vcmp.le.f32.partialorder %v1511, 0.7853982
    %vm1513 = vcmp.lt.s32.totalorder %v220, 0
    %v1514 = vand.u32 %v220, 2139095040
    %v1515 = vshrl.u32 %v1514, 23
    %v1516 = vsub.s32 %v1515, 127
    %v1517 = vand.u32 2147483647, %v220
    %v1518 = vand.u32 %v1517, 8388607
    %v1519 = vor.u32 %v1518, 8388608
    %v1520 = vsub.s32 0, %v1519
    %v1521 = vadd.s32 %v1516, 1
    %vm1522 = vcmp.gt.s32.totalorder %v1521, 0
    %v1523 = vsel %vm1522, %v1521, 0
    %v1524 = vshrl.u32 %v1523, 5
    %v1525 = vand.u32 %v1523, 31
    %v1526 = vsub.s32 32, %v1525
    %v1527 = vshrl.u32 683565275, %v1526
    %v1528 = vshll.u32 683565275, %v1525
    %v1529 = vshrl.u32 2475754826, %v1526
    %v1530 = vor.u32 %v1528, %v1529
    %v1531 = vshll.u32 2475754826, %v1525
    %v1532 = vshrl.u32 2131351028, %v1526
    %v1533 = vor.u32 %v1531, %v1532
    %v1534 = vshll.u32 2131351028, %v1525
    %v1535 = vshrl.u32 2102212464, %v1526
    %v1536 = vor.u32 %v1534, %v1535
    %v1537 = vshll.u32 2102212464, %v1525
    %v1538 = vshrl.u32 920167782, %v1526
    %v1539 = vor.u32 %v1537, %v1538
    %v1540 = vshll.u32 920167782, %v1525
    %v1541 = vshrl.u32 1326507024, %v1526
    %v1542 = vor.u32 %v1540, %v1541
    %vm1543 = vcmp.lt.s32.totalorder %v1524, 1
    %vm1544 = vcmp.lt.s32.totalorder %v1524, 2
    %vm1545 = vcmp.lt.s32.totalorder %v1524, 3
    %vm1546 = vcmp.lt.s32.totalorder %v1524, 4
    %v1547 = vsel %vm1543, %v1527, %v1530
    %v1548 = vsel %vm1546, %v1536, 2102212464
    %v1549 = vsel %vm1545, %v1533, %v1548
    %v1550 = vsel %vm1544, %v1547, %v1549
    %v1551 = vsel %vm1543, %v1530, %v1533
    %v1552 = vsel %vm1546, %v1539, 920167782
    %v1553 = vsel %vm1545, %v1536, %v1552
    %v1554 = vsel %vm1544, %v1551, %v1553
    %v1555 = vsel %vm1543, %v1533, %v1536
    %v1556 = vsel %vm1546, %v1542, 1326507024
    %v1557 = vsel %vm1545, %v1539, %v1556
    %v1558 = vsel %vm1544, %v1555, %v1557
    %v1559 = vshll.u32 %v1519, 8
    %v1560 = vmul.u32.u64.compose %v1559, %v1558
    %v1561 = vextract.low.u32 %v1560
    %v1562 = vextract.high.u32 %v1560
    %v1563 = vmul.u32.u64.compose %v1559, %v1554
    %v1564 = vextract.low.u32 %v1563
    %v1565 = vextract.high.u32 %v1563
    %v1566 = vmul.u32 %v1559, %v1550
    %v1567 = vadd.s32 %v1562, %v1564
    %vm1568 = vc.u32 %v1562, %v1564
    %v1569 = vadd.s32 %v1565, 1
    %v1570 = vsel %vm1568, %v1569, %v1565
    %v1571 = vadd.s32 %v1566, %v1570
    %v1572 = vadd.s32 %v1571, 536870912
    %v1573 = vshrl.u32 %v1572, 30
    %v1574 = vshll.u32 %v1573, 30
    %v1575 = vsub.s32 %v1571, %v1574
    %vm1576 = vcmp.lt.s32.totalorder %v1575, 0
    %v1577 = vsub.s32 0, %v1575
    %v1578 = vsel %vm1576, %v1577, %v1575
    %v1579 = vclz %v1578
    %v1580 = vsub.s32 %v1579, 2
    %vm1581 = vcmp.gt.s32.totalorder 0, %v1580
    %v1582 = vsel %vm1581, 0, %v1580
    %v1583 = vsub.s32 32, %v1582
    %v1584 = vshll.u32 %v1575, %v1582
    %v1585 = vshrl.u32 %v1567, %v1583
    %v1586 = vor.u32 %v1584, %v1585
    %v1587 = vsub.s32 4294967266, %v1582
    %v1588 = vadd.s32 %v1587, 127
    %v1589 = vshll.u32 %v1588, 23
    %v1590 = vor.u32 4788187, %v1589
    %v1591 = vand.u32 2147483647, %v1590
    %v1593 = vcvt.s32.f32 %v1586
    %v1594 = vmul.f32 %v1593, %v1591
    %v1595 = vxor.u32 %v1594, 2147483648
    %v1596 = vsel %vm1513, %v1595, %v1594
    %v1597 = vsub.s32 4, %v1573
    %v1598 = vsel %vm1513, %v1597, %v1573
    %v1599 = vsel %vm1512, %v220, %v1596
    %v1600 = vsel %vm1512, 0, %v1598
    %v1601 = vcosq.f32.pop %v1599
    %v1602 = vsinq.f32.pop %v1599
    %vm1603 = vweird.f32 %v220
    %v1604 = vadd.s32 %v1600, 3
    %v1605 = vand.u32 %v1604, 3
    %vm1606 = vcmp.lt.s32.totalorder %v1605, 2
    %vm1607 = vcmp.eq.s32.totalorder %v1605, 0
    %v1608 = vxor.u32 %v1602, 2147483648
    %v1609 = vsel %vm1607, %v1601, %v1608
    %vm1610 = vcmp.eq.s32.totalorder %v1605, 2
    %v1611 = vxor.u32 %v1601, 2147483648
    %v1612 = vsel %vm1610, %v1611, %v1602
    %v1613 = vsel %vm1606, %v1609, %v1612
    %v1614 = vsel %vm1603, nan, %v1613
    %v1615 = vand.u32 2147483647, %v295
    %vm1616 = vcmp.le.f32.partialorder %v1615, 0.7853982
    %vm1617 = vcmp.lt.s32.totalorder %v295, 0
    %v1618 = vand.u32 %v295, 2139095040
    %v1619 = vshrl.u32 %v1618, 23
    %v1620 = vsub.s32 %v1619, 127
    %v1621 = vand.u32 2147483647, %v295
    %v1622 = vand.u32 %v1621, 8388607
    %v1623 = vor.u32 %v1622, 8388608
    %v1624 = vsub.s32 0, %v1623
    %v1625 = vadd.s32 %v1620, 1
    %vm1626 = vcmp.gt.s32.totalorder %v1625, 0
    %v1627 = vsel %vm1626, %v1625, 0
    %v1628 = vshrl.u32 %v1627, 5
    %v1629 = vand.u32 %v1627, 31
    %v1630 = vsub.s32 32, %v1629
    %v1631 = vshrl.u32 683565275, %v1630
    %v1632 = vshll.u32 683565275, %v1629
    %v1633 = vshrl.u32 2475754826, %v1630
    %v1634 = vor.u32 %v1632, %v1633
    %v1635 = vshll.u32 2475754826, %v1629
    %v1636 = vshrl.u32 2131351028, %v1630
    %v1637 = vor.u32 %v1635, %v1636
    %v1638 = vshll.u32 2131351028, %v1629
    %v1639 = vshrl.u32 2102212464, %v1630
    %v1640 = vor.u32 %v1638, %v1639
    %v1641 = vshll.u32 2102212464, %v1629
    %v1642 = vshrl.u32 920167782, %v1630
    %v1643 = vor.u32 %v1641, %v1642
    %v1644 = vshll.u32 920167782, %v1629
    %v1645 = vshrl.u32 1326507024, %v1630
    %v1646 = vor.u32 %v1644, %v1645
    %vm1647 = vcmp.lt.s32.totalorder %v1628, 1
    %vm1648 = vcmp.lt.s32.totalorder %v1628, 2
    %vm1649 = vcmp.lt.s32.totalorder %v1628, 3
    %vm1650 = vcmp.lt.s32.totalorder %v1628, 4
    %v1651 = vsel %vm1647, %v1631, %v1634
    %v1652 = vsel %vm1650, %v1640, 2102212464
    %v1653 = vsel %vm1649, %v1637, %v1652
    %v1654 = vsel %vm1648, %v1651, %v1653
    %v1655 = vsel %vm1647, %v1634, %v1637
    %v1656 = vsel %vm1650, %v1643, 920167782
    %v1657 = vsel %vm1649, %v1640, %v1656
    %v1658 = vsel %vm1648, %v1655, %v1657
    %v1659 = vsel %vm1647, %v1637, %v1640
    %v1660 = vsel %vm1650, %v1646, 1326507024
    %v1661 = vsel %vm1649, %v1643, %v1660
    %v1662 = vsel %vm1648, %v1659, %v1661
    %v1663 = vshll.u32 %v1623, 8
    %v1664 = vmul.u32.u64.compose %v1663, %v1662
    %v1665 = vextract.low.u32 %v1664
    %v1666 = vextract.high.u32 %v1664
    %v1667 = vmul.u32.u64.compose %v1663, %v1658
    %v1668 = vextract.low.u32 %v1667
    %v1669 = vextract.high.u32 %v1667
    %v1670 = vmul.u32 %v1663, %v1654
    %v1671 = vadd.s32 %v1666, %v1668
    %vm1672 = vc.u32 %v1666, %v1668
    %v1673 = vadd.s32 %v1669, 1
    %v1674 = vsel %vm1672, %v1673, %v1669
    %v1675 = vadd.s32 %v1670, %v1674
    %v1676 = vadd.s32 %v1675, 536870912
    %v1677 = vshrl.u32 %v1676, 30
    %v1678 = vshll.u32 %v1677, 30
    %v1679 = vsub.s32 %v1675, %v1678
    %vm1680 = vcmp.lt.s32.totalorder %v1679, 0
    %v1681 = vsub.s32 0, %v1679
    %v1682 = vsel %vm1680, %v1681, %v1679
    %v1683 = vclz %v1682
    %v1684 = vsub.s32 %v1683, 2
    %vm1685 = vcmp.gt.s32.totalorder 0, %v1684
    %v1686 = vsel %vm1685, 0, %v1684
    %v1687 = vsub.s32 32, %v1686
    %v1688 = vshll.u32 %v1679, %v1686
    %v1689 = vshrl.u32 %v1671, %v1687
    %v1690 = vor.u32 %v1688, %v1689
    %v1691 = vsub.s32 4294967266, %v1686
    %v1692 = vadd.s32 %v1691, 127
    %v1693 = vshll.u32 %v1692, 23
    %v1694 = vor.u32 4788187, %v1693
    %v1695 = vand.u32 2147483647, %v1694
    %v1697 = vcvt.s32.f32 %v1690
    %v1698 = vmul.f32 %v1697, %v1695
    %v1699 = vxor.u32 %v1698, 2147483648
    %v1700 = vsel %vm1617, %v1699, %v1698
    %v1701 = vsub.s32 4, %v1677
    %v1702 = vsel %vm1617, %v1701, %v1677
    %v1703 = vsel %vm1616, %v295, %v1700
    %v1704 = vsel %vm1616, 0, %v1702
    %v1705 = vcosq.f32.pop %v1703
    %v1706 = vsinq.f32.pop %v1703
    %vm1707 = vweird.f32 %v295
    %v1708 = vadd.s32 %v1704, 3
    %v1709 = vand.u32 %v1708, 3
    %vm1710 = vcmp.lt.s32.totalorder %v1709, 2
    %vm1711 = vcmp.eq.s32.totalorder %v1709, 0
    %v1712 = vxor.u32 %v1706, 2147483648
    %v1713 = vsel %vm1711, %v1705, %v1712
    %vm1714 = vcmp.eq.s32.totalorder %v1709, 2
    %v1715 = vxor.u32 %v1705, 2147483648
    %v1716 = vsel %vm1714, %v1715, %v1706
    %v1717 = vsel %vm1710, %v1713, %v1716
    %v1718 = vsel %vm1707, nan, %v1717
    %v1719 = vand.u32 2147483647, %v297
    %vm1720 = vcmp.le.f32.partialorder %v1719, 0.7853982
    %vm1721 = vcmp.lt.s32.totalorder %v297, 0
    %v1722 = vand.u32 %v297, 2139095040
    %v1723 = vshrl.u32 %v1722, 23
    %v1724 = vsub.s32 %v1723, 127
    %v1725 = vand.u32 2147483647, %v297
    %v1726 = vand.u32 %v1725, 8388607
    %v1727 = vor.u32 %v1726, 8388608
    %v1728 = vsub.s32 0, %v1727
    %v1729 = vadd.s32 %v1724, 1
    %vm1730 = vcmp.gt.s32.totalorder %v1729, 0
    %v1731 = vsel %vm1730, %v1729, 0
    %v1732 = vshrl.u32 %v1731, 5
    %v1733 = vand.u32 %v1731, 31
    %v1734 = vsub.s32 32, %v1733
    %v1735 = vshrl.u32 683565275, %v1734
    %v1736 = vshll.u32 683565275, %v1733
    %v1737 = vshrl.u32 2475754826, %v1734
    %v1738 = vor.u32 %v1736, %v1737
    %v1739 = vshll.u32 2475754826, %v1733
    %v1740 = vshrl.u32 2131351028, %v1734
    %v1741 = vor.u32 %v1739, %v1740
    %v1742 = vshll.u32 2131351028, %v1733
    %v1743 = vshrl.u32 2102212464, %v1734
    %v1744 = vor.u32 %v1742, %v1743
    %v1745 = vshll.u32 2102212464, %v1733
    %v1746 = vshrl.u32 920167782, %v1734
    %v1747 = vor.u32 %v1745, %v1746
    %v1748 = vshll.u32 920167782, %v1733
    %v1749 = vshrl.u32 1326507024, %v1734
    %v1750 = vor.u32 %v1748, %v1749
    %vm1751 = vcmp.lt.s32.totalorder %v1732, 1
    %vm1752 = vcmp.lt.s32.totalorder %v1732, 2
    %vm1753 = vcmp.lt.s32.totalorder %v1732, 3
    %vm1754 = vcmp.lt.s32.totalorder %v1732, 4
    %v1755 = vsel %vm1751, %v1735, %v1738
    %v1756 = vsel %vm1754, %v1744, 2102212464
    %v1757 = vsel %vm1753, %v1741, %v1756
    %v1758 = vsel %vm1752, %v1755, %v1757
    %v1759 = vsel %vm1751, %v1738, %v1741
    %v1760 = vsel %vm1754, %v1747, 920167782
    %v1761 = vsel %vm1753, %v1744, %v1760
    %v1762 = vsel %vm1752, %v1759, %v1761
    %v1763 = vsel %vm1751, %v1741, %v1744
    %v1764 = vsel %vm1754, %v1750, 1326507024
    %v1765 = vsel %vm1753, %v1747, %v1764
    %v1766 = vsel %vm1752, %v1763, %v1765
    %v1767 = vshll.u32 %v1727, 8
    %v1768 = vmul.u32.u64.compose %v1767, %v1766
    %v1769 = vextract.low.u32 %v1768
    %v1770 = vextract.high.u32 %v1768
    %v1771 = vmul.u32.u64.compose %v1767, %v1762
    %v1772 = vextract.low.u32 %v1771
    %v1773 = vextract.high.u32 %v1771
    %v1774 = vmul.u32 %v1767, %v1758
    %v1775 = vadd.s32 %v1770, %v1772
    %vm1776 = vc.u32 %v1770, %v1772
    %v1777 = vadd.s32 %v1773, 1
    %v1778 = vsel %vm1776, %v1777, %v1773
    %v1779 = vadd.s32 %v1774, %v1778
    %v1780 = vadd.s32 %v1779, 536870912
    %v1781 = vshrl.u32 %v1780, 30
    %v1782 = vshll.u32 %v1781, 30
    %v1783 = vsub.s32 %v1779, %v1782
    %vm1784 = vcmp.lt.s32.totalorder %v1783, 0
    %v1785 = vsub.s32 0, %v1783
    %v1786 = vsel %vm1784, %v1785, %v1783
    %v1787 = vclz %v1786
    %v1788 = vsub.s32 %v1787, 2
    %vm1789 = vcmp.gt.s32.totalorder 0, %v1788
    %v1790 = vsel %vm1789, 0, %v1788
    %v1791 = vsub.s32 32, %v1790
    %v1792 = vshll.u32 %v1783, %v1790
    %v1793 = vshrl.u32 %v1775, %v1791
    %v1794 = vor.u32 %v1792, %v1793
    %v1795 = vsub.s32 4294967266, %v1790
    %v1796 = vadd.s32 %v1795, 127
    %v1797 = vshll.u32 %v1796, 23
    %v1798 = vor.u32 4788187, %v1797
    %v1799 = vand.u32 2147483647, %v1798
    %v1801 = vcvt.s32.f32 %v1794
    %v1802 = vmul.f32 %v1801, %v1799
    %v1803 = vxor.u32 %v1802, 2147483648
    %v1804 = vsel %vm1721, %v1803, %v1802
    %v1805 = vsub.s32 4, %v1781
    %v1806 = vsel %vm1721, %v1805, %v1781
    %v1807 = vsel %vm1720, %v297, %v1804
    %v1808 = vsel %vm1720, 0, %v1806
    %v1809 = vcosq.f32.pop %v1807
    %v1810 = vsinq.f32.pop %v1807
    %vm1811 = vweird.f32 %v297
    %v1812 = vadd.s32 %v1808, 3
    %v1813 = vand.u32 %v1812, 3
    %vm1814 = vcmp.lt.s32.totalorder %v1813, 2
    %vm1815 = vcmp.eq.s32.totalorder %v1813, 0
    %v1816 = vxor.u32 %v1810, 2147483648
    %v1817 = vsel %vm1815, %v1809, %v1816
    %vm1818 = vcmp.eq.s32.totalorder %v1813, 2
    %v1819 = vxor.u32 %v1809, 2147483648
    %v1820 = vsel %vm1818, %v1819, %v1810
    %v1821 = vsel %vm1814, %v1817, %v1820
    %v1822 = vsel %vm1811, nan, %v1821
    %v1823 = vmul.f32 %v552, %v678
    %v1824 = vmul.f32 %v554, %v782
    %v1825 = vmul.f32 %v556, %v886
    %v1826 = vmul.f32 %v558, %v990
    %v1827 = vmul.f32 %v560, %v1094
    %v1828 = vmul.f32 %v562, %v1198
    %v1829 = vmul.f32 %v564, %v1302
    %v1830 = vmul.f32 %v566, %v1406
    %v1831 = vmul.f32 %v568, %v1510
    %v1832 = vmul.f32 %v570, %v1614
    %v1833 = vmul.f32 %v572, %v1718
    %v1834 = vmul.f32 %v574, %v1822
    %v1835 = vpack.c.bf16 %v1829, %v1823
    %v1836 = vpack.c.bf16 %v1830, %v1824
    %v1837 = vpack.c.bf16 %v1831, %v1825
    %v1838 = vpack.c.bf16 %v1832, %v1826
    %v1839 = vpack.c.bf16 %v1833, %v1827
    %v1840 = vpack.c.bf16 %v1834, %v1828
    %v1841 = vand.u32 2147483647, %v135
    %vm1842 = vcmp.le.f32.partialorder %v1841, 0.7853982
    %vm1843 = vcmp.lt.s32.totalorder %v135, 0
    %v1844 = vand.u32 %v135, 2139095040
    %v1845 = vshrl.u32 %v1844, 23
    %v1846 = vsub.s32 %v1845, 127
    %v1847 = vand.u32 2147483647, %v135
    %v1848 = vand.u32 %v1847, 8388607
    %v1849 = vor.u32 %v1848, 8388608
    %v1850 = vsub.s32 0, %v1849
    %v1851 = vadd.s32 %v1846, 1
    %vm1852 = vcmp.gt.s32.totalorder %v1851, 0
    %v1853 = vsel %vm1852, %v1851, 0
    %v1854 = vshrl.u32 %v1853, 5
    %v1855 = vand.u32 %v1853, 31
    %v1856 = vsub.s32 32, %v1855
    %v1857 = vshrl.u32 683565275, %v1856
    %v1858 = vshll.u32 683565275, %v1855
    %v1859 = vshrl.u32 2475754826, %v1856
    %v1860 = vor.u32 %v1858, %v1859
    %v1861 = vshll.u32 2475754826, %v1855
    %v1862 = vshrl.u32 2131351028, %v1856
    %v1863 = vor.u32 %v1861, %v1862
    %v1864 = vshll.u32 2131351028, %v1855
    %v1865 = vshrl.u32 2102212464, %v1856
    %v1866 = vor.u32 %v1864, %v1865
    %v1867 = vshll.u32 2102212464, %v1855
    %v1868 = vshrl.u32 920167782, %v1856
    %v1869 = vor.u32 %v1867, %v1868
    %v1870 = vshll.u32 920167782, %v1855
    %v1871 = vshrl.u32 1326507024, %v1856
    %v1872 = vor.u32 %v1870, %v1871
    %vm1873 = vcmp.lt.s32.totalorder %v1854, 1
    %vm1874 = vcmp.lt.s32.totalorder %v1854, 2
    %vm1875 = vcmp.lt.s32.totalorder %v1854, 3
    %vm1876 = vcmp.lt.s32.totalorder %v1854, 4
    %v1877 = vsel %vm1873, %v1857, %v1860
    %v1878 = vsel %vm1876, %v1866, 2102212464
    %v1879 = vsel %vm1875, %v1863, %v1878
    %v1880 = vsel %vm1874, %v1877, %v1879
    %v1881 = vsel %vm1873, %v1860, %v1863
    %v1882 = vsel %vm1876, %v1869, 920167782
    %v1883 = vsel %vm1875, %v1866, %v1882
    %v1884 = vsel %vm1874, %v1881, %v1883
    %v1885 = vsel %vm1873, %v1863, %v1866
    %v1886 = vsel %vm1876, %v1872, 1326507024
    %v1887 = vsel %vm1875, %v1869, %v1886
    %v1888 = vsel %vm1874, %v1885, %v1887
    %v1889 = vshll.u32 %v1849, 8
    %v1890 = vmul.u32.u64.compose %v1889, %v1888
    %v1891 = vextract.low.u32 %v1890
    %v1892 = vextract.high.u32 %v1890
    %v1893 = vmul.u32.u64.compose %v1889, %v1884
    %v1894 = vextract.low.u32 %v1893
    %v1895 = vextract.high.u32 %v1893
    %v1896 = vmul.u32 %v1889, %v1880
    %v1897 = vadd.s32 %v1892, %v1894
    %vm1898 = vc.u32 %v1892, %v1894
    %v1899 = vadd.s32 %v1895, 1
    %v1900 = vsel %vm1898, %v1899, %v1895
    %v1901 = vadd.s32 %v1896, %v1900
    %v1902 = vadd.s32 %v1901, 536870912
    %v1903 = vshrl.u32 %v1902, 30
    %v1904 = vshll.u32 %v1903, 30
    %v1905 = vsub.s32 %v1901, %v1904
    %vm1906 = vcmp.lt.s32.totalorder %v1905, 0
    %v1907 = vsub.s32 0, %v1905
    %v1908 = vsel %vm1906, %v1907, %v1905
    %v1909 = vclz %v1908
    %v1910 = vsub.s32 %v1909, 2
    %vm1911 = vcmp.gt.s32.totalorder 0, %v1910
    %v1912 = vsel %vm1911, 0, %v1910
    %v1913 = vsub.s32 32, %v1912
    %v1914 = vshll.u32 %v1905, %v1912
    %v1915 = vshrl.u32 %v1897, %v1913
    %v1916 = vor.u32 %v1914, %v1915
    %v1917 = vsub.s32 4294967266, %v1912
    %v1918 = vadd.s32 %v1917, 127
    %v1919 = vshll.u32 %v1918, 23
    %v1920 = vor.u32 4788187, %v1919
    %v1921 = vand.u32 2147483647, %v1920
    %v1923 = vcvt.s32.f32 %v1916
    %v1924 = vmul.f32 %v1923, %v1921
    %v1925 = vxor.u32 %v1924, 2147483648
    %v1926 = vsel %vm1843, %v1925, %v1924
    %v1927 = vsub.s32 4, %v1903
    %v1928 = vsel %vm1843, %v1927, %v1903
    %v1929 = vsel %vm1842, %v135, %v1926
    %v1930 = vsel %vm1842, 0, %v1928
    %v1931 = vcosq.f32.pop %v1929
    %v1932 = vsinq.f32.pop %v1929
    %vm1933 = vweird.f32 %v135
    %v1934 = vand.u32 %v1930, 3
    %vm1935 = vcmp.lt.s32.totalorder %v1934, 2
    %vm1936 = vcmp.eq.s32.totalorder %v1934, 0
    %v1937 = vxor.u32 %v1932, 2147483648
    %v1938 = vsel %vm1936, %v1931, %v1937
    %vm1939 = vcmp.eq.s32.totalorder %v1934, 2
    %v1940 = vxor.u32 %v1931, 2147483648
    %v1941 = vsel %vm1939, %v1940, %v1932
    %v1942 = vsel %vm1935, %v1938, %v1941
    %v1943 = vsel %vm1933, nan, %v1942
    %v1944 = vand.u32 2147483647, %v137
    %vm1945 = vcmp.le.f32.partialorder %v1944, 0.7853982
    %vm1946 = vcmp.lt.s32.totalorder %v137, 0
    %v1947 = vand.u32 %v137, 2139095040
    %v1948 = vshrl.u32 %v1947, 23
    %v1949 = vsub.s32 %v1948, 127
    %v1950 = vand.u32 2147483647, %v137
    %v1951 = vand.u32 %v1950, 8388607
    %v1952 = vor.u32 %v1951, 8388608
    %v1953 = vsub.s32 0, %v1952
    %v1954 = vadd.s32 %v1949, 1
    %vm1955 = vcmp.gt.s32.totalorder %v1954, 0
    %v1956 = vsel %vm1955, %v1954, 0
    %v1957 = vshrl.u32 %v1956, 5
    %v1958 = vand.u32 %v1956, 31
    %v1959 = vsub.s32 32, %v1958
    %v1960 = vshrl.u32 683565275, %v1959
    %v1961 = vshll.u32 683565275, %v1958
    %v1962 = vshrl.u32 2475754826, %v1959
    %v1963 = vor.u32 %v1961, %v1962
    %v1964 = vshll.u32 2475754826, %v1958
    %v1965 = vshrl.u32 2131351028, %v1959
    %v1966 = vor.u32 %v1964, %v1965
    %v1967 = vshll.u32 2131351028, %v1958
    %v1968 = vshrl.u32 2102212464, %v1959
    %v1969 = vor.u32 %v1967, %v1968
    %v1970 = vshll.u32 2102212464, %v1958
    %v1971 = vshrl.u32 920167782, %v1959
    %v1972 = vor.u32 %v1970, %v1971
    %v1973 = vshll.u32 920167782, %v1958
    %v1974 = vshrl.u32 1326507024, %v1959
    %v1975 = vor.u32 %v1973, %v1974
    %vm1976 = vcmp.lt.s32.totalorder %v1957, 1
    %vm1977 = vcmp.lt.s32.totalorder %v1957, 2
    %vm1978 = vcmp.lt.s32.totalorder %v1957, 3
    %vm1979 = vcmp.lt.s32.totalorder %v1957, 4
    %v1980 = vsel %vm1976, %v1960, %v1963
    %v1981 = vsel %vm1979, %v1969, 2102212464
    %v1982 = vsel %vm1978, %v1966, %v1981
    %v1983 = vsel %vm1977, %v1980, %v1982
    %v1984 = vsel %vm1976, %v1963, %v1966
    %v1985 = vsel %vm1979, %v1972, 920167782
    %v1986 = vsel %vm1978, %v1969, %v1985
    %v1987 = vsel %vm1977, %v1984, %v1986
    %v1988 = vsel %vm1976, %v1966, %v1969
    %v1989 = vsel %vm1979, %v1975, 1326507024
    %v1990 = vsel %vm1978, %v1972, %v1989
    %v1991 = vsel %vm1977, %v1988, %v1990
    %v1992 = vshll.u32 %v1952, 8
    %v1993 = vmul.u32.u64.compose %v1992, %v1991
    %v1994 = vextract.low.u32 %v1993
    %v1995 = vextract.high.u32 %v1993
    %v1996 = vmul.u32.u64.compose %v1992, %v1987
    %v1997 = vextract.low.u32 %v1996
    %v1998 = vextract.high.u32 %v1996
    %v1999 = vmul.u32 %v1992, %v1983
    %v2000 = vadd.s32 %v1995, %v1997
    %vm2001 = vc.u32 %v1995, %v1997
    %v2002 = vadd.s32 %v1998, 1
    %v2003 = vsel %vm2001, %v2002, %v1998
    %v2004 = vadd.s32 %v1999, %v2003
    %v2005 = vadd.s32 %v2004, 536870912
    %v2006 = vshrl.u32 %v2005, 30
    %v2007 = vshll.u32 %v2006, 30
    %v2008 = vsub.s32 %v2004, %v2007
    %vm2009 = vcmp.lt.s32.totalorder %v2008, 0
    %v2010 = vsub.s32 0, %v2008
    %v2011 = vsel %vm2009, %v2010, %v2008
    %v2012 = vclz %v2011
    %v2013 = vsub.s32 %v2012, 2
    %vm2014 = vcmp.gt.s32.totalorder 0, %v2013
    %v2015 = vsel %vm2014, 0, %v2013
    %v2016 = vsub.s32 32, %v2015
    %v2017 = vshll.u32 %v2008, %v2015
    %v2018 = vshrl.u32 %v2000, %v2016
    %v2019 = vor.u32 %v2017, %v2018
    %v2020 = vsub.s32 4294967266, %v2015
    %v2021 = vadd.s32 %v2020, 127
    %v2022 = vshll.u32 %v2021, 23
    %v2023 = vor.u32 4788187, %v2022
    %v2024 = vand.u32 2147483647, %v2023
    %v2026 = vcvt.s32.f32 %v2019
    %v2027 = vmul.f32 %v2026, %v2024
    %v2028 = vxor.u32 %v2027, 2147483648
    %v2029 = vsel %vm1946, %v2028, %v2027
    %v2030 = vsub.s32 4, %v2006
    %v2031 = vsel %vm1946, %v2030, %v2006
    %v2032 = vsel %vm1945, %v137, %v2029
    %v2033 = vsel %vm1945, 0, %v2031
    %v2034 = vcosq.f32.pop %v2032
    %v2035 = vsinq.f32.pop %v2032
    %vm2036 = vweird.f32 %v137
    %v2037 = vand.u32 %v2033, 3
    %vm2038 = vcmp.lt.s32.totalorder %v2037, 2
    %vm2039 = vcmp.eq.s32.totalorder %v2037, 0
    %v2040 = vxor.u32 %v2035, 2147483648
    %v2041 = vsel %vm2039, %v2034, %v2040
    %vm2042 = vcmp.eq.s32.totalorder %v2037, 2
    %v2043 = vxor.u32 %v2034, 2147483648
    %v2044 = vsel %vm2042, %v2043, %v2035
    %v2045 = vsel %vm2038, %v2041, %v2044
    %v2046 = vsel %vm2036, nan, %v2045
    %v2047 = vand.u32 2147483647, %v212
    %vm2048 = vcmp.le.f32.partialorder %v2047, 0.7853982
    %vm2049 = vcmp.lt.s32.totalorder %v212, 0
    %v2050 = vand.u32 %v212, 2139095040
    %v2051 = vshrl.u32 %v2050, 23
    %v2052 = vsub.s32 %v2051, 127
    %v2053 = vand.u32 2147483647, %v212
    %v2054 = vand.u32 %v2053, 8388607
    %v2055 = vor.u32 %v2054, 8388608
    %v2056 = vsub.s32 0, %v2055
    %v2057 = vadd.s32 %v2052, 1
    %vm2058 = vcmp.gt.s32.totalorder %v2057, 0
    %v2059 = vsel %vm2058, %v2057, 0
    %v2060 = vshrl.u32 %v2059, 5
    %v2061 = vand.u32 %v2059, 31
    %v2062 = vsub.s32 32, %v2061
    %v2063 = vshrl.u32 683565275, %v2062
    %v2064 = vshll.u32 683565275, %v2061
    %v2065 = vshrl.u32 2475754826, %v2062
    %v2066 = vor.u32 %v2064, %v2065
    %v2067 = vshll.u32 2475754826, %v2061
    %v2068 = vshrl.u32 2131351028, %v2062
    %v2069 = vor.u32 %v2067, %v2068
    %v2070 = vshll.u32 2131351028, %v2061
    %v2071 = vshrl.u32 2102212464, %v2062
    %v2072 = vor.u32 %v2070, %v2071
    %v2073 = vshll.u32 2102212464, %v2061
    %v2074 = vshrl.u32 920167782, %v2062
    %v2075 = vor.u32 %v2073, %v2074
    %v2076 = vshll.u32 920167782, %v2061
    %v2077 = vshrl.u32 1326507024, %v2062
    %v2078 = vor.u32 %v2076, %v2077
    %vm2079 = vcmp.lt.s32.totalorder %v2060, 1
    %vm2080 = vcmp.lt.s32.totalorder %v2060, 2
    %vm2081 = vcmp.lt.s32.totalorder %v2060, 3
    %vm2082 = vcmp.lt.s32.totalorder %v2060, 4
    %v2083 = vsel %vm2079, %v2063, %v2066
    %v2084 = vsel %vm2082, %v2072, 2102212464
    %v2085 = vsel %vm2081, %v2069, %v2084
    %v2086 = vsel %vm2080, %v2083, %v2085
    %v2087 = vsel %vm2079, %v2066, %v2069
    %v2088 = vsel %vm2082, %v2075, 920167782
    %v2089 = vsel %vm2081, %v2072, %v2088
    %v2090 = vsel %vm2080, %v2087, %v2089
    %v2091 = vsel %vm2079, %v2069, %v2072
    %v2092 = vsel %vm2082, %v2078, 1326507024
    %v2093 = vsel %vm2081, %v2075, %v2092
    %v2094 = vsel %vm2080, %v2091, %v2093
    %v2095 = vshll.u32 %v2055, 8
    %v2096 = vmul.u32.u64.compose %v2095, %v2094
    %v2097 = vextract.low.u32 %v2096
    %v2098 = vextract.high.u32 %v2096
    %v2099 = vmul.u32.u64.compose %v2095, %v2090
    %v2100 = vextract.low.u32 %v2099
    %v2101 = vextract.high.u32 %v2099
    %v2102 = vmul.u32 %v2095, %v2086
    %v2103 = vadd.s32 %v2098, %v2100
    %vm2104 = vc.u32 %v2098, %v2100
    %v2105 = vadd.s32 %v2101, 1
    %v2106 = vsel %vm2104, %v2105, %v2101
    %v2107 = vadd.s32 %v2102, %v2106
    %v2108 = vadd.s32 %v2107, 536870912
    %v2109 = vshrl.u32 %v2108, 30
    %v2110 = vshll.u32 %v2109, 30
    %v2111 = vsub.s32 %v2107, %v2110
    %vm2112 = vcmp.lt.s32.totalorder %v2111, 0
    %v2113 = vsub.s32 0, %v2111
    %v2114 = vsel %vm2112, %v2113, %v2111
    %v2115 = vclz %v2114
    %v2116 = vsub.s32 %v2115, 2
    %vm2117 = vcmp.gt.s32.totalorder 0, %v2116
    %v2118 = vsel %vm2117, 0, %v2116
    %v2119 = vsub.s32 32, %v2118
    %v2120 = vshll.u32 %v2111, %v2118
    %v2121 = vshrl.u32 %v2103, %v2119
    %v2122 = vor.u32 %v2120, %v2121
    %v2123 = vsub.s32 4294967266, %v2118
    %v2124 = vadd.s32 %v2123, 127
    %v2125 = vshll.u32 %v2124, 23
    %v2126 = vor.u32 4788187, %v2125
    %v2127 = vand.u32 2147483647, %v2126
    %v2129 = vcvt.s32.f32 %v2122
    %v2130 = vmul.f32 %v2129, %v2127
    %v2131 = vxor.u32 %v2130, 2147483648
    %v2132 = vsel %vm2049, %v2131, %v2130
    %v2133 = vsub.s32 4, %v2109
    %v2134 = vsel %vm2049, %v2133, %v2109
    %v2135 = vsel %vm2048, %v212, %v2132
    %v2136 = vsel %vm2048, 0, %v2134
    %v2137 = vcosq.f32.pop %v2135
    %v2138 = vsinq.f32.pop %v2135
    %vm2139 = vweird.f32 %v212
    %v2140 = vand.u32 %v2136, 3
    %vm2141 = vcmp.lt.s32.totalorder %v2140, 2
    %vm2142 = vcmp.eq.s32.totalorder %v2140, 0
    %v2143 = vxor.u32 %v2138, 2147483648
    %v2144 = vsel %vm2142, %v2137, %v2143
    %vm2145 = vcmp.eq.s32.totalorder %v2140, 2
    %v2146 = vxor.u32 %v2137, 2147483648
    %v2147 = vsel %vm2145, %v2146, %v2138
    %v2148 = vsel %vm2141, %v2144, %v2147
    %v2149 = vsel %vm2139, nan, %v2148
    %v2150 = vand.u32 2147483647, %v214
    %vm2151 = vcmp.le.f32.partialorder %v2150, 0.7853982
    %vm2152 = vcmp.lt.s32.totalorder %v214, 0
    %v2153 = vand.u32 %v214, 2139095040
    %v2154 = vshrl.u32 %v2153, 23
    %v2155 = vsub.s32 %v2154, 127
    %v2156 = vand.u32 2147483647, %v214
    %v2157 = vand.u32 %v2156, 8388607
    %v2158 = vor.u32 %v2157, 8388608
    %v2159 = vsub.s32 0, %v2158
    %v2160 = vadd.s32 %v2155, 1
    %vm2161 = vcmp.gt.s32.totalorder %v2160, 0
    %v2162 = vsel %vm2161, %v2160, 0
    %v2163 = vshrl.u32 %v2162, 5
    %v2164 = vand.u32 %v2162, 31
    %v2165 = vsub.s32 32, %v2164
    %v2166 = vshrl.u32 683565275, %v2165
    %v2167 = vshll.u32 683565275, %v2164
    %v2168 = vshrl.u32 2475754826, %v2165
    %v2169 = vor.u32 %v2167, %v2168
    %v2170 = vshll.u32 2475754826, %v2164
    %v2171 = vshrl.u32 2131351028, %v2165
    %v2172 = vor.u32 %v2170, %v2171
    %v2173 = vshll.u32 2131351028, %v2164
    %v2174 = vshrl.u32 2102212464, %v2165
    %v2175 = vor.u32 %v2173, %v2174
    %v2176 = vshll.u32 2102212464, %v2164
    %v2177 = vshrl.u32 920167782, %v2165
    %v2178 = vor.u32 %v2176, %v2177
    %v2179 = vshll.u32 920167782, %v2164
    %v2180 = vshrl.u32 1326507024, %v2165
    %v2181 = vor.u32 %v2179, %v2180
    %vm2182 = vcmp.lt.s32.totalorder %v2163, 1
    %vm2183 = vcmp.lt.s32.totalorder %v2163, 2
    %vm2184 = vcmp.lt.s32.totalorder %v2163, 3
    %vm2185 = vcmp.lt.s32.totalorder %v2163, 4
    %v2186 = vsel %vm2182, %v2166, %v2169
    %v2187 = vsel %vm2185, %v2175, 2102212464
    %v2188 = vsel %vm2184, %v2172, %v2187
    %v2189 = vsel %vm2183, %v2186, %v2188
    %v2190 = vsel %vm2182, %v2169, %v2172
    %v2191 = vsel %vm2185, %v2178, 920167782
    %v2192 = vsel %vm2184, %v2175, %v2191
    %v2193 = vsel %vm2183, %v2190, %v2192
    %v2194 = vsel %vm2182, %v2172, %v2175
    %v2195 = vsel %vm2185, %v2181, 1326507024
    %v2196 = vsel %vm2184, %v2178, %v2195
    %v2197 = vsel %vm2183, %v2194, %v2196
    %v2198 = vshll.u32 %v2158, 8
    %v2199 = vmul.u32.u64.compose %v2198, %v2197
    %v2200 = vextract.low.u32 %v2199
    %v2201 = vextract.high.u32 %v2199
    %v2202 = vmul.u32.u64.compose %v2198, %v2193
    %v2203 = vextract.low.u32 %v2202
    %v2204 = vextract.high.u32 %v2202
    %v2205 = vmul.u32 %v2198, %v2189
    %v2206 = vadd.s32 %v2201, %v2203
    %vm2207 = vc.u32 %v2201, %v2203
    %v2208 = vadd.s32 %v2204, 1
    %v2209 = vsel %vm2207, %v2208, %v2204
    %v2210 = vadd.s32 %v2205, %v2209
    %v2211 = vadd.s32 %v2210, 536870912
    %v2212 = vshrl.u32 %v2211, 30
    %v2213 = vshll.u32 %v2212, 30
    %v2214 = vsub.s32 %v2210, %v2213
    %vm2215 = vcmp.lt.s32.totalorder %v2214, 0
    %v2216 = vsub.s32 0, %v2214
    %v2217 = vsel %vm2215, %v2216, %v2214
    %v2218 = vclz %v2217
    %v2219 = vsub.s32 %v2218, 2
    %vm2220 = vcmp.gt.s32.totalorder 0, %v2219
    %v2221 = vsel %vm2220, 0, %v2219
    %v2222 = vsub.s32 32, %v2221
    %v2223 = vshll.u32 %v2214, %v2221
    %v2224 = vshrl.u32 %v2206, %v2222
    %v2225 = vor.u32 %v2223, %v2224
    %v2226 = vsub.s32 4294967266, %v2221
    %v2227 = vadd.s32 %v2226, 127
    %v2228 = vshll.u32 %v2227, 23
    %v2229 = vor.u32 4788187, %v2228
    %v2230 = vand.u32 2147483647, %v2229
    %v2232 = vcvt.s32.f32 %v2225
    %v2233 = vmul.f32 %v2232, %v2230
    %v2234 = vxor.u32 %v2233, 2147483648
    %v2235 = vsel %vm2152, %v2234, %v2233
    %v2236 = vsub.s32 4, %v2212
    %v2237 = vsel %vm2152, %v2236, %v2212
    %v2238 = vsel %vm2151, %v214, %v2235
    %v2239 = vsel %vm2151, 0, %v2237
    %v2240 = vcosq.f32.pop %v2238
    %v2241 = vsinq.f32.pop %v2238
    %vm2242 = vweird.f32 %v214
    %v2243 = vand.u32 %v2239, 3
    %vm2244 = vcmp.lt.s32.totalorder %v2243, 2
    %vm2245 = vcmp.eq.s32.totalorder %v2243, 0
    %v2246 = vxor.u32 %v2241, 2147483648
    %v2247 = vsel %vm2245, %v2240, %v2246
    %vm2248 = vcmp.eq.s32.totalorder %v2243, 2
    %v2249 = vxor.u32 %v2240, 2147483648
    %v2250 = vsel %vm2248, %v2249, %v2241
    %v2251 = vsel %vm2244, %v2247, %v2250
    %v2252 = vsel %vm2242, nan, %v2251
    %v2253 = vand.u32 2147483647, %v289
    %vm2254 = vcmp.le.f32.partialorder %v2253, 0.7853982
    %vm2255 = vcmp.lt.s32.totalorder %v289, 0
    %v2256 = vand.u32 %v289, 2139095040
    %v2257 = vshrl.u32 %v2256, 23
    %v2258 = vsub.s32 %v2257, 127
    %v2259 = vand.u32 2147483647, %v289
    %v2260 = vand.u32 %v2259, 8388607
    %v2261 = vor.u32 %v2260, 8388608
    %v2262 = vsub.s32 0, %v2261
    %v2263 = vadd.s32 %v2258, 1
    %vm2264 = vcmp.gt.s32.totalorder %v2263, 0
    %v2265 = vsel %vm2264, %v2263, 0
    %v2266 = vshrl.u32 %v2265, 5
    %v2267 = vand.u32 %v2265, 31
    %v2268 = vsub.s32 32, %v2267
    %v2269 = vshrl.u32 683565275, %v2268
    %v2270 = vshll.u32 683565275, %v2267
    %v2271 = vshrl.u32 2475754826, %v2268
    %v2272 = vor.u32 %v2270, %v2271
    %v2273 = vshll.u32 2475754826, %v2267
    %v2274 = vshrl.u32 2131351028, %v2268
    %v2275 = vor.u32 %v2273, %v2274
    %v2276 = vshll.u32 2131351028, %v2267
    %v2277 = vshrl.u32 2102212464, %v2268
    %v2278 = vor.u32 %v2276, %v2277
    %v2279 = vshll.u32 2102212464, %v2267
    %v2280 = vshrl.u32 920167782, %v2268
    %v2281 = vor.u32 %v2279, %v2280
    %v2282 = vshll.u32 920167782, %v2267
    %v2283 = vshrl.u32 1326507024, %v2268
    %v2284 = vor.u32 %v2282, %v2283
    %vm2285 = vcmp.lt.s32.totalorder %v2266, 1
    %vm2286 = vcmp.lt.s32.totalorder %v2266, 2
    %vm2287 = vcmp.lt.s32.totalorder %v2266, 3
    %vm2288 = vcmp.lt.s32.totalorder %v2266, 4
    %v2289 = vsel %vm2285, %v2269, %v2272
    %v2290 = vsel %vm2288, %v2278, 2102212464
    %v2291 = vsel %vm2287, %v2275, %v2290
    %v2292 = vsel %vm2286, %v2289, %v2291
    %v2293 = vsel %vm2285, %v2272, %v2275
    %v2294 = vsel %vm2288, %v2281, 920167782
    %v2295 = vsel %vm2287, %v2278, %v2294
    %v2296 = vsel %vm2286, %v2293, %v2295
    %v2297 = vsel %vm2285, %v2275, %v2278
    %v2298 = vsel %vm2288, %v2284, 1326507024
    %v2299 = vsel %vm2287, %v2281, %v2298
    %v2300 = vsel %vm2286, %v2297, %v2299
    %v2301 = vshll.u32 %v2261, 8
    %v2302 = vmul.u32.u64.compose %v2301, %v2300
    %v2303 = vextract.low.u32 %v2302
    %v2304 = vextract.high.u32 %v2302
    %v2305 = vmul.u32.u64.compose %v2301, %v2296
    %v2306 = vextract.low.u32 %v2305
    %v2307 = vextract.high.u32 %v2305
    %v2308 = vmul.u32 %v2301, %v2292
    %v2309 = vadd.s32 %v2304, %v2306
    %vm2310 = vc.u32 %v2304, %v2306
    %v2311 = vadd.s32 %v2307, 1
    %v2312 = vsel %vm2310, %v2311, %v2307
    %v2313 = vadd.s32 %v2308, %v2312
    %v2314 = vadd.s32 %v2313, 536870912
    %v2315 = vshrl.u32 %v2314, 30
    %v2316 = vshll.u32 %v2315, 30
    %v2317 = vsub.s32 %v2313, %v2316
    %vm2318 = vcmp.lt.s32.totalorder %v2317, 0
    %v2319 = vsub.s32 0, %v2317
    %v2320 = vsel %vm2318, %v2319, %v2317
    %v2321 = vclz %v2320
    %v2322 = vsub.s32 %v2321, 2
    %vm2323 = vcmp.gt.s32.totalorder 0, %v2322
    %v2324 = vsel %vm2323, 0, %v2322
    %v2325 = vsub.s32 32, %v2324
    %v2326 = vshll.u32 %v2317, %v2324
    %v2327 = vshrl.u32 %v2309, %v2325
    %v2328 = vor.u32 %v2326, %v2327
    %v2329 = vsub.s32 4294967266, %v2324
    %v2330 = vadd.s32 %v2329, 127
    %v2331 = vshll.u32 %v2330, 23
    %v2332 = vor.u32 4788187, %v2331
    %v2333 = vand.u32 2147483647, %v2332
    %v2335 = vcvt.s32.f32 %v2328
    %v2336 = vmul.f32 %v2335, %v2333
    %v2337 = vxor.u32 %v2336, 2147483648
    %v2338 = vsel %vm2255, %v2337, %v2336
    %v2339 = vsub.s32 4, %v2315
    %v2340 = vsel %vm2255, %v2339, %v2315
    %v2341 = vsel %vm2254, %v289, %v2338
    %v2342 = vsel %vm2254, 0, %v2340
    %v2343 = vcosq.f32.pop %v2341
    %v2344 = vsinq.f32.pop %v2341
    %vm2345 = vweird.f32 %v289
    %v2346 = vand.u32 %v2342, 3
    %vm2347 = vcmp.lt.s32.totalorder %v2346, 2
    %vm2348 = vcmp.eq.s32.totalorder %v2346, 0
    %v2349 = vxor.u32 %v2344, 2147483648
    %v2350 = vsel %vm2348, %v2343, %v2349
    %vm2351 = vcmp.eq.s32.totalorder %v2346, 2
    %v2352 = vxor.u32 %v2343, 2147483648
    %v2353 = vsel %vm2351, %v2352, %v2344
    %v2354 = vsel %vm2347, %v2350, %v2353
    %v2355 = vsel %vm2345, nan, %v2354
    %v2356 = vand.u32 2147483647, %v291
    %vm2357 = vcmp.le.f32.partialorder %v2356, 0.7853982
    %vm2358 = vcmp.lt.s32.totalorder %v291, 0
    %v2359 = vand.u32 %v291, 2139095040
    %v2360 = vshrl.u32 %v2359, 23
    %v2361 = vsub.s32 %v2360, 127
    %v2362 = vand.u32 2147483647, %v291
    %v2363 = vand.u32 %v2362, 8388607
    %v2364 = vor.u32 %v2363, 8388608
    %v2365 = vsub.s32 0, %v2364
    %v2366 = vadd.s32 %v2361, 1
    %vm2367 = vcmp.gt.s32.totalorder %v2366, 0
    %v2368 = vsel %vm2367, %v2366, 0
    %v2369 = vshrl.u32 %v2368, 5
    %v2370 = vand.u32 %v2368, 31
    %v2371 = vsub.s32 32, %v2370
    %v2372 = vshrl.u32 683565275, %v2371
    %v2373 = vshll.u32 683565275, %v2370
    %v2374 = vshrl.u32 2475754826, %v2371
    %v2375 = vor.u32 %v2373, %v2374
    %v2376 = vshll.u32 2475754826, %v2370
    %v2377 = vshrl.u32 2131351028, %v2371
    %v2378 = vor.u32 %v2376, %v2377
    %v2379 = vshll.u32 2131351028, %v2370
    %v2380 = vshrl.u32 2102212464, %v2371
    %v2381 = vor.u32 %v2379, %v2380
    %v2382 = vshll.u32 2102212464, %v2370
    %v2383 = vshrl.u32 920167782, %v2371
    %v2384 = vor.u32 %v2382, %v2383
    %v2385 = vshll.u32 920167782, %v2370
    %v2386 = vshrl.u32 1326507024, %v2371
    %v2387 = vor.u32 %v2385, %v2386
    %vm2388 = vcmp.lt.s32.totalorder %v2369, 1
    %vm2389 = vcmp.lt.s32.totalorder %v2369, 2
    %vm2390 = vcmp.lt.s32.totalorder %v2369, 3
    %vm2391 = vcmp.lt.s32.totalorder %v2369, 4
    %v2392 = vsel %vm2388, %v2372, %v2375
    %v2393 = vsel %vm2391, %v2381, 2102212464
    %v2394 = vsel %vm2390, %v2378, %v2393
    %v2395 = vsel %vm2389, %v2392, %v2394
    %v2396 = vsel %vm2388, %v2375, %v2378
    %v2397 = vsel %vm2391, %v2384, 920167782
    %v2398 = vsel %vm2390, %v2381, %v2397
    %v2399 = vsel %vm2389, %v2396, %v2398
    %v2400 = vsel %vm2388, %v2378, %v2381
    %v2401 = vsel %vm2391, %v2387, 1326507024
    %v2402 = vsel %vm2390, %v2384, %v2401
    %v2403 = vsel %vm2389, %v2400, %v2402
    %v2404 = vshll.u32 %v2364, 8
    %v2405 = vmul.u32.u64.compose %v2404, %v2403
    %v2406 = vextract.low.u32 %v2405
    %v2407 = vextract.high.u32 %v2405
    %v2408 = vmul.u32.u64.compose %v2404, %v2399
    %v2409 = vextract.low.u32 %v2408
    %v2410 = vextract.high.u32 %v2408
    %v2411 = vmul.u32 %v2404, %v2395
    %v2412 = vadd.s32 %v2407, %v2409
    %vm2413 = vc.u32 %v2407, %v2409
    %v2414 = vadd.s32 %v2410, 1
    %v2415 = vsel %vm2413, %v2414, %v2410
    %v2416 = vadd.s32 %v2411, %v2415
    %v2417 = vadd.s32 %v2416, 536870912
    %v2418 = vshrl.u32 %v2417, 30
    %v2419 = vshll.u32 %v2418, 30
    %v2420 = vsub.s32 %v2416, %v2419
    %vm2421 = vcmp.lt.s32.totalorder %v2420, 0
    %v2422 = vsub.s32 0, %v2420
    %v2423 = vsel %vm2421, %v2422, %v2420
    %v2424 = vclz %v2423
    %v2425 = vsub.s32 %v2424, 2
    %vm2426 = vcmp.gt.s32.totalorder 0, %v2425
    %v2427 = vsel %vm2426, 0, %v2425
    %v2428 = vsub.s32 32, %v2427
    %v2429 = vshll.u32 %v2420, %v2427
    %v2430 = vshrl.u32 %v2412, %v2428
    %v2431 = vor.u32 %v2429, %v2430
    %v2432 = vsub.s32 4294967266, %v2427
    %v2433 = vadd.s32 %v2432, 127
    %v2434 = vshll.u32 %v2433, 23
    %v2435 = vor.u32 4788187, %v2434
    %v2436 = vand.u32 2147483647, %v2435
    %v2438 = vcvt.s32.f32 %v2431
    %v2439 = vmul.f32 %v2438, %v2436
    %v2440 = vxor.u32 %v2439, 2147483648
    %v2441 = vsel %vm2358, %v2440, %v2439
    %v2442 = vsub.s32 4, %v2418
    %v2443 = vsel %vm2358, %v2442, %v2418
    %v2444 = vsel %vm2357, %v291, %v2441
    %v2445 = vsel %vm2357, 0, %v2443
    %v2446 = vcosq.f32.pop %v2444
    %v2447 = vsinq.f32.pop %v2444
    %vm2448 = vweird.f32 %v291
    %v2449 = vand.u32 %v2445, 3
    %vm2450 = vcmp.lt.s32.totalorder %v2449, 2
    %vm2451 = vcmp.eq.s32.totalorder %v2449, 0
    %v2452 = vxor.u32 %v2447, 2147483648
    %v2453 = vsel %vm2451, %v2446, %v2452
    %vm2454 = vcmp.eq.s32.totalorder %v2449, 2
    %v2455 = vxor.u32 %v2446, 2147483648
    %v2456 = vsel %vm2454, %v2455, %v2447
    %v2457 = vsel %vm2450, %v2453, %v2456
    %v2458 = vsel %vm2448, nan, %v2457
    %v2459 = vand.u32 2147483647, %v141
    %vm2460 = vcmp.le.f32.partialorder %v2459, 0.7853982
    %vm2461 = vcmp.lt.s32.totalorder %v141, 0
    %v2462 = vand.u32 %v141, 2139095040
    %v2463 = vshrl.u32 %v2462, 23
    %v2464 = vsub.s32 %v2463, 127
    %v2465 = vand.u32 2147483647, %v141
    %v2466 = vand.u32 %v2465, 8388607
    %v2467 = vor.u32 %v2466, 8388608
    %v2468 = vsub.s32 0, %v2467
    %v2469 = vadd.s32 %v2464, 1
    %vm2470 = vcmp.gt.s32.totalorder %v2469, 0
    %v2471 = vsel %vm2470, %v2469, 0
    %v2472 = vshrl.u32 %v2471, 5
    %v2473 = vand.u32 %v2471, 31
    %v2474 = vsub.s32 32, %v2473
    %v2475 = vshrl.u32 683565275, %v2474
    %v2476 = vshll.u32 683565275, %v2473
    %v2477 = vshrl.u32 2475754826, %v2474
    %v2478 = vor.u32 %v2476, %v2477
    %v2479 = vshll.u32 2475754826, %v2473
    %v2480 = vshrl.u32 2131351028, %v2474
    %v2481 = vor.u32 %v2479, %v2480
    %v2482 = vshll.u32 2131351028, %v2473
    %v2483 = vshrl.u32 2102212464, %v2474
    %v2484 = vor.u32 %v2482, %v2483
    %v2485 = vshll.u32 2102212464, %v2473
    %v2486 = vshrl.u32 920167782, %v2474
    %v2487 = vor.u32 %v2485, %v2486
    %v2488 = vshll.u32 920167782, %v2473
    %v2489 = vshrl.u32 1326507024, %v2474
    %v2490 = vor.u32 %v2488, %v2489
    %vm2491 = vcmp.lt.s32.totalorder %v2472, 1
    %vm2492 = vcmp.lt.s32.totalorder %v2472, 2
    %vm2493 = vcmp.lt.s32.totalorder %v2472, 3
    %vm2494 = vcmp.lt.s32.totalorder %v2472, 4
    %v2495 = vsel %vm2491, %v2475, %v2478
    %v2496 = vsel %vm2494, %v2484, 2102212464
    %v2497 = vsel %vm2493, %v2481, %v2496
    %v2498 = vsel %vm2492, %v2495, %v2497
    %v2499 = vsel %vm2491, %v2478, %v2481
    %v2500 = vsel %vm2494, %v2487, 920167782
    %v2501 = vsel %vm2493, %v2484, %v2500
    %v2502 = vsel %vm2492, %v2499, %v2501
    %v2503 = vsel %vm2491, %v2481, %v2484
    %v2504 = vsel %vm2494, %v2490, 1326507024
    %v2505 = vsel %vm2493, %v2487, %v2504
    %v2506 = vsel %vm2492, %v2503, %v2505
    %v2507 = vshll.u32 %v2467, 8
    %v2508 = vmul.u32.u64.compose %v2507, %v2506
    %v2509 = vextract.low.u32 %v2508
    %v2510 = vextract.high.u32 %v2508
    %v2511 = vmul.u32.u64.compose %v2507, %v2502
    %v2512 = vextract.low.u32 %v2511
    %v2513 = vextract.high.u32 %v2511
    %v2514 = vmul.u32 %v2507, %v2498
    %v2515 = vadd.s32 %v2510, %v2512
    %vm2516 = vc.u32 %v2510, %v2512
    %v2517 = vadd.s32 %v2513, 1
    %v2518 = vsel %vm2516, %v2517, %v2513
    %v2519 = vadd.s32 %v2514, %v2518
    %v2520 = vadd.s32 %v2519, 536870912
    %v2521 = vshrl.u32 %v2520, 30
    %v2522 = vshll.u32 %v2521, 30
    %v2523 = vsub.s32 %v2519, %v2522
    %vm2524 = vcmp.lt.s32.totalorder %v2523, 0
    %v2525 = vsub.s32 0, %v2523
    %v2526 = vsel %vm2524, %v2525, %v2523
    %v2527 = vclz %v2526
    %v2528 = vsub.s32 %v2527, 2
    %vm2529 = vcmp.gt.s32.totalorder 0, %v2528
    %v2530 = vsel %vm2529, 0, %v2528
    %v2531 = vsub.s32 32, %v2530
    %v2532 = vshll.u32 %v2523, %v2530
    %v2533 = vshrl.u32 %v2515, %v2531
    %v2534 = vor.u32 %v2532, %v2533
    %v2535 = vsub.s32 4294967266, %v2530
    %v2536 = vadd.s32 %v2535, 127
    %v2537 = vshll.u32 %v2536, 23
    %v2538 = vor.u32 4788187, %v2537
    %v2539 = vand.u32 2147483647, %v2538
    %v2541 = vcvt.s32.f32 %v2534
    %v2542 = vmul.f32 %v2541, %v2539
    %v2543 = vxor.u32 %v2542, 2147483648
    %v2544 = vsel %vm2461, %v2543, %v2542
    %v2545 = vsub.s32 4, %v2521
    %v2546 = vsel %vm2461, %v2545, %v2521
    %v2547 = vsel %vm2460, %v141, %v2544
    %v2548 = vsel %vm2460, 0, %v2546
    %v2549 = vcosq.f32.pop %v2547
    %v2550 = vsinq.f32.pop %v2547
    %vm2551 = vweird.f32 %v141
    %v2552 = vand.u32 %v2548, 3
    %vm2553 = vcmp.lt.s32.totalorder %v2552, 2
    %vm2554 = vcmp.eq.s32.totalorder %v2552, 0
    %v2555 = vxor.u32 %v2550, 2147483648
    %v2556 = vsel %vm2554, %v2549, %v2555
    %vm2557 = vcmp.eq.s32.totalorder %v2552, 2
    %v2558 = vxor.u32 %v2549, 2147483648
    %v2559 = vsel %vm2557, %v2558, %v2550
    %v2560 = vsel %vm2553, %v2556, %v2559
    %v2561 = vsel %vm2551, nan, %v2560
    %v2562 = vand.u32 2147483647, %v143
    %vm2563 = vcmp.le.f32.partialorder %v2562, 0.7853982
    %vm2564 = vcmp.lt.s32.totalorder %v143, 0
    %v2565 = vand.u32 %v143, 2139095040
    %v2566 = vshrl.u32 %v2565, 23
    %v2567 = vsub.s32 %v2566, 127
    %v2568 = vand.u32 2147483647, %v143
    %v2569 = vand.u32 %v2568, 8388607
    %v2570 = vor.u32 %v2569, 8388608
    %v2571 = vsub.s32 0, %v2570
    %v2572 = vadd.s32 %v2567, 1
    %vm2573 = vcmp.gt.s32.totalorder %v2572, 0
    %v2574 = vsel %vm2573, %v2572, 0
    %v2575 = vshrl.u32 %v2574, 5
    %v2576 = vand.u32 %v2574, 31
    %v2577 = vsub.s32 32, %v2576
    %v2578 = vshrl.u32 683565275, %v2577
    %v2579 = vshll.u32 683565275, %v2576
    %v2580 = vshrl.u32 2475754826, %v2577
    %v2581 = vor.u32 %v2579, %v2580
    %v2582 = vshll.u32 2475754826, %v2576
    %v2583 = vshrl.u32 2131351028, %v2577
    %v2584 = vor.u32 %v2582, %v2583
    %v2585 = vshll.u32 2131351028, %v2576
    %v2586 = vshrl.u32 2102212464, %v2577
    %v2587 = vor.u32 %v2585, %v2586
    %v2588 = vshll.u32 2102212464, %v2576
    %v2589 = vshrl.u32 920167782, %v2577
    %v2590 = vor.u32 %v2588, %v2589
    %v2591 = vshll.u32 920167782, %v2576
    %v2592 = vshrl.u32 1326507024, %v2577
    %v2593 = vor.u32 %v2591, %v2592
    %vm2594 = vcmp.lt.s32.totalorder %v2575, 1
    %vm2595 = vcmp.lt.s32.totalorder %v2575, 2
    %vm2596 = vcmp.lt.s32.totalorder %v2575, 3
    %vm2597 = vcmp.lt.s32.totalorder %v2575, 4
    %v2598 = vsel %vm2594, %v2578, %v2581
    %v2599 = vsel %vm2597, %v2587, 2102212464
    %v2600 = vsel %vm2596, %v2584, %v2599
    %v2601 = vsel %vm2595, %v2598, %v2600
    %v2602 = vsel %vm2594, %v2581, %v2584
    %v2603 = vsel %vm2597, %v2590, 920167782
    %v2604 = vsel %vm2596, %v2587, %v2603
    %v2605 = vsel %vm2595, %v2602, %v2604
    %v2606 = vsel %vm2594, %v2584, %v2587
    %v2607 = vsel %vm2597, %v2593, 1326507024
    %v2608 = vsel %vm2596, %v2590, %v2607
    %v2609 = vsel %vm2595, %v2606, %v2608
    %v2610 = vshll.u32 %v2570, 8
    %v2611 = vmul.u32.u64.compose %v2610, %v2609
    %v2612 = vextract.low.u32 %v2611
    %v2613 = vextract.high.u32 %v2611
    %v2614 = vmul.u32.u64.compose %v2610, %v2605
    %v2615 = vextract.low.u32 %v2614
    %v2616 = vextract.high.u32 %v2614
    %v2617 = vmul.u32 %v2610, %v2601
    %v2618 = vadd.s32 %v2613, %v2615
    %vm2619 = vc.u32 %v2613, %v2615
    %v2620 = vadd.s32 %v2616, 1
    %v2621 = vsel %vm2619, %v2620, %v2616
    %v2622 = vadd.s32 %v2617, %v2621
    %v2623 = vadd.s32 %v2622, 536870912
    %v2624 = vshrl.u32 %v2623, 30
    %v2625 = vshll.u32 %v2624, 30
    %v2626 = vsub.s32 %v2622, %v2625
    %vm2627 = vcmp.lt.s32.totalorder %v2626, 0
    %v2628 = vsub.s32 0, %v2626
    %v2629 = vsel %vm2627, %v2628, %v2626
    %v2630 = vclz %v2629
    %v2631 = vsub.s32 %v2630, 2
    %vm2632 = vcmp.gt.s32.totalorder 0, %v2631
    %v2633 = vsel %vm2632, 0, %v2631
    %v2634 = vsub.s32 32, %v2633
    %v2635 = vshll.u32 %v2626, %v2633
    %v2636 = vshrl.u32 %v2618, %v2634
    %v2637 = vor.u32 %v2635, %v2636
    %v2638 = vsub.s32 4294967266, %v2633
    %v2639 = vadd.s32 %v2638, 127
    %v2640 = vshll.u32 %v2639, 23
    %v2641 = vor.u32 4788187, %v2640
    %v2642 = vand.u32 2147483647, %v2641
    %v2644 = vcvt.s32.f32 %v2637
    %v2645 = vmul.f32 %v2644, %v2642
    %v2646 = vxor.u32 %v2645, 2147483648
    %v2647 = vsel %vm2564, %v2646, %v2645
    %v2648 = vsub.s32 4, %v2624
    %v2649 = vsel %vm2564, %v2648, %v2624
    %v2650 = vsel %vm2563, %v143, %v2647
    %v2651 = vsel %vm2563, 0, %v2649
    %v2652 = vcosq.f32.pop %v2650
    %v2653 = vsinq.f32.pop %v2650
    %vm2654 = vweird.f32 %v143
    %v2655 = vand.u32 %v2651, 3
    %vm2656 = vcmp.lt.s32.totalorder %v2655, 2
    %vm2657 = vcmp.eq.s32.totalorder %v2655, 0
    %v2658 = vxor.u32 %v2653, 2147483648
    %v2659 = vsel %vm2657, %v2652, %v2658
    %vm2660 = vcmp.eq.s32.totalorder %v2655, 2
    %v2661 = vxor.u32 %v2652, 2147483648
    %v2662 = vsel %vm2660, %v2661, %v2653
    %v2663 = vsel %vm2656, %v2659, %v2662
    %v2664 = vsel %vm2654, nan, %v2663
    %v2665 = vand.u32 2147483647, %v218
    %vm2666 = vcmp.le.f32.partialorder %v2665, 0.7853982
    %vm2667 = vcmp.lt.s32.totalorder %v218, 0
    %v2668 = vand.u32 %v218, 2139095040
    %v2669 = vshrl.u32 %v2668, 23
    %v2670 = vsub.s32 %v2669, 127
    %v2671 = vand.u32 2147483647, %v218
    %v2672 = vand.u32 %v2671, 8388607
    %v2673 = vor.u32 %v2672, 8388608
    %v2674 = vsub.s32 0, %v2673
    %v2675 = vadd.s32 %v2670, 1
    %vm2676 = vcmp.gt.s32.totalorder %v2675, 0
    %v2677 = vsel %vm2676, %v2675, 0
    %v2678 = vshrl.u32 %v2677, 5
    %v2679 = vand.u32 %v2677, 31
    %v2680 = vsub.s32 32, %v2679
    %v2681 = vshrl.u32 683565275, %v2680
    %v2682 = vshll.u32 683565275, %v2679
    %v2683 = vshrl.u32 2475754826, %v2680
    %v2684 = vor.u32 %v2682, %v2683
    %v2685 = vshll.u32 2475754826, %v2679
    %v2686 = vshrl.u32 2131351028, %v2680
    %v2687 = vor.u32 %v2685, %v2686
    %v2688 = vshll.u32 2131351028, %v2679
    %v2689 = vshrl.u32 2102212464, %v2680
    %v2690 = vor.u32 %v2688, %v2689
    %v2691 = vshll.u32 2102212464, %v2679
    %v2692 = vshrl.u32 920167782, %v2680
    %v2693 = vor.u32 %v2691, %v2692
    %v2694 = vshll.u32 920167782, %v2679
    %v2695 = vshrl.u32 1326507024, %v2680
    %v2696 = vor.u32 %v2694, %v2695
    %vm2697 = vcmp.lt.s32.totalorder %v2678, 1
    %vm2698 = vcmp.lt.s32.totalorder %v2678, 2
    %vm2699 = vcmp.lt.s32.totalorder %v2678, 3
    %vm2700 = vcmp.lt.s32.totalorder %v2678, 4
    %v2701 = vsel %vm2697, %v2681, %v2684
    %v2702 = vsel %vm2700, %v2690, 2102212464
    %v2703 = vsel %vm2699, %v2687, %v2702
    %v2704 = vsel %vm2698, %v2701, %v2703
    %v2705 = vsel %vm2697, %v2684, %v2687
    %v2706 = vsel %vm2700, %v2693, 920167782
    %v2707 = vsel %vm2699, %v2690, %v2706
    %v2708 = vsel %vm2698, %v2705, %v2707
    %v2709 = vsel %vm2697, %v2687, %v2690
    %v2710 = vsel %vm2700, %v2696, 1326507024
    %v2711 = vsel %vm2699, %v2693, %v2710
    %v2712 = vsel %vm2698, %v2709, %v2711
    %v2713 = vshll.u32 %v2673, 8
    %v2714 = vmul.u32.u64.compose %v2713, %v2712
    %v2715 = vextract.low.u32 %v2714
    %v2716 = vextract.high.u32 %v2714
    %v2717 = vmul.u32.u64.compose %v2713, %v2708
    %v2718 = vextract.low.u32 %v2717
    %v2719 = vextract.high.u32 %v2717
    %v2720 = vmul.u32 %v2713, %v2704
    %v2721 = vadd.s32 %v2716, %v2718
    %vm2722 = vc.u32 %v2716, %v2718
    %v2723 = vadd.s32 %v2719, 1
    %v2724 = vsel %vm2722, %v2723, %v2719
    %v2725 = vadd.s32 %v2720, %v2724
    %v2726 = vadd.s32 %v2725, 536870912
    %v2727 = vshrl.u32 %v2726, 30
    %v2728 = vshll.u32 %v2727, 30
    %v2729 = vsub.s32 %v2725, %v2728
    %vm2730 = vcmp.lt.s32.totalorder %v2729, 0
    %v2731 = vsub.s32 0, %v2729
    %v2732 = vsel %vm2730, %v2731, %v2729
    %v2733 = vclz %v2732
    %v2734 = vsub.s32 %v2733, 2
    %vm2735 = vcmp.gt.s32.totalorder 0, %v2734
    %v2736 = vsel %vm2735, 0, %v2734
    %v2737 = vsub.s32 32, %v2736
    %v2738 = vshll.u32 %v2729, %v2736
    %v2739 = vshrl.u32 %v2721, %v2737
    %v2740 = vor.u32 %v2738, %v2739
    %v2741 = vsub.s32 4294967266, %v2736
    %v2742 = vadd.s32 %v2741, 127
    %v2743 = vshll.u32 %v2742, 23
    %v2744 = vor.u32 4788187, %v2743
    %v2745 = vand.u32 2147483647, %v2744
    %v2747 = vcvt.s32.f32 %v2740
    %v2748 = vmul.f32 %v2747, %v2745
    %v2749 = vxor.u32 %v2748, 2147483648
    %v2750 = vsel %vm2667, %v2749, %v2748
    %v2751 = vsub.s32 4, %v2727
    %v2752 = vsel %vm2667, %v2751, %v2727
    %v2753 = vsel %vm2666, %v218, %v2750
    %v2754 = vsel %vm2666, 0, %v2752
    %v2755 = vcosq.f32.pop %v2753
    %v2756 = vsinq.f32.pop %v2753
    %vm2757 = vweird.f32 %v218
    %v2758 = vand.u32 %v2754, 3
    %vm2759 = vcmp.lt.s32.totalorder %v2758, 2
    %vm2760 = vcmp.eq.s32.totalorder %v2758, 0
    %v2761 = vxor.u32 %v2756, 2147483648
    %v2762 = vsel %vm2760, %v2755, %v2761
    %vm2763 = vcmp.eq.s32.totalorder %v2758, 2
    %v2764 = vxor.u32 %v2755, 2147483648
    %v2765 = vsel %vm2763, %v2764, %v2756
    %v2766 = vsel %vm2759, %v2762, %v2765
    %v2767 = vsel %vm2757, nan, %v2766
    %v2768 = vand.u32 2147483647, %v220
    %vm2769 = vcmp.le.f32.partialorder %v2768, 0.7853982
    %vm2770 = vcmp.lt.s32.totalorder %v220, 0
    %v2771 = vand.u32 %v220, 2139095040
    %v2772 = vshrl.u32 %v2771, 23
    %v2773 = vsub.s32 %v2772, 127
    %v2774 = vand.u32 2147483647, %v220
    %v2775 = vand.u32 %v2774, 8388607
    %v2776 = vor.u32 %v2775, 8388608
    %v2777 = vsub.s32 0, %v2776
    %v2778 = vadd.s32 %v2773, 1
    %vm2779 = vcmp.gt.s32.totalorder %v2778, 0
    %v2780 = vsel %vm2779, %v2778, 0
    %v2781 = vshrl.u32 %v2780, 5
    %v2782 = vand.u32 %v2780, 31
    %v2783 = vsub.s32 32, %v2782
    %v2784 = vshrl.u32 683565275, %v2783
    %v2785 = vshll.u32 683565275, %v2782
    %v2786 = vshrl.u32 2475754826, %v2783
    %v2787 = vor.u32 %v2785, %v2786
    %v2788 = vshll.u32 2475754826, %v2782
    %v2789 = vshrl.u32 2131351028, %v2783
    %v2790 = vor.u32 %v2788, %v2789
    %v2791 = vshll.u32 2131351028, %v2782
    %v2792 = vshrl.u32 2102212464, %v2783
    %v2793 = vor.u32 %v2791, %v2792
    %v2794 = vshll.u32 2102212464, %v2782
    %v2795 = vshrl.u32 920167782, %v2783
    %v2796 = vor.u32 %v2794, %v2795
    %v2797 = vshll.u32 920167782, %v2782
    %v2798 = vshrl.u32 1326507024, %v2783
    %v2799 = vor.u32 %v2797, %v2798
    %vm2800 = vcmp.lt.s32.totalorder %v2781, 1
    %vm2801 = vcmp.lt.s32.totalorder %v2781, 2
    %vm2802 = vcmp.lt.s32.totalorder %v2781, 3
    %vm2803 = vcmp.lt.s32.totalorder %v2781, 4
    %v2804 = vsel %vm2800, %v2784, %v2787
    %v2805 = vsel %vm2803, %v2793, 2102212464
    %v2806 = vsel %vm2802, %v2790, %v2805
    %v2807 = vsel %vm2801, %v2804, %v2806
    %v2808 = vsel %vm2800, %v2787, %v2790
    %v2809 = vsel %vm2803, %v2796, 920167782
    %v2810 = vsel %vm2802, %v2793, %v2809
    %v2811 = vsel %vm2801, %v2808, %v2810
    %v2812 = vsel %vm2800, %v2790, %v2793
    %v2813 = vsel %vm2803, %v2799, 1326507024
    %v2814 = vsel %vm2802, %v2796, %v2813
    %v2815 = vsel %vm2801, %v2812, %v2814
    %v2816 = vshll.u32 %v2776, 8
    %v2817 = vmul.u32.u64.compose %v2816, %v2815
    %v2818 = vextract.low.u32 %v2817
    %v2819 = vextract.high.u32 %v2817
    %v2820 = vmul.u32.u64.compose %v2816, %v2811
    %v2821 = vextract.low.u32 %v2820
    %v2822 = vextract.high.u32 %v2820
    %v2823 = vmul.u32 %v2816, %v2807
    %v2824 = vadd.s32 %v2819, %v2821
    %vm2825 = vc.u32 %v2819, %v2821
    %v2826 = vadd.s32 %v2822, 1
    %v2827 = vsel %vm2825, %v2826, %v2822
    %v2828 = vadd.s32 %v2823, %v2827
    %v2829 = vadd.s32 %v2828, 536870912
    %v2830 = vshrl.u32 %v2829, 30
    %v2831 = vshll.u32 %v2830, 30
    %v2832 = vsub.s32 %v2828, %v2831
    %vm2833 = vcmp.lt.s32.totalorder %v2832, 0
    %v2834 = vsub.s32 0, %v2832
    %v2835 = vsel %vm2833, %v2834, %v2832
    %v2836 = vclz %v2835
    %v2837 = vsub.s32 %v2836, 2
    %vm2838 = vcmp.gt.s32.totalorder 0, %v2837
    %v2839 = vsel %vm2838, 0, %v2837
    %v2840 = vsub.s32 32, %v2839
    %v2841 = vshll.u32 %v2832, %v2839
    %v2842 = vshrl.u32 %v2824, %v2840
    %v2843 = vor.u32 %v2841, %v2842
    %v2844 = vsub.s32 4294967266, %v2839
    %v2845 = vadd.s32 %v2844, 127
    %v2846 = vshll.u32 %v2845, 23
    %v2847 = vor.u32 4788187, %v2846
    %v2848 = vand.u32 2147483647, %v2847
    %v2850 = vcvt.s32.f32 %v2843
    %v2851 = vmul.f32 %v2850, %v2848
    %v2852 = vxor.u32 %v2851, 2147483648
    %v2853 = vsel %vm2770, %v2852, %v2851
    %v2854 = vsub.s32 4, %v2830
    %v2855 = vsel %vm2770, %v2854, %v2830
    %v2856 = vsel %vm2769, %v220, %v2853
    %v2857 = vsel %vm2769, 0, %v2855
    %v2858 = vcosq.f32.pop %v2856
    %v2859 = vsinq.f32.pop %v2856
    %vm2860 = vweird.f32 %v220
    %v2861 = vand.u32 %v2857, 3
    %vm2862 = vcmp.lt.s32.totalorder %v2861, 2
    %vm2863 = vcmp.eq.s32.totalorder %v2861, 0
    %v2864 = vxor.u32 %v2859, 2147483648
    %v2865 = vsel %vm2863, %v2858, %v2864
    %vm2866 = vcmp.eq.s32.totalorder %v2861, 2
    %v2867 = vxor.u32 %v2858, 2147483648
    %v2868 = vsel %vm2866, %v2867, %v2859
    %v2869 = vsel %vm2862, %v2865, %v2868
    %v2870 = vsel %vm2860, nan, %v2869
    %v2871 = vand.u32 2147483647, %v295
    %vm2872 = vcmp.le.f32.partialorder %v2871, 0.7853982
    %vm2873 = vcmp.lt.s32.totalorder %v295, 0
    %v2874 = vand.u32 %v295, 2139095040
    %v2875 = vshrl.u32 %v2874, 23
    %v2876 = vsub.s32 %v2875, 127
    %v2877 = vand.u32 2147483647, %v295
    %v2878 = vand.u32 %v2877, 8388607
    %v2879 = vor.u32 %v2878, 8388608
    %v2880 = vsub.s32 0, %v2879
    %v2881 = vadd.s32 %v2876, 1
    %vm2882 = vcmp.gt.s32.totalorder %v2881, 0
    %v2883 = vsel %vm2882, %v2881, 0
    %v2884 = vshrl.u32 %v2883, 5
    %v2885 = vand.u32 %v2883, 31
    %v2886 = vsub.s32 32, %v2885
    %v2887 = vshrl.u32 683565275, %v2886
    %v2888 = vshll.u32 683565275, %v2885
    %v2889 = vshrl.u32 2475754826, %v2886
    %v2890 = vor.u32 %v2888, %v2889
    %v2891 = vshll.u32 2475754826, %v2885
    %v2892 = vshrl.u32 2131351028, %v2886
    %v2893 = vor.u32 %v2891, %v2892
    %v2894 = vshll.u32 2131351028, %v2885
    %v2895 = vshrl.u32 2102212464, %v2886
    %v2896 = vor.u32 %v2894, %v2895
    %v2897 = vshll.u32 2102212464, %v2885
    %v2898 = vshrl.u32 920167782, %v2886
    %v2899 = vor.u32 %v2897, %v2898
    %v2900 = vshll.u32 920167782, %v2885
    %v2901 = vshrl.u32 1326507024, %v2886
    %v2902 = vor.u32 %v2900, %v2901
    %vm2903 = vcmp.lt.s32.totalorder %v2884, 1
    %vm2904 = vcmp.lt.s32.totalorder %v2884, 2
    %vm2905 = vcmp.lt.s32.totalorder %v2884, 3
    %vm2906 = vcmp.lt.s32.totalorder %v2884, 4
    %v2907 = vsel %vm2903, %v2887, %v2890
    %v2908 = vsel %vm2906, %v2896, 2102212464
    %v2909 = vsel %vm2905, %v2893, %v2908
    %v2910 = vsel %vm2904, %v2907, %v2909
    %v2911 = vsel %vm2903, %v2890, %v2893
    %v2912 = vsel %vm2906, %v2899, 920167782
    %v2913 = vsel %vm2905, %v2896, %v2912
    %v2914 = vsel %vm2904, %v2911, %v2913
    %v2915 = vsel %vm2903, %v2893, %v2896
    %v2916 = vsel %vm2906, %v2902, 1326507024
    %v2917 = vsel %vm2905, %v2899, %v2916
    %v2918 = vsel %vm2904, %v2915, %v2917
    %v2919 = vshll.u32 %v2879, 8
    %v2920 = vmul.u32.u64.compose %v2919, %v2918
    %v2921 = vextract.low.u32 %v2920
    %v2922 = vextract.high.u32 %v2920
    %v2923 = vmul.u32.u64.compose %v2919, %v2914
    %v2924 = vextract.low.u32 %v2923
    %v2925 = vextract.high.u32 %v2923
    %v2926 = vmul.u32 %v2919, %v2910
    %v2927 = vadd.s32 %v2922, %v2924
    %vm2928 = vc.u32 %v2922, %v2924
    %v2929 = vadd.s32 %v2925, 1
    %v2930 = vsel %vm2928, %v2929, %v2925
    %v2931 = vadd.s32 %v2926, %v2930
    %v2932 = vadd.s32 %v2931, 536870912
    %v2933 = vshrl.u32 %v2932, 30
    %v2934 = vshll.u32 %v2933, 30
    %v2935 = vsub.s32 %v2931, %v2934
    %vm2936 = vcmp.lt.s32.totalorder %v2935, 0
    %v2937 = vsub.s32 0, %v2935
    %v2938 = vsel %vm2936, %v2937, %v2935
    %v2939 = vclz %v2938
    %v2940 = vsub.s32 %v2939, 2
    %vm2941 = vcmp.gt.s32.totalorder 0, %v2940
    %v2942 = vsel %vm2941, 0, %v2940
    %v2943 = vsub.s32 32, %v2942
    %v2944 = vshll.u32 %v2935, %v2942
    %v2945 = vshrl.u32 %v2927, %v2943
    %v2946 = vor.u32 %v2944, %v2945
    %v2947 = vsub.s32 4294967266, %v2942
    %v2948 = vadd.s32 %v2947, 127
    %v2949 = vshll.u32 %v2948, 23
    %v2950 = vor.u32 4788187, %v2949
    %v2951 = vand.u32 2147483647, %v2950
    %v2953 = vcvt.s32.f32 %v2946
    %v2954 = vmul.f32 %v2953, %v2951
    %v2955 = vxor.u32 %v2954, 2147483648
    %v2956 = vsel %vm2873, %v2955, %v2954
    %v2957 = vsub.s32 4, %v2933
    %v2958 = vsel %vm2873, %v2957, %v2933
    %v2959 = vsel %vm2872, %v295, %v2956
    %v2960 = vsel %vm2872, 0, %v2958
    %v2961 = vcosq.f32.pop %v2959
    %v2962 = vsinq.f32.pop %v2959
    %vm2963 = vweird.f32 %v295
    %v2964 = vand.u32 %v2960, 3
    %vm2965 = vcmp.lt.s32.totalorder %v2964, 2
    %vm2966 = vcmp.eq.s32.totalorder %v2964, 0
    %v2967 = vxor.u32 %v2962, 2147483648
    %v2968 = vsel %vm2966, %v2961, %v2967
    %vm2969 = vcmp.eq.s32.totalorder %v2964, 2
    %v2970 = vxor.u32 %v2961, 2147483648
    %v2971 = vsel %vm2969, %v2970, %v2962
    %v2972 = vsel %vm2965, %v2968, %v2971
    %v2973 = vsel %vm2963, nan, %v2972
    %v2974 = vand.u32 2147483647, %v297
    %vm2975 = vcmp.le.f32.partialorder %v2974, 0.7853982
    %vm2976 = vcmp.lt.s32.totalorder %v297, 0
    %v2977 = vand.u32 %v297, 2139095040
    %v2978 = vshrl.u32 %v2977, 23
    %v2979 = vsub.s32 %v2978, 127
    %v2980 = vand.u32 2147483647, %v297
    %v2981 = vand.u32 %v2980, 8388607
    %v2982 = vor.u32 %v2981, 8388608
    %v2983 = vsub.s32 0, %v2982
    %v2984 = vadd.s32 %v2979, 1
    %vm2985 = vcmp.gt.s32.totalorder %v2984, 0
    %v2986 = vsel %vm2985, %v2984, 0
    %v2987 = vshrl.u32 %v2986, 5
    %v2988 = vand.u32 %v2986, 31
    %v2989 = vsub.s32 32, %v2988
    %v2990 = vshrl.u32 683565275, %v2989
    %v2991 = vshll.u32 683565275, %v2988
    %v2992 = vshrl.u32 2475754826, %v2989
    %v2993 = vor.u32 %v2991, %v2992
    %v2994 = vshll.u32 2475754826, %v2988
    %v2995 = vshrl.u32 2131351028, %v2989
    %v2996 = vor.u32 %v2994, %v2995
    %v2997 = vshll.u32 2131351028, %v2988
    %v2998 = vshrl.u32 2102212464, %v2989
    %v2999 = vor.u32 %v2997, %v2998
    %v3000 = vshll.u32 2102212464, %v2988
    %v3001 = vshrl.u32 920167782, %v2989
    %v3002 = vor.u32 %v3000, %v3001
    %v3003 = vshll.u32 920167782, %v2988
    %v3004 = vshrl.u32 1326507024, %v2989
    %v3005 = vor.u32 %v3003, %v3004
    %vm3006 = vcmp.lt.s32.totalorder %v2987, 1
    %vm3007 = vcmp.lt.s32.totalorder %v2987, 2
    %vm3008 = vcmp.lt.s32.totalorder %v2987, 3
    %vm3009 = vcmp.lt.s32.totalorder %v2987, 4
    %v3010 = vsel %vm3006, %v2990, %v2993
    %v3011 = vsel %vm3009, %v2999, 2102212464
    %v3012 = vsel %vm3008, %v2996, %v3011
    %v3013 = vsel %vm3007, %v3010, %v3012
    %v3014 = vsel %vm3006, %v2993, %v2996
    %v3015 = vsel %vm3009, %v3002, 920167782
    %v3016 = vsel %vm3008, %v2999, %v3015
    %v3017 = vsel %vm3007, %v3014, %v3016
    %v3018 = vsel %vm3006, %v2996, %v2999
    %v3019 = vsel %vm3009, %v3005, 1326507024
    %v3020 = vsel %vm3008, %v3002, %v3019
    %v3021 = vsel %vm3007, %v3018, %v3020
    %v3022 = vshll.u32 %v2982, 8
    %v3023 = vmul.u32.u64.compose %v3022, %v3021
    %v3024 = vextract.low.u32 %v3023
    %v3025 = vextract.high.u32 %v3023
    %v3026 = vmul.u32.u64.compose %v3022, %v3017
    %v3027 = vextract.low.u32 %v3026
    %v3028 = vextract.high.u32 %v3026
    %v3029 = vmul.u32 %v3022, %v3013
    %v3030 = vadd.s32 %v3025, %v3027
    %vm3031 = vc.u32 %v3025, %v3027
    %v3032 = vadd.s32 %v3028, 1
    %v3033 = vsel %vm3031, %v3032, %v3028
    %v3034 = vadd.s32 %v3029, %v3033
    %v3035 = vadd.s32 %v3034, 536870912
    %v3036 = vshrl.u32 %v3035, 30
    %v3037 = vshll.u32 %v3036, 30
    %v3038 = vsub.s32 %v3034, %v3037
    %vm3039 = vcmp.lt.s32.totalorder %v3038, 0
    %v3040 = vsub.s32 0, %v3038
    %v3041 = vsel %vm3039, %v3040, %v3038
    %v3042 = vclz %v3041
    %v3043 = vsub.s32 %v3042, 2
    %vm3044 = vcmp.gt.s32.totalorder 0, %v3043
    %v3045 = vsel %vm3044, 0, %v3043
    %v3046 = vsub.s32 32, %v3045
    %v3047 = vshll.u32 %v3038, %v3045
    %v3048 = vshrl.u32 %v3030, %v3046
    %v3049 = vor.u32 %v3047, %v3048
    %v3050 = vsub.s32 4294967266, %v3045
    %v3051 = vadd.s32 %v3050, 127
    %v3052 = vshll.u32 %v3051, 23
    %v3053 = vor.u32 4788187, %v3052
    %v3054 = vand.u32 2147483647, %v3053
    %v3056 = vcvt.s32.f32 %v3049
    %v3057 = vmul.f32 %v3056, %v3054
    %v3058 = vxor.u32 %v3057, 2147483648
    %v3059 = vsel %vm2976, %v3058, %v3057
    %v3060 = vsub.s32 4, %v3036
    %v3061 = vsel %vm2976, %v3060, %v3036
    %v3062 = vsel %vm2975, %v297, %v3059
    %v3063 = vsel %vm2975, 0, %v3061
    %v3064 = vcosq.f32.pop %v3062
    %v3065 = vsinq.f32.pop %v3062
    %vm3066 = vweird.f32 %v297
    %v3067 = vand.u32 %v3063, 3
    %vm3068 = vcmp.lt.s32.totalorder %v3067, 2
    %vm3069 = vcmp.eq.s32.totalorder %v3067, 0
    %v3070 = vxor.u32 %v3065, 2147483648
    %v3071 = vsel %vm3069, %v3064, %v3070
    %vm3072 = vcmp.eq.s32.totalorder %v3067, 2
    %v3073 = vxor.u32 %v3064, 2147483648
    %v3074 = vsel %vm3072, %v3073, %v3065
    %v3075 = vsel %vm3068, %v3071, %v3074
    %v3076 = vsel %vm3066, nan, %v3075
    %v3077 = vmul.f32 %v552, %v1943
    %v3078 = vmul.f32 %v554, %v2046
    %v3079 = vmul.f32 %v556, %v2149
    %v3080 = vmul.f32 %v558, %v2252
    %v3081 = vmul.f32 %v560, %v2355
    %v3082 = vmul.f32 %v562, %v2458
    %v3083 = vmul.f32 %v564, %v2561
    %v3084 = vmul.f32 %v566, %v2664
    %v3085 = vmul.f32 %v568, %v2767
    %v3086 = vmul.f32 %v570, %v2870
    %v3087 = vmul.f32 %v572, %v2973
    %v3088 = vmul.f32 %v574, %v3076
    %v3089 = vpack.c.bf16 %v3083, %v3077
    %v3090 = vpack.c.bf16 %v3084, %v3078
    %v3091 = vpack.c.bf16 %v3085, %v3079
    %v3092 = vpack.c.bf16 %v3086, %v3080
    %v3093 = vpack.c.bf16 %v3087, %v3081
    %v3094 = vpack.c.bf16 %v3088, %v3082
    %v3095 = vld [vmem:[%s3] sm:$0xf]
    %v3096 = vld [vmem:[%s3 + $0x4] sm:$0xf]
    %v3097 = vld [vmem:[%s3 + $0x8] sm:$0xf]
    %v3098 = vld [vmem:[%s3 + $0xc] sm:$0xf]
    %s3099 = scalar_lea.vmem %s3, 16
    %v3100 = vld [vmem:[%s3099] sm:$0xf]
    %v3101 = vld [vmem:[%s3099 + $0x4] sm:$0xf]
    %v3102 = vld [vmem:[%s3099 + $0x8] sm:$0xf]
    %v3103 = vld [vmem:[%s3099 + $0xc] sm:$0xf]
    %v3108 = vunpack.c.l.b16 %v3100
    %v3109 = vunpack.c.l.b16 %v3101
    %v3110 = vunpack.c.l.b16 %v3102
    %v3111 = vunpack.c.l.b16 %v3103
    %v3112 = vpack.c.b16 %v3109, %v3108
    %v3113 = vpack.c.b16 %v3111, %v3110
    %vm3114 = vcmask 97280
    %v3116 = vsel %vm3114, %v3112, 0
    %v3119 = vsel %vm3114, %v3113, 0
    %v3122 = vsel %vm49, %v3089, 0
    %v3125 = vsel %vm49, %v3090, 0
    %v3128 = vsel %vm49, %v3091, 0
    %v3131 = vsel %vm49, %v3092, 0
    %v3134 = vsel %vm49, %v3093, 0
    %v3137 = vsel %vm49, %v3094, 0
    %3139 = vmatprep.subr.bf16.mxu0 0
    %3140 = vmatpush1.bf16.msra.mxu0 0
    %3141 = vmatprep.subr.bf16.mxu0 0
    %3142 = vmatpush1.bf16.msra.mxu0 0
    %3143 = vmatprep.subr.bf16.mxu0 0
    %3144 = vmatpush1.bf16.msra.mxu0 0
    %3145 = vmatprep.subr.bf16.mxu0 0
    %3146 = vmatpush1.bf16.msra.mxu0 0
    %3147 = vmatprep.subr.bf16.mxu0 0
    %3148 = vmatpush1.bf16.msra.mxu0 0
    %3149 = vmatprep.subr.bf16.mxu0 0
    %3150 = vmatpush1.bf16.msra.mxu0 0
    %3151 = vmatprep.subr.bf16.mxu0 0
    %3152 = vmatpush1.bf16.msra.mxu0 0
    %3153 = vmatprep.subr.bf16.mxu0 %v3125
    %3154 = vmatpush1.bf16.msra.mxu0 %v3122
    %3155 = vmatprep.subr.bf16.mxu0 0
    %3156 = vmatpush2.bf16.msra.mxu0 0
    %3157 = vmatprep.subr.bf16.mxu0 0
    %3158 = vmatpush2.bf16.msra.mxu0 0
    %3159 = vmatprep.subr.bf16.mxu0 0
    %3160 = vmatpush2.bf16.msra.mxu0 0
    %3161 = vmatprep.subr.bf16.mxu0 0
    %3162 = vmatpush2.bf16.msra.mxu0 0
    %3163 = vmatprep.subr.bf16.mxu0 0
    %3164 = vmatpush2.bf16.msra.mxu0 0
    %3165 = vmatprep.subr.bf16.mxu0 0
    %3166 = vmatpush2.bf16.msra.mxu0 0
    %3167 = vmatprep.subr.bf16.mxu0 0
    %3168 = vmatpush2.bf16.msra.mxu0 0
    %3169 = vmatprep.subr.bf16.mxu0 0
    %3170 = vmatpush2.bf16.msra.mxu0 0
    %3171 = vmatprep.mubr.bf16.mxu0 0
    %3172 = vmatmul.mubr.bf16.gmra.mxu0 %v3116
    %v3173 = vpop.f32.mrf.mxu0
    %v3174 = vadd.f32 0.0, %v3173
    %v3175 = vpop.f32.mrf.mxu0
    %v3176 = vadd.f32 0.0, %v3175
    %v3177 = vpop.f32.mrf.mxu0
    %v3178 = vadd.f32 0.0, %v3177
    %v3179 = vpop.f32.mrf.mxu0
    %v3180 = vadd.f32 0.0, %v3179
    %3181 = vmatprep.mubr.bf16.mxu0 0
    %3182 = vmatmul.mubr.bf16.gmra.mxu0 %v3119
    %v3183 = vpop.f32.mrf.mxu0
    %v3184 = vadd.f32 0.0, %v3183
    %v3185 = vpop.f32.mrf.mxu0
    %v3186 = vadd.f32 0.0, %v3185
    %v3187 = vpop.f32.mrf.mxu0
    %v3188 = vadd.f32 0.0, %v3187
    %v3189 = vpop.f32.mrf.mxu0
    %v3190 = vadd.f32 0.0, %v3189
    %3191 = vdwg.mxu0
    %3192 = vmatprep.subr.bf16.mxu0 0
    %3193 = vmatpush1.bf16.msra.mxu0 0
    %3194 = vmatprep.subr.bf16.mxu0 0
    %3195 = vmatpush1.bf16.msra.mxu0 0
    %3196 = vmatprep.subr.bf16.mxu0 0
    %3197 = vmatpush1.bf16.msra.mxu0 0
    %3198 = vmatprep.subr.bf16.mxu0 0
    %3199 = vmatpush1.bf16.msra.mxu0 0
    %3200 = vmatprep.subr.bf16.mxu0 0
    %3201 = vmatpush1.bf16.msra.mxu0 0
    %3202 = vmatprep.subr.bf16.mxu0 0
    %3203 = vmatpush1.bf16.msra.mxu0 0
    %3204 = vmatprep.subr.bf16.mxu0 0
    %3205 = vmatpush1.bf16.msra.mxu0 0
    %3206 = vmatprep.subr.bf16.mxu0 %v3131
    %3207 = vmatpush1.bf16.msra.mxu0 %v3128
    %3208 = vmatprep.subr.bf16.mxu0 0
    %3209 = vmatpush2.bf16.msra.mxu0 0
    %3210 = vmatprep.subr.bf16.mxu0 0
    %3211 = vmatpush2.bf16.msra.mxu0 0
    %3212 = vmatprep.subr.bf16.mxu0 0
    %3213 = vmatpush2.bf16.msra.mxu0 0
    %3214 = vmatprep.subr.bf16.mxu0 0
    %3215 = vmatpush2.bf16.msra.mxu0 0
    %3216 = vmatprep.subr.bf16.mxu0 0
    %3217 = vmatpush2.bf16.msra.mxu0 0
    %3218 = vmatprep.subr.bf16.mxu0 0
    %3219 = vmatpush2.bf16.msra.mxu0 0
    %3220 = vmatprep.subr.bf16.mxu0 0
    %3221 = vmatpush2.bf16.msra.mxu0 0
    %3222 = vmatprep.subr.bf16.mxu0 0
    %3223 = vmatpush2.bf16.msra.mxu0 0
    %3224 = vmatprep.mubr.bf16.mxu0 0
    %3225 = vmatmul.mubr.bf16.gmra.mxu0 %v3116
    %v3226 = vpop.f32.mrf.mxu0
    %v3227 = vadd.f32 0.0, %v3226
    %v3228 = vpop.f32.mrf.mxu0
    %v3229 = vadd.f32 0.0, %v3228
    %v3230 = vpop.f32.mrf.mxu0
    %v3231 = vadd.f32 0.0, %v3230
    %v3232 = vpop.f32.mrf.mxu0
    %v3233 = vadd.f32 0.0, %v3232
    %3234 = vmatprep.mubr.bf16.mxu0 0
    %3235 = vmatmul.mubr.bf16.gmra.mxu0 %v3119
    %v3236 = vpop.f32.mrf.mxu0
    %v3237 = vadd.f32 0.0, %v3236
    %v3238 = vpop.f32.mrf.mxu0
    %v3239 = vadd.f32 0.0, %v3238
    %v3240 = vpop.f32.mrf.mxu0
    %v3241 = vadd.f32 0.0, %v3240
    %v3242 = vpop.f32.mrf.mxu0
    %v3243 = vadd.f32 0.0, %v3242
    %3244 = vdwg.mxu0
    %3245 = vmatprep.subr.bf16.mxu0 0
    %3246 = vmatpush1.bf16.msra.mxu0 0
    %3247 = vmatprep.subr.bf16.mxu0 0
    %3248 = vmatpush1.bf16.msra.mxu0 0
    %3249 = vmatprep.subr.bf16.mxu0 0
    %3250 = vmatpush1.bf16.msra.mxu0 0
    %3251 = vmatprep.subr.bf16.mxu0 0
    %3252 = vmatpush1.bf16.msra.mxu0 0
    %3253 = vmatprep.subr.bf16.mxu0 0
    %3254 = vmatpush1.bf16.msra.mxu0 0
    %3255 = vmatprep.subr.bf16.mxu0 0
    %3256 = vmatpush1.bf16.msra.mxu0 0
    %3257 = vmatprep.subr.bf16.mxu0 0
    %3258 = vmatpush1.bf16.msra.mxu0 0
    %3259 = vmatprep.subr.bf16.mxu0 %v3137
    %3260 = vmatpush1.bf16.msra.mxu0 %v3134
    %3261 = vmatprep.subr.bf16.mxu0 0
    %3262 = vmatpush2.bf16.msra.mxu0 0
    %3263 = vmatprep.subr.bf16.mxu0 0
    %3264 = vmatpush2.bf16.msra.mxu0 0
    %3265 = vmatprep.subr.bf16.mxu0 0
    %3266 = vmatpush2.bf16.msra.mxu0 0
    %3267 = vmatprep.subr.bf16.mxu0 0
    %3268 = vmatpush2.bf16.msra.mxu0 0
    %3269 = vmatprep.subr.bf16.mxu0 0
    %3270 = vmatpush2.bf16.msra.mxu0 0
    %3271 = vmatprep.subr.bf16.mxu0 0
    %3272 = vmatpush2.bf16.msra.mxu0 0
    %3273 = vmatprep.subr.bf16.mxu0 0
    %3274 = vmatpush2.bf16.msra.mxu0 0
    %3275 = vmatprep.subr.bf16.mxu0 0
    %3276 = vmatpush2.bf16.msra.mxu0 0
    %3277 = vmatprep.mubr.bf16.mxu0 0
    %3278 = vmatmul.mubr.bf16.gmra.mxu0 %v3116
    %v3279 = vpop.f32.mrf.mxu0
    %v3280 = vadd.f32 0.0, %v3279
    %v3281 = vpop.f32.mrf.mxu0
    %v3282 = vadd.f32 0.0, %v3281
    %v3283 = vpop.f32.mrf.mxu0
    %v3284 = vadd.f32 0.0, %v3283
    %v3285 = vpop.f32.mrf.mxu0
    %v3286 = vadd.f32 0.0, %v3285
    %3287 = vmatprep.mubr.bf16.mxu0 0
    %3288 = vmatmul.mubr.bf16.gmra.mxu0 %v3119
    %v3289 = vpop.f32.mrf.mxu0
    %v3290 = vadd.f32 0.0, %v3289
    %v3291 = vpop.f32.mrf.mxu0
    %v3292 = vadd.f32 0.0, %v3291
    %v3293 = vpop.f32.mrf.mxu0
    %v3294 = vadd.f32 0.0, %v3293
    %v3295 = vpop.f32.mrf.mxu0
    %v3296 = vadd.f32 0.0, %v3295
    %3297 = vdwg.mxu0
    %v3302 = vunpack.c.l.b16 %v3095
    %v3303 = vunpack.c.l.b16 %v3096
    %v3304 = vunpack.c.l.b16 %v3097
    %v3305 = vunpack.c.l.b16 %v3098
    %v3306 = vpack.c.b16 %v3303, %v3302
    %v3307 = vpack.c.b16 %v3305, %v3304
    %v3309 = vsel %vm3114, %v3306, 0
    %v3312 = vsel %vm3114, %v3307, 0
    %v3315 = vsel %vm49, %v1835, 0
    %v3318 = vsel %vm49, %v1836, 0
    %v3321 = vsel %vm49, %v1837, 0
    %v3324 = vsel %vm49, %v1838, 0
    %v3327 = vsel %vm49, %v1839, 0
    %v3330 = vsel %vm49, %v1840, 0
    %3332 = vmatprep.subr.bf16.mxu0 0
    %3333 = vmatpush1.bf16.msra.mxu0 0
    %3334 = vmatprep.subr.bf16.mxu0 0
    %3335 = vmatpush1.bf16.msra.mxu0 0
    %3336 = vmatprep.subr.bf16.mxu0 0
    %3337 = vmatpush1.bf16.msra.mxu0 0
    %3338 = vmatprep.subr.bf16.mxu0 0
    %3339 = vmatpush1.bf16.msra.mxu0 0
    %3340 = vmatprep.subr.bf16.mxu0 0
    %3341 = vmatpush1.bf16.msra.mxu0 0
    %3342 = vmatprep.subr.bf16.mxu0 0
    %3343 = vmatpush1.bf16.msra.mxu0 0
    %3344 = vmatprep.subr.bf16.mxu0 0
    %3345 = vmatpush1.bf16.msra.mxu0 0
    %3346 = vmatprep.subr.bf16.mxu0 %v3318
    %3347 = vmatpush1.bf16.msra.mxu0 %v3315
    %3348 = vmatprep.subr.bf16.mxu0 0
    %3349 = vmatpush2.bf16.msra.mxu0 0
    %3350 = vmatprep.subr.bf16.mxu0 0
    %3351 = vmatpush2.bf16.msra.mxu0 0
    %3352 = vmatprep.subr.bf16.mxu0 0
    %3353 = vmatpush2.bf16.msra.mxu0 0
    %3354 = vmatprep.subr.bf16.mxu0 0
    %3355 = vmatpush2.bf16.msra.mxu0 0
    %3356 = vmatprep.subr.bf16.mxu0 0
    %3357 = vmatpush2.bf16.msra.mxu0 0
    %3358 = vmatprep.subr.bf16.mxu0 0
    %3359 = vmatpush2.bf16.msra.mxu0 0
    %3360 = vmatprep.subr.bf16.mxu0 0
    %3361 = vmatpush2.bf16.msra.mxu0 0
    %3362 = vmatprep.subr.bf16.mxu0 0
    %3363 = vmatpush2.bf16.msra.mxu0 0
    %3364 = vmatprep.mubr.bf16.mxu0 0
    %3365 = vmatmul.mubr.bf16.gmra.mxu0 %v3309
    %v3366 = vpop.f32.mrf.mxu0
    %v3367 = vadd.f32 %v3174, %v3366
    %v3368 = vpop.f32.mrf.mxu0
    %v3369 = vadd.f32 %v3176, %v3368
    %v3370 = vpop.f32.mrf.mxu0
    %v3371 = vadd.f32 %v3178, %v3370
    %v3372 = vpop.f32.mrf.mxu0
    %v3373 = vadd.f32 %v3180, %v3372
    %3374 = vmatprep.mubr.bf16.mxu0 0
    %3375 = vmatmul.mubr.bf16.gmra.mxu0 %v3312
    %v3376 = vpop.f32.mrf.mxu0
    %v3377 = vadd.f32 %v3184, %v3376
    %v3378 = vpop.f32.mrf.mxu0
    %v3379 = vadd.f32 %v3186, %v3378
    %v3380 = vpop.f32.mrf.mxu0
    %v3381 = vadd.f32 %v3188, %v3380
    %v3382 = vpop.f32.mrf.mxu0
    %v3383 = vadd.f32 %v3190, %v3382
    %3384 = vdwg.mxu0
    %3385 = vmatprep.subr.bf16.mxu0 0
    %3386 = vmatpush1.bf16.msra.mxu0 0
    %3387 = vmatprep.subr.bf16.mxu0 0
    %3388 = vmatpush1.bf16.msra.mxu0 0
    %3389 = vmatprep.subr.bf16.mxu0 0
    %3390 = vmatpush1.bf16.msra.mxu0 0
    %3391 = vmatprep.subr.bf16.mxu0 0
    %3392 = vmatpush1.bf16.msra.mxu0 0
    %3393 = vmatprep.subr.bf16.mxu0 0
    %3394 = vmatpush1.bf16.msra.mxu0 0
    %3395 = vmatprep.subr.bf16.mxu0 0
    %3396 = vmatpush1.bf16.msra.mxu0 0
    %3397 = vmatprep.subr.bf16.mxu0 0
    %3398 = vmatpush1.bf16.msra.mxu0 0
    %3399 = vmatprep.subr.bf16.mxu0 %v3324
    %3400 = vmatpush1.bf16.msra.mxu0 %v3321
    %3401 = vmatprep.subr.bf16.mxu0 0
    %3402 = vmatpush2.bf16.msra.mxu0 0
    %3403 = vmatprep.subr.bf16.mxu0 0
    %3404 = vmatpush2.bf16.msra.mxu0 0
    %3405 = vmatprep.subr.bf16.mxu0 0
    %3406 = vmatpush2.bf16.msra.mxu0 0
    %3407 = vmatprep.subr.bf16.mxu0 0
    %3408 = vmatpush2.bf16.msra.mxu0 0
    %3409 = vmatprep.subr.bf16.mxu0 0
    %3410 = vmatpush2.bf16.msra.mxu0 0
    %3411 = vmatprep.subr.bf16.mxu0 0
    %3412 = vmatpush2.bf16.msra.mxu0 0
    %3413 = vmatprep.subr.bf16.mxu0 0
    %3414 = vmatpush2.bf16.msra.mxu0 0
    %3415 = vmatprep.subr.bf16.mxu0 0
    %3416 = vmatpush2.bf16.msra.mxu0 0
    %3417 = vmatprep.mubr.bf16.mxu0 0
    %3418 = vmatmul.mubr.bf16.gmra.mxu0 %v3309
    %v3419 = vpop.f32.mrf.mxu0
    %v3420 = vadd.f32 %v3227, %v3419
    %v3421 = vpop.f32.mrf.mxu0
    %v3422 = vadd.f32 %v3229, %v3421
    %v3423 = vpop.f32.mrf.mxu0
    %v3424 = vadd.f32 %v3231, %v3423
    %v3425 = vpop.f32.mrf.mxu0
    %v3426 = vadd.f32 %v3233, %v3425
    %3427 = vmatprep.mubr.bf16.mxu0 0
    %3428 = vmatmul.mubr.bf16.gmra.mxu0 %v3312
    %v3429 = vpop.f32.mrf.mxu0
    %v3430 = vadd.f32 %v3237, %v3429
    %v3431 = vpop.f32.mrf.mxu0
    %v3432 = vadd.f32 %v3239, %v3431
    %v3433 = vpop.f32.mrf.mxu0
    %v3434 = vadd.f32 %v3241, %v3433
    %v3435 = vpop.f32.mrf.mxu0
    %v3436 = vadd.f32 %v3243, %v3435
    %3437 = vdwg.mxu0
    %3438 = vmatprep.subr.bf16.mxu0 0
    %3439 = vmatpush1.bf16.msra.mxu0 0
    %3440 = vmatprep.subr.bf16.mxu0 0
    %3441 = vmatpush1.bf16.msra.mxu0 0
    %3442 = vmatprep.subr.bf16.mxu0 0
    %3443 = vmatpush1.bf16.msra.mxu0 0
    %3444 = vmatprep.subr.bf16.mxu0 0
    %3445 = vmatpush1.bf16.msra.mxu0 0
    %3446 = vmatprep.subr.bf16.mxu0 0
    %3447 = vmatpush1.bf16.msra.mxu0 0
    %3448 = vmatprep.subr.bf16.mxu0 0
    %3449 = vmatpush1.bf16.msra.mxu0 0
    %3450 = vmatprep.subr.bf16.mxu0 0
    %3451 = vmatpush1.bf16.msra.mxu0 0
    %3452 = vmatprep.subr.bf16.mxu0 %v3330
    %3453 = vmatpush1.bf16.msra.mxu0 %v3327
    %3454 = vmatprep.subr.bf16.mxu0 0
    %3455 = vmatpush2.bf16.msra.mxu0 0
    %3456 = vmatprep.subr.bf16.mxu0 0
    %3457 = vmatpush2.bf16.msra.mxu0 0
    %3458 = vmatprep.subr.bf16.mxu0 0
    %3459 = vmatpush2.bf16.msra.mxu0 0
    %3460 = vmatprep.subr.bf16.mxu0 0
    %3461 = vmatpush2.bf16.msra.mxu0 0
    %3462 = vmatprep.subr.bf16.mxu0 0
    %3463 = vmatpush2.bf16.msra.mxu0 0
    %3464 = vmatprep.subr.bf16.mxu0 0
    %3465 = vmatpush2.bf16.msra.mxu0 0
    %3466 = vmatprep.subr.bf16.mxu0 0
    %3467 = vmatpush2.bf16.msra.mxu0 0
    %3468 = vmatprep.subr.bf16.mxu0 0
    %3469 = vmatpush2.bf16.msra.mxu0 0
    %3470 = vmatprep.mubr.bf16.mxu0 0
    %3471 = vmatmul.mubr.bf16.gmra.mxu0 %v3309
    %v3472 = vpop.f32.mrf.mxu0
    %v3473 = vadd.f32 %v3280, %v3472
    %v3474 = vpop.f32.mrf.mxu0
    %v3475 = vadd.f32 %v3282, %v3474
    %v3476 = vpop.f32.mrf.mxu0
    %v3477 = vadd.f32 %v3284, %v3476
    %v3478 = vpop.f32.mrf.mxu0
    %v3479 = vadd.f32 %v3286, %v3478
    %3480 = vmatprep.mubr.bf16.mxu0 0
    %3481 = vmatmul.mubr.bf16.gmra.mxu0 %v3312
    %v3482 = vpop.f32.mrf.mxu0
    %v3483 = vadd.f32 %v3290, %v3482
    %v3484 = vpop.f32.mrf.mxu0
    %v3485 = vadd.f32 %v3292, %v3484
    %v3486 = vpop.f32.mrf.mxu0
    %v3487 = vadd.f32 %v3294, %v3486
    %v3488 = vpop.f32.mrf.mxu0
    %v3489 = vadd.f32 %v3296, %v3488
    %3490 = vdwg.mxu0
    %v3491 = vld [vmem:[%s7] sm:$0xff]
    %v3492 = vld [vmem:[%s7 + $0x8] sm:$0xff]
    %v3493 = vld [vmem:[%s7 + $0x10] sm:$0xff]
    %v3494 = vld [vmem:[%s7 + $0x18] sm:$0xff]
    %3496 = vset.pattern.permute.xlu0 0
    %3497 = vperm.xlu0 %3496, %v3491
    %v3498 = vpop.permute.xlu0 %3497
    %3501 = vset.pattern.permute.xlu0 0
    %3502 = vperm.xlu0 %3501, %v3492
    %v3503 = vpop.permute.xlu0 %3502
    %3506 = vset.pattern.permute.xlu0 0
    %3507 = vperm.xlu0 %3506, %v3493
    %v3508 = vpop.permute.xlu0 %3507
    %3511 = vset.pattern.permute.xlu0 0
    %3512 = vperm.xlu0 %3511, %v3494
    %v3513 = vpop.permute.xlu0 %3512
    %v3515 = vadd.f32 %v3367, %v3498
    %v3516 = vadd.f32 %v3369, %v3498
    %v3517 = vadd.f32 %v3420, %v3498
    %v3518 = vadd.f32 %v3422, %v3498
    %v3519 = vadd.f32 %v3473, %v3498
    %v3520 = vadd.f32 %v3475, %v3498
    %v3521 = vadd.f32 %v3371, %v3503
    %v3522 = vadd.f32 %v3373, %v3503
    %v3523 = vadd.f32 %v3424, %v3503
    %v3524 = vadd.f32 %v3426, %v3503
    %v3525 = vadd.f32 %v3477, %v3503
    %v3526 = vadd.f32 %v3479, %v3503
    %v3527 = vadd.f32 %v3377, %v3508
    %v3528 = vadd.f32 %v3379, %v3508
    %v3529 = vadd.f32 %v3430, %v3508
    %v3530 = vadd.f32 %v3432, %v3508
    %v3531 = vadd.f32 %v3483, %v3508
    %v3532 = vadd.f32 %v3485, %v3508
    %v3533 = vadd.f32 %v3381, %v3513
    %v3534 = vadd.f32 %v3383, %v3513
    %v3535 = vadd.f32 %v3434, %v3513
    %v3536 = vadd.f32 %v3436, %v3513
    %v3537 = vadd.f32 %v3487, %v3513
    %v3538 = vadd.f32 %v3489, %v3513
    %v3539 = vmax.f32 %v3515, 0.0
    %v3540 = vmax.f32 %v3516, 0.0
    %v3541 = vmax.f32 %v3517, 0.0
    %v3542 = vmax.f32 %v3518, 0.0
    %v3543 = vmax.f32 %v3519, 0.0
    %v3544 = vmax.f32 %v3520, 0.0
    %v3545 = vmax.f32 %v3521, 0.0
    %v3546 = vmax.f32 %v3522, 0.0
    %v3547 = vmax.f32 %v3523, 0.0
    %v3548 = vmax.f32 %v3524, 0.0
    %v3549 = vmax.f32 %v3525, 0.0
    %v3550 = vmax.f32 %v3526, 0.0
    %v3551 = vmax.f32 %v3527, 0.0
    %v3552 = vmax.f32 %v3528, 0.0
    %v3553 = vmax.f32 %v3529, 0.0
    %v3554 = vmax.f32 %v3530, 0.0
    %v3555 = vmax.f32 %v3531, 0.0
    %v3556 = vmax.f32 %v3532, 0.0
    %v3557 = vmax.f32 %v3533, 0.0
    %v3558 = vmax.f32 %v3534, 0.0
    %v3559 = vmax.f32 %v3535, 0.0
    %v3560 = vmax.f32 %v3536, 0.0
    %v3561 = vmax.f32 %v3537, 0.0
    %v3562 = vmax.f32 %v3538, 0.0
    %v3563 = vld [vmem:[%s4] sm:$0xf]
    %v3564 = vld [vmem:[%s4 + $0x4] sm:$0xf]
    %v3565 = vld [vmem:[%s4 + $0x8] sm:$0xf]
    %v3566 = vld [vmem:[%s4 + $0xc] sm:$0xf]
    %v3567 = vpack.c.bf16 %v3545, %v3539
    %v3568 = vpack.c.bf16 %v3546, %v3540
    %v3569 = vpack.c.bf16 %v3547, %v3541
    %v3570 = vpack.c.bf16 %v3548, %v3542
    %v3571 = vpack.c.bf16 %v3549, %v3543
    %v3572 = vpack.c.bf16 %v3550, %v3544
    %v3573 = vpack.c.bf16 %v3557, %v3551
    %v3574 = vpack.c.bf16 %v3558, %v3552
    %v3575 = vpack.c.bf16 %v3559, %v3553
    %v3576 = vpack.c.bf16 %v3560, %v3554
    %v3577 = vpack.c.bf16 %v3561, %v3555
    %v3578 = vpack.c.bf16 %v3562, %v3556
    %s3579 = scalar_lea.vmem %s7, 32
    %v3580 = vld [vmem:[%s3579] sm:$0xff]
    %v3581 = vld [vmem:[%s3579 + $0x8] sm:$0xff]
    %v3582 = vld [vmem:[%s3579 + $0x10] sm:$0xff]
    %v3583 = vld [vmem:[%s3579 + $0x18] sm:$0xff]
    %3585 = vset.pattern.permute.xlu0 0
    %3586 = vperm.xlu0 %3585, %v3580
    %v3587 = vpop.permute.xlu0 %3586
    %3590 = vset.pattern.permute.xlu0 0
    %3591 = vperm.xlu0 %3590, %v3581
    %v3592 = vpop.permute.xlu0 %3591
    %3595 = vset.pattern.permute.xlu0 0
    %3596 = vperm.xlu0 %3595, %v3582
    %v3597 = vpop.permute.xlu0 %3596
    %3600 = vset.pattern.permute.xlu0 0
    %3601 = vperm.xlu0 %3600, %v3583
    %v3602 = vpop.permute.xlu0 %3601
    %v3608 = vunpack.c.l.b16 %v3563
    %v3609 = vunpack.c.l.b16 %v3564
    %v3610 = vunpack.c.l.b16 %v3565
    %v3611 = vunpack.c.l.b16 %v3566
    %v3612 = vpack.c.b16 %v3609, %v3608
    %v3613 = vpack.c.b16 %v3611, %v3610
    %vm3614 = vcmask 261120
    %v3616 = vsel %vm3614, %v3612, 0
    %v3619 = vsel %vm3614, %v3613, 0
    %3621 = vmatprep.subr.bf16.mxu0 0
    %3622 = vmatpush1.bf16.msra.mxu0 0
    %3623 = vmatprep.subr.bf16.mxu0 0
    %3624 = vmatpush1.bf16.msra.mxu0 0
    %3625 = vmatprep.subr.bf16.mxu0 0
    %3626 = vmatpush1.bf16.msra.mxu0 0
    %3627 = vmatprep.subr.bf16.mxu0 0
    %3628 = vmatpush1.bf16.msra.mxu0 0
    %3629 = vmatprep.subr.bf16.mxu0 0
    %3630 = vmatpush1.bf16.msra.mxu0 0
    %3631 = vmatprep.subr.bf16.mxu0 0
    %3632 = vmatpush1.bf16.msra.mxu0 0
    %3633 = vmatprep.subr.bf16.mxu0 %v3574
    %3634 = vmatpush1.bf16.msra.mxu0 %v3573
    %3635 = vmatprep.subr.bf16.mxu0 %v3568
    %3636 = vmatpush1.bf16.msra.mxu0 %v3567
    %3637 = vmatprep.subr.bf16.mxu0 0
    %3638 = vmatpush2.bf16.msra.mxu0 0
    %3639 = vmatprep.subr.bf16.mxu0 0
    %3640 = vmatpush2.bf16.msra.mxu0 0
    %3641 = vmatprep.subr.bf16.mxu0 0
    %3642 = vmatpush2.bf16.msra.mxu0 0
    %3643 = vmatprep.subr.bf16.mxu0 0
    %3644 = vmatpush2.bf16.msra.mxu0 0
    %3645 = vmatprep.subr.bf16.mxu0 0
    %3646 = vmatpush2.bf16.msra.mxu0 0
    %3647 = vmatprep.subr.bf16.mxu0 0
    %3648 = vmatpush2.bf16.msra.mxu0 0
    %3649 = vmatprep.subr.bf16.mxu0 0
    %3650 = vmatpush2.bf16.msra.mxu0 0
    %3651 = vmatprep.subr.bf16.mxu0 0
    %3652 = vmatpush2.bf16.msra.mxu0 0
    %3653 = vmatprep.mubr.bf16.mxu0 0
    %3654 = vmatmul.mubr.bf16.gmra.mxu0 %v3616
    %v3655 = vpop.f32.mrf.mxu0
    %v3656 = vadd.f32 %v3587, %v3655
    %v3657 = vpop.f32.mrf.mxu0
    %v3658 = vadd.f32 %v3587, %v3657
    %v3659 = vpop.f32.mrf.mxu0
    %v3660 = vadd.f32 %v3592, %v3659
    %v3661 = vpop.f32.mrf.mxu0
    %v3662 = vadd.f32 %v3592, %v3661
    %3663 = vmatprep.mubr.bf16.mxu0 0
    %3664 = vmatmul.mubr.bf16.gmra.mxu0 %v3619
    %v3665 = vpop.f32.mrf.mxu0
    %v3666 = vadd.f32 %v3597, %v3665
    %v3667 = vpop.f32.mrf.mxu0
    %v3668 = vadd.f32 %v3597, %v3667
    %v3669 = vpop.f32.mrf.mxu0
    %v3670 = vadd.f32 %v3602, %v3669
    %v3671 = vpop.f32.mrf.mxu0
    %v3672 = vadd.f32 %v3602, %v3671
    %3673 = vdwg.mxu0
    %3674 = vmatprep.subr.bf16.mxu0 0
    %3675 = vmatpush1.bf16.msra.mxu0 0
    %3676 = vmatprep.subr.bf16.mxu0 0
    %3677 = vmatpush1.bf16.msra.mxu0 0
    %3678 = vmatprep.subr.bf16.mxu0 0
    %3679 = vmatpush1.bf16.msra.mxu0 0
    %3680 = vmatprep.subr.bf16.mxu0 0
    %3681 = vmatpush1.bf16.msra.mxu0 0
    %3682 = vmatprep.subr.bf16.mxu0 0
    %3683 = vmatpush1.bf16.msra.mxu0 0
    %3684 = vmatprep.subr.bf16.mxu0 0
    %3685 = vmatpush1.bf16.msra.mxu0 0
    %3686 = vmatprep.subr.bf16.mxu0 %v3576
    %3687 = vmatpush1.bf16.msra.mxu0 %v3575
    %3688 = vmatprep.subr.bf16.mxu0 %v3570
    %3689 = vmatpush1.bf16.msra.mxu0 %v3569
    %3690 = vmatprep.subr.bf16.mxu0 0
    %3691 = vmatpush2.bf16.msra.mxu0 0
    %3692 = vmatprep.subr.bf16.mxu0 0
    %3693 = vmatpush2.bf16.msra.mxu0 0
    %3694 = vmatprep.subr.bf16.mxu0 0
    %3695 = vmatpush2.bf16.msra.mxu0 0
    %3696 = vmatprep.subr.bf16.mxu0 0
    %3697 = vmatpush2.bf16.msra.mxu0 0
    %3698 = vmatprep.subr.bf16.mxu0 0
    %3699 = vmatpush2.bf16.msra.mxu0 0
    %3700 = vmatprep.subr.bf16.mxu0 0
    %3701 = vmatpush2.bf16.msra.mxu0 0
    %3702 = vmatprep.subr.bf16.mxu0 0
    %3703 = vmatpush2.bf16.msra.mxu0 0
    %3704 = vmatprep.subr.bf16.mxu0 0
    %3705 = vmatpush2.bf16.msra.mxu0 0
    %3706 = vmatprep.mubr.bf16.mxu0 0
    %3707 = vmatmul.mubr.bf16.gmra.mxu0 %v3616
    %v3708 = vpop.f32.mrf.mxu0
    %v3709 = vadd.f32 %v3587, %v3708
    %v3710 = vpop.f32.mrf.mxu0
    %v3711 = vadd.f32 %v3587, %v3710
    %v3712 = vpop.f32.mrf.mxu0
    %v3713 = vadd.f32 %v3592, %v3712
    %v3714 = vpop.f32.mrf.mxu0
    %v3715 = vadd.f32 %v3592, %v3714
    %3716 = vmatprep.mubr.bf16.mxu0 0
    %3717 = vmatmul.mubr.bf16.gmra.mxu0 %v3619
    %v3718 = vpop.f32.mrf.mxu0
    %v3719 = vadd.f32 %v3597, %v3718
    %v3720 = vpop.f32.mrf.mxu0
    %v3721 = vadd.f32 %v3597, %v3720
    %v3722 = vpop.f32.mrf.mxu0
    %v3723 = vadd.f32 %v3602, %v3722
    %v3724 = vpop.f32.mrf.mxu0
    %v3725 = vadd.f32 %v3602, %v3724
    %3726 = vdwg.mxu0
    %3727 = vmatprep.subr.bf16.mxu0 0
    %3728 = vmatpush1.bf16.msra.mxu0 0
    %3729 = vmatprep.subr.bf16.mxu0 0
    %3730 = vmatpush1.bf16.msra.mxu0 0
    %3731 = vmatprep.subr.bf16.mxu0 0
    %3732 = vmatpush1.bf16.msra.mxu0 0
    %3733 = vmatprep.subr.bf16.mxu0 0
    %3734 = vmatpush1.bf16.msra.mxu0 0
    %3735 = vmatprep.subr.bf16.mxu0 0
    %3736 = vmatpush1.bf16.msra.mxu0 0
    %3737 = vmatprep.subr.bf16.mxu0 0
    %3738 = vmatpush1.bf16.msra.mxu0 0
    %3739 = vmatprep.subr.bf16.mxu0 %v3578
    %3740 = vmatpush1.bf16.msra.mxu0 %v3577
    %3741 = vmatprep.subr.bf16.mxu0 %v3572
    %3742 = vmatpush1.bf16.msra.mxu0 %v3571
    %3743 = vmatprep.subr.bf16.mxu0 0
    %3744 = vmatpush2.bf16.msra.mxu0 0
    %3745 = vmatprep.subr.bf16.mxu0 0
    %3746 = vmatpush2.bf16.msra.mxu0 0
    %3747 = vmatprep.subr.bf16.mxu0 0
    %3748 = vmatpush2.bf16.msra.mxu0 0
    %3749 = vmatprep.subr.bf16.mxu0 0
    %3750 = vmatpush2.bf16.msra.mxu0 0
    %3751 = vmatprep.subr.bf16.mxu0 0
    %3752 = vmatpush2.bf16.msra.mxu0 0
    %3753 = vmatprep.subr.bf16.mxu0 0
    %3754 = vmatpush2.bf16.msra.mxu0 0
    %3755 = vmatprep.subr.bf16.mxu0 0
    %3756 = vmatpush2.bf16.msra.mxu0 0
    %3757 = vmatprep.subr.bf16.mxu0 0
    %3758 = vmatpush2.bf16.msra.mxu0 0
    %3759 = vmatprep.mubr.bf16.mxu0 0
    %3760 = vmatmul.mubr.bf16.gmra.mxu0 %v3616
    %v3761 = vpop.f32.mrf.mxu0
    %v3762 = vadd.f32 %v3587, %v3761
    %v3763 = vpop.f32.mrf.mxu0
    %v3764 = vadd.f32 %v3587, %v3763
    %v3765 = vpop.f32.mrf.mxu0
    %v3766 = vadd.f32 %v3592, %v3765
    %v3767 = vpop.f32.mrf.mxu0
    %v3768 = vadd.f32 %v3592, %v3767
    %3769 = vmatprep.mubr.bf16.mxu0 0
    %3770 = vmatmul.mubr.bf16.gmra.mxu0 %v3619
    %v3771 = vpop.f32.mrf.mxu0
    %v3772 = vadd.f32 %v3597, %v3771
    %v3773 = vpop.f32.mrf.mxu0
    %v3774 = vadd.f32 %v3597, %v3773
    %v3775 = vpop.f32.mrf.mxu0
    %v3776 = vadd.f32 %v3602, %v3775
    %v3777 = vpop.f32.mrf.mxu0
    %v3778 = vadd.f32 %v3602, %v3777
    %3779 = vdwg.mxu0
    %v3780 = vmax.f32 %v3656, 0.0
    %v3781 = vmax.f32 %v3658, 0.0
    %v3782 = vmax.f32 %v3709, 0.0
    %v3783 = vmax.f32 %v3711, 0.0
    %v3784 = vmax.f32 %v3762, 0.0
    %v3785 = vmax.f32 %v3764, 0.0
    %v3786 = vmax.f32 %v3660, 0.0
    %v3787 = vmax.f32 %v3662, 0.0
    %v3788 = vmax.f32 %v3713, 0.0
    %v3789 = vmax.f32 %v3715, 0.0
    %v3790 = vmax.f32 %v3766, 0.0
    %v3791 = vmax.f32 %v3768, 0.0
    %v3792 = vmax.f32 %v3666, 0.0
    %v3793 = vmax.f32 %v3668, 0.0
    %v3794 = vmax.f32 %v3719, 0.0
    %v3795 = vmax.f32 %v3721, 0.0
    %v3796 = vmax.f32 %v3772, 0.0
    %v3797 = vmax.f32 %v3774, 0.0
    %v3798 = vmax.f32 %v3670, 0.0
    %v3799 = vmax.f32 %v3672, 0.0
    %v3800 = vmax.f32 %v3723, 0.0
    %v3801 = vmax.f32 %v3725, 0.0
    %v3802 = vmax.f32 %v3776, 0.0
    %v3803 = vmax.f32 %v3778, 0.0
    %s3804 = scalar_lea.vmem %s4, 16
    %v3805 = vld [vmem:[%s3804] sm:$0xf]
    %v3806 = vld [vmem:[%s3804 + $0x4] sm:$0xf]
    %v3807 = vld [vmem:[%s3804 + $0x8] sm:$0xf]
    %v3808 = vld [vmem:[%s3804 + $0xc] sm:$0xf]
    %v3809 = vpack.c.bf16 %v3786, %v3780
    %v3810 = vpack.c.bf16 %v3787, %v3781
    %v3811 = vpack.c.bf16 %v3788, %v3782
    %v3812 = vpack.c.bf16 %v3789, %v3783
    %v3813 = vpack.c.bf16 %v3790, %v3784
    %v3814 = vpack.c.bf16 %v3791, %v3785
    %v3815 = vpack.c.bf16 %v3798, %v3792
    %v3816 = vpack.c.bf16 %v3799, %v3793
    %v3817 = vpack.c.bf16 %v3800, %v3794
    %v3818 = vpack.c.bf16 %v3801, %v3795
    %v3819 = vpack.c.bf16 %v3802, %v3796
    %v3820 = vpack.c.bf16 %v3803, %v3797
    %s3821 = scalar_lea.vmem %s7, 64
    %v3822 = vld [vmem:[%s3821] sm:$0xff]
    %v3823 = vld [vmem:[%s3821 + $0x8] sm:$0xff]
    %v3824 = vld [vmem:[%s3821 + $0x10] sm:$0xff]
    %v3825 = vld [vmem:[%s3821 + $0x18] sm:$0xff]
    %3827 = vset.pattern.permute.xlu0 0
    %3828 = vperm.xlu0 %3827, %v3822
    %v3829 = vpop.permute.xlu0 %3828
    %3832 = vset.pattern.permute.xlu0 0
    %3833 = vperm.xlu0 %3832, %v3823
    %v3834 = vpop.permute.xlu0 %3833
    %3837 = vset.pattern.permute.xlu0 0
    %3838 = vperm.xlu0 %3837, %v3824
    %v3839 = vpop.permute.xlu0 %3838
    %3842 = vset.pattern.permute.xlu0 0
    %3843 = vperm.xlu0 %3842, %v3825
    %v3844 = vpop.permute.xlu0 %3843
    %v3850 = vunpack.c.l.b16 %v3805
    %v3851 = vunpack.c.l.b16 %v3806
    %v3852 = vunpack.c.l.b16 %v3807
    %v3853 = vunpack.c.l.b16 %v3808
    %v3854 = vpack.c.b16 %v3851, %v3850
    %v3855 = vpack.c.b16 %v3853, %v3852
    %v3857 = vsel %vm3614, %v3854, 0
    %v3860 = vsel %vm3614, %v3855, 0
    %3862 = vmatprep.subr.bf16.mxu0 0
    %3863 = vmatpush1.bf16.msra.mxu0 0
    %3864 = vmatprep.subr.bf16.mxu0 0
    %3865 = vmatpush1.bf16.msra.mxu0 0
    %3866 = vmatprep.subr.bf16.mxu0 0
    %3867 = vmatpush1.bf16.msra.mxu0 0
    %3868 = vmatprep.subr.bf16.mxu0 0
    %3869 = vmatpush1.bf16.msra.mxu0 0
    %3870 = vmatprep.subr.bf16.mxu0 0
    %3871 = vmatpush1.bf16.msra.mxu0 0
    %3872 = vmatprep.subr.bf16.mxu0 0
    %3873 = vmatpush1.bf16.msra.mxu0 0
    %3874 = vmatprep.subr.bf16.mxu0 %v3816
    %3875 = vmatpush1.bf16.msra.mxu0 %v3815
    %3876 = vmatprep.subr.bf16.mxu0 %v3810
    %3877 = vmatpush1.bf16.msra.mxu0 %v3809
    %3878 = vmatprep.subr.bf16.mxu0 0
    %3879 = vmatpush2.bf16.msra.mxu0 0
    %3880 = vmatprep.subr.bf16.mxu0 0
    %3881 = vmatpush2.bf16.msra.mxu0 0
    %3882 = vmatprep.subr.bf16.mxu0 0
    %3883 = vmatpush2.bf16.msra.mxu0 0
    %3884 = vmatprep.subr.bf16.mxu0 0
    %3885 = vmatpush2.bf16.msra.mxu0 0
    %3886 = vmatprep.subr.bf16.mxu0 0
    %3887 = vmatpush2.bf16.msra.mxu0 0
    %3888 = vmatprep.subr.bf16.mxu0 0
    %3889 = vmatpush2.bf16.msra.mxu0 0
    %3890 = vmatprep.subr.bf16.mxu0 0
    %3891 = vmatpush2.bf16.msra.mxu0 0
    %3892 = vmatprep.subr.bf16.mxu0 0
    %3893 = vmatpush2.bf16.msra.mxu0 0
    %3894 = vmatprep.mubr.bf16.mxu0 0
    %3895 = vmatmul.mubr.bf16.gmra.mxu0 %v3857
    %v3896 = vpop.f32.mrf.mxu0
    %v3897 = vadd.f32 %v3829, %v3896
    %v3898 = vpop.f32.mrf.mxu0
    %v3899 = vadd.f32 %v3829, %v3898
    %v3900 = vpop.f32.mrf.mxu0
    %v3901 = vadd.f32 %v3834, %v3900
    %v3902 = vpop.f32.mrf.mxu0
    %v3903 = vadd.f32 %v3834, %v3902
    %3904 = vmatprep.mubr.bf16.mxu0 0
    %3905 = vmatmul.mubr.bf16.gmra.mxu0 %v3860
    %v3906 = vpop.f32.mrf.mxu0
    %v3907 = vadd.f32 %v3839, %v3906
    %v3908 = vpop.f32.mrf.mxu0
    %v3909 = vadd.f32 %v3839, %v3908
    %v3910 = vpop.f32.mrf.mxu0
    %v3911 = vadd.f32 %v3844, %v3910
    %v3912 = vpop.f32.mrf.mxu0
    %v3913 = vadd.f32 %v3844, %v3912
    %3914 = vdwg.mxu0
    %3915 = vmatprep.subr.bf16.mxu0 0
    %3916 = vmatpush1.bf16.msra.mxu0 0
    %3917 = vmatprep.subr.bf16.mxu0 0
    %3918 = vmatpush1.bf16.msra.mxu0 0
    %3919 = vmatprep.subr.bf16.mxu0 0
    %3920 = vmatpush1.bf16.msra.mxu0 0
    %3921 = vmatprep.subr.bf16.mxu0 0
    %3922 = vmatpush1.bf16.msra.mxu0 0
    %3923 = vmatprep.subr.bf16.mxu0 0
    %3924 = vmatpush1.bf16.msra.mxu0 0
    %3925 = vmatprep.subr.bf16.mxu0 0
    %3926 = vmatpush1.bf16.msra.mxu0 0
    %3927 = vmatprep.subr.bf16.mxu0 %v3818
    %3928 = vmatpush1.bf16.msra.mxu0 %v3817
    %3929 = vmatprep.subr.bf16.mxu0 %v3812
    %3930 = vmatpush1.bf16.msra.mxu0 %v3811
    %3931 = vmatprep.subr.bf16.mxu0 0
    %3932 = vmatpush2.bf16.msra.mxu0 0
    %3933 = vmatprep.subr.bf16.mxu0 0
    %3934 = vmatpush2.bf16.msra.mxu0 0
    %3935 = vmatprep.subr.bf16.mxu0 0
    %3936 = vmatpush2.bf16.msra.mxu0 0
    %3937 = vmatprep.subr.bf16.mxu0 0
    %3938 = vmatpush2.bf16.msra.mxu0 0
    %3939 = vmatprep.subr.bf16.mxu0 0
    %3940 = vmatpush2.bf16.msra.mxu0 0
    %3941 = vmatprep.subr.bf16.mxu0 0
    %3942 = vmatpush2.bf16.msra.mxu0 0
    %3943 = vmatprep.subr.bf16.mxu0 0
    %3944 = vmatpush2.bf16.msra.mxu0 0
    %3945 = vmatprep.subr.bf16.mxu0 0
    %3946 = vmatpush2.bf16.msra.mxu0 0
    %3947 = vmatprep.mubr.bf16.mxu0 0
    %3948 = vmatmul.mubr.bf16.gmra.mxu0 %v3857
    %v3949 = vpop.f32.mrf.mxu0
    %v3950 = vadd.f32 %v3829, %v3949
    %v3951 = vpop.f32.mrf.mxu0
    %v3952 = vadd.f32 %v3829, %v3951
    %v3953 = vpop.f32.mrf.mxu0
    %v3954 = vadd.f32 %v3834, %v3953
    %v3955 = vpop.f32.mrf.mxu0
    %v3956 = vadd.f32 %v3834, %v3955
    %3957 = vmatprep.mubr.bf16.mxu0 0
    %3958 = vmatmul.mubr.bf16.gmra.mxu0 %v3860
    %v3959 = vpop.f32.mrf.mxu0
    %v3960 = vadd.f32 %v3839, %v3959
    %v3961 = vpop.f32.mrf.mxu0
    %v3962 = vadd.f32 %v3839, %v3961
    %v3963 = vpop.f32.mrf.mxu0
    %v3964 = vadd.f32 %v3844, %v3963
    %v3965 = vpop.f32.mrf.mxu0
    %v3966 = vadd.f32 %v3844, %v3965
    %3967 = vdwg.mxu0
    %3968 = vmatprep.subr.bf16.mxu0 0
    %3969 = vmatpush1.bf16.msra.mxu0 0
    %3970 = vmatprep.subr.bf16.mxu0 0
    %3971 = vmatpush1.bf16.msra.mxu0 0
    %3972 = vmatprep.subr.bf16.mxu0 0
    %3973 = vmatpush1.bf16.msra.mxu0 0
    %3974 = vmatprep.subr.bf16.mxu0 0
    %3975 = vmatpush1.bf16.msra.mxu0 0
    %3976 = vmatprep.subr.bf16.mxu0 0
    %3977 = vmatpush1.bf16.msra.mxu0 0
    %3978 = vmatprep.subr.bf16.mxu0 0
    %3979 = vmatpush1.bf16.msra.mxu0 0
    %3980 = vmatprep.subr.bf16.mxu0 %v3820
    %3981 = vmatpush1.bf16.msra.mxu0 %v3819
    %3982 = vmatprep.subr.bf16.mxu0 %v3814
    %3983 = vmatpush1.bf16.msra.mxu0 %v3813
    %3984 = vmatprep.subr.bf16.mxu0 0
    %3985 = vmatpush2.bf16.msra.mxu0 0
    %3986 = vmatprep.subr.bf16.mxu0 0
    %3987 = vmatpush2.bf16.msra.mxu0 0
    %3988 = vmatprep.subr.bf16.mxu0 0
    %3989 = vmatpush2.bf16.msra.mxu0 0
    %3990 = vmatprep.subr.bf16.mxu0 0
    %3991 = vmatpush2.bf16.msra.mxu0 0
    %3992 = vmatprep.subr.bf16.mxu0 0
    %3993 = vmatpush2.bf16.msra.mxu0 0
    %3994 = vmatprep.subr.bf16.mxu0 0
    %3995 = vmatpush2.bf16.msra.mxu0 0
    %3996 = vmatprep.subr.bf16.mxu0 0
    %3997 = vmatpush2.bf16.msra.mxu0 0
    %3998 = vmatprep.subr.bf16.mxu0 0
    %3999 = vmatpush2.bf16.msra.mxu0 0
    %4000 = vmatprep.mubr.bf16.mxu0 0
    %4001 = vmatmul.mubr.bf16.gmra.mxu0 %v3857
    %v4002 = vpop.f32.mrf.mxu0
    %v4003 = vadd.f32 %v3829, %v4002
    %v4004 = vpop.f32.mrf.mxu0
    %v4005 = vadd.f32 %v3829, %v4004
    %v4006 = vpop.f32.mrf.mxu0
    %v4007 = vadd.f32 %v3834, %v4006
    %v4008 = vpop.f32.mrf.mxu0
    %v4009 = vadd.f32 %v3834, %v4008
    %4010 = vmatprep.mubr.bf16.mxu0 0
    %4011 = vmatmul.mubr.bf16.gmra.mxu0 %v3860
    %v4012 = vpop.f32.mrf.mxu0
    %v4013 = vadd.f32 %v3839, %v4012
    %v4014 = vpop.f32.mrf.mxu0
    %v4015 = vadd.f32 %v3839, %v4014
    %v4016 = vpop.f32.mrf.mxu0
    %v4017 = vadd.f32 %v3844, %v4016
    %v4018 = vpop.f32.mrf.mxu0
    %v4019 = vadd.f32 %v3844, %v4018
    %4020 = vdwg.mxu0
    %v4021 = vmax.f32 %v3897, 0.0
    %v4022 = vmax.f32 %v3899, 0.0
    %v4023 = vmax.f32 %v3950, 0.0
    %v4024 = vmax.f32 %v3952, 0.0
    %v4025 = vmax.f32 %v4003, 0.0
    %v4026 = vmax.f32 %v4005, 0.0
    %v4027 = vmax.f32 %v3901, 0.0
    %v4028 = vmax.f32 %v3903, 0.0
    %v4029 = vmax.f32 %v3954, 0.0
    %v4030 = vmax.f32 %v3956, 0.0
    %v4031 = vmax.f32 %v4007, 0.0
    %v4032 = vmax.f32 %v4009, 0.0
    %v4033 = vmax.f32 %v3907, 0.0
    %v4034 = vmax.f32 %v3909, 0.0
    %v4035 = vmax.f32 %v3960, 0.0
    %v4036 = vmax.f32 %v3962, 0.0
    %v4037 = vmax.f32 %v4013, 0.0
    %v4038 = vmax.f32 %v4015, 0.0
    %v4039 = vmax.f32 %v3911, 0.0
    %v4040 = vmax.f32 %v3913, 0.0
    %v4041 = vmax.f32 %v3964, 0.0
    %v4042 = vmax.f32 %v3966, 0.0
    %v4043 = vmax.f32 %v4017, 0.0
    %v4044 = vmax.f32 %v4019, 0.0
    %s4045 = scalar_lea.vmem %s4, 32
    %v4046 = vld [vmem:[%s4045] sm:$0xf]
    %v4047 = vld [vmem:[%s4045 + $0x4] sm:$0xf]
    %v4048 = vld [vmem:[%s4045 + $0x8] sm:$0xf]
    %v4049 = vld [vmem:[%s4045 + $0xc] sm:$0xf]
    %v4050 = vpack.c.bf16 %v4027, %v4021
    %v4051 = vpack.c.bf16 %v4028, %v4022
    %v4052 = vpack.c.bf16 %v4029, %v4023
    %v4053 = vpack.c.bf16 %v4030, %v4024
    %v4054 = vpack.c.bf16 %v4031, %v4025
    %v4055 = vpack.c.bf16 %v4032, %v4026
    %v4056 = vpack.c.bf16 %v4039, %v4033
    %v4057 = vpack.c.bf16 %v4040, %v4034
    %v4058 = vpack.c.bf16 %v4041, %v4035
    %v4059 = vpack.c.bf16 %v4042, %v4036
    %v4060 = vpack.c.bf16 %v4043, %v4037
    %v4061 = vpack.c.bf16 %v4044, %v4038
    %s4062 = scalar_lea.vmem %s7, 96
    %v4063 = vld [vmem:[%s4062] sm:$0xff]
    %v4064 = vld [vmem:[%s4062 + $0x8] sm:$0xff]
    %v4065 = vld [vmem:[%s4062 + $0x10] sm:$0xff]
    %v4066 = vld [vmem:[%s4062 + $0x18] sm:$0xff]
    %4068 = vset.pattern.permute.xlu0 0
    %4069 = vperm.xlu0 %4068, %v4063
    %v4070 = vpop.permute.xlu0 %4069
    %4073 = vset.pattern.permute.xlu0 0
    %4074 = vperm.xlu0 %4073, %v4064
    %v4075 = vpop.permute.xlu0 %4074
    %4078 = vset.pattern.permute.xlu0 0
    %4079 = vperm.xlu0 %4078, %v4065
    %v4080 = vpop.permute.xlu0 %4079
    %4083 = vset.pattern.permute.xlu0 0
    %4084 = vperm.xlu0 %4083, %v4066
    %v4085 = vpop.permute.xlu0 %4084
    %v4091 = vunpack.c.l.b16 %v4046
    %v4092 = vunpack.c.l.b16 %v4047
    %v4093 = vunpack.c.l.b16 %v4048
    %v4094 = vunpack.c.l.b16 %v4049
    %v4095 = vpack.c.b16 %v4092, %v4091
    %v4096 = vpack.c.b16 %v4094, %v4093
    %v4098 = vsel %vm3614, %v4095, 0
    %v4101 = vsel %vm3614, %v4096, 0
    %4103 = vmatprep.subr.bf16.mxu0 0
    %4104 = vmatpush1.bf16.msra.mxu0 0
    %4105 = vmatprep.subr.bf16.mxu0 0
    %4106 = vmatpush1.bf16.msra.mxu0 0
    %4107 = vmatprep.subr.bf16.mxu0 0
    %4108 = vmatpush1.bf16.msra.mxu0 0
    %4109 = vmatprep.subr.bf16.mxu0 0
    %4110 = vmatpush1.bf16.msra.mxu0 0
    %4111 = vmatprep.subr.bf16.mxu0 0
    %4112 = vmatpush1.bf16.msra.mxu0 0
    %4113 = vmatprep.subr.bf16.mxu0 0
    %4114 = vmatpush1.bf16.msra.mxu0 0
    %4115 = vmatprep.subr.bf16.mxu0 %v4057
    %4116 = vmatpush1.bf16.msra.mxu0 %v4056
    %4117 = vmatprep.subr.bf16.mxu0 %v4051
    %4118 = vmatpush1.bf16.msra.mxu0 %v4050
    %4119 = vmatprep.subr.bf16.mxu0 0
    %4120 = vmatpush2.bf16.msra.mxu0 0
    %4121 = vmatprep.subr.bf16.mxu0 0
    %4122 = vmatpush2.bf16.msra.mxu0 0
    %4123 = vmatprep.subr.bf16.mxu0 0
    %4124 = vmatpush2.bf16.msra.mxu0 0
    %4125 = vmatprep.subr.bf16.mxu0 0
    %4126 = vmatpush2.bf16.msra.mxu0 0
    %4127 = vmatprep.subr.bf16.mxu0 0
    %4128 = vmatpush2.bf16.msra.mxu0 0
    %4129 = vmatprep.subr.bf16.mxu0 0
    %4130 = vmatpush2.bf16.msra.mxu0 0
    %4131 = vmatprep.subr.bf16.mxu0 0
    %4132 = vmatpush2.bf16.msra.mxu0 0
    %4133 = vmatprep.subr.bf16.mxu0 0
    %4134 = vmatpush2.bf16.msra.mxu0 0
    %4135 = vmatprep.mubr.bf16.mxu0 0
    %4136 = vmatmul.mubr.bf16.gmra.mxu0 %v4098
    %v4137 = vpop.f32.mrf.mxu0
    %v4138 = vadd.f32 %v4070, %v4137
    %v4139 = vpop.f32.mrf.mxu0
    %v4140 = vadd.f32 %v4070, %v4139
    %v4141 = vpop.f32.mrf.mxu0
    %v4142 = vadd.f32 %v4075, %v4141
    %v4143 = vpop.f32.mrf.mxu0
    %v4144 = vadd.f32 %v4075, %v4143
    %4145 = vmatprep.mubr.bf16.mxu0 0
    %4146 = vmatmul.mubr.bf16.gmra.mxu0 %v4101
    %v4147 = vpop.f32.mrf.mxu0
    %v4148 = vadd.f32 %v4080, %v4147
    %v4149 = vpop.f32.mrf.mxu0
    %v4150 = vadd.f32 %v4080, %v4149
    %v4151 = vpop.f32.mrf.mxu0
    %v4152 = vadd.f32 %v4085, %v4151
    %v4153 = vpop.f32.mrf.mxu0
    %v4154 = vadd.f32 %v4085, %v4153
    %4155 = vdwg.mxu0
    %4156 = vmatprep.subr.bf16.mxu0 0
    %4157 = vmatpush1.bf16.msra.mxu0 0
    %4158 = vmatprep.subr.bf16.mxu0 0
    %4159 = vmatpush1.bf16.msra.mxu0 0
    %4160 = vmatprep.subr.bf16.mxu0 0
    %4161 = vmatpush1.bf16.msra.mxu0 0
    %4162 = vmatprep.subr.bf16.mxu0 0
    %4163 = vmatpush1.bf16.msra.mxu0 0
    %4164 = vmatprep.subr.bf16.mxu0 0
    %4165 = vmatpush1.bf16.msra.mxu0 0
    %4166 = vmatprep.subr.bf16.mxu0 0
    %4167 = vmatpush1.bf16.msra.mxu0 0
    %4168 = vmatprep.subr.bf16.mxu0 %v4059
    %4169 = vmatpush1.bf16.msra.mxu0 %v4058
    %4170 = vmatprep.subr.bf16.mxu0 %v4053
    %4171 = vmatpush1.bf16.msra.mxu0 %v4052
    %4172 = vmatprep.subr.bf16.mxu0 0
    %4173 = vmatpush2.bf16.msra.mxu0 0
    %4174 = vmatprep.subr.bf16.mxu0 0
    %4175 = vmatpush2.bf16.msra.mxu0 0
    %4176 = vmatprep.subr.bf16.mxu0 0
    %4177 = vmatpush2.bf16.msra.mxu0 0
    %4178 = vmatprep.subr.bf16.mxu0 0
    %4179 = vmatpush2.bf16.msra.mxu0 0
    %4180 = vmatprep.subr.bf16.mxu0 0
    %4181 = vmatpush2.bf16.msra.mxu0 0
    %4182 = vmatprep.subr.bf16.mxu0 0
    %4183 = vmatpush2.bf16.msra.mxu0 0
    %4184 = vmatprep.subr.bf16.mxu0 0
    %4185 = vmatpush2.bf16.msra.mxu0 0
    %4186 = vmatprep.subr.bf16.mxu0 0
    %4187 = vmatpush2.bf16.msra.mxu0 0
    %4188 = vmatprep.mubr.bf16.mxu0 0
    %4189 = vmatmul.mubr.bf16.gmra.mxu0 %v4098
    %v4190 = vpop.f32.mrf.mxu0
    %v4191 = vadd.f32 %v4070, %v4190
    %v4192 = vpop.f32.mrf.mxu0
    %v4193 = vadd.f32 %v4070, %v4192
    %v4194 = vpop.f32.mrf.mxu0
    %v4195 = vadd.f32 %v4075, %v4194
    %v4196 = vpop.f32.mrf.mxu0
    %v4197 = vadd.f32 %v4075, %v4196
    %4198 = vmatprep.mubr.bf16.mxu0 0
    %4199 = vmatmul.mubr.bf16.gmra.mxu0 %v4101
    %v4200 = vpop.f32.mrf.mxu0
    %v4201 = vadd.f32 %v4080, %v4200
    %v4202 = vpop.f32.mrf.mxu0
    %v4203 = vadd.f32 %v4080, %v4202
    %v4204 = vpop.f32.mrf.mxu0
    %v4205 = vadd.f32 %v4085, %v4204
    %v4206 = vpop.f32.mrf.mxu0
    %v4207 = vadd.f32 %v4085, %v4206
    %4208 = vdwg.mxu0
    %4209 = vmatprep.subr.bf16.mxu0 0
    %4210 = vmatpush1.bf16.msra.mxu0 0
    %4211 = vmatprep.subr.bf16.mxu0 0
    %4212 = vmatpush1.bf16.msra.mxu0 0
    %4213 = vmatprep.subr.bf16.mxu0 0
    %4214 = vmatpush1.bf16.msra.mxu0 0
    %4215 = vmatprep.subr.bf16.mxu0 0
    %4216 = vmatpush1.bf16.msra.mxu0 0
    %4217 = vmatprep.subr.bf16.mxu0 0
    %4218 = vmatpush1.bf16.msra.mxu0 0
    %4219 = vmatprep.subr.bf16.mxu0 0
    %4220 = vmatpush1.bf16.msra.mxu0 0
    %4221 = vmatprep.subr.bf16.mxu0 %v4061
    %4222 = vmatpush1.bf16.msra.mxu0 %v4060
    %4223 = vmatprep.subr.bf16.mxu0 %v4055
    %4224 = vmatpush1.bf16.msra.mxu0 %v4054
    %4225 = vmatprep.subr.bf16.mxu0 0
    %4226 = vmatpush2.bf16.msra.mxu0 0
    %4227 = vmatprep.subr.bf16.mxu0 0
    %4228 = vmatpush2.bf16.msra.mxu0 0
    %4229 = vmatprep.subr.bf16.mxu0 0
    %4230 = vmatpush2.bf16.msra.mxu0 0
    %4231 = vmatprep.subr.bf16.mxu0 0
    %4232 = vmatpush2.bf16.msra.mxu0 0
    %4233 = vmatprep.subr.bf16.mxu0 0
    %4234 = vmatpush2.bf16.msra.mxu0 0
    %4235 = vmatprep.subr.bf16.mxu0 0
    %4236 = vmatpush2.bf16.msra.mxu0 0
    %4237 = vmatprep.subr.bf16.mxu0 0
    %4238 = vmatpush2.bf16.msra.mxu0 0
    %4239 = vmatprep.subr.bf16.mxu0 0
    %4240 = vmatpush2.bf16.msra.mxu0 0
    %4241 = vmatprep.mubr.bf16.mxu0 0
    %4242 = vmatmul.mubr.bf16.gmra.mxu0 %v4098
    %v4243 = vpop.f32.mrf.mxu0
    %v4244 = vadd.f32 %v4070, %v4243
    %v4245 = vpop.f32.mrf.mxu0
    %v4246 = vadd.f32 %v4070, %v4245
    %v4247 = vpop.f32.mrf.mxu0
    %v4248 = vadd.f32 %v4075, %v4247
    %v4249 = vpop.f32.mrf.mxu0
    %v4250 = vadd.f32 %v4075, %v4249
    %4251 = vmatprep.mubr.bf16.mxu0 0
    %4252 = vmatmul.mubr.bf16.gmra.mxu0 %v4101
    %v4253 = vpop.f32.mrf.mxu0
    %v4254 = vadd.f32 %v4080, %v4253
    %v4255 = vpop.f32.mrf.mxu0
    %v4256 = vadd.f32 %v4080, %v4255
    %v4257 = vpop.f32.mrf.mxu0
    %v4258 = vadd.f32 %v4085, %v4257
    %v4259 = vpop.f32.mrf.mxu0
    %v4260 = vadd.f32 %v4085, %v4259
    %4261 = vdwg.mxu0
    %v4262 = vmax.f32 %v4138, 0.0
    %v4263 = vmax.f32 %v4140, 0.0
    %v4264 = vmax.f32 %v4191, 0.0
    %v4265 = vmax.f32 %v4193, 0.0
    %v4266 = vmax.f32 %v4244, 0.0
    %v4267 = vmax.f32 %v4246, 0.0
    %v4268 = vmax.f32 %v4142, 0.0
    %v4269 = vmax.f32 %v4144, 0.0
    %v4270 = vmax.f32 %v4195, 0.0
    %v4271 = vmax.f32 %v4197, 0.0
    %v4272 = vmax.f32 %v4248, 0.0
    %v4273 = vmax.f32 %v4250, 0.0
    %v4274 = vmax.f32 %v4148, 0.0
    %v4275 = vmax.f32 %v4150, 0.0
    %v4276 = vmax.f32 %v4201, 0.0
    %v4277 = vmax.f32 %v4203, 0.0
    %v4278 = vmax.f32 %v4254, 0.0
    %v4279 = vmax.f32 %v4256, 0.0
    %v4280 = vmax.f32 %v4152, 0.0
    %v4281 = vmax.f32 %v4154, 0.0
    %v4282 = vmax.f32 %v4205, 0.0
    %v4283 = vmax.f32 %v4207, 0.0
    %v4284 = vmax.f32 %v4258, 0.0
    %v4285 = vmax.f32 %v4260, 0.0
    %s4286 = scalar_lea.vmem %s4, 48
    %v4287 = vld [vmem:[%s4286] sm:$0xf]
    %v4288 = vld [vmem:[%s4286 + $0x4] sm:$0xf]
    %v4289 = vld [vmem:[%s4286 + $0x8] sm:$0xf]
    %v4290 = vld [vmem:[%s4286 + $0xc] sm:$0xf]
    %v4291 = vpack.c.bf16 %v4268, %v4262
    %v4292 = vpack.c.bf16 %v4269, %v4263
    %v4293 = vpack.c.bf16 %v4270, %v4264
    %v4294 = vpack.c.bf16 %v4271, %v4265
    %v4295 = vpack.c.bf16 %v4272, %v4266
    %v4296 = vpack.c.bf16 %v4273, %v4267
    %v4297 = vpack.c.bf16 %v4280, %v4274
    %v4298 = vpack.c.bf16 %v4281, %v4275
    %v4299 = vpack.c.bf16 %v4282, %v4276
    %v4300 = vpack.c.bf16 %v4283, %v4277
    %v4301 = vpack.c.bf16 %v4284, %v4278
    %v4302 = vpack.c.bf16 %v4285, %v4279
    %s4303 = scalar_lea.vmem %s7, 128
    %v4304 = vld [vmem:[%s4303] sm:$0xff]
    %v4305 = vld [vmem:[%s4303 + $0x8] sm:$0xff]
    %v4306 = vld [vmem:[%s4303 + $0x10] sm:$0xff]
    %v4307 = vld [vmem:[%s4303 + $0x18] sm:$0xff]
    %4309 = vset.pattern.permute.xlu0 0
    %4310 = vperm.xlu0 %4309, %v4304
    %v4311 = vpop.permute.xlu0 %4310
    %4314 = vset.pattern.permute.xlu0 0
    %4315 = vperm.xlu0 %4314, %v4305
    %v4316 = vpop.permute.xlu0 %4315
    %4319 = vset.pattern.permute.xlu0 0
    %4320 = vperm.xlu0 %4319, %v4306
    %v4321 = vpop.permute.xlu0 %4320
    %4324 = vset.pattern.permute.xlu0 0
    %4325 = vperm.xlu0 %4324, %v4307
    %v4326 = vpop.permute.xlu0 %4325
    %v4332 = vunpack.c.l.b16 %v4287
    %v4333 = vunpack.c.l.b16 %v4288
    %v4334 = vunpack.c.l.b16 %v4289
    %v4335 = vunpack.c.l.b16 %v4290
    %v4336 = vpack.c.b16 %v4333, %v4332
    %v4337 = vpack.c.b16 %v4335, %v4334
    %v4339 = vsel %vm3614, %v4336, 0
    %v4342 = vsel %vm3614, %v4337, 0
    %4344 = vmatprep.subr.bf16.mxu0 0
    %4345 = vmatpush1.bf16.msra.mxu0 0
    %4346 = vmatprep.subr.bf16.mxu0 0
    %4347 = vmatpush1.bf16.msra.mxu0 0
    %4348 = vmatprep.subr.bf16.mxu0 0
    %4349 = vmatpush1.bf16.msra.mxu0 0
    %4350 = vmatprep.subr.bf16.mxu0 0
    %4351 = vmatpush1.bf16.msra.mxu0 0
    %4352 = vmatprep.subr.bf16.mxu0 0
    %4353 = vmatpush1.bf16.msra.mxu0 0
    %4354 = vmatprep.subr.bf16.mxu0 0
    %4355 = vmatpush1.bf16.msra.mxu0 0
    %4356 = vmatprep.subr.bf16.mxu0 %v4298
    %4357 = vmatpush1.bf16.msra.mxu0 %v4297
    %4358 = vmatprep.subr.bf16.mxu0 %v4292
    %4359 = vmatpush1.bf16.msra.mxu0 %v4291
    %4360 = vmatprep.subr.bf16.mxu0 0
    %4361 = vmatpush2.bf16.msra.mxu0 0
    %4362 = vmatprep.subr.bf16.mxu0 0
    %4363 = vmatpush2.bf16.msra.mxu0 0
    %4364 = vmatprep.subr.bf16.mxu0 0
    %4365 = vmatpush2.bf16.msra.mxu0 0
    %4366 = vmatprep.subr.bf16.mxu0 0
    %4367 = vmatpush2.bf16.msra.mxu0 0
    %4368 = vmatprep.subr.bf16.mxu0 0
    %4369 = vmatpush2.bf16.msra.mxu0 0
    %4370 = vmatprep.subr.bf16.mxu0 0
    %4371 = vmatpush2.bf16.msra.mxu0 0
    %4372 = vmatprep.subr.bf16.mxu0 0
    %4373 = vmatpush2.bf16.msra.mxu0 0
    %4374 = vmatprep.subr.bf16.mxu0 0
    %4375 = vmatpush2.bf16.msra.mxu0 0
    %4376 = vmatprep.mubr.bf16.mxu0 0
    %4377 = vmatmul.mubr.bf16.gmra.mxu0 %v4339
    %v4378 = vpop.f32.mrf.mxu0
    %v4379 = vadd.f32 %v4311, %v4378
    %v4380 = vpop.f32.mrf.mxu0
    %v4381 = vadd.f32 %v4311, %v4380
    %v4382 = vpop.f32.mrf.mxu0
    %v4383 = vadd.f32 %v4316, %v4382
    %v4384 = vpop.f32.mrf.mxu0
    %v4385 = vadd.f32 %v4316, %v4384
    %4386 = vmatprep.mubr.bf16.mxu0 0
    %4387 = vmatmul.mubr.bf16.gmra.mxu0 %v4342
    %v4388 = vpop.f32.mrf.mxu0
    %v4389 = vadd.f32 %v4321, %v4388
    %v4390 = vpop.f32.mrf.mxu0
    %v4391 = vadd.f32 %v4321, %v4390
    %v4392 = vpop.f32.mrf.mxu0
    %v4393 = vadd.f32 %v4326, %v4392
    %v4394 = vpop.f32.mrf.mxu0
    %v4395 = vadd.f32 %v4326, %v4394
    %4396 = vdwg.mxu0
    %4397 = vmatprep.subr.bf16.mxu0 0
    %4398 = vmatpush1.bf16.msra.mxu0 0
    %4399 = vmatprep.subr.bf16.mxu0 0
    %4400 = vmatpush1.bf16.msra.mxu0 0
    %4401 = vmatprep.subr.bf16.mxu0 0
    %4402 = vmatpush1.bf16.msra.mxu0 0
    %4403 = vmatprep.subr.bf16.mxu0 0
    %4404 = vmatpush1.bf16.msra.mxu0 0
    %4405 = vmatprep.subr.bf16.mxu0 0
    %4406 = vmatpush1.bf16.msra.mxu0 0
    %4407 = vmatprep.subr.bf16.mxu0 0
    %4408 = vmatpush1.bf16.msra.mxu0 0
    %4409 = vmatprep.subr.bf16.mxu0 %v4300
    %4410 = vmatpush1.bf16.msra.mxu0 %v4299
    %4411 = vmatprep.subr.bf16.mxu0 %v4294
    %4412 = vmatpush1.bf16.msra.mxu0 %v4293
    %4413 = vmatprep.subr.bf16.mxu0 0
    %4414 = vmatpush2.bf16.msra.mxu0 0
    %4415 = vmatprep.subr.bf16.mxu0 0
    %4416 = vmatpush2.bf16.msra.mxu0 0
    %4417 = vmatprep.subr.bf16.mxu0 0
    %4418 = vmatpush2.bf16.msra.mxu0 0
    %4419 = vmatprep.subr.bf16.mxu0 0
    %4420 = vmatpush2.bf16.msra.mxu0 0
    %4421 = vmatprep.subr.bf16.mxu0 0
    %4422 = vmatpush2.bf16.msra.mxu0 0
    %4423 = vmatprep.subr.bf16.mxu0 0
    %4424 = vmatpush2.bf16.msra.mxu0 0
    %4425 = vmatprep.subr.bf16.mxu0 0
    %4426 = vmatpush2.bf16.msra.mxu0 0
    %4427 = vmatprep.subr.bf16.mxu0 0
    %4428 = vmatpush2.bf16.msra.mxu0 0
    %4429 = vmatprep.mubr.bf16.mxu0 0
    %4430 = vmatmul.mubr.bf16.gmra.mxu0 %v4339
    %v4431 = vpop.f32.mrf.mxu0
    %v4432 = vadd.f32 %v4311, %v4431
    %v4433 = vpop.f32.mrf.mxu0
    %v4434 = vadd.f32 %v4311, %v4433
    %v4435 = vpop.f32.mrf.mxu0
    %v4436 = vadd.f32 %v4316, %v4435
    %v4437 = vpop.f32.mrf.mxu0
    %v4438 = vadd.f32 %v4316, %v4437
    %4439 = vmatprep.mubr.bf16.mxu0 0
    %4440 = vmatmul.mubr.bf16.gmra.mxu0 %v4342
    %v4441 = vpop.f32.mrf.mxu0
    %v4442 = vadd.f32 %v4321, %v4441
    %v4443 = vpop.f32.mrf.mxu0
    %v4444 = vadd.f32 %v4321, %v4443
    %v4445 = vpop.f32.mrf.mxu0
    %v4446 = vadd.f32 %v4326, %v4445
    %v4447 = vpop.f32.mrf.mxu0
    %v4448 = vadd.f32 %v4326, %v4447
    %4449 = vdwg.mxu0
    %4450 = vmatprep.subr.bf16.mxu0 0
    %4451 = vmatpush1.bf16.msra.mxu0 0
    %4452 = vmatprep.subr.bf16.mxu0 0
    %4453 = vmatpush1.bf16.msra.mxu0 0
    %4454 = vmatprep.subr.bf16.mxu0 0
    %4455 = vmatpush1.bf16.msra.mxu0 0
    %4456 = vmatprep.subr.bf16.mxu0 0
    %4457 = vmatpush1.bf16.msra.mxu0 0
    %4458 = vmatprep.subr.bf16.mxu0 0
    %4459 = vmatpush1.bf16.msra.mxu0 0
    %4460 = vmatprep.subr.bf16.mxu0 0
    %4461 = vmatpush1.bf16.msra.mxu0 0
    %4462 = vmatprep.subr.bf16.mxu0 %v4302
    %4463 = vmatpush1.bf16.msra.mxu0 %v4301
    %4464 = vmatprep.subr.bf16.mxu0 %v4296
    %4465 = vmatpush1.bf16.msra.mxu0 %v4295
    %4466 = vmatprep.subr.bf16.mxu0 0
    %4467 = vmatpush2.bf16.msra.mxu0 0
    %4468 = vmatprep.subr.bf16.mxu0 0
    %4469 = vmatpush2.bf16.msra.mxu0 0
    %4470 = vmatprep.subr.bf16.mxu0 0
    %4471 = vmatpush2.bf16.msra.mxu0 0
    %4472 = vmatprep.subr.bf16.mxu0 0
    %4473 = vmatpush2.bf16.msra.mxu0 0
    %4474 = vmatprep.subr.bf16.mxu0 0
    %4475 = vmatpush2.bf16.msra.mxu0 0
    %4476 = vmatprep.subr.bf16.mxu0 0
    %4477 = vmatpush2.bf16.msra.mxu0 0
    %4478 = vmatprep.subr.bf16.mxu0 0
    %4479 = vmatpush2.bf16.msra.mxu0 0
    %4480 = vmatprep.subr.bf16.mxu0 0
    %4481 = vmatpush2.bf16.msra.mxu0 0
    %4482 = vmatprep.mubr.bf16.mxu0 0
    %4483 = vmatmul.mubr.bf16.gmra.mxu0 %v4339
    %v4484 = vpop.f32.mrf.mxu0
    %v4485 = vadd.f32 %v4311, %v4484
    %v4486 = vpop.f32.mrf.mxu0
    %v4487 = vadd.f32 %v4311, %v4486
    %v4488 = vpop.f32.mrf.mxu0
    %v4489 = vadd.f32 %v4316, %v4488
    %v4490 = vpop.f32.mrf.mxu0
    %v4491 = vadd.f32 %v4316, %v4490
    %4492 = vmatprep.mubr.bf16.mxu0 0
    %4493 = vmatmul.mubr.bf16.gmra.mxu0 %v4342
    %v4494 = vpop.f32.mrf.mxu0
    %v4495 = vadd.f32 %v4321, %v4494
    %v4496 = vpop.f32.mrf.mxu0
    %v4497 = vadd.f32 %v4321, %v4496
    %v4498 = vpop.f32.mrf.mxu0
    %v4499 = vadd.f32 %v4326, %v4498
    %v4500 = vpop.f32.mrf.mxu0
    %v4501 = vadd.f32 %v4326, %v4500
    %4502 = vdwg.mxu0
    %v4503 = vmax.f32 %v4379, 0.0
    %v4504 = vmax.f32 %v4381, 0.0
    %v4505 = vmax.f32 %v4432, 0.0
    %v4506 = vmax.f32 %v4434, 0.0
    %v4507 = vmax.f32 %v4485, 0.0
    %v4508 = vmax.f32 %v4487, 0.0
    %v4509 = vmax.f32 %v4383, 0.0
    %v4510 = vmax.f32 %v4385, 0.0
    %v4511 = vmax.f32 %v4436, 0.0
    %v4512 = vmax.f32 %v4438, 0.0
    %v4513 = vmax.f32 %v4489, 0.0
    %v4514 = vmax.f32 %v4491, 0.0
    %v4515 = vmax.f32 %v4389, 0.0
    %v4516 = vmax.f32 %v4391, 0.0
    %v4517 = vmax.f32 %v4442, 0.0
    %v4518 = vmax.f32 %v4444, 0.0
    %v4519 = vmax.f32 %v4495, 0.0
    %v4520 = vmax.f32 %v4497, 0.0
    %v4521 = vmax.f32 %v4393, 0.0
    %v4522 = vmax.f32 %v4395, 0.0
    %v4523 = vmax.f32 %v4446, 0.0
    %v4524 = vmax.f32 %v4448, 0.0
    %v4525 = vmax.f32 %v4499, 0.0
    %v4526 = vmax.f32 %v4501, 0.0
    %s4527 = scalar_lea.vmem %s4, 64
    %v4528 = vld [vmem:[%s4527] sm:$0xf]
    %v4529 = vld [vmem:[%s4527 + $0x4] sm:$0xf]
    %v4530 = vld [vmem:[%s4527 + $0x8] sm:$0xf]
    %v4531 = vld [vmem:[%s4527 + $0xc] sm:$0xf]
    %v4532 = vpack.c.bf16 %v4509, %v4503
    %v4533 = vpack.c.bf16 %v4510, %v4504
    %v4534 = vpack.c.bf16 %v4511, %v4505
    %v4535 = vpack.c.bf16 %v4512, %v4506
    %v4536 = vpack.c.bf16 %v4513, %v4507
    %v4537 = vpack.c.bf16 %v4514, %v4508
    %v4538 = vpack.c.bf16 %v4521, %v4515
    %v4539 = vpack.c.bf16 %v4522, %v4516
    %v4540 = vpack.c.bf16 %v4523, %v4517
    %v4541 = vpack.c.bf16 %v4524, %v4518
    %v4542 = vpack.c.bf16 %v4525, %v4519
    %v4543 = vpack.c.bf16 %v4526, %v4520
    %s4544 = scalar_lea.vmem %s7, 160
    %v4545 = vld [vmem:[%s4544] sm:$0xff]
    %v4546 = vld [vmem:[%s4544 + $0x8] sm:$0xff]
    %v4547 = vld [vmem:[%s4544 + $0x10] sm:$0xff]
    %v4548 = vld [vmem:[%s4544 + $0x18] sm:$0xff]
    %4550 = vset.pattern.permute.xlu0 0
    %4551 = vperm.xlu0 %4550, %v4545
    %v4552 = vpop.permute.xlu0 %4551
    %4555 = vset.pattern.permute.xlu0 0
    %4556 = vperm.xlu0 %4555, %v4546
    %v4557 = vpop.permute.xlu0 %4556
    %4560 = vset.pattern.permute.xlu0 0
    %4561 = vperm.xlu0 %4560, %v4547
    %v4562 = vpop.permute.xlu0 %4561
    %4565 = vset.pattern.permute.xlu0 0
    %4566 = vperm.xlu0 %4565, %v4548
    %v4567 = vpop.permute.xlu0 %4566
    %v4573 = vunpack.c.l.b16 %v4528
    %v4574 = vunpack.c.l.b16 %v4529
    %v4575 = vunpack.c.l.b16 %v4530
    %v4576 = vunpack.c.l.b16 %v4531
    %v4577 = vpack.c.b16 %v4574, %v4573
    %v4578 = vpack.c.b16 %v4576, %v4575
    %v4580 = vsel %vm3614, %v4577, 0
    %v4583 = vsel %vm3614, %v4578, 0
    %4585 = vmatprep.subr.bf16.mxu0 0
    %4586 = vmatpush1.bf16.msra.mxu0 0
    %4587 = vmatprep.subr.bf16.mxu0 0
    %4588 = vmatpush1.bf16.msra.mxu0 0
    %4589 = vmatprep.subr.bf16.mxu0 0
    %4590 = vmatpush1.bf16.msra.mxu0 0
    %4591 = vmatprep.subr.bf16.mxu0 0
    %4592 = vmatpush1.bf16.msra.mxu0 0
    %4593 = vmatprep.subr.bf16.mxu0 0
    %4594 = vmatpush1.bf16.msra.mxu0 0
    %4595 = vmatprep.subr.bf16.mxu0 0
    %4596 = vmatpush1.bf16.msra.mxu0 0
    %4597 = vmatprep.subr.bf16.mxu0 %v4539
    %4598 = vmatpush1.bf16.msra.mxu0 %v4538
    %4599 = vmatprep.subr.bf16.mxu0 %v4533
    %4600 = vmatpush1.bf16.msra.mxu0 %v4532
    %4601 = vmatprep.subr.bf16.mxu0 0
    %4602 = vmatpush2.bf16.msra.mxu0 0
    %4603 = vmatprep.subr.bf16.mxu0 0
    %4604 = vmatpush2.bf16.msra.mxu0 0
    %4605 = vmatprep.subr.bf16.mxu0 0
    %4606 = vmatpush2.bf16.msra.mxu0 0
    %4607 = vmatprep.subr.bf16.mxu0 0
    %4608 = vmatpush2.bf16.msra.mxu0 0
    %4609 = vmatprep.subr.bf16.mxu0 0
    %4610 = vmatpush2.bf16.msra.mxu0 0
    %4611 = vmatprep.subr.bf16.mxu0 0
    %4612 = vmatpush2.bf16.msra.mxu0 0
    %4613 = vmatprep.subr.bf16.mxu0 0
    %4614 = vmatpush2.bf16.msra.mxu0 0
    %4615 = vmatprep.subr.bf16.mxu0 0
    %4616 = vmatpush2.bf16.msra.mxu0 0
    %4617 = vmatprep.mubr.bf16.mxu0 0
    %4618 = vmatmul.mubr.bf16.gmra.mxu0 %v4580
    %v4619 = vpop.f32.mrf.mxu0
    %v4620 = vadd.f32 %v4552, %v4619
    %v4621 = vpop.f32.mrf.mxu0
    %v4622 = vadd.f32 %v4552, %v4621
    %v4623 = vpop.f32.mrf.mxu0
    %v4624 = vadd.f32 %v4557, %v4623
    %v4625 = vpop.f32.mrf.mxu0
    %v4626 = vadd.f32 %v4557, %v4625
    %4627 = vmatprep.mubr.bf16.mxu0 0
    %4628 = vmatmul.mubr.bf16.gmra.mxu0 %v4583
    %v4629 = vpop.f32.mrf.mxu0
    %v4630 = vadd.f32 %v4562, %v4629
    %v4631 = vpop.f32.mrf.mxu0
    %v4632 = vadd.f32 %v4562, %v4631
    %v4633 = vpop.f32.mrf.mxu0
    %v4634 = vadd.f32 %v4567, %v4633
    %v4635 = vpop.f32.mrf.mxu0
    %v4636 = vadd.f32 %v4567, %v4635
    %4637 = vdwg.mxu0
    %4638 = vmatprep.subr.bf16.mxu0 0
    %4639 = vmatpush1.bf16.msra.mxu0 0
    %4640 = vmatprep.subr.bf16.mxu0 0
    %4641 = vmatpush1.bf16.msra.mxu0 0
    %4642 = vmatprep.subr.bf16.mxu0 0
    %4643 = vmatpush1.bf16.msra.mxu0 0
    %4644 = vmatprep.subr.bf16.mxu0 0
    %4645 = vmatpush1.bf16.msra.mxu0 0
    %4646 = vmatprep.subr.bf16.mxu0 0
    %4647 = vmatpush1.bf16.msra.mxu0 0
    %4648 = vmatprep.subr.bf16.mxu0 0
    %4649 = vmatpush1.bf16.msra.mxu0 0
    %4650 = vmatprep.subr.bf16.mxu0 %v4541
    %4651 = vmatpush1.bf16.msra.mxu0 %v4540
    %4652 = vmatprep.subr.bf16.mxu0 %v4535
    %4653 = vmatpush1.bf16.msra.mxu0 %v4534
    %4654 = vmatprep.subr.bf16.mxu0 0
    %4655 = vmatpush2.bf16.msra.mxu0 0
    %4656 = vmatprep.subr.bf16.mxu0 0
    %4657 = vmatpush2.bf16.msra.mxu0 0
    %4658 = vmatprep.subr.bf16.mxu0 0
    %4659 = vmatpush2.bf16.msra.mxu0 0
    %4660 = vmatprep.subr.bf16.mxu0 0
    %4661 = vmatpush2.bf16.msra.mxu0 0
    %4662 = vmatprep.subr.bf16.mxu0 0
    %4663 = vmatpush2.bf16.msra.mxu0 0
    %4664 = vmatprep.subr.bf16.mxu0 0
    %4665 = vmatpush2.bf16.msra.mxu0 0
    %4666 = vmatprep.subr.bf16.mxu0 0
    %4667 = vmatpush2.bf16.msra.mxu0 0
    %4668 = vmatprep.subr.bf16.mxu0 0
    %4669 = vmatpush2.bf16.msra.mxu0 0
    %4670 = vmatprep.mubr.bf16.mxu0 0
    %4671 = vmatmul.mubr.bf16.gmra.mxu0 %v4580
    %v4672 = vpop.f32.mrf.mxu0
    %v4673 = vadd.f32 %v4552, %v4672
    %v4674 = vpop.f32.mrf.mxu0
    %v4675 = vadd.f32 %v4552, %v4674
    %v4676 = vpop.f32.mrf.mxu0
    %v4677 = vadd.f32 %v4557, %v4676
    %v4678 = vpop.f32.mrf.mxu0
    %v4679 = vadd.f32 %v4557, %v4678
    %4680 = vmatprep.mubr.bf16.mxu0 0
    %4681 = vmatmul.mubr.bf16.gmra.mxu0 %v4583
    %v4682 = vpop.f32.mrf.mxu0
    %v4683 = vadd.f32 %v4562, %v4682
    %v4684 = vpop.f32.mrf.mxu0
    %v4685 = vadd.f32 %v4562, %v4684
    %v4686 = vpop.f32.mrf.mxu0
    %v4687 = vadd.f32 %v4567, %v4686
    %v4688 = vpop.f32.mrf.mxu0
    %v4689 = vadd.f32 %v4567, %v4688
    %4690 = vdwg.mxu0
    %4691 = vmatprep.subr.bf16.mxu0 0
    %4692 = vmatpush1.bf16.msra.mxu0 0
    %4693 = vmatprep.subr.bf16.mxu0 0
    %4694 = vmatpush1.bf16.msra.mxu0 0
    %4695 = vmatprep.subr.bf16.mxu0 0
    %4696 = vmatpush1.bf16.msra.mxu0 0
    %4697 = vmatprep.subr.bf16.mxu0 0
    %4698 = vmatpush1.bf16.msra.mxu0 0
    %4699 = vmatprep.subr.bf16.mxu0 0
    %4700 = vmatpush1.bf16.msra.mxu0 0
    %4701 = vmatprep.subr.bf16.mxu0 0
    %4702 = vmatpush1.bf16.msra.mxu0 0
    %4703 = vmatprep.subr.bf16.mxu0 %v4543
    %4704 = vmatpush1.bf16.msra.mxu0 %v4542
    %4705 = vmatprep.subr.bf16.mxu0 %v4537
    %4706 = vmatpush1.bf16.msra.mxu0 %v4536
    %4707 = vmatprep.subr.bf16.mxu0 0
    %4708 = vmatpush2.bf16.msra.mxu0 0
    %4709 = vmatprep.subr.bf16.mxu0 0
    %4710 = vmatpush2.bf16.msra.mxu0 0
    %4711 = vmatprep.subr.bf16.mxu0 0
    %4712 = vmatpush2.bf16.msra.mxu0 0
    %4713 = vmatprep.subr.bf16.mxu0 0
    %4714 = vmatpush2.bf16.msra.mxu0 0
    %4715 = vmatprep.subr.bf16.mxu0 0
    %4716 = vmatpush2.bf16.msra.mxu0 0
    %4717 = vmatprep.subr.bf16.mxu0 0
    %4718 = vmatpush2.bf16.msra.mxu0 0
    %4719 = vmatprep.subr.bf16.mxu0 0
    %4720 = vmatpush2.bf16.msra.mxu0 0
    %4721 = vmatprep.subr.bf16.mxu0 0
    %4722 = vmatpush2.bf16.msra.mxu0 0
    %4723 = vmatprep.mubr.bf16.mxu0 0
    %4724 = vmatmul.mubr.bf16.gmra.mxu0 %v4580
    %v4725 = vpop.f32.mrf.mxu0
    %v4726 = vadd.f32 %v4552, %v4725
    %v4727 = vpop.f32.mrf.mxu0
    %v4728 = vadd.f32 %v4552, %v4727
    %v4729 = vpop.f32.mrf.mxu0
    %v4730 = vadd.f32 %v4557, %v4729
    %v4731 = vpop.f32.mrf.mxu0
    %v4732 = vadd.f32 %v4557, %v4731
    %4733 = vmatprep.mubr.bf16.mxu0 0
    %4734 = vmatmul.mubr.bf16.gmra.mxu0 %v4583
    %v4735 = vpop.f32.mrf.mxu0
    %v4736 = vadd.f32 %v4562, %v4735
    %v4737 = vpop.f32.mrf.mxu0
    %v4738 = vadd.f32 %v4562, %v4737
    %v4739 = vpop.f32.mrf.mxu0
    %v4740 = vadd.f32 %v4567, %v4739
    %v4741 = vpop.f32.mrf.mxu0
    %v4742 = vadd.f32 %v4567, %v4741
    %4743 = vdwg.mxu0
    %s4744 = scalar_lea.vmem %s3, 32
    %v4745 = vld [vmem:[%s4744] sm:$0xf]
    %v4746 = vld [vmem:[%s4744 + $0x4] sm:$0xf]
    %v4747 = vld [vmem:[%s4744 + $0x8] sm:$0xf]
    %v4748 = vld [vmem:[%s4744 + $0xc] sm:$0xf]
    %v4753 = vunpack.c.l.b16 %v4745
    %v4754 = vunpack.c.l.b16 %v4746
    %v4755 = vunpack.c.l.b16 %v4747
    %v4756 = vunpack.c.l.b16 %v4748
    %v4757 = vpack.c.b16 %v4754, %v4753
    %v4758 = vpack.c.b16 %v4756, %v4755
    %v4760 = vsel %vm3114, %v4757, 0
    %v4763 = vsel %vm3114, %v4758, 0
    %4765 = vmatprep.subr.bf16.mxu0 0
    %4766 = vmatpush1.bf16.msra.mxu0 0
    %4767 = vmatprep.subr.bf16.mxu0 0
    %4768 = vmatpush1.bf16.msra.mxu0 0
    %4769 = vmatprep.subr.bf16.mxu0 0
    %4770 = vmatpush1.bf16.msra.mxu0 0
    %4771 = vmatprep.subr.bf16.mxu0 0
    %4772 = vmatpush1.bf16.msra.mxu0 0
    %4773 = vmatprep.subr.bf16.mxu0 0
    %4774 = vmatpush1.bf16.msra.mxu0 0
    %4775 = vmatprep.subr.bf16.mxu0 0
    %4776 = vmatpush1.bf16.msra.mxu0 0
    %4777 = vmatprep.subr.bf16.mxu0 0
    %4778 = vmatpush1.bf16.msra.mxu0 0
    %4779 = vmatprep.subr.bf16.mxu0 %v3318
    %4780 = vmatpush1.bf16.msra.mxu0 %v3315
    %4781 = vmatprep.subr.bf16.mxu0 0
    %4782 = vmatpush2.bf16.msra.mxu0 0
    %4783 = vmatprep.subr.bf16.mxu0 0
    %4784 = vmatpush2.bf16.msra.mxu0 0
    %4785 = vmatprep.subr.bf16.mxu0 0
    %4786 = vmatpush2.bf16.msra.mxu0 0
    %4787 = vmatprep.subr.bf16.mxu0 0
    %4788 = vmatpush2.bf16.msra.mxu0 0
    %4789 = vmatprep.subr.bf16.mxu0 0
    %4790 = vmatpush2.bf16.msra.mxu0 0
    %4791 = vmatprep.subr.bf16.mxu0 0
    %4792 = vmatpush2.bf16.msra.mxu0 0
    %4793 = vmatprep.subr.bf16.mxu0 0
    %4794 = vmatpush2.bf16.msra.mxu0 0
    %4795 = vmatprep.subr.bf16.mxu0 0
    %4796 = vmatpush2.bf16.msra.mxu0 0
    %4797 = vmatprep.mubr.bf16.mxu0 0
    %4798 = vmatmul.mubr.bf16.gmra.mxu0 %v4760
    %v4799 = vpop.f32.mrf.mxu0
    %v4800 = vadd.f32 0.0, %v4799
    %v4801 = vpop.f32.mrf.mxu0
    %v4802 = vadd.f32 0.0, %v4801
    %v4803 = vpop.f32.mrf.mxu0
    %v4804 = vadd.f32 0.0, %v4803
    %v4805 = vpop.f32.mrf.mxu0
    %v4806 = vadd.f32 0.0, %v4805
    %4807 = vmatprep.mubr.bf16.mxu0 0
    %4808 = vmatmul.mubr.bf16.gmra.mxu0 %v4763
    %v4809 = vpop.f32.mrf.mxu0
    %v4810 = vadd.f32 0.0, %v4809
    %v4811 = vpop.f32.mrf.mxu0
    %v4812 = vadd.f32 0.0, %v4811
    %v4813 = vpop.f32.mrf.mxu0
    %v4814 = vadd.f32 0.0, %v4813
    %v4815 = vpop.f32.mrf.mxu0
    %v4816 = vadd.f32 0.0, %v4815
    %4817 = vdwg.mxu0
    %4818 = vmatprep.subr.bf16.mxu0 0
    %4819 = vmatpush1.bf16.msra.mxu0 0
    %4820 = vmatprep.subr.bf16.mxu0 0
    %4821 = vmatpush1.bf16.msra.mxu0 0
    %4822 = vmatprep.subr.bf16.mxu0 0
    %4823 = vmatpush1.bf16.msra.mxu0 0
    %4824 = vmatprep.subr.bf16.mxu0 0
    %4825 = vmatpush1.bf16.msra.mxu0 0
    %4826 = vmatprep.subr.bf16.mxu0 0
    %4827 = vmatpush1.bf16.msra.mxu0 0
    %4828 = vmatprep.subr.bf16.mxu0 0
    %4829 = vmatpush1.bf16.msra.mxu0 0
    %4830 = vmatprep.subr.bf16.mxu0 0
    %4831 = vmatpush1.bf16.msra.mxu0 0
    %4832 = vmatprep.subr.bf16.mxu0 %v3324
    %4833 = vmatpush1.bf16.msra.mxu0 %v3321
    %4834 = vmatprep.subr.bf16.mxu0 0
    %4835 = vmatpush2.bf16.msra.mxu0 0
    %4836 = vmatprep.subr.bf16.mxu0 0
    %4837 = vmatpush2.bf16.msra.mxu0 0
    %4838 = vmatprep.subr.bf16.mxu0 0
    %4839 = vmatpush2.bf16.msra.mxu0 0
    %4840 = vmatprep.subr.bf16.mxu0 0
    %4841 = vmatpush2.bf16.msra.mxu0 0
    %4842 = vmatprep.subr.bf16.mxu0 0
    %4843 = vmatpush2.bf16.msra.mxu0 0
    %4844 = vmatprep.subr.bf16.mxu0 0
    %4845 = vmatpush2.bf16.msra.mxu0 0
    %4846 = vmatprep.subr.bf16.mxu0 0
    %4847 = vmatpush2.bf16.msra.mxu0 0
    %4848 = vmatprep.subr.bf16.mxu0 0
    %4849 = vmatpush2.bf16.msra.mxu0 0
    %4850 = vmatprep.mubr.bf16.mxu0 0
    %4851 = vmatmul.mubr.bf16.gmra.mxu0 %v4760
    %v4852 = vpop.f32.mrf.mxu0
    %v4853 = vadd.f32 0.0, %v4852
    %v4854 = vpop.f32.mrf.mxu0
    %v4855 = vadd.f32 0.0, %v4854
    %v4856 = vpop.f32.mrf.mxu0
    %v4857 = vadd.f32 0.0, %v4856
    %v4858 = vpop.f32.mrf.mxu0
    %v4859 = vadd.f32 0.0, %v4858
    %4860 = vmatprep.mubr.bf16.mxu0 0
    %4861 = vmatmul.mubr.bf16.gmra.mxu0 %v4763
    %v4862 = vpop.f32.mrf.mxu0
    %v4863 = vadd.f32 0.0, %v4862
    %v4864 = vpop.f32.mrf.mxu0
    %v4865 = vadd.f32 0.0, %v4864
    %v4866 = vpop.f32.mrf.mxu0
    %v4867 = vadd.f32 0.0, %v4866
    %v4868 = vpop.f32.mrf.mxu0
    %v4869 = vadd.f32 0.0, %v4868
    %4870 = vdwg.mxu0
    %4871 = vmatprep.subr.bf16.mxu0 0
    %4872 = vmatpush1.bf16.msra.mxu0 0
    %4873 = vmatprep.subr.bf16.mxu0 0
    %4874 = vmatpush1.bf16.msra.mxu0 0
    %4875 = vmatprep.subr.bf16.mxu0 0
    %4876 = vmatpush1.bf16.msra.mxu0 0
    %4877 = vmatprep.subr.bf16.mxu0 0
    %4878 = vmatpush1.bf16.msra.mxu0 0
    %4879 = vmatprep.subr.bf16.mxu0 0
    %4880 = vmatpush1.bf16.msra.mxu0 0
    %4881 = vmatprep.subr.bf16.mxu0 0
    %4882 = vmatpush1.bf16.msra.mxu0 0
    %4883 = vmatprep.subr.bf16.mxu0 0
    %4884 = vmatpush1.bf16.msra.mxu0 0
    %4885 = vmatprep.subr.bf16.mxu0 %v3330
    %4886 = vmatpush1.bf16.msra.mxu0 %v3327
    %4887 = vmatprep.subr.bf16.mxu0 0
    %4888 = vmatpush2.bf16.msra.mxu0 0
    %4889 = vmatprep.subr.bf16.mxu0 0
    %4890 = vmatpush2.bf16.msra.mxu0 0
    %4891 = vmatprep.subr.bf16.mxu0 0
    %4892 = vmatpush2.bf16.msra.mxu0 0
    %4893 = vmatprep.subr.bf16.mxu0 0
    %4894 = vmatpush2.bf16.msra.mxu0 0
    %4895 = vmatprep.subr.bf16.mxu0 0
    %4896 = vmatpush2.bf16.msra.mxu0 0
    %4897 = vmatprep.subr.bf16.mxu0 0
    %4898 = vmatpush2.bf16.msra.mxu0 0
    %4899 = vmatprep.subr.bf16.mxu0 0
    %4900 = vmatpush2.bf16.msra.mxu0 0
    %4901 = vmatprep.subr.bf16.mxu0 0
    %4902 = vmatpush2.bf16.msra.mxu0 0
    %4903 = vmatprep.mubr.bf16.mxu0 0
    %4904 = vmatmul.mubr.bf16.gmra.mxu0 %v4760
    %v4905 = vpop.f32.mrf.mxu0
    %v4906 = vadd.f32 0.0, %v4905
    %v4907 = vpop.f32.mrf.mxu0
    %v4908 = vadd.f32 0.0, %v4907
    %v4909 = vpop.f32.mrf.mxu0
    %v4910 = vadd.f32 0.0, %v4909
    %v4911 = vpop.f32.mrf.mxu0
    %v4912 = vadd.f32 0.0, %v4911
    %4913 = vmatprep.mubr.bf16.mxu0 0
    %4914 = vmatmul.mubr.bf16.gmra.mxu0 %v4763
    %v4915 = vpop.f32.mrf.mxu0
    %v4916 = vadd.f32 0.0, %v4915
    %v4917 = vpop.f32.mrf.mxu0
    %v4918 = vadd.f32 0.0, %v4917
    %v4919 = vpop.f32.mrf.mxu0
    %v4920 = vadd.f32 0.0, %v4919
    %v4921 = vpop.f32.mrf.mxu0
    %v4922 = vadd.f32 0.0, %v4921
    %4923 = vdwg.mxu0
    %v4924 = vadd.f32 %v4620, %v4800
    %v4925 = vadd.f32 %v4622, %v4802
    %v4926 = vadd.f32 %v4673, %v4853
    %v4927 = vadd.f32 %v4675, %v4855
    %v4928 = vadd.f32 %v4726, %v4906
    %v4929 = vadd.f32 %v4728, %v4908
    %v4930 = vadd.f32 %v4624, %v4804
    %v4931 = vadd.f32 %v4626, %v4806
    %v4932 = vadd.f32 %v4677, %v4857
    %v4933 = vadd.f32 %v4679, %v4859
    %v4934 = vadd.f32 %v4730, %v4910
    %v4935 = vadd.f32 %v4732, %v4912
    %v4936 = vadd.f32 %v4630, %v4810
    %v4937 = vadd.f32 %v4632, %v4812
    %v4938 = vadd.f32 %v4683, %v4863
    %v4939 = vadd.f32 %v4685, %v4865
    %v4940 = vadd.f32 %v4736, %v4916
    %v4941 = vadd.f32 %v4738, %v4918
    %v4942 = vadd.f32 %v4634, %v4814
    %v4943 = vadd.f32 %v4636, %v4816
    %v4944 = vadd.f32 %v4687, %v4867
    %v4945 = vadd.f32 %v4689, %v4869
    %v4946 = vadd.f32 %v4740, %v4920
    %v4947 = vadd.f32 %v4742, %v4922
    %s4948 = scalar_lea.vmem %s3, 48
    %v4949 = vld [vmem:[%s4948] sm:$0xf]
    %v4950 = vld [vmem:[%s4948 + $0x4] sm:$0xf]
    %v4951 = vld [vmem:[%s4948 + $0x8] sm:$0xf]
    %v4952 = vld [vmem:[%s4948 + $0xc] sm:$0xf]
    %v4957 = vunpack.c.l.b16 %v4949
    %v4958 = vunpack.c.l.b16 %v4950
    %v4959 = vunpack.c.l.b16 %v4951
    %v4960 = vunpack.c.l.b16 %v4952
    %v4961 = vpack.c.b16 %v4958, %v4957
    %v4962 = vpack.c.b16 %v4960, %v4959
    %v4964 = vsel %vm3114, %v4961, 0
    %v4967 = vsel %vm3114, %v4962, 0
    %4969 = vmatprep.subr.bf16.mxu0 0
    %4970 = vmatpush1.bf16.msra.mxu0 0
    %4971 = vmatprep.subr.bf16.mxu0 0
    %4972 = vmatpush1.bf16.msra.mxu0 0
    %4973 = vmatprep.subr.bf16.mxu0 0
    %4974 = vmatpush1.bf16.msra.mxu0 0
    %4975 = vmatprep.subr.bf16.mxu0 0
    %4976 = vmatpush1.bf16.msra.mxu0 0
    %4977 = vmatprep.subr.bf16.mxu0 0
    %4978 = vmatpush1.bf16.msra.mxu0 0
    %4979 = vmatprep.subr.bf16.mxu0 0
    %4980 = vmatpush1.bf16.msra.mxu0 0
    %4981 = vmatprep.subr.bf16.mxu0 0
    %4982 = vmatpush1.bf16.msra.mxu0 0
    %4983 = vmatprep.subr.bf16.mxu0 %v3125
    %4984 = vmatpush1.bf16.msra.mxu0 %v3122
    %4985 = vmatprep.subr.bf16.mxu0 0
    %4986 = vmatpush2.bf16.msra.mxu0 0
    %4987 = vmatprep.subr.bf16.mxu0 0
    %4988 = vmatpush2.bf16.msra.mxu0 0
    %4989 = vmatprep.subr.bf16.mxu0 0
    %4990 = vmatpush2.bf16.msra.mxu0 0
    %4991 = vmatprep.subr.bf16.mxu0 0
    %4992 = vmatpush2.bf16.msra.mxu0 0
    %4993 = vmatprep.subr.bf16.mxu0 0
    %4994 = vmatpush2.bf16.msra.mxu0 0
    %4995 = vmatprep.subr.bf16.mxu0 0
    %4996 = vmatpush2.bf16.msra.mxu0 0
    %4997 = vmatprep.subr.bf16.mxu0 0
    %4998 = vmatpush2.bf16.msra.mxu0 0
    %4999 = vmatprep.subr.bf16.mxu0 0
    %5000 = vmatpush2.bf16.msra.mxu0 0
    %5001 = vmatprep.mubr.bf16.mxu0 0
    %5002 = vmatmul.mubr.bf16.gmra.mxu0 %v4964
    %v5003 = vpop.f32.mrf.mxu0
    %v5004 = vadd.f32 0.0, %v5003
    %v5005 = vpop.f32.mrf.mxu0
    %v5006 = vadd.f32 0.0, %v5005
    %v5007 = vpop.f32.mrf.mxu0
    %v5008 = vadd.f32 0.0, %v5007
    %v5009 = vpop.f32.mrf.mxu0
    %v5010 = vadd.f32 0.0, %v5009
    %5011 = vmatprep.mubr.bf16.mxu0 0
    %5012 = vmatmul.mubr.bf16.gmra.mxu0 %v4967
    %v5013 = vpop.f32.mrf.mxu0
    %v5014 = vadd.f32 0.0, %v5013
    %v5015 = vpop.f32.mrf.mxu0
    %v5016 = vadd.f32 0.0, %v5015
    %v5017 = vpop.f32.mrf.mxu0
    %v5018 = vadd.f32 0.0, %v5017
    %v5019 = vpop.f32.mrf.mxu0
    %v5020 = vadd.f32 0.0, %v5019
    %5021 = vdwg.mxu0
    %5022 = vmatprep.subr.bf16.mxu0 0
    %5023 = vmatpush1.bf16.msra.mxu0 0
    %5024 = vmatprep.subr.bf16.mxu0 0
    %5025 = vmatpush1.bf16.msra.mxu0 0
    %5026 = vmatprep.subr.bf16.mxu0 0
    %5027 = vmatpush1.bf16.msra.mxu0 0
    %5028 = vmatprep.subr.bf16.mxu0 0
    %5029 = vmatpush1.bf16.msra.mxu0 0
    %5030 = vmatprep.subr.bf16.mxu0 0
    %5031 = vmatpush1.bf16.msra.mxu0 0
    %5032 = vmatprep.subr.bf16.mxu0 0
    %5033 = vmatpush1.bf16.msra.mxu0 0
    %5034 = vmatprep.subr.bf16.mxu0 0
    %5035 = vmatpush1.bf16.msra.mxu0 0
    %5036 = vmatprep.subr.bf16.mxu0 %v3131
    %5037 = vmatpush1.bf16.msra.mxu0 %v3128
    %5038 = vmatprep.subr.bf16.mxu0 0
    %5039 = vmatpush2.bf16.msra.mxu0 0
    %5040 = vmatprep.subr.bf16.mxu0 0
    %5041 = vmatpush2.bf16.msra.mxu0 0
    %5042 = vmatprep.subr.bf16.mxu0 0
    %5043 = vmatpush2.bf16.msra.mxu0 0
    %5044 = vmatprep.subr.bf16.mxu0 0
    %5045 = vmatpush2.bf16.msra.mxu0 0
    %5046 = vmatprep.subr.bf16.mxu0 0
    %5047 = vmatpush2.bf16.msra.mxu0 0
    %5048 = vmatprep.subr.bf16.mxu0 0
    %5049 = vmatpush2.bf16.msra.mxu0 0
    %5050 = vmatprep.subr.bf16.mxu0 0
    %5051 = vmatpush2.bf16.msra.mxu0 0
    %5052 = vmatprep.subr.bf16.mxu0 0
    %5053 = vmatpush2.bf16.msra.mxu0 0
    %5054 = vmatprep.mubr.bf16.mxu0 0
    %5055 = vmatmul.mubr.bf16.gmra.mxu0 %v4964
    %v5056 = vpop.f32.mrf.mxu0
    %v5057 = vadd.f32 0.0, %v5056
    %v5058 = vpop.f32.mrf.mxu0
    %v5059 = vadd.f32 0.0, %v5058
    %v5060 = vpop.f32.mrf.mxu0
    %v5061 = vadd.f32 0.0, %v5060
    %v5062 = vpop.f32.mrf.mxu0
    %v5063 = vadd.f32 0.0, %v5062
    %5064 = vmatprep.mubr.bf16.mxu0 0
    %5065 = vmatmul.mubr.bf16.gmra.mxu0 %v4967
    %v5066 = vpop.f32.mrf.mxu0
    %v5067 = vadd.f32 0.0, %v5066
    %v5068 = vpop.f32.mrf.mxu0
    %v5069 = vadd.f32 0.0, %v5068
    %v5070 = vpop.f32.mrf.mxu0
    %v5071 = vadd.f32 0.0, %v5070
    %v5072 = vpop.f32.mrf.mxu0
    %v5073 = vadd.f32 0.0, %v5072
    %5074 = vdwg.mxu0
    %5075 = vmatprep.subr.bf16.mxu0 0
    %5076 = vmatpush1.bf16.msra.mxu0 0
    %5077 = vmatprep.subr.bf16.mxu0 0
    %5078 = vmatpush1.bf16.msra.mxu0 0
    %5079 = vmatprep.subr.bf16.mxu0 0
    %5080 = vmatpush1.bf16.msra.mxu0 0
    %5081 = vmatprep.subr.bf16.mxu0 0
    %5082 = vmatpush1.bf16.msra.mxu0 0
    %5083 = vmatprep.subr.bf16.mxu0 0
    %5084 = vmatpush1.bf16.msra.mxu0 0
    %5085 = vmatprep.subr.bf16.mxu0 0
    %5086 = vmatpush1.bf16.msra.mxu0 0
    %5087 = vmatprep.subr.bf16.mxu0 0
    %5088 = vmatpush1.bf16.msra.mxu0 0
    %5089 = vmatprep.subr.bf16.mxu0 %v3137
    %5090 = vmatpush1.bf16.msra.mxu0 %v3134
    %5091 = vmatprep.subr.bf16.mxu0 0
    %5092 = vmatpush2.bf16.msra.mxu0 0
    %5093 = vmatprep.subr.bf16.mxu0 0
    %5094 = vmatpush2.bf16.msra.mxu0 0
    %5095 = vmatprep.subr.bf16.mxu0 0
    %5096 = vmatpush2.bf16.msra.mxu0 0
    %5097 = vmatprep.subr.bf16.mxu0 0
    %5098 = vmatpush2.bf16.msra.mxu0 0
    %5099 = vmatprep.subr.bf16.mxu0 0
    %5100 = vmatpush2.bf16.msra.mxu0 0
    %5101 = vmatprep.subr.bf16.mxu0 0
    %5102 = vmatpush2.bf16.msra.mxu0 0
    %5103 = vmatprep.subr.bf16.mxu0 0
    %5104 = vmatpush2.bf16.msra.mxu0 0
    %5105 = vmatprep.subr.bf16.mxu0 0
    %5106 = vmatpush2.bf16.msra.mxu0 0
    %5107 = vmatprep.mubr.bf16.mxu0 0
    %5108 = vmatmul.mubr.bf16.gmra.mxu0 %v4964
    %v5109 = vpop.f32.mrf.mxu0
    %v5110 = vadd.f32 0.0, %v5109
    %v5111 = vpop.f32.mrf.mxu0
    %v5112 = vadd.f32 0.0, %v5111
    %v5113 = vpop.f32.mrf.mxu0
    %v5114 = vadd.f32 0.0, %v5113
    %v5115 = vpop.f32.mrf.mxu0
    %v5116 = vadd.f32 0.0, %v5115
    %5117 = vmatprep.mubr.bf16.mxu0 0
    %5118 = vmatmul.mubr.bf16.gmra.mxu0 %v4967
    %v5119 = vpop.f32.mrf.mxu0
    %v5120 = vadd.f32 0.0, %v5119
    %v5121 = vpop.f32.mrf.mxu0
    %v5122 = vadd.f32 0.0, %v5121
    %v5123 = vpop.f32.mrf.mxu0
    %v5124 = vadd.f32 0.0, %v5123
    %v5125 = vpop.f32.mrf.mxu0
    %v5126 = vadd.f32 0.0, %v5125
    %5127 = vdwg.mxu0
    %v5128 = vadd.f32 %v4924, %v5004
    %v5129 = vadd.f32 %v4925, %v5006
    %v5130 = vadd.f32 %v4926, %v5057
    %v5131 = vadd.f32 %v4927, %v5059
    %v5132 = vadd.f32 %v4928, %v5110
    %v5133 = vadd.f32 %v4929, %v5112
    %v5134 = vadd.f32 %v4930, %v5008
    %v5135 = vadd.f32 %v4931, %v5010
    %v5136 = vadd.f32 %v4932, %v5061
    %v5137 = vadd.f32 %v4933, %v5063
    %v5138 = vadd.f32 %v4934, %v5114
    %v5139 = vadd.f32 %v4935, %v5116
    %v5140 = vadd.f32 %v4936, %v5014
    %v5141 = vadd.f32 %v4937, %v5016
    %v5142 = vadd.f32 %v4938, %v5067
    %v5143 = vadd.f32 %v4939, %v5069
    %v5144 = vadd.f32 %v4940, %v5120
    %v5145 = vadd.f32 %v4941, %v5122
    %v5146 = vadd.f32 %v4942, %v5018
    %v5147 = vadd.f32 %v4943, %v5020
    %v5148 = vadd.f32 %v4944, %v5071
    %v5149 = vadd.f32 %v4945, %v5073
    %v5150 = vadd.f32 %v4946, %v5124
    %v5151 = vadd.f32 %v4947, %v5126
    %v5152 = vmax.f32 %v5128, 0.0
    %v5153 = vmax.f32 %v5129, 0.0
    %v5154 = vmax.f32 %v5130, 0.0
    %v5155 = vmax.f32 %v5131, 0.0
    %v5156 = vmax.f32 %v5132, 0.0
    %v5157 = vmax.f32 %v5133, 0.0
    %v5158 = vmax.f32 %v5134, 0.0
    %v5159 = vmax.f32 %v5135, 0.0
    %v5160 = vmax.f32 %v5136, 0.0
    %v5161 = vmax.f32 %v5137, 0.0
    %v5162 = vmax.f32 %v5138, 0.0
    %v5163 = vmax.f32 %v5139, 0.0
    %v5164 = vmax.f32 %v5140, 0.0
    %v5165 = vmax.f32 %v5141, 0.0
    %v5166 = vmax.f32 %v5142, 0.0
    %v5167 = vmax.f32 %v5143, 0.0
    %v5168 = vmax.f32 %v5144, 0.0
    %v5169 = vmax.f32 %v5145, 0.0
    %v5170 = vmax.f32 %v5146, 0.0
    %v5171 = vmax.f32 %v5147, 0.0
    %v5172 = vmax.f32 %v5148, 0.0
    %v5173 = vmax.f32 %v5149, 0.0
    %v5174 = vmax.f32 %v5150, 0.0
    %v5175 = vmax.f32 %v5151, 0.0
    %v5176 = vpack.c.bf16 %v5158, %v5152
    %v5177 = vpack.c.bf16 %v5159, %v5153
    %v5178 = vpack.c.bf16 %v5160, %v5154
    %v5179 = vpack.c.bf16 %v5161, %v5155
    %v5180 = vpack.c.bf16 %v5162, %v5156
    %v5181 = vpack.c.bf16 %v5163, %v5157
    %v5182 = vpack.c.bf16 %v5170, %v5164
    %v5183 = vpack.c.bf16 %v5171, %v5165
    %v5184 = vpack.c.bf16 %v5172, %v5166
    %v5185 = vpack.c.bf16 %v5173, %v5167
    %v5186 = vpack.c.bf16 %v5174, %v5168
    %v5187 = vpack.c.bf16 %v5175, %v5169
    %s5188 = scalar_lea.vmem %s4, 80
    %v5189 = vld [vmem:[%s5188] sm:$0xf]
    %v5190 = vld [vmem:[%s5188 + $0x4] sm:$0xf]
    %v5191 = vld [vmem:[%s5188 + $0x8] sm:$0xf]
    %v5192 = vld [vmem:[%s5188 + $0xc] sm:$0xf]
    %s5193 = scalar_lea.vmem %s7, 192
    %v5194 = vld [vmem:[%s5193] sm:$0xff]
    %v5195 = vld [vmem:[%s5193 + $0x8] sm:$0xff]
    %v5196 = vld [vmem:[%s5193 + $0x10] sm:$0xff]
    %v5197 = vld [vmem:[%s5193 + $0x18] sm:$0xff]
    %5199 = vset.pattern.permute.xlu0 0
    %5200 = vperm.xlu0 %5199, %v5194
    %v5201 = vpop.permute.xlu0 %5200
    %5204 = vset.pattern.permute.xlu0 0
    %5205 = vperm.xlu0 %5204, %v5195
    %v5206 = vpop.permute.xlu0 %5205
    %5209 = vset.pattern.permute.xlu0 0
    %5210 = vperm.xlu0 %5209, %v5196
    %v5211 = vpop.permute.xlu0 %5210
    %5214 = vset.pattern.permute.xlu0 0
    %5215 = vperm.xlu0 %5214, %v5197
    %v5216 = vpop.permute.xlu0 %5215
    %v5222 = vunpack.c.l.b16 %v5189
    %v5223 = vunpack.c.l.b16 %v5190
    %v5224 = vunpack.c.l.b16 %v5191
    %v5225 = vunpack.c.l.b16 %v5192
    %v5226 = vpack.c.b16 %v5223, %v5222
    %v5227 = vpack.c.b16 %v5225, %v5224
    %v5229 = vsel %vm3614, %v5226, 0
    %v5232 = vsel %vm3614, %v5227, 0
    %5234 = vmatprep.subr.bf16.mxu0 0
    %5235 = vmatpush1.bf16.msra.mxu0 0
    %5236 = vmatprep.subr.bf16.mxu0 0
    %5237 = vmatpush1.bf16.msra.mxu0 0
    %5238 = vmatprep.subr.bf16.mxu0 0
    %5239 = vmatpush1.bf16.msra.mxu0 0
    %5240 = vmatprep.subr.bf16.mxu0 0
    %5241 = vmatpush1.bf16.msra.mxu0 0
    %5242 = vmatprep.subr.bf16.mxu0 0
    %5243 = vmatpush1.bf16.msra.mxu0 0
    %5244 = vmatprep.subr.bf16.mxu0 0
    %5245 = vmatpush1.bf16.msra.mxu0 0
    %5246 = vmatprep.subr.bf16.mxu0 %v5183
    %5247 = vmatpush1.bf16.msra.mxu0 %v5182
    %5248 = vmatprep.subr.bf16.mxu0 %v5177
    %5249 = vmatpush1.bf16.msra.mxu0 %v5176
    %5250 = vmatprep.subr.bf16.mxu0 0
    %5251 = vmatpush2.bf16.msra.mxu0 0
    %5252 = vmatprep.subr.bf16.mxu0 0
    %5253 = vmatpush2.bf16.msra.mxu0 0
    %5254 = vmatprep.subr.bf16.mxu0 0
    %5255 = vmatpush2.bf16.msra.mxu0 0
    %5256 = vmatprep.subr.bf16.mxu0 0
    %5257 = vmatpush2.bf16.msra.mxu0 0
    %5258 = vmatprep.subr.bf16.mxu0 0
    %5259 = vmatpush2.bf16.msra.mxu0 0
    %5260 = vmatprep.subr.bf16.mxu0 0
    %5261 = vmatpush2.bf16.msra.mxu0 0
    %5262 = vmatprep.subr.bf16.mxu0 0
    %5263 = vmatpush2.bf16.msra.mxu0 0
    %5264 = vmatprep.subr.bf16.mxu0 0
    %5265 = vmatpush2.bf16.msra.mxu0 0
    %5266 = vmatprep.mubr.bf16.mxu0 0
    %5267 = vmatmul.mubr.bf16.gmra.mxu0 %v5229
    %v5268 = vpop.f32.mrf.mxu0
    %v5269 = vadd.f32 %v5201, %v5268
    %v5270 = vpop.f32.mrf.mxu0
    %v5271 = vadd.f32 %v5201, %v5270
    %v5272 = vpop.f32.mrf.mxu0
    %v5273 = vadd.f32 %v5206, %v5272
    %v5274 = vpop.f32.mrf.mxu0
    %v5275 = vadd.f32 %v5206, %v5274
    %5276 = vmatprep.mubr.bf16.mxu0 0
    %5277 = vmatmul.mubr.bf16.gmra.mxu0 %v5232
    %v5278 = vpop.f32.mrf.mxu0
    %v5279 = vadd.f32 %v5211, %v5278
    %v5280 = vpop.f32.mrf.mxu0
    %v5281 = vadd.f32 %v5211, %v5280
    %v5282 = vpop.f32.mrf.mxu0
    %v5283 = vadd.f32 %v5216, %v5282
    %v5284 = vpop.f32.mrf.mxu0
    %v5285 = vadd.f32 %v5216, %v5284
    %5286 = vdwg.mxu0
    %5287 = vmatprep.subr.bf16.mxu0 0
    %5288 = vmatpush1.bf16.msra.mxu0 0
    %5289 = vmatprep.subr.bf16.mxu0 0
    %5290 = vmatpush1.bf16.msra.mxu0 0
    %5291 = vmatprep.subr.bf16.mxu0 0
    %5292 = vmatpush1.bf16.msra.mxu0 0
    %5293 = vmatprep.subr.bf16.mxu0 0
    %5294 = vmatpush1.bf16.msra.mxu0 0
    %5295 = vmatprep.subr.bf16.mxu0 0
    %5296 = vmatpush1.bf16.msra.mxu0 0
    %5297 = vmatprep.subr.bf16.mxu0 0
    %5298 = vmatpush1.bf16.msra.mxu0 0
    %5299 = vmatprep.subr.bf16.mxu0 %v5185
    %5300 = vmatpush1.bf16.msra.mxu0 %v5184
    %5301 = vmatprep.subr.bf16.mxu0 %v5179
    %5302 = vmatpush1.bf16.msra.mxu0 %v5178
    %5303 = vmatprep.subr.bf16.mxu0 0
    %5304 = vmatpush2.bf16.msra.mxu0 0
    %5305 = vmatprep.subr.bf16.mxu0 0
    %5306 = vmatpush2.bf16.msra.mxu0 0
    %5307 = vmatprep.subr.bf16.mxu0 0
    %5308 = vmatpush2.bf16.msra.mxu0 0
    %5309 = vmatprep.subr.bf16.mxu0 0
    %5310 = vmatpush2.bf16.msra.mxu0 0
    %5311 = vmatprep.subr.bf16.mxu0 0
    %5312 = vmatpush2.bf16.msra.mxu0 0
    %5313 = vmatprep.subr.bf16.mxu0 0
    %5314 = vmatpush2.bf16.msra.mxu0 0
    %5315 = vmatprep.subr.bf16.mxu0 0
    %5316 = vmatpush2.bf16.msra.mxu0 0
    %5317 = vmatprep.subr.bf16.mxu0 0
    %5318 = vmatpush2.bf16.msra.mxu0 0
    %5319 = vmatprep.mubr.bf16.mxu0 0
    %5320 = vmatmul.mubr.bf16.gmra.mxu0 %v5229
    %v5321 = vpop.f32.mrf.mxu0
    %v5322 = vadd.f32 %v5201, %v5321
    %v5323 = vpop.f32.mrf.mxu0
    %v5324 = vadd.f32 %v5201, %v5323
    %v5325 = vpop.f32.mrf.mxu0
    %v5326 = vadd.f32 %v5206, %v5325
    %v5327 = vpop.f32.mrf.mxu0
    %v5328 = vadd.f32 %v5206, %v5327
    %5329 = vmatprep.mubr.bf16.mxu0 0
    %5330 = vmatmul.mubr.bf16.gmra.mxu0 %v5232
    %v5331 = vpop.f32.mrf.mxu0
    %v5332 = vadd.f32 %v5211, %v5331
    %v5333 = vpop.f32.mrf.mxu0
    %v5334 = vadd.f32 %v5211, %v5333
    %v5335 = vpop.f32.mrf.mxu0
    %v5336 = vadd.f32 %v5216, %v5335
    %v5337 = vpop.f32.mrf.mxu0
    %v5338 = vadd.f32 %v5216, %v5337
    %5339 = vdwg.mxu0
    %5340 = vmatprep.subr.bf16.mxu0 0
    %5341 = vmatpush1.bf16.msra.mxu0 0
    %5342 = vmatprep.subr.bf16.mxu0 0
    %5343 = vmatpush1.bf16.msra.mxu0 0
    %5344 = vmatprep.subr.bf16.mxu0 0
    %5345 = vmatpush1.bf16.msra.mxu0 0
    %5346 = vmatprep.subr.bf16.mxu0 0
    %5347 = vmatpush1.bf16.msra.mxu0 0
    %5348 = vmatprep.subr.bf16.mxu0 0
    %5349 = vmatpush1.bf16.msra.mxu0 0
    %5350 = vmatprep.subr.bf16.mxu0 0
    %5351 = vmatpush1.bf16.msra.mxu0 0
    %5352 = vmatprep.subr.bf16.mxu0 %v5187
    %5353 = vmatpush1.bf16.msra.mxu0 %v5186
    %5354 = vmatprep.subr.bf16.mxu0 %v5181
    %5355 = vmatpush1.bf16.msra.mxu0 %v5180
    %5356 = vmatprep.subr.bf16.mxu0 0
    %5357 = vmatpush2.bf16.msra.mxu0 0
    %5358 = vmatprep.subr.bf16.mxu0 0
    %5359 = vmatpush2.bf16.msra.mxu0 0
    %5360 = vmatprep.subr.bf16.mxu0 0
    %5361 = vmatpush2.bf16.msra.mxu0 0
    %5362 = vmatprep.subr.bf16.mxu0 0
    %5363 = vmatpush2.bf16.msra.mxu0 0
    %5364 = vmatprep.subr.bf16.mxu0 0
    %5365 = vmatpush2.bf16.msra.mxu0 0
    %5366 = vmatprep.subr.bf16.mxu0 0
    %5367 = vmatpush2.bf16.msra.mxu0 0
    %5368 = vmatprep.subr.bf16.mxu0 0
    %5369 = vmatpush2.bf16.msra.mxu0 0
    %5370 = vmatprep.subr.bf16.mxu0 0
    %5371 = vmatpush2.bf16.msra.mxu0 0
    %5372 = vmatprep.mubr.bf16.mxu0 0
    %5373 = vmatmul.mubr.bf16.gmra.mxu0 %v5229
    %v5374 = vpop.f32.mrf.mxu0
    %v5375 = vadd.f32 %v5201, %v5374
    %v5376 = vpop.f32.mrf.mxu0
    %v5377 = vadd.f32 %v5201, %v5376
    %v5378 = vpop.f32.mrf.mxu0
    %v5379 = vadd.f32 %v5206, %v5378
    %v5380 = vpop.f32.mrf.mxu0
    %v5381 = vadd.f32 %v5206, %v5380
    %5382 = vmatprep.mubr.bf16.mxu0 0
    %5383 = vmatmul.mubr.bf16.gmra.mxu0 %v5232
    %v5384 = vpop.f32.mrf.mxu0
    %v5385 = vadd.f32 %v5211, %v5384
    %v5386 = vpop.f32.mrf.mxu0
    %v5387 = vadd.f32 %v5211, %v5386
    %v5388 = vpop.f32.mrf.mxu0
    %v5389 = vadd.f32 %v5216, %v5388
    %v5390 = vpop.f32.mrf.mxu0
    %v5391 = vadd.f32 %v5216, %v5390
    %5392 = vdwg.mxu0
    %s5393 = scalar_lea.vmem %s4, 96
    %v5394 = vld [vmem:[%s5393] sm:$0xf]
    %v5395 = vld [vmem:[%s5393 + $0x4] sm:$0xf]
    %v5396 = vld [vmem:[%s5393 + $0x8] sm:$0xf]
    %v5397 = vld [vmem:[%s5393 + $0xc] sm:$0xf]
    %v5398 = vpack.c.bf16 %v5273, %v5269
    %v5399 = vpack.c.bf16 %v5275, %v5271
    %v5400 = vpack.c.bf16 %v5326, %v5322
    %v5401 = vpack.c.bf16 %v5328, %v5324
    %v5402 = vpack.c.bf16 %v5379, %v5375
    %v5403 = vpack.c.bf16 %v5381, %v5377
    %v5404 = vpack.c.bf16 %v5283, %v5279
    %v5405 = vpack.c.bf16 %v5285, %v5281
    %v5406 = vpack.c.bf16 %v5336, %v5332
    %v5407 = vpack.c.bf16 %v5338, %v5334
    %v5408 = vpack.c.bf16 %v5389, %v5385
    %v5409 = vpack.c.bf16 %v5391, %v5387
    %v5410 = vld [vmem:[%s5] sm:$0xf]
    %v5411 = vld [vmem:[%s5 + $0x4] sm:$0xf]
    %v5412 = vld [vmem:[%s5 + $0x8] sm:$0xf]
    %v5413 = vld [vmem:[%s5 + $0xc] sm:$0xf]
    %v5414 = vld [vmem:[%s1] sm:$0xff]
    %v5415 = vld [vmem:[%s1 + $0x8] sm:$0xff]
    %v5416 = vld [vmem:[%s1 + $0x10] sm:$0xff]
    %v5417 = vld [vmem:[%s1 + $0x18] sm:$0xff]
    %v5418 = vld [vmem:[%s1 + $0x20] sm:$0xff]
    %v5419 = vld [vmem:[%s1 + $0x28] sm:$0xff]
    %v5424 = vunpack.c.l.b16 %v5410
    %v5425 = vunpack.c.l.b16 %v5411
    %v5426 = vunpack.c.l.b16 %v5412
    %v5427 = vunpack.c.l.b16 %v5413
    %v5428 = vpack.c.b16 %v5425, %v5424
    %v5429 = vpack.c.b16 %v5427, %v5426
    %v5436 = vunpack.c.l.b16 %v5414
    %v5437 = vunpack.c.h.b16 %v5414
    %v5438 = vunpack.c.l.b16 %v5415
    %v5439 = vunpack.c.h.b16 %v5415
    %v5440 = vunpack.c.l.b16 %v5416
    %v5441 = vunpack.c.h.b16 %v5416
    %v5442 = vunpack.c.l.b16 %v5417
    %v5443 = vunpack.c.h.b16 %v5417
    %v5444 = vunpack.c.l.b16 %v5418
    %v5445 = vunpack.c.h.b16 %v5418
    %v5446 = vunpack.c.l.b16 %v5419
    %v5447 = vunpack.c.h.b16 %v5419
    %v5448 = vpack.c.b16 %v5442, %v5436
    %v5449 = vpack.c.b16 %v5443, %v5437
    %v5450 = vpack.c.b16 %v5444, %v5438
    %v5451 = vpack.c.b16 %v5445, %v5439
    %v5452 = vpack.c.b16 %v5446, %v5440
    %v5453 = vpack.c.b16 %v5447, %v5441
    %vm5460 = vcmask 130048
    %v5462 = vsel %vm5460, %v5428, 0
    %v5465 = vsel %vm5460, %v5429, 0
    %5467 = vmatprep.subr.bf16.mxu0 0
    %5468 = vmatpush1.bf16.msra.mxu0 0
    %5469 = vmatprep.subr.bf16.mxu0 0
    %5470 = vmatpush1.bf16.msra.mxu0 0
    %5471 = vmatprep.subr.bf16.mxu0 0
    %5472 = vmatpush1.bf16.msra.mxu0 0
    %5473 = vmatprep.subr.bf16.mxu0 0
    %5474 = vmatpush1.bf16.msra.mxu0 0
    %5475 = vmatprep.subr.bf16.mxu0 0
    %5476 = vmatpush1.bf16.msra.mxu0 0
    %5477 = vmatprep.subr.bf16.mxu0 0
    %5478 = vmatpush1.bf16.msra.mxu0 0
    %5479 = vmatprep.subr.bf16.mxu0 0
    %5480 = vmatpush1.bf16.msra.mxu0 0
    %5481 = vmatprep.subr.bf16.mxu0 %v5449
    %5482 = vmatpush1.bf16.msra.mxu0 %v5448
    %5483 = vmatprep.subr.bf16.mxu0 0
    %5484 = vmatpush2.bf16.msra.mxu0 0
    %5485 = vmatprep.subr.bf16.mxu0 0
    %5486 = vmatpush2.bf16.msra.mxu0 0
    %5487 = vmatprep.subr.bf16.mxu0 0
    %5488 = vmatpush2.bf16.msra.mxu0 0
    %5489 = vmatprep.subr.bf16.mxu0 0
    %5490 = vmatpush2.bf16.msra.mxu0 0
    %5491 = vmatprep.subr.bf16.mxu0 0
    %5492 = vmatpush2.bf16.msra.mxu0 0
    %5493 = vmatprep.subr.bf16.mxu0 0
    %5494 = vmatpush2.bf16.msra.mxu0 0
    %5495 = vmatprep.subr.bf16.mxu0 0
    %5496 = vmatpush2.bf16.msra.mxu0 0
    %5497 = vmatprep.subr.bf16.mxu0 0
    %5498 = vmatpush2.bf16.msra.mxu0 0
    %5499 = vmatprep.mubr.bf16.mxu0 0
    %5500 = vmatmul.mubr.bf16.gmra.mxu0 %v5462
    %v5501 = vpop.f32.mrf.mxu0
    %v5502 = vadd.f32 0.0, %v5501
    %v5503 = vpop.f32.mrf.mxu0
    %v5504 = vadd.f32 0.0, %v5503
    %v5505 = vpop.f32.mrf.mxu0
    %v5506 = vadd.f32 0.0, %v5505
    %v5507 = vpop.f32.mrf.mxu0
    %v5508 = vadd.f32 0.0, %v5507
    %5509 = vmatprep.mubr.bf16.mxu0 0
    %5510 = vmatmul.mubr.bf16.gmra.mxu0 %v5465
    %v5511 = vpop.f32.mrf.mxu0
    %v5512 = vadd.f32 0.0, %v5511
    %v5513 = vpop.f32.mrf.mxu0
    %v5514 = vadd.f32 0.0, %v5513
    %v5515 = vpop.f32.mrf.mxu0
    %v5516 = vadd.f32 0.0, %v5515
    %v5517 = vpop.f32.mrf.mxu0
    %v5518 = vadd.f32 0.0, %v5517
    %5519 = vdwg.mxu0
    %5520 = vmatprep.subr.bf16.mxu0 0
    %5521 = vmatpush1.bf16.msra.mxu0 0
    %5522 = vmatprep.subr.bf16.mxu0 0
    %5523 = vmatpush1.bf16.msra.mxu0 0
    %5524 = vmatprep.subr.bf16.mxu0 0
    %5525 = vmatpush1.bf16.msra.mxu0 0
    %5526 = vmatprep.subr.bf16.mxu0 0
    %5527 = vmatpush1.bf16.msra.mxu0 0
    %5528 = vmatprep.subr.bf16.mxu0 0
    %5529 = vmatpush1.bf16.msra.mxu0 0
    %5530 = vmatprep.subr.bf16.mxu0 0
    %5531 = vmatpush1.bf16.msra.mxu0 0
    %5532 = vmatprep.subr.bf16.mxu0 0
    %5533 = vmatpush1.bf16.msra.mxu0 0
    %5534 = vmatprep.subr.bf16.mxu0 %v5451
    %5535 = vmatpush1.bf16.msra.mxu0 %v5450
    %5536 = vmatprep.subr.bf16.mxu0 0
    %5537 = vmatpush2.bf16.msra.mxu0 0
    %5538 = vmatprep.subr.bf16.mxu0 0
    %5539 = vmatpush2.bf16.msra.mxu0 0
    %5540 = vmatprep.subr.bf16.mxu0 0
    %5541 = vmatpush2.bf16.msra.mxu0 0
    %5542 = vmatprep.subr.bf16.mxu0 0
    %5543 = vmatpush2.bf16.msra.mxu0 0
    %5544 = vmatprep.subr.bf16.mxu0 0
    %5545 = vmatpush2.bf16.msra.mxu0 0
    %5546 = vmatprep.subr.bf16.mxu0 0
    %5547 = vmatpush2.bf16.msra.mxu0 0
    %5548 = vmatprep.subr.bf16.mxu0 0
    %5549 = vmatpush2.bf16.msra.mxu0 0
    %5550 = vmatprep.subr.bf16.mxu0 0
    %5551 = vmatpush2.bf16.msra.mxu0 0
    %5552 = vmatprep.mubr.bf16.mxu0 0
    %5553 = vmatmul.mubr.bf16.gmra.mxu0 %v5462
    %v5554 = vpop.f32.mrf.mxu0
    %v5555 = vadd.f32 0.0, %v5554
    %v5556 = vpop.f32.mrf.mxu0
    %v5557 = vadd.f32 0.0, %v5556
    %v5558 = vpop.f32.mrf.mxu0
    %v5559 = vadd.f32 0.0, %v5558
    %v5560 = vpop.f32.mrf.mxu0
    %v5561 = vadd.f32 0.0, %v5560
    %5562 = vmatprep.mubr.bf16.mxu0 0
    %5563 = vmatmul.mubr.bf16.gmra.mxu0 %v5465
    %v5564 = vpop.f32.mrf.mxu0
    %v5565 = vadd.f32 0.0, %v5564
    %v5566 = vpop.f32.mrf.mxu0
    %v5567 = vadd.f32 0.0, %v5566
    %v5568 = vpop.f32.mrf.mxu0
    %v5569 = vadd.f32 0.0, %v5568
    %v5570 = vpop.f32.mrf.mxu0
    %v5571 = vadd.f32 0.0, %v5570
    %5572 = vdwg.mxu0
    %5573 = vmatprep.subr.bf16.mxu0 0
    %5574 = vmatpush1.bf16.msra.mxu0 0
    %5575 = vmatprep.subr.bf16.mxu0 0
    %5576 = vmatpush1.bf16.msra.mxu0 0
    %5577 = vmatprep.subr.bf16.mxu0 0
    %5578 = vmatpush1.bf16.msra.mxu0 0
    %5579 = vmatprep.subr.bf16.mxu0 0
    %5580 = vmatpush1.bf16.msra.mxu0 0
    %5581 = vmatprep.subr.bf16.mxu0 0
    %5582 = vmatpush1.bf16.msra.mxu0 0
    %5583 = vmatprep.subr.bf16.mxu0 0
    %5584 = vmatpush1.bf16.msra.mxu0 0
    %5585 = vmatprep.subr.bf16.mxu0 0
    %5586 = vmatpush1.bf16.msra.mxu0 0
    %5587 = vmatprep.subr.bf16.mxu0 %v5453
    %5588 = vmatpush1.bf16.msra.mxu0 %v5452
    %5589 = vmatprep.subr.bf16.mxu0 0
    %5590 = vmatpush2.bf16.msra.mxu0 0
    %5591 = vmatprep.subr.bf16.mxu0 0
    %5592 = vmatpush2.bf16.msra.mxu0 0
    %5593 = vmatprep.subr.bf16.mxu0 0
    %5594 = vmatpush2.bf16.msra.mxu0 0
    %5595 = vmatprep.subr.bf16.mxu0 0
    %5596 = vmatpush2.bf16.msra.mxu0 0
    %5597 = vmatprep.subr.bf16.mxu0 0
    %5598 = vmatpush2.bf16.msra.mxu0 0
    %5599 = vmatprep.subr.bf16.mxu0 0
    %5600 = vmatpush2.bf16.msra.mxu0 0
    %5601 = vmatprep.subr.bf16.mxu0 0
    %5602 = vmatpush2.bf16.msra.mxu0 0
    %5603 = vmatprep.subr.bf16.mxu0 0
    %5604 = vmatpush2.bf16.msra.mxu0 0
    %5605 = vmatprep.mubr.bf16.mxu0 0
    %5606 = vmatmul.mubr.bf16.gmra.mxu0 %v5462
    %v5607 = vpop.f32.mrf.mxu0
    %v5608 = vadd.f32 0.0, %v5607
    %v5609 = vpop.f32.mrf.mxu0
    %v5610 = vadd.f32 0.0, %v5609
    %v5611 = vpop.f32.mrf.mxu0
    %v5612 = vadd.f32 0.0, %v5611
    %v5613 = vpop.f32.mrf.mxu0
    %v5614 = vadd.f32 0.0, %v5613
    %5615 = vmatprep.mubr.bf16.mxu0 0
    %5616 = vmatmul.mubr.bf16.gmra.mxu0 %v5465
    %v5617 = vpop.f32.mrf.mxu0
    %v5618 = vadd.f32 0.0, %v5617
    %v5619 = vpop.f32.mrf.mxu0
    %v5620 = vadd.f32 0.0, %v5619
    %v5621 = vpop.f32.mrf.mxu0
    %v5622 = vadd.f32 0.0, %v5621
    %v5623 = vpop.f32.mrf.mxu0
    %v5624 = vadd.f32 0.0, %v5623
    %5625 = vdwg.mxu0
    %v5630 = vunpack.c.l.b16 %v5394
    %v5631 = vunpack.c.l.b16 %v5395
    %v5632 = vunpack.c.l.b16 %v5396
    %v5633 = vunpack.c.l.b16 %v5397
    %v5634 = vpack.c.b16 %v5631, %v5630
    %v5635 = vpack.c.b16 %v5633, %v5632
    %v5637 = vsel %vm3614, %v5634, 0
    %v5640 = vsel %vm3614, %v5635, 0
    %5642 = vmatprep.subr.bf16.mxu0 0
    %5643 = vmatpush1.bf16.msra.mxu0 0
    %5644 = vmatprep.subr.bf16.mxu0 0
    %5645 = vmatpush1.bf16.msra.mxu0 0
    %5646 = vmatprep.subr.bf16.mxu0 0
    %5647 = vmatpush1.bf16.msra.mxu0 0
    %5648 = vmatprep.subr.bf16.mxu0 0
    %5649 = vmatpush1.bf16.msra.mxu0 0
    %5650 = vmatprep.subr.bf16.mxu0 0
    %5651 = vmatpush1.bf16.msra.mxu0 0
    %5652 = vmatprep.subr.bf16.mxu0 0
    %5653 = vmatpush1.bf16.msra.mxu0 0
    %5654 = vmatprep.subr.bf16.mxu0 %v5405
    %5655 = vmatpush1.bf16.msra.mxu0 %v5404
    %5656 = vmatprep.subr.bf16.mxu0 %v5399
    %5657 = vmatpush1.bf16.msra.mxu0 %v5398
    %5658 = vmatprep.subr.bf16.mxu0 0
    %5659 = vmatpush2.bf16.msra.mxu0 0
    %5660 = vmatprep.subr.bf16.mxu0 0
    %5661 = vmatpush2.bf16.msra.mxu0 0
    %5662 = vmatprep.subr.bf16.mxu0 0
    %5663 = vmatpush2.bf16.msra.mxu0 0
    %5664 = vmatprep.subr.bf16.mxu0 0
    %5665 = vmatpush2.bf16.msra.mxu0 0
    %5666 = vmatprep.subr.bf16.mxu0 0
    %5667 = vmatpush2.bf16.msra.mxu0 0
    %5668 = vmatprep.subr.bf16.mxu0 0
    %5669 = vmatpush2.bf16.msra.mxu0 0
    %5670 = vmatprep.subr.bf16.mxu0 0
    %5671 = vmatpush2.bf16.msra.mxu0 0
    %5672 = vmatprep.subr.bf16.mxu0 0
    %5673 = vmatpush2.bf16.msra.mxu0 0
    %5674 = vmatprep.mubr.bf16.mxu0 0
    %5675 = vmatmul.mubr.bf16.gmra.mxu0 %v5637
    %v5676 = vpop.f32.mrf.mxu0
    %v5677 = vadd.f32 %v5502, %v5676
    %v5678 = vpop.f32.mrf.mxu0
    %v5679 = vadd.f32 %v5504, %v5678
    %v5680 = vpop.f32.mrf.mxu0
    %v5681 = vadd.f32 %v5506, %v5680
    %v5682 = vpop.f32.mrf.mxu0
    %v5683 = vadd.f32 %v5508, %v5682
    %5684 = vmatprep.mubr.bf16.mxu0 0
    %5685 = vmatmul.mubr.bf16.gmra.mxu0 %v5640
    %v5686 = vpop.f32.mrf.mxu0
    %v5687 = vadd.f32 %v5512, %v5686
    %v5688 = vpop.f32.mrf.mxu0
    %v5689 = vadd.f32 %v5514, %v5688
    %v5690 = vpop.f32.mrf.mxu0
    %v5691 = vadd.f32 %v5516, %v5690
    %v5692 = vpop.f32.mrf.mxu0
    %v5693 = vadd.f32 %v5518, %v5692
    %5694 = vdwg.mxu0
    %5695 = vmatprep.subr.bf16.mxu0 0
    %5696 = vmatpush1.bf16.msra.mxu0 0
    %5697 = vmatprep.subr.bf16.mxu0 0
    %5698 = vmatpush1.bf16.msra.mxu0 0
    %5699 = vmatprep.subr.bf16.mxu0 0
    %5700 = vmatpush1.bf16.msra.mxu0 0
    %5701 = vmatprep.subr.bf16.mxu0 0
    %5702 = vmatpush1.bf16.msra.mxu0 0
    %5703 = vmatprep.subr.bf16.mxu0 0
    %5704 = vmatpush1.bf16.msra.mxu0 0
    %5705 = vmatprep.subr.bf16.mxu0 0
    %5706 = vmatpush1.bf16.msra.mxu0 0
    %5707 = vmatprep.subr.bf16.mxu0 %v5407
    %5708 = vmatpush1.bf16.msra.mxu0 %v5406
    %5709 = vmatprep.subr.bf16.mxu0 %v5401
    %5710 = vmatpush1.bf16.msra.mxu0 %v5400
    %5711 = vmatprep.subr.bf16.mxu0 0
    %5712 = vmatpush2.bf16.msra.mxu0 0
    %5713 = vmatprep.subr.bf16.mxu0 0
    %5714 = vmatpush2.bf16.msra.mxu0 0
    %5715 = vmatprep.subr.bf16.mxu0 0
    %5716 = vmatpush2.bf16.msra.mxu0 0
    %5717 = vmatprep.subr.bf16.mxu0 0
    %5718 = vmatpush2.bf16.msra.mxu0 0
    %5719 = vmatprep.subr.bf16.mxu0 0
    %5720 = vmatpush2.bf16.msra.mxu0 0
    %5721 = vmatprep.subr.bf16.mxu0 0
    %5722 = vmatpush2.bf16.msra.mxu0 0
    %5723 = vmatprep.subr.bf16.mxu0 0
    %5724 = vmatpush2.bf16.msra.mxu0 0
    %5725 = vmatprep.subr.bf16.mxu0 0
    %5726 = vmatpush2.bf16.msra.mxu0 0
    %5727 = vmatprep.mubr.bf16.mxu0 0
    %5728 = vmatmul.mubr.bf16.gmra.mxu0 %v5637
    %v5729 = vpop.f32.mrf.mxu0
    %v5730 = vadd.f32 %v5555, %v5729
    %v5731 = vpop.f32.mrf.mxu0
    %v5732 = vadd.f32 %v5557, %v5731
    %v5733 = vpop.f32.mrf.mxu0
    %v5734 = vadd.f32 %v5559, %v5733
    %v5735 = vpop.f32.mrf.mxu0
    %v5736 = vadd.f32 %v5561, %v5735
    %5737 = vmatprep.mubr.bf16.mxu0 0
    %5738 = vmatmul.mubr.bf16.gmra.mxu0 %v5640
    %v5739 = vpop.f32.mrf.mxu0
    %v5740 = vadd.f32 %v5565, %v5739
    %v5741 = vpop.f32.mrf.mxu0
    %v5742 = vadd.f32 %v5567, %v5741
    %v5743 = vpop.f32.mrf.mxu0
    %v5744 = vadd.f32 %v5569, %v5743
    %v5745 = vpop.f32.mrf.mxu0
    %v5746 = vadd.f32 %v5571, %v5745
    %5747 = vdwg.mxu0
    %5748 = vmatprep.subr.bf16.mxu0 0
    %5749 = vmatpush1.bf16.msra.mxu0 0
    %5750 = vmatprep.subr.bf16.mxu0 0
    %5751 = vmatpush1.bf16.msra.mxu0 0
    %5752 = vmatprep.subr.bf16.mxu0 0
    %5753 = vmatpush1.bf16.msra.mxu0 0
    %5754 = vmatprep.subr.bf16.mxu0 0
    %5755 = vmatpush1.bf16.msra.mxu0 0
    %5756 = vmatprep.subr.bf16.mxu0 0
    %5757 = vmatpush1.bf16.msra.mxu0 0
    %5758 = vmatprep.subr.bf16.mxu0 0
    %5759 = vmatpush1.bf16.msra.mxu0 0
    %5760 = vmatprep.subr.bf16.mxu0 %v5409
    %5761 = vmatpush1.bf16.msra.mxu0 %v5408
    %5762 = vmatprep.subr.bf16.mxu0 %v5403
    %5763 = vmatpush1.bf16.msra.mxu0 %v5402
    %5764 = vmatprep.subr.bf16.mxu0 0
    %5765 = vmatpush2.bf16.msra.mxu0 0
    %5766 = vmatprep.subr.bf16.mxu0 0
    %5767 = vmatpush2.bf16.msra.mxu0 0
    %5768 = vmatprep.subr.bf16.mxu0 0
    %5769 = vmatpush2.bf16.msra.mxu0 0
    %5770 = vmatprep.subr.bf16.mxu0 0
    %5771 = vmatpush2.bf16.msra.mxu0 0
    %5772 = vmatprep.subr.bf16.mxu0 0
    %5773 = vmatpush2.bf16.msra.mxu0 0
    %5774 = vmatprep.subr.bf16.mxu0 0
    %5775 = vmatpush2.bf16.msra.mxu0 0
    %5776 = vmatprep.subr.bf16.mxu0 0
    %5777 = vmatpush2.bf16.msra.mxu0 0
    %5778 = vmatprep.subr.bf16.mxu0 0
    %5779 = vmatpush2.bf16.msra.mxu0 0
    %5780 = vmatprep.mubr.bf16.mxu0 0
    %5781 = vmatmul.mubr.bf16.gmra.mxu0 %v5637
    %v5782 = vpop.f32.mrf.mxu0
    %v5783 = vadd.f32 %v5608, %v5782
    %v5784 = vpop.f32.mrf.mxu0
    %v5785 = vadd.f32 %v5610, %v5784
    %v5786 = vpop.f32.mrf.mxu0
    %v5787 = vadd.f32 %v5612, %v5786
    %v5788 = vpop.f32.mrf.mxu0
    %v5789 = vadd.f32 %v5614, %v5788
    %5790 = vmatprep.mubr.bf16.mxu0 0
    %5791 = vmatmul.mubr.bf16.gmra.mxu0 %v5640
    %v5792 = vpop.f32.mrf.mxu0
    %v5793 = vadd.f32 %v5618, %v5792
    %v5794 = vpop.f32.mrf.mxu0
    %v5795 = vadd.f32 %v5620, %v5794
    %v5796 = vpop.f32.mrf.mxu0
    %v5797 = vadd.f32 %v5622, %v5796
    %v5798 = vpop.f32.mrf.mxu0
    %v5799 = vadd.f32 %v5624, %v5798
    %5800 = vdwg.mxu0
    %s5801 = scalar_lea.vmem %s7, 224
    %v5802 = vld [vmem:[%s5801] sm:$0xff]
    %v5803 = vld [vmem:[%s5801 + $0x8] sm:$0xff]
    %v5804 = vld [vmem:[%s5801 + $0x10] sm:$0xff]
    %v5805 = vld [vmem:[%s5801 + $0x18] sm:$0xff]
    %5807 = vset.pattern.permute.xlu0 0
    %5808 = vperm.xlu0 %5807, %v5802
    %v5809 = vpop.permute.xlu0 %5808
    %5812 = vset.pattern.permute.xlu0 0
    %5813 = vperm.xlu0 %5812, %v5803
    %v5814 = vpop.permute.xlu0 %5813
    %5817 = vset.pattern.permute.xlu0 0
    %5818 = vperm.xlu0 %5817, %v5804
    %v5819 = vpop.permute.xlu0 %5818
    %5822 = vset.pattern.permute.xlu0 0
    %5823 = vperm.xlu0 %5822, %v5805
    %v5824 = vpop.permute.xlu0 %5823
    %v5826 = vadd.f32 %v5677, %v5809
    %v5827 = vadd.f32 %v5679, %v5809
    %v5828 = vadd.f32 %v5730, %v5809
    %v5829 = vadd.f32 %v5732, %v5809
    %v5830 = vadd.f32 %v5783, %v5809
    %v5831 = vadd.f32 %v5785, %v5809
    %v5832 = vadd.f32 %v5681, %v5814
    %v5833 = vadd.f32 %v5683, %v5814
    %v5834 = vadd.f32 %v5734, %v5814
    %v5835 = vadd.f32 %v5736, %v5814
    %v5836 = vadd.f32 %v5787, %v5814
    %v5837 = vadd.f32 %v5789, %v5814
    %v5838 = vadd.f32 %v5687, %v5819
    %v5839 = vadd.f32 %v5689, %v5819
    %v5840 = vadd.f32 %v5740, %v5819
    %v5841 = vadd.f32 %v5742, %v5819
    %v5842 = vadd.f32 %v5793, %v5819
    %v5843 = vadd.f32 %v5795, %v5819
    %v5844 = vadd.f32 %v5691, %v5824
    %v5845 = vadd.f32 %v5693, %v5824
    %v5846 = vadd.f32 %v5744, %v5824
    %v5847 = vadd.f32 %v5746, %v5824
    %v5848 = vadd.f32 %v5797, %v5824
    %v5849 = vadd.f32 %v5799, %v5824
    %v5850 = vmax.f32 %v5826, 0.0
    %v5851 = vmax.f32 %v5827, 0.0
    %v5852 = vmax.f32 %v5828, 0.0
    %v5853 = vmax.f32 %v5829, 0.0
    %v5854 = vmax.f32 %v5830, 0.0
    %v5855 = vmax.f32 %v5831, 0.0
    %v5856 = vmax.f32 %v5832, 0.0
    %v5857 = vmax.f32 %v5833, 0.0
    %v5858 = vmax.f32 %v5834, 0.0
    %v5859 = vmax.f32 %v5835, 0.0
    %v5860 = vmax.f32 %v5836, 0.0
    %v5861 = vmax.f32 %v5837, 0.0
    %v5862 = vmax.f32 %v5838, 0.0
    %v5863 = vmax.f32 %v5839, 0.0
    %v5864 = vmax.f32 %v5840, 0.0
    %v5865 = vmax.f32 %v5841, 0.0
    %v5866 = vmax.f32 %v5842, 0.0
    %v5867 = vmax.f32 %v5843, 0.0
    %v5868 = vmax.f32 %v5844, 0.0
    %v5869 = vmax.f32 %v5845, 0.0
    %v5870 = vmax.f32 %v5846, 0.0
    %v5871 = vmax.f32 %v5847, 0.0
    %v5872 = vmax.f32 %v5848, 0.0
    %v5873 = vmax.f32 %v5849, 0.0
    %v5874 = vld [vmem:[%s6] sm:$0x3]
    %v5875 = vpack.c.bf16 %v5856, %v5850
    %v5876 = vpack.c.bf16 %v5857, %v5851
    %v5877 = vpack.c.bf16 %v5858, %v5852
    %v5878 = vpack.c.bf16 %v5859, %v5853
    %v5879 = vpack.c.bf16 %v5860, %v5854
    %v5880 = vpack.c.bf16 %v5861, %v5855
    %v5881 = vpack.c.bf16 %v5868, %v5862
    %v5882 = vpack.c.bf16 %v5869, %v5863
    %v5883 = vpack.c.bf16 %v5870, %v5864
    %v5884 = vpack.c.bf16 %v5871, %v5865
    %v5885 = vpack.c.bf16 %v5872, %v5866
    %v5886 = vpack.c.bf16 %v5873, %v5867
    %s5887 = scalar_lea.vmem %s6, 2
    %v5888 = vld [vmem:[%s5887] sm:$0x3]
    %v5890 = vsel %vm3614, %v5888, 0
    %5892 = vmatprep.subr.bf16.mxu0 0
    %5893 = vmatpush1.bf16.msra.mxu0 0
    %5894 = vmatprep.subr.bf16.mxu0 0
    %5895 = vmatpush1.bf16.msra.mxu0 0
    %5896 = vmatprep.subr.bf16.mxu0 0
    %5897 = vmatpush1.bf16.msra.mxu0 0
    %5898 = vmatprep.subr.bf16.mxu0 0
    %5899 = vmatpush1.bf16.msra.mxu0 0
    %5900 = vmatprep.subr.bf16.mxu0 0
    %5901 = vmatpush1.bf16.msra.mxu0 0
    %5902 = vmatprep.subr.bf16.mxu0 0
    %5903 = vmatpush1.bf16.msra.mxu0 0
    %5904 = vmatprep.subr.bf16.mxu0 %v5183
    %5905 = vmatpush1.bf16.msra.mxu0 %v5182
    %5906 = vmatprep.subr.bf16.mxu0 %v5177
    %5907 = vmatpush1.bf16.msra.mxu0 %v5176
    %5908 = vmatprep.subr.bf16.mxu0 0
    %5909 = vmatpush2.bf16.msra.mxu0 0
    %5910 = vmatprep.subr.bf16.mxu0 0
    %5911 = vmatpush2.bf16.msra.mxu0 0
    %5912 = vmatprep.subr.bf16.mxu0 0
    %5913 = vmatpush2.bf16.msra.mxu0 0
    %5914 = vmatprep.subr.bf16.mxu0 0
    %5915 = vmatpush2.bf16.msra.mxu0 0
    %5916 = vmatprep.subr.bf16.mxu0 0
    %5917 = vmatpush2.bf16.msra.mxu0 0
    %5918 = vmatprep.subr.bf16.mxu0 0
    %5919 = vmatpush2.bf16.msra.mxu0 0
    %5920 = vmatprep.subr.bf16.mxu0 0
    %5921 = vmatpush2.bf16.msra.mxu0 0
    %5922 = vmatprep.subr.bf16.mxu0 0
    %5923 = vmatpush2.bf16.msra.mxu0 0
    %5924 = vmatprep.mubr.bf16.mxu0 0
    %5925 = vmatmul.mubr.bf16.gmra.mxu0 %v5890
    %v5926 = vpop.f32.mrf.mxu0
    %v5927 = vadd.f32 0.0, %v5926
    %v5928 = vpop.f32.mrf.mxu0
    %v5929 = vadd.f32 0.0, %v5928
    %v5930 = vpop.f32.mrf.mxu0
    %v5931 = vpop.f32.mrf.mxu0
    %5932 = vdwg.mxu0
    %5933 = vmatprep.subr.bf16.mxu0 0
    %5934 = vmatpush1.bf16.msra.mxu0 0
    %5935 = vmatprep.subr.bf16.mxu0 0
    %5936 = vmatpush1.bf16.msra.mxu0 0
    %5937 = vmatprep.subr.bf16.mxu0 0
    %5938 = vmatpush1.bf16.msra.mxu0 0
    %5939 = vmatprep.subr.bf16.mxu0 0
    %5940 = vmatpush1.bf16.msra.mxu0 0
    %5941 = vmatprep.subr.bf16.mxu0 0
    %5942 = vmatpush1.bf16.msra.mxu0 0
    %5943 = vmatprep.subr.bf16.mxu0 0
    %5944 = vmatpush1.bf16.msra.mxu0 0
    %5945 = vmatprep.subr.bf16.mxu0 %v5185
    %5946 = vmatpush1.bf16.msra.mxu0 %v5184
    %5947 = vmatprep.subr.bf16.mxu0 %v5179
    %5948 = vmatpush1.bf16.msra.mxu0 %v5178
    %5949 = vmatprep.subr.bf16.mxu0 0
    %5950 = vmatpush2.bf16.msra.mxu0 0
    %5951 = vmatprep.subr.bf16.mxu0 0
    %5952 = vmatpush2.bf16.msra.mxu0 0
    %5953 = vmatprep.subr.bf16.mxu0 0
    %5954 = vmatpush2.bf16.msra.mxu0 0
    %5955 = vmatprep.subr.bf16.mxu0 0
    %5956 = vmatpush2.bf16.msra.mxu0 0
    %5957 = vmatprep.subr.bf16.mxu0 0
    %5958 = vmatpush2.bf16.msra.mxu0 0
    %5959 = vmatprep.subr.bf16.mxu0 0
    %5960 = vmatpush2.bf16.msra.mxu0 0
    %5961 = vmatprep.subr.bf16.mxu0 0
    %5962 = vmatpush2.bf16.msra.mxu0 0
    %5963 = vmatprep.subr.bf16.mxu0 0
    %5964 = vmatpush2.bf16.msra.mxu0 0
    %5965 = vmatprep.mubr.bf16.mxu0 0
    %5966 = vmatmul.mubr.bf16.gmra.mxu0 %v5890
    %v5967 = vpop.f32.mrf.mxu0
    %v5968 = vadd.f32 0.0, %v5967
    %v5969 = vpop.f32.mrf.mxu0
    %v5970 = vadd.f32 0.0, %v5969
    %v5971 = vpop.f32.mrf.mxu0
    %v5972 = vpop.f32.mrf.mxu0
    %5973 = vdwg.mxu0
    %5974 = vmatprep.subr.bf16.mxu0 0
    %5975 = vmatpush1.bf16.msra.mxu0 0
    %5976 = vmatprep.subr.bf16.mxu0 0
    %5977 = vmatpush1.bf16.msra.mxu0 0
    %5978 = vmatprep.subr.bf16.mxu0 0
    %5979 = vmatpush1.bf16.msra.mxu0 0
    %5980 = vmatprep.subr.bf16.mxu0 0
    %5981 = vmatpush1.bf16.msra.mxu0 0
    %5982 = vmatprep.subr.bf16.mxu0 0
    %5983 = vmatpush1.bf16.msra.mxu0 0
    %5984 = vmatprep.subr.bf16.mxu0 0
    %5985 = vmatpush1.bf16.msra.mxu0 0
    %5986 = vmatprep.subr.bf16.mxu0 %v5187
    %5987 = vmatpush1.bf16.msra.mxu0 %v5186
    %5988 = vmatprep.subr.bf16.mxu0 %v5181
    %5989 = vmatpush1.bf16.msra.mxu0 %v5180
    %5990 = vmatprep.subr.bf16.mxu0 0
    %5991 = vmatpush2.bf16.msra.mxu0 0
    %5992 = vmatprep.subr.bf16.mxu0 0
    %5993 = vmatpush2.bf16.msra.mxu0 0
    %5994 = vmatprep.subr.bf16.mxu0 0
    %5995 = vmatpush2.bf16.msra.mxu0 0
    %5996 = vmatprep.subr.bf16.mxu0 0
    %5997 = vmatpush2.bf16.msra.mxu0 0
    %5998 = vmatprep.subr.bf16.mxu0 0
    %5999 = vmatpush2.bf16.msra.mxu0 0
    %6000 = vmatprep.subr.bf16.mxu0 0
    %6001 = vmatpush2.bf16.msra.mxu0 0
    %6002 = vmatprep.subr.bf16.mxu0 0
    %6003 = vmatpush2.bf16.msra.mxu0 0
    %6004 = vmatprep.subr.bf16.mxu0 0
    %6005 = vmatpush2.bf16.msra.mxu0 0
    %6006 = vmatprep.mubr.bf16.mxu0 0
    %6007 = vmatmul.mubr.bf16.gmra.mxu0 %v5890
    %v6008 = vpop.f32.mrf.mxu0
    %v6009 = vadd.f32 0.0, %v6008
    %v6010 = vpop.f32.mrf.mxu0
    %v6011 = vadd.f32 0.0, %v6010
    %v6012 = vpop.f32.mrf.mxu0
    %v6013 = vpop.f32.mrf.mxu0
    %6014 = vdwg.mxu0
    %v6016 = vsel %vm3614, %v5874, 0
    %6018 = vmatprep.subr.bf16.mxu0 0
    %6019 = vmatpush1.bf16.msra.mxu0 0
    %6020 = vmatprep.subr.bf16.mxu0 0
    %6021 = vmatpush1.bf16.msra.mxu0 0
    %6022 = vmatprep.subr.bf16.mxu0 0
    %6023 = vmatpush1.bf16.msra.mxu0 0
    %6024 = vmatprep.subr.bf16.mxu0 0
    %6025 = vmatpush1.bf16.msra.mxu0 0
    %6026 = vmatprep.subr.bf16.mxu0 0
    %6027 = vmatpush1.bf16.msra.mxu0 0
    %6028 = vmatprep.subr.bf16.mxu0 0
    %6029 = vmatpush1.bf16.msra.mxu0 0
    %6030 = vmatprep.subr.bf16.mxu0 %v5882
    %6031 = vmatpush1.bf16.msra.mxu0 %v5881
    %6032 = vmatprep.subr.bf16.mxu0 %v5876
    %6033 = vmatpush1.bf16.msra.mxu0 %v5875
    %6034 = vmatprep.subr.bf16.mxu0 0
    %6035 = vmatpush2.bf16.msra.mxu0 0
    %6036 = vmatprep.subr.bf16.mxu0 0
    %6037 = vmatpush2.bf16.msra.mxu0 0
    %6038 = vmatprep.subr.bf16.mxu0 0
    %6039 = vmatpush2.bf16.msra.mxu0 0
    %6040 = vmatprep.subr.bf16.mxu0 0
    %6041 = vmatpush2.bf16.msra.mxu0 0
    %6042 = vmatprep.subr.bf16.mxu0 0
    %6043 = vmatpush2.bf16.msra.mxu0 0
    %6044 = vmatprep.subr.bf16.mxu0 0
    %6045 = vmatpush2.bf16.msra.mxu0 0
    %6046 = vmatprep.subr.bf16.mxu0 0
    %6047 = vmatpush2.bf16.msra.mxu0 0
    %6048 = vmatprep.subr.bf16.mxu0 0
    %6049 = vmatpush2.bf16.msra.mxu0 0
    %6050 = vmatprep.mubr.bf16.mxu0 0
    %6051 = vmatmul.mubr.bf16.gmra.mxu0 %v6016
    %v6052 = vpop.f32.mrf.mxu0
    %v6053 = vadd.f32 %v5927, %v6052
    %v6054 = vpop.f32.mrf.mxu0
    %v6055 = vadd.f32 %v5929, %v6054
    %v6056 = vpop.f32.mrf.mxu0
    %v6057 = vpop.f32.mrf.mxu0
    %6058 = vdwg.mxu0
    %6059 = vmatprep.subr.bf16.mxu0 0
    %6060 = vmatpush1.bf16.msra.mxu0 0
    %6061 = vmatprep.subr.bf16.mxu0 0
    %6062 = vmatpush1.bf16.msra.mxu0 0
    %6063 = vmatprep.subr.bf16.mxu0 0
    %6064 = vmatpush1.bf16.msra.mxu0 0
    %6065 = vmatprep.subr.bf16.mxu0 0
    %6066 = vmatpush1.bf16.msra.mxu0 0
    %6067 = vmatprep.subr.bf16.mxu0 0
    %6068 = vmatpush1.bf16.msra.mxu0 0
    %6069 = vmatprep.subr.bf16.mxu0 0
    %6070 = vmatpush1.bf16.msra.mxu0 0
    %6071 = vmatprep.subr.bf16.mxu0 %v5884
    %6072 = vmatpush1.bf16.msra.mxu0 %v5883
    %6073 = vmatprep.subr.bf16.mxu0 %v5878
    %6074 = vmatpush1.bf16.msra.mxu0 %v5877
    %6075 = vmatprep.subr.bf16.mxu0 0
    %6076 = vmatpush2.bf16.msra.mxu0 0
    %6077 = vmatprep.subr.bf16.mxu0 0
    %6078 = vmatpush2.bf16.msra.mxu0 0
    %6079 = vmatprep.subr.bf16.mxu0 0
    %6080 = vmatpush2.bf16.msra.mxu0 0
    %6081 = vmatprep.subr.bf16.mxu0 0
    %6082 = vmatpush2.bf16.msra.mxu0 0
    %6083 = vmatprep.subr.bf16.mxu0 0
    %6084 = vmatpush2.bf16.msra.mxu0 0
    %6085 = vmatprep.subr.bf16.mxu0 0
    %6086 = vmatpush2.bf16.msra.mxu0 0
    %6087 = vmatprep.subr.bf16.mxu0 0
    %6088 = vmatpush2.bf16.msra.mxu0 0
    %6089 = vmatprep.subr.bf16.mxu0 0
    %6090 = vmatpush2.bf16.msra.mxu0 0
    %6091 = vmatprep.mubr.bf16.mxu0 0
    %6092 = vmatmul.mubr.bf16.gmra.mxu0 %v6016
    %v6093 = vpop.f32.mrf.mxu0
    %v6094 = vadd.f32 %v5968, %v6093
    %v6095 = vpop.f32.mrf.mxu0
    %v6096 = vadd.f32 %v5970, %v6095
    %v6097 = vpop.f32.mrf.mxu0
    %v6098 = vpop.f32.mrf.mxu0
    %6099 = vdwg.mxu0
    %6100 = vmatprep.subr.bf16.mxu0 0
    %6101 = vmatpush1.bf16.msra.mxu0 0
    %6102 = vmatprep.subr.bf16.mxu0 0
    %6103 = vmatpush1.bf16.msra.mxu0 0
    %6104 = vmatprep.subr.bf16.mxu0 0
    %6105 = vmatpush1.bf16.msra.mxu0 0
    %6106 = vmatprep.subr.bf16.mxu0 0
    %6107 = vmatpush1.bf16.msra.mxu0 0
    %6108 = vmatprep.subr.bf16.mxu0 0
    %6109 = vmatpush1.bf16.msra.mxu0 0
    %6110 = vmatprep.subr.bf16.mxu0 0
    %6111 = vmatpush1.bf16.msra.mxu0 0
    %6112 = vmatprep.subr.bf16.mxu0 %v5886
    %6113 = vmatpush1.bf16.msra.mxu0 %v5885
    %6114 = vmatprep.subr.bf16.mxu0 %v5880
    %6115 = vmatpush1.bf16.msra.mxu0 %v5879
    %6116 = vmatprep.subr.bf16.mxu0 0
    %6117 = vmatpush2.bf16.msra.mxu0 0
    %6118 = vmatprep.subr.bf16.mxu0 0
    %6119 = vmatpush2.bf16.msra.mxu0 0
    %6120 = vmatprep.subr.bf16.mxu0 0
    %6121 = vmatpush2.bf16.msra.mxu0 0
    %6122 = vmatprep.subr.bf16.mxu0 0
    %6123 = vmatpush2.bf16.msra.mxu0 0
    %6124 = vmatprep.subr.bf16.mxu0 0
    %6125 = vmatpush2.bf16.msra.mxu0 0
    %6126 = vmatprep.subr.bf16.mxu0 0
    %6127 = vmatpush2.bf16.msra.mxu0 0
    %6128 = vmatprep.subr.bf16.mxu0 0
    %6129 = vmatpush2.bf16.msra.mxu0 0
    %6130 = vmatprep.subr.bf16.mxu0 0
    %6131 = vmatpush2.bf16.msra.mxu0 0
    %6132 = vmatprep.mubr.bf16.mxu0 0
    %6133 = vmatmul.mubr.bf16.gmra.mxu0 %v6016
    %v6134 = vpop.f32.mrf.mxu0
    %v6135 = vadd.f32 %v6009, %v6134
    %v6136 = vpop.f32.mrf.mxu0
    %v6137 = vadd.f32 %v6011, %v6136
    %v6138 = vpop.f32.mrf.mxu0
    %v6139 = vpop.f32.mrf.mxu0
    %6140 = vdwg.mxu0
    %v6141 = vld [vmem:[%s8] sm:$0xf]
    %6143 = vset.pattern.permute.xlu0 0
    %6144 = vperm.xlu0 %6143, %v6141
    %v6145 = vpop.permute.xlu0 %6144
    %v6147 = vadd.f32 %v6053, %v6145
    %v6148 = vadd.f32 %v6055, %v6145
    %v6149 = vadd.f32 %v6094, %v6145
    %v6150 = vadd.f32 %v6096, %v6145
    %v6151 = vadd.f32 %v6135, %v6145
    %v6152 = vadd.f32 %v6137, %v6145
    %v6153 = vmax.f32 %v6147, 0.0
    %v6154 = vmax.f32 %v6148, 0.0
    %v6155 = vmax.f32 %v6149, 0.0
    %v6156 = vmax.f32 %v6150, 0.0
    %v6157 = vmax.f32 %v6151, 0.0
    %v6158 = vmax.f32 %v6152, 0.0
    %v6159 = vand.u32 2147483647, %v6147
    %v6160 = vand.u32 2147483647, %v6148
    %v6161 = vand.u32 2147483647, %v6149
    %v6162 = vand.u32 2147483647, %v6150
    %v6163 = vand.u32 2147483647, %v6151
    %v6164 = vand.u32 2147483647, %v6152
    %v6165 = vsub.f32 0.0, %v6159
    %v6166 = vsub.f32 0.0, %v6160
    %v6167 = vsub.f32 0.0, %v6161
    %v6168 = vsub.f32 0.0, %v6162
    %v6169 = vsub.f32 0.0, %v6163
    %v6170 = vsub.f32 0.0, %v6164
    %v6171 = vmul.f32 %v6165, 1.442695
    %v6172 = vpow.pop %v6171
    %v6173 = vmul.f32 %v6166, 1.442695
    %v6174 = vpow.pop %v6173
    %v6175 = vmul.f32 %v6167, 1.442695
    %v6176 = vpow.pop %v6175
    %v6177 = vmul.f32 %v6168, 1.442695
    %v6178 = vpow.pop %v6177
    %v6179 = vmul.f32 %v6169, 1.442695
    %v6180 = vpow.pop %v6179
    %v6181 = vmul.f32 %v6170, 1.442695
    %v6182 = vpow.pop %v6181
    %v6183 = vadd.f32 %v6172, 1.0
    %v6184 = vadd.f32 %v6174, 1.0
    %v6185 = vadd.f32 %v6176, 1.0
    %v6186 = vadd.f32 %v6178, 1.0
    %v6187 = vadd.f32 %v6180, 1.0
    %v6188 = vadd.f32 %v6182, 1.0
    %v6189 = vlog2.pop %v6183
    %v6190 = vmul.f32 %v6189, 0.6931472
    %v6191 = vlog2.pop %v6184
    %v6192 = vmul.f32 %v6191, 0.6931472
    %v6193 = vlog2.pop %v6185
    %v6194 = vmul.f32 %v6193, 0.6931472
    %v6195 = vlog2.pop %v6186
    %v6196 = vmul.f32 %v6195, 0.6931472
    %v6197 = vlog2.pop %v6187
    %v6198 = vmul.f32 %v6197, 0.6931472
    %v6199 = vlog2.pop %v6188
    %v6200 = vmul.f32 %v6199, 0.6931472
    %v6201 = vadd.f32 %v6153, %v6190
    %v6202 = vadd.f32 %v6154, %v6192
    %v6203 = vadd.f32 %v6155, %v6194
    %v6204 = vadd.f32 %v6156, %v6196
    %v6205 = vadd.f32 %v6157, %v6198
    %v6206 = vadd.f32 %v6158, %v6200
    %v6207 = vlaneseq
    %v6208 = vshrl.u32 %v6207, 7
    %vm6209 = vcmp.lt.s32.totalorder %v6208, 3
    %v6210 = vmul.f32 %v6201, 1.002
    %v6211 = vmul.f32 %v6202, 1.002
    %v6212 = vmul.f32 %v6203, 1.002
    %v6213 = vmul.f32 %v6204, 1.002
    %v6214 = vmul.f32 %v6205, 1.002
    %v6215 = vmul.f32 %v6206, 1.002
    %v6216 = vsub.f32 %v6210, 0.001
    %v6217 = vsub.f32 %v6211, 0.001
    %v6218 = vsub.f32 %v6212, 0.001
    %v6219 = vsub.f32 %v6213, 0.001
    %v6220 = vsub.f32 %v6214, 0.001
    %v6221 = vsub.f32 %v6215, 0.001
    %v6222 = vsel %vm6209, %v6216, %v6201
    %v6223 = vsel %vm6209, %v6217, %v6202
    %v6224 = vsel %vm6209, %v6218, %v6203
    %v6225 = vsel %vm6209, %v6219, %v6204
    %v6226 = vsel %vm6209, %v6220, %v6205
    %v6227 = vsel %vm6209, %v6221, %v6206
    %v6234 = vcombine.low %v6222, %v6223
    %v6235 = vcombine.low %v6224, %v6225
    %v6236 = vcombine.low %v6226, %v6227
    %6240 = vst [vmem:[#allocation2] sm:$0xff] %v6234
    %6241 = vst [vmem:[#allocation2 + $0x8] sm:$0xff] %v6235
    %6242 = vst [vmem:[#allocation2 + $0x10] sm:$0xff] %v6236
    // Predicated region
    $region38: #{tpu_custom_call.1} parent=1 // pred_check
      _
    $region39: #{tpu_custom_call.1} parent=1 // pred_check_branch
      %6244 = sbr.rel (0) target = $region41
    $region40: #{tpu_custom_call.1} parent=1 // pred_region
      %s6246 = ssub.s32 384, 384
      %6247 = vsyncadd [#allocation3], %s6246
      %s6249 = sshll.u32 [#allocation2], 4
      %s6250 = int_to_ptr.vmem [resolvable:$true] %s6249
      %6252 = dma.vmem_to_hbm [thread:$0]  %s6250, 384, %s9, [#allocation3]
    $region41: #{tpu_custom_call.1} parent=1 // pred_fallthru
      _
    // Predicated region
    $region42: #{tpu_custom_call.1} parent=1 // pred_check
      _
    $region43: #{tpu_custom_call.1} parent=1 // pred_check_branch
      %6254 = sbr.rel (0) target = $region45
    $region44: #{tpu_custom_call.1} parent=1 // pred_region
      %6255 = dma.done [#allocation3], 384
    $region45: #{tpu_custom_call.1} parent=1 // pred_fallthru
      _
    %6256 = vsyncpa [#allocation3], 1

</llo_original>
